<compile_context>
chip_gen: v7x
topology: tpu7x:2x2x1
jax: 0.10.0
libtpu: 0.0.40
codegen_flags: <defaults>
</compile_context>

<pallas_src>
import functools

import jax
import jax.numpy as jnp
from jax.experimental import pallas as pl
from jax.experimental.pallas import tpu as pltpu

EPS = 1e-5
NPAD = 128  # output-channel padding (lane width -> unmasked stores, full MXU width)


def _valid_col_mask(L, Wp, W):
    """(L, 1) f32 mask: 1.0 where flat index q = h*Wp + w has w < W.
    Built in-kernel from an iota; q//Wp is recovered with a float reciprocal
    (the +0.5 keeps floor() exact for all q < L), avoiding vector int div/mod."""
    q = jax.lax.broadcasted_iota(jnp.int32, (L, 1), 0).astype(jnp.float32)
    row = jnp.floor((q + 0.5) * (1.0 / Wp))
    col = q - row * Wp
    return (col < (W - 0.5)).astype(jnp.float32)


# ----------------- kernel 1: conv1 (single K=9*Cin dot) + per-image BN partial stats -----------------

def _conv1_stats_kernel(x_ref, w_ref, y_ref, sum_ref, sq_ref, *, L, Wp, W):
    # x_ref: (1, L, 9*Cin) bf16 (taps pre-concatenated), w_ref: (9*Cin, NPAD) bf16
    acc = jnp.dot(x_ref[0], w_ref[...], preferred_element_type=jnp.float32)   # (L, NPAD) f32
    y_ref[0] = acc.astype(y_ref.dtype)                                        # bf16 store

    m = _valid_col_mask(L, Wp, W)
    av = acc * m
    sum_ref[0] = jnp.sum(av, axis=0, keepdims=True)
    sq_ref[0] = jnp.sum(av * av, axis=0, keepdims=True)


def conv1_stats(x1cat, w1, *, H, W):
    B, L, K1 = x1cat.shape
    Wp = W + 2
    kernel = functools.partial(_conv1_stats_kernel, L=L, Wp=Wp, W=W)
    grid_spec = pltpu.PrefetchScalarGridSpec(
        num_scalar_prefetch=0,
        grid=(B,),
        in_specs=[
            pl.BlockSpec((1, L, K1), lambda b: (b, 0, 0)),     # image b, taps concatenated
            pl.BlockSpec((K1, NPAD), lambda b: (0, 0)),        # weights, resident
        ],
        out_specs=[
            pl.BlockSpec((1, L, NPAD), lambda b: (b, 0, 0)),   # pre-BN conv output (bf16)
            pl.BlockSpec((1, 1, NPAD), lambda b: (b, 0, 0)),   # per-image sum
            pl.BlockSpec((1, 1, NPAD), lambda b: (b, 0, 0)),   # per-image sum of squares
        ],
    )
    return pl.pallas_call(
        kernel,
        out_shape=(jax.ShapeDtypeStruct((B, L, NPAD), jnp.bfloat16),
                   jax.ShapeDtypeStruct((B, 1, NPAD), jnp.float32),
                   jax.ShapeDtypeStruct((B, 1, NPAD), jnp.float32)),
        grid_spec=grid_spec,
        compiler_params=pltpu.CompilerParams(dimension_semantics=("parallel",)),
    )(x1cat, w1)


# --------- kernel 2: fused [BN1 + ReLU + halo re-pad] prologue -> conv2 (K=1152 dot) + stats ---------

def _conv2_fused_kernel(y1_ref, sc_ref, sh_ref, w_ref,
                        y2_ref, sum_ref, sq_ref, x2_buf, *, L, Lp, Wp, W):
    m = _valid_col_mask(L, Wp, W)

    # Fused conv1 epilogue: BN + ReLU, zero the two garbage columns per row, and
    # place the result at flat offset Wp+1 of the zero-padded conv2 input buffer
    # (the masked columns become the exact left/right spatial halo of conv2).
    z1 = jnp.maximum(y1_ref[0].astype(jnp.float32) * sc_ref[...] + sh_ref[...], 0.0) * m
    tail = Lp - L - (Wp + 1)
    x2_buf[pl.ds(0, Wp + 1), :] = jnp.zeros((Wp + 1, NPAD), x2_buf.dtype)
    x2_buf[pl.ds(Wp + 1 + L, tail), :] = jnp.zeros((tail, NPAD), x2_buf.dtype)
    x2_buf[pl.ds(Wp + 1, L), :] = z1.astype(x2_buf.dtype)

    # 3x3 conv as one K = 9*NPAD bf16 dot on lane-aligned concatenated shifted views.
    taps = [x2_buf[pl.ds(dy * Wp + dx, L), :] for dy in range(3) for dx in range(3)]
    lhs = jnp.concatenate(taps, axis=-1)                                       # (L, 9*NPAD)
    acc = jnp.dot(lhs, w_ref[...], preferred_element_type=jnp.float32)         # (L, NPAD) f32
    y2_ref[0] = acc.astype(y2_ref.dtype)

    av = acc * m
    sum_ref[0] = jnp.sum(av, axis=0, keepdims=True)
    sq_ref[0] = jnp.sum(av * av, axis=0, keepdims=True)


def conv2_fused_stats(y1_raw, scale1, shift1, w2, *, H, W):
    B, L, _ = y1_raw.shape
    Wp = W + 2
    Lp = (H + 3) * Wp
    kernel = functools.partial(_conv2_fused_kernel, L=L, Lp=Lp, Wp=Wp, W=W)
    grid_spec = pltpu.PrefetchScalarGridSpec(
        num_scalar_prefetch=0,
        grid=(B,),
        in_specs=[
            pl.BlockSpec((1, L, NPAD), lambda b: (b, 0, 0)),    # conv1 pre-BN output (bf16)
            pl.BlockSpec((1, NPAD), lambda b: (0, 0)),          # BN1 scale
            pl.BlockSpec((1, NPAD), lambda b: (0, 0)),          # BN1 shift
            pl.BlockSpec((9 * NPAD, NPAD), lambda b: (0, 0)),   # conv2 weights, resident
        ],
        out_specs=[
            pl.BlockSpec((1, L, NPAD), lambda b: (b, 0, 0)),
            pl.BlockSpec((1, 1, NPAD), lambda b: (b, 0, 0)),
            pl.BlockSpec((1, 1, NPAD), lambda b: (b, 0, 0)),
        ],
        scratch_shapes=[pltpu.VMEM((Lp, NPAD), jnp.bfloat16)],  # padded conv2 input
    )
    return pl.pallas_call(
        kernel,
        out_shape=(jax.ShapeDtypeStruct((B, L, NPAD), jnp.bfloat16),
                   jax.ShapeDtypeStruct((B, 1, NPAD), jnp.float32),
                   jax.ShapeDtypeStruct((B, 1, NPAD), jnp.float32)),
        grid_spec=grid_spec,
        compiler_params=pltpu.CompilerParams(dimension_semantics=("parallel",)),
    )(y1_raw, scale1, shift1, w2)


# -------------- kernel 3: BN2 apply + ReLU + fused 2x2 max-pool (whole image per step) --------------

def _bn_relu_pool_kernel(y_ref, sc_ref, sh_ref, xo_ref, p_ref, *, H, W, Wp):
    Ho, Wo = H // 2, W // 2
    sc = sc_ref[...]
    sh = sh_ref[...]
    # merged even/odd column selector, built once per grid step:
    # rows 0..Wo-1 select even cols, rows Wo..2*Wo-1 select odd cols
    r = jax.lax.broadcasted_iota(jnp.int32, (2 * Wo, Wp), 0)
    c = jax.lax.broadcasted_iota(jnp.int32, (2 * Wo, Wp), 1)
    sel = (((r < Wo) & (c == 2 * r)) |
           ((r >= Wo) & (c == 2 * (r - Wo) + 1))).astype(jnp.float32)

    for i in range(Ho):                                          # static, whole image per step
        y = y_ref[0, pl.ds(2 * i * Wp, 2 * Wp), :].astype(jnp.float32)   # (2*Wp, NPAD)
        z = jnp.maximum(y * sc + sh, 0.0)
        xo_ref[0, pl.ds(2 * i * Wp, 2 * Wp), :] = z.astype(xo_ref.dtype)
        zh = jnp.maximum(z[:Wp], z[Wp:])                                  # h-pair max, (Wp, NPAD)
        pe = jnp.dot(sel, zh, preferred_element_type=jnp.float32)        # (2*Wo, NPAD)
        p_ref[0, i] = jnp.maximum(pe[:Wo], pe[Wo:]).astype(p_ref.dtype)  # w-pair max


def bn_relu_pool(y2_raw, scale2, shift2, *, H, W):
    B, L, _ = y2_raw.shape
    Wp = W + 2
    Ho, Wo = H // 2, W // 2
    kernel = functools.partial(_bn_relu_pool_kernel, H=H, W=W, Wp=Wp)
    grid_spec = pltpu.PrefetchScalarGridSpec(
        num_scalar_prefetch=0,
        grid=(B,),
        in_specs=[
            pl.BlockSpec((1, L, NPAD), lambda b: (b, 0, 0)),
            pl.BlockSpec((1, NPAD), lambda b: (0, 0)),
            pl.BlockSpec((1, NPAD), lambda b: (0, 0)),
        ],
        out_specs=[
            pl.BlockSpec((1, L, NPAD), lambda b: (b, 0, 0)),
            pl.BlockSpec((1, Ho, Wo, NPAD), lambda b: (b, 0, 0, 0)),
        ],
    )
    return pl.pallas_call(
        kernel,
        out_shape=(jax.ShapeDtypeStruct((B, L, NPAD), jnp.bfloat16),
                   jax.ShapeDtypeStruct((B, Ho, Wo, NPAD), jnp.bfloat16)),
        grid_spec=grid_spec,
        compiler_params=pltpu.CompilerParams(dimension_semantics=("parallel",)),
    )(y2_raw, scale2, shift2)


# ---------------------------------- forward (JAX glue) ----------------------------------

def _finalize_bn(part_sum, part_sq, gamma, beta, count):
    """Fold per-image partial sums into a single (scale, shift) pair (tiny XLA ops)."""
    mean = jnp.sum(part_sum, axis=0) / count                    # (1, NPAD)
    var = jnp.sum(part_sq, axis=0) / count - mean * mean        # biased variance
    scale = gamma * jax.lax.rsqrt(var + EPS)
    shift = beta - mean * scale
    return scale, shift


@functools.partial(jax.jit, static_argnames=("cout",))
def encoder_block_forward(x_nchw, kp, *, cout):
    B, Cin, H, W = x_nchw.shape
    Wp, L, Lp = W + 2, H * (W + 2), (H + 3) * (W + 2)
    count = float(B * H * W)

    # NCHW -> NHWC, 1-px halo (+2 bottom slack rows for the flat-shift trick),
    # row-flatten, and pre-concatenate conv1's 9 shifted taps so the kernel issues
    # one K=9*Cin bf16 dot.  Cin is tiny, so this one-time concat is ~80 KB/image;
    # conv2's 9x concat (which would be ~0.6 MB/image) is built in VMEM instead.
    x = jnp.transpose(x_nchw, (0, 2, 3, 1))
    xf = jnp.pad(x, ((0, 0), (1, 2), (1, 1), (0, 0))).reshape(B, Lp, Cin)
    x1cat = jnp.concatenate(
        [xf[:, dy * Wp + dx: dy * Wp + dx + L, :] for dy in range(3) for dx in range(3)],
        axis=-1).astype(jnp.bfloat16)                                        # (B, L, 9*Cin)

    # conv1 (+ per-image BN partial stats); batch axis fully parallel
    y1_raw, s1, q1 = conv1_stats(x1cat, kp["w1"], H=H, W=W)
    scale1, shift1 = _finalize_bn(s1, q1, kp["g1"], kp["be1"], count)

    # conv2 with conv1's BN+ReLU+halo-re-pad fused into its prologue
    y2_raw, s2, q2 = conv2_fused_stats(y1_raw, scale1, shift1, kp["w2"], H=H, W=W)
    scale2, shift2 = _finalize_bn(s2, q2, kp["g2"], kp["be2"], count)

    # conv2 epilogue: BN + ReLU + fused 2x2 max-pool
    x_full, p_full = bn_relu_pool(y2_raw, scale2, shift2, H=H, W=W)

    x_out = jnp.transpose(
        x_full.reshape(B, H, Wp, NPAD)[:, :, :W, :cout], (0, 3, 1, 2)).astype(jnp.float32)
    p_out = jnp.transpose(p_full[:, :, :, :cout], (0, 3, 1, 2)).astype(jnp.float32)
    return x_out, p_out


# ---------------------------------- parameters ----------------------------------

def init_torch_params(key, cin, cout):
    """PyTorch-layout parameters (conv weight OIHW, bias, BN gamma/beta)."""
    k = jax.random.split(key, 8)
    return dict(
        w1=0.1 * jax.random.normal(k[0], (cout, cin, 3, 3), jnp.float32),
        b1=0.1 * jax.random.normal(k[1], (cout,), jnp.float32),
        w2=0.1 * jax.random.normal(k[2], (cout, cout, 3, 3), jnp.float32),
        b2=0.1 * jax.random.normal(k[3], (cout,), jnp.float32),
        g1=1.0 + 0.1 * jax.random.normal(k[4], (cout,), jnp.float32),
        be1=0.1 * jax.random.normal(k[5], (cout,), jnp.float32),
        g2=1.0 + 0.1 * jax.random.normal(k[6], (cout,), jnp.float32),
        be2=0.1 * jax.random.normal(k[7], (cout,), jnp.float32),
    )


def pack_params(tp, cin, cout):
    """Torch layout -> padded kernel layout.  Conv biases are dropped: the BN
    mean subtraction cancels them exactly."""
    del cout  # implied by array shapes

    def conv_w(w, cpad):
        o, i = w.shape[0], w.shape[1]
        w9 = jnp.transpose(w, (2, 3, 1, 0)).reshape(9, i, o)        # (tap, cin, cout)
        w9 = jnp.pad(w9, ((0, 0), (0, cpad - i), (0, NPAD - o)))
        return w9.reshape(9 * cpad, NPAD).astype(jnp.bfloat16)      # K = tap*cpad + c

    def vec(v):
        return jnp.pad(v, (0, NPAD - v.shape[0])).reshape(1, NPAD).astype(jnp.float32)

    return dict(
        w1=conv_w(tp["w1"], tp["w1"].shape[1]),   # K = 9*Cin, matches x1cat ordering
        w2=conv_w(tp["w2"], NPAD),                # K = 9*128, matches the VMEM concat
        g1=vec(tp["g1"]), be1=vec(tp["be1"]),
        g2=vec(tp["g2"]), be2=vec(tp["be2"]),
    )


# ------------------------------- pure-JAX fp32 reference -------------------------------

def _ref_conv_bn_relu(x_nhwc, w_oihw, bias, gamma, beta):
    B, H, W, C = x_nhwc.shape
    xp = jnp.pad(x_nhwc, ((0, 0), (1, 1), (1, 1), (0, 0)))
    cols = [xp[:, dy:dy + H, dx:dx + W, :] for dy in range(3) for dx in range(3)]
    X = jnp.concatenate(cols, axis=-1).reshape(B * H * W, 9 * C)
    Wm = jnp.transpose(w_oihw, (2, 3, 1, 0)).reshape(9 * C, -1)
    y = jnp.dot(X, Wm, precision=jax.lax.Precision.HIGHEST) + bias[None, :]
    mean = jnp.mean(y, axis=0, keepdims=True)
    var = jnp.mean(jnp.square(y - mean), axis=0, keepdims=True)
    y = (y - mean) * jax.lax.rsqrt(var + EPS) * gamma[None, :] + beta[None, :]
    return jnp.maximum(y, 0.0).reshape(B, H, W, -1)


def reference_forward(x_nchw, tp):
    B, Cin, H, W = x_nchw.shape
    x = jnp.transpose(x_nchw, (0, 2, 3, 1))
    y1 = _ref_conv_bn_relu(x, tp["w1"], tp["b1"], tp["g1"], tp["be1"])
    y2 = _ref_conv_bn_relu(y1, tp["w2"], tp["b2"], tp["g2"], tp["be2"])
    C = y2.shape[-1]
    p = y2.reshape(B, H // 2, 2, W // 2, 2, C).max(axis=(2, 4))
    return jnp.transpose(y2, (0, 3, 1, 2)), jnp.transpose(p, (0, 3, 1, 2))


# ----------------------------------------- main -----------------------------------------

if __name__ == "__main__":
    B, Cin, Cout, H, W = 2, 4, 8, 16, 16
    key = jax.random.PRNGKey(0)
    kx, kp = jax.random.split(key)
    x = jax.random.normal(kx, (B, Cin, H, W), jnp.float32)

    tparams = init_torch_params(kp, Cin, Cout)
    kparams = pack_params(tparams, Cin, Cout)

    x_out, p_out = encoder_block_forward(x, kparams, cout=Cout)
    jax.block_until_ready((x_out, p_out))

    assert x_out.shape == (B, Cout, H, W)
    assert p_out.shape == (B, Cout, H // 2, W // 2)

    x_ref, p_ref = reference_forward(x, tparams)
    # bf16 MXU operands + bf16 intermediates vs an fp32-HIGHEST reference: allow a
    # few e-2 of slack (observed error is ~1-3e-2 absolute after two BN layers).
    assert jnp.allclose(x_out, x_ref, atol=5e-2, rtol=5e-2), \
        float(jnp.max(jnp.abs(x_out - x_ref)))
    assert jnp.allclose(p_out, p_ref, atol=5e-2, rtol=5e-2), \
        float(jnp.max(jnp.abs(p_out - p_ref)))

    print("KERNEL_OK")
</pallas_src>

<mosaic_0001>
module attributes {stable_mosaic.version = 11 : i64} {
  func.func @_conv1_stats_kernel(%arg0: i32, %arg1: memref<1x288x36xbf16, #tpu.memory_space<vmem>>, %arg2: memref<36x128xbf16, #tpu.memory_space<vmem>>, %arg3: memref<1x288x128xbf16, #tpu.memory_space<vmem>>, %arg4: memref<1x1x128xf32, #tpu.memory_space<vmem>>, %arg5: memref<1x1x128xf32, #tpu.memory_space<vmem>>) attributes {dimension_semantics = [#tpu.dimension_semantics<parallel>], iteration_bounds = array<i64: 2>, scalar_prefetch = 0 : i64, scratch_operands = 0 : i64, tpu.core_type = #tpu.core_type<tc>, window_params = [{transform_indices = @transform_0, window_bounds = array<i64: 1, 288, 36>}, {pipeline_mode = #tpu.pipeline_mode<synchronous>, transform_indices = @transform_1, window_bounds = array<i64: 36, 128>}, {transform_indices = @transform_2, window_bounds = array<i64: 1, 288, 128>}, {transform_indices = @transform_3, window_bounds = array<i64: 1, 1, 128>}, {transform_indices = @transform_4, window_bounds = array<i64: 1, 1, 128>}]} {
    %c0 = arith.constant 0 : index
    %c0_0 = arith.constant 0 : index
    %c0_1 = arith.constant 0 : index
    %0 = vector.load %arg1[%c0, %c0_0, %c0_1] : memref<1x288x36xbf16, #tpu.memory_space<vmem>>, vector<1x288x36xbf16>
    %1 = vector.shape_cast %0 : vector<1x288x36xbf16> to vector<288x36xbf16>
    %c0_2 = arith.constant 0 : index
    %c0_3 = arith.constant 0 : index
    %2 = vector.load %arg2[%c0_2, %c0_3] : memref<36x128xbf16, #tpu.memory_space<vmem>>, vector<36x128xbf16>
    %cst = arith.constant dense<0.000000e+00> : vector<288x128xf32>
    %3 = tpu.matmul %1, %2, %cst {dimension_numbers = #tpu.dot_dimension_numbers<[1], [0], [0], [1], [0, 0, 1, 1], [], []>} : vector<288x36xbf16>, vector<36x128xbf16>, vector<288x128xf32> -> vector<288x128xf32>
    %4 = arith.truncf %3 : vector<288x128xf32> to vector<288x128xbf16>
    %c0_4 = arith.constant 0 : index
    %c0_5 = arith.constant 0 : index
    %c0_6 = arith.constant 0 : index
    %5 = vector.load %arg3[%c0_4, %c0_5, %c0_6] : memref<1x288x128xbf16, #tpu.memory_space<vmem>>, vector<1x288x128xbf16>
    %6 = vector.shape_cast %5 : vector<1x288x128xbf16> to vector<288x128xbf16>
    %7 = vector.shape_cast %4 : vector<288x128xbf16> to vector<1x288x128xbf16>
    tpu.vector_store %arg3[%c0_4, %c0_5, %c0_6], %7 {strides = array<i32>} : memref<1x288x128xbf16, #tpu.memory_space<vmem>>, vector<1x288x128xbf16>,
    %8 = tpu.iota {dimensions = array<i32: 0>} : vector<288x1xi32>
    %9 = arith.sitofp %8 : vector<288x1xi32> to vector<288x1xf32>
    %cst_7 = arith.constant 5.000000e-01 : f32
    %10 = vector.broadcast %cst_7 : f32 to vector<288x1xf32>
    %11 = arith.addf %9, %10 : vector<288x1xf32>
    %cst_8 = arith.constant 0.055555556 : f32
    %12 = vector.broadcast %cst_8 : f32 to vector<288x1xf32>
    %13 = arith.mulf %11, %12 : vector<288x1xf32>
    %14 = math.floor %13 : vector<288x1xf32>
    %cst_9 = arith.constant 1.800000e+01 : f32
    %15 = vector.broadcast %cst_9 : f32 to vector<288x1xf32>
    %16 = arith.mulf %14, %15 : vector<288x1xf32>
    %17 = arith.subf %9, %16 : vector<288x1xf32>
    %cst_10 = arith.constant 1.550000e+01 : f32
    %18 = vector.broadcast %cst_10 : f32 to vector<288x1xf32>
    %19 = arith.cmpf olt, %17, %18 : vector<288x1xf32>
    %20 = arith.extui %19 : vector<288x1xi1> to vector<288x1xi32>
    %21 = arith.sitofp %20 : vector<288x1xi32> to vector<288x1xf32>
    %22 = vector.broadcast %21 : vector<288x1xf32> to vector<288x128xf32>
    %23 = arith.mulf %3, %22 : vector<288x128xf32>
    %cst_11 = arith.constant dense<0.000000e+00> : vector<128xf32>
    %24 = vector.multi_reduction <add>, %23, %cst_11 [0] : vector<288x128xf32> to vector<128xf32>
    %25 = vector.shape_cast %24 : vector<128xf32> to vector<1x128xf32>
    %c0_12 = arith.constant 0 : index
    %c0_13 = arith.constant 0 : index
    %c0_14 = arith.constant 0 : index
    %26 = vector.load %arg4[%c0_12, %c0_13, %c0_14] : memref<1x1x128xf32, #tpu.memory_space<vmem>>, vector<1x1x128xf32>
    %27 = vector.shape_cast %26 : vector<1x1x128xf32> to vector<1x128xf32>
    %28 = vector.shape_cast %25 : vector<1x128xf32> to vector<1x1x128xf32>
    tpu.vector_store %arg4[%c0_12, %c0_13, %c0_14], %28 {strides = array<i32>} : memref<1x1x128xf32, #tpu.memory_space<vmem>>, vector<1x1x128xf32>,
    %29 = arith.mulf %23, %23 : vector<288x128xf32>
    %cst_15 = arith.constant dense<0.000000e+00> : vector<128xf32>
    %30 = vector.multi_reduction <add>, %29, %cst_15 [0] : vector<288x128xf32> to vector<128xf32>
    %31 = vector.shape_cast %30 : vector<128xf32> to vector<1x128xf32>
    %c0_16 = arith.constant 0 : index
    %c0_17 = arith.constant 0 : index
    %c0_18 = arith.constant 0 : index
    %32 = vector.load %arg5[%c0_16, %c0_17, %c0_18] : memref<1x1x128xf32, #tpu.memory_space<vmem>>, vector<1x1x128xf32>
    %33 = vector.shape_cast %32 : vector<1x1x128xf32> to vector<1x128xf32>
    %34 = vector.shape_cast %31 : vector<1x128xf32> to vector<1x1x128xf32>
    tpu.vector_store %arg5[%c0_16, %c0_17, %c0_18], %34 {strides = array<i32>} : memref<1x1x128xf32, #tpu.memory_space<vmem>>, vector<1x1x128xf32>,
    return
  }
  func.func @transform_0(%arg0: i32) -> (i32, i32, i32) {
    %c0_i32 = arith.constant 0 : i32
    %c0_i32_0 = arith.constant 0 : i32
    %c0_i32_1 = arith.constant 0 : i32
    return %arg0, %c0_i32, %c0_i32_0 : i32, i32, i32
  }
  func.func @transform_1(%arg0: i32) -> (i32, i32) {
    %c0_i32 = arith.constant 0 : i32
    %c0_i32_0 = arith.constant 0 : i32
    %c0_i32_1 = arith.constant 0 : i32
    return %c0_i32, %c0_i32_0 : i32, i32
  }
  func.func @transform_2(%arg0: i32) -> (i32, i32, i32) {
    %c0_i32 = arith.constant 0 : i32
    %c0_i32_0 = arith.constant 0 : i32
    %c0_i32_1 = arith.constant 0 : i32
    return %arg0, %c0_i32, %c0_i32_0 : i32, i32, i32
  }
  func.func @transform_3(%arg0: i32) -> (i32, i32, i32) {
    %c0_i32 = arith.constant 0 : i32
    %c0_i32_0 = arith.constant 0 : i32
    %c0_i32_1 = arith.constant 0 : i32
    return %arg0, %c0_i32, %c0_i32_0 : i32, i32, i32
  }
  func.func @transform_4(%arg0: i32) -> (i32, i32, i32) {
    %c0_i32 = arith.constant 0 : i32
    %c0_i32_0 = arith.constant 0 : i32
    %c0_i32_1 = arith.constant 0 : i32
    return %arg0, %c0_i32, %c0_i32_0 : i32, i32, i32
  }
}

module attributes {stable_mosaic.version = 11 : i64} {
  func.func @_conv2_fused_kernel(%arg0: i32, %arg1: memref<1x288x128xbf16, #tpu.memory_space<vmem>>, %arg2: memref<1x128xf32, #tpu.memory_space<vmem>>, %arg3: memref<1x128xf32, #tpu.memory_space<vmem>>, %arg4: memref<1152x128xbf16, #tpu.memory_space<vmem>>, %arg5: memref<1x288x128xbf16, #tpu.memory_space<vmem>>, %arg6: memref<1x1x128xf32, #tpu.memory_space<vmem>>, %arg7: memref<1x1x128xf32, #tpu.memory_space<vmem>>, %arg8: memref<342x128xbf16, #tpu.memory_space<vmem>>) attributes {dimension_semantics = [#tpu.dimension_semantics<parallel>], iteration_bounds = array<i64: 2>, scalar_prefetch = 0 : i64, scratch_operands = 1 : i64, tpu.core_type = #tpu.core_type<tc>, window_params = [{transform_indices = @transform_0, window_bounds = array<i64: 1, 288, 128>}, {pipeline_mode = #tpu.pipeline_mode<synchronous>, transform_indices = @transform_1, window_bounds = array<i64: 1, 128>}, {pipeline_mode = #tpu.pipeline_mode<synchronous>, transform_indices = @transform_2, window_bounds = array<i64: 1, 128>}, {pipeline_mode = #tpu.pipeline_mode<synchronous>, transform_indices = @transform_3, window_bounds = array<i64: 1152, 128>}, {transform_indices = @transform_4, window_bounds = array<i64: 1, 288, 128>}, {transform_indices = @transform_5, window_bounds = array<i64: 1, 1, 128>}, {transform_indices = @transform_6, window_bounds = array<i64: 1, 1, 128>}]} {
    %0 = tpu.iota {dimensions = array<i32: 0>} : vector<288x1xi32>
    %1 = arith.sitofp %0 : vector<288x1xi32> to vector<288x1xf32>
    %cst = arith.constant 5.000000e-01 : f32
    %2 = vector.broadcast %cst : f32 to vector<288x1xf32>
    %3 = arith.addf %1, %2 : vector<288x1xf32>
    %cst_0 = arith.constant 0.055555556 : f32
    %4 = vector.broadcast %cst_0 : f32 to vector<288x1xf32>
    %5 = arith.mulf %3, %4 : vector<288x1xf32>
    %6 = math.floor %5 : vector<288x1xf32>
    %cst_1 = arith.constant 1.800000e+01 : f32
    %7 = vector.broadcast %cst_1 : f32 to vector<288x1xf32>
    %8 = arith.mulf %6, %7 : vector<288x1xf32>
    %9 = arith.subf %1, %8 : vector<288x1xf32>
    %cst_2 = arith.constant 1.550000e+01 : f32
    %10 = vector.broadcast %cst_2 : f32 to vector<288x1xf32>
    %11 = arith.cmpf olt, %9, %10 : vector<288x1xf32>
    %12 = arith.extui %11 : vector<288x1xi1> to vector<288x1xi32>
    %13 = arith.sitofp %12 : vector<288x1xi32> to vector<288x1xf32>
    %c0 = arith.constant 0 : index
    %c0_3 = arith.constant 0 : index
    %c0_4 = arith.constant 0 : index
    %14 = vector.load %arg1[%c0, %c0_3, %c0_4] : memref<1x288x128xbf16, #tpu.memory_space<vmem>>, vector<1x288x128xbf16>
    %15 = vector.shape_cast %14 : vector<1x288x128xbf16> to vector<288x128xbf16>
    %16 = arith.extf %15 : vector<288x128xbf16> to vector<288x128xf32>
    %c0_5 = arith.constant 0 : index
    %c0_6 = arith.constant 0 : index
    %17 = vector.load %arg2[%c0_5, %c0_6] : memref<1x128xf32, #tpu.memory_space<vmem>>, vector<1x128xf32>
    %18 = vector.broadcast %17 : vector<1x128xf32> to vector<288x128xf32>
    %19 = arith.mulf %16, %18 : vector<288x128xf32>
    %c0_7 = arith.constant 0 : index
    %c0_8 = arith.constant 0 : index
    %20 = vector.load %arg3[%c0_7, %c0_8] : memref<1x128xf32, #tpu.memory_space<vmem>>, vector<1x128xf32>
    %21 = vector.broadcast %20 : vector<1x128xf32> to vector<288x128xf32>
    %22 = arith.addf %19, %21 : vector<288x128xf32>
    %cst_9 = arith.constant 0.000000e+00 : f32
    %23 = vector.broadcast %cst_9 : f32 to vector<288x128xf32>
    %24 = arith.maximumf %22, %23 : vector<288x128xf32>
    %25 = vector.broadcast %13 : vector<288x1xf32> to vector<288x128xf32>
    %26 = arith.mulf %24, %25 : vector<288x128xf32>
    %cst_10 = arith.constant 0.000000e+00 : bf16
    %27 = vector.broadcast %cst_10 : bf16 to vector<19x128xbf16>
    %c0_11 = arith.constant 0 : index
    %c0_12 = arith.constant 0 : index
    %28 = vector.load %arg8[%c0_11, %c0_12] : memref<342x128xbf16, #tpu.memory_space<vmem>>, vector<19x128xbf16>
    tpu.vector_store %arg8[%c0_11, %c0_12], %27 {strides = array<i32>} : memref<342x128xbf16, #tpu.memory_space<vmem>>, vector<19x128xbf16>,
    %cst_13 = arith.constant 0.000000e+00 : bf16
    %29 = vector.broadcast %cst_13 : bf16 to vector<35x128xbf16>
    %c307 = arith.constant 307 : index
    %c0_14 = arith.constant 0 : index
    %30 = vector.load %arg8[%c307, %c0_14] : memref<342x128xbf16, #tpu.memory_space<vmem>>, vector<35x128xbf16>
    tpu.vector_store %arg8[%c307, %c0_14], %29 {strides = array<i32>} : memref<342x128xbf16, #tpu.memory_space<vmem>>, vector<35x128xbf16>,
    %31 = arith.truncf %26 : vector<288x128xf32> to vector<288x128xbf16>
    %c19 = arith.constant 19 : index
    %c0_15 = arith.constant 0 : index
    %32 = vector.load %arg8[%c19, %c0_15] : memref<342x128xbf16, #tpu.memory_space<vmem>>, vector<288x128xbf16>
    tpu.vector_store %arg8[%c19, %c0_15], %31 {strides = array<i32>} : memref<342x128xbf16, #tpu.memory_space<vmem>>, vector<288x128xbf16>,
    %c0_16 = arith.constant 0 : index
    %c0_17 = arith.constant 0 : index
    %33 = vector.load %arg8[%c0_16, %c0_17] : memref<342x128xbf16, #tpu.memory_space<vmem>>, vector<288x128xbf16>
    %c1 = arith.constant 1 : index
    %c0_18 = arith.constant 0 : index
    %34 = vector.load %arg8[%c1, %c0_18] : memref<342x128xbf16, #tpu.memory_space<vmem>>, vector<288x128xbf16>
    %c2 = arith.constant 2 : index
    %c0_19 = arith.constant 0 : index
    %35 = vector.load %arg8[%c2, %c0_19] : memref<342x128xbf16, #tpu.memory_space<vmem>>, vector<288x128xbf16>
    %c18 = arith.constant 18 : index
    %c0_20 = arith.constant 0 : index
    %36 = vector.load %arg8[%c18, %c0_20] : memref<342x128xbf16, #tpu.memory_space<vmem>>, vector<288x128xbf16>
    %c19_21 = arith.constant 19 : index
    %c0_22 = arith.constant 0 : index
    %37 = vector.load %arg8[%c19_21, %c0_22] : memref<342x128xbf16, #tpu.memory_space<vmem>>, vector<288x128xbf16>
    %c20 = arith.constant 20 : index
    %c0_23 = arith.constant 0 : index
    %38 = vector.load %arg8[%c20, %c0_23] : memref<342x128xbf16, #tpu.memory_space<vmem>>, vector<288x128xbf16>
    %c36 = arith.constant 36 : index
    %c0_24 = arith.constant 0 : index
    %39 = vector.load %arg8[%c36, %c0_24] : memref<342x128xbf16, #tpu.memory_space<vmem>>, vector<288x128xbf16>
    %c37 = arith.constant 37 : index
    %c0_25 = arith.constant 0 : index
    %40 = vector.load %arg8[%c37, %c0_25] : memref<342x128xbf16, #tpu.memory_space<vmem>>, vector<288x128xbf16>
    %c38 = arith.constant 38 : index
    %c0_26 = arith.constant 0 : index
    %41 = vector.load %arg8[%c38, %c0_26] : memref<342x128xbf16, #tpu.memory_space<vmem>>, vector<288x128xbf16>
    %42 = tpu.concatenate %33, %34, %35, %36, %37, %38, %39, %40, %41 in 1 : vector<288x128xbf16>, vector<288x128xbf16>, vector<288x128xbf16>, vector<288x128xbf16>, vector<288x128xbf16>, vector<288x128xbf16>, vector<288x128xbf16>, vector<288x128xbf16>, vector<288x128xbf16> -> vector<288x1152xbf16>
    %c0_27 = arith.constant 0 : index
    %c0_28 = arith.constant 0 : index
    %43 = vector.load %arg4[%c0_27, %c0_28] : memref<1152x128xbf16, #tpu.memory_space<vmem>>, vector<1152x128xbf16>
    %cst_29 = arith.constant dense<0.000000e+00> : vector<288x128xf32>
    %44 = tpu.matmul %42, %43, %cst_29 {dimension_numbers = #tpu.dot_dimension_numbers<[1], [0], [0], [1], [0, 0, 1, 1], [], []>} : vector<288x1152xbf16>, vector<1152x128xbf16>, vector<288x128xf32> -> vector<288x128xf32>
    %45 = arith.truncf %44 : vector<288x128xf32> to vector<288x128xbf16>
    %c0_30 = arith.constant 0 : index
    %c0_31 = arith.constant 0 : index
    %c0_32 = arith.constant 0 : index
    %46 = vector.load %arg5[%c0_30, %c0_31, %c0_32] : memref<1x288x128xbf16, #tpu.memory_space<vmem>>, vector<1x288x128xbf16>
    %47 = vector.shape_cast %46 : vector<1x288x128xbf16> to vector<288x128xbf16>
    %48 = vector.shape_cast %45 : vector<288x128xbf16> to vector<1x288x128xbf16>
    tpu.vector_store %arg5[%c0_30, %c0_31, %c0_32], %48 {strides = array<i32>} : memref<1x288x128xbf16, #tpu.memory_space<vmem>>, vector<1x288x128xbf16>,
    %49 = vector.broadcast %13 : vector<288x1xf32> to vector<288x128xf32>
    %50 = arith.mulf %44, %49 : vector<288x128xf32>
    %cst_33 = arith.constant dense<0.000000e+00> : vector<128xf32>
    %51 = vector.multi_reduction <add>, %50, %cst_33 [0] : vector<288x128xf32> to vector<128xf32>
    %52 = vector.shape_cast %51 : vector<128xf32> to vector<1x128xf32>
    %c0_34 = arith.constant 0 : index
    %c0_35 = arith.constant 0 : index
    %c0_36 = arith.constant 0 : index
    %53 = vector.load %arg6[%c0_34, %c0_35, %c0_36] : memref<1x1x128xf32, #tpu.memory_space<vmem>>, vector<1x1x128xf32>
    %54 = vector.shape_cast %53 : vector<1x1x128xf32> to vector<1x128xf32>
    %55 = vector.shape_cast %52 : vector<1x128xf32> to vector<1x1x128xf32>
    tpu.vector_store %arg6[%c0_34, %c0_35, %c0_36], %55 {strides = array<i32>} : memref<1x1x128xf32, #tpu.memory_space<vmem>>, vector<1x1x128xf32>,
    %56 = arith.mulf %50, %50 : vector<288x128xf32>
    %cst_37 = arith.constant dense<0.000000e+00> : vector<128xf32>
    %57 = vector.multi_reduction <add>, %56, %cst_37 [0] : vector<288x128xf32> to vector<128xf32>
    %58 = vector.shape_cast %57 : vector<128xf32> to vector<1x128xf32>
    %c0_38 = arith.constant 0 : index
    %c0_39 = arith.constant 0 : index
    %c0_40 = arith.constant 0 : index
    %59 = vector.load %arg7[%c0_38, %c0_39, %c0_40] : memref<1x1x128xf32, #tpu.memory_space<vmem>>, vector<1x1x128xf32>
    %60 = vector.shape_cast %59 : vector<1x1x128xf32> to vector<1x128xf32>
    %61 = vector.shape_cast %58 : vector<1x128xf32> to vector<1x1x128xf32>
    tpu.vector_store %arg7[%c0_38, %c0_39, %c0_40], %61 {strides = array<i32>} : memref<1x1x128xf32, #tpu.memory_space<vmem>>, vector<1x1x128xf32>,
    return
  }
  func.func @transform_0(%arg0: i32) -> (i32, i32, i32) {
    %c0_i32 = arith.constant 0 : i32
    %c0_i32_0 = arith.constant 0 : i32
    %c0_i32_1 = arith.constant 0 : i32
    return %arg0, %c0_i32, %c0_i32_0 : i32, i32, i32
  }
  func.func @transform_1(%arg0: i32) -> (i32, i32) {
    %c0_i32 = arith.constant 0 : i32
    %c0_i32_0 = arith.constant 0 : i32
    %c0_i32_1 = arith.constant 0 : i32
    return %c0_i32, %c0_i32_0 : i32, i32
  }
  func.func @transform_2(%arg0: i32) -> (i32, i32) {
    %c0_i32 = arith.constant 0 : i32
    %c0_i32_0 = arith.constant 0 : i32
    %c0_i32_1 = arith.constant 0 : i32
    return %c0_i32, %c0_i32_0 : i32, i32
  }
  func.func @transform_3(%arg0: i32) -> (i32, i32) {
    %c0_i32 = arith.constant 0 : i32
    %c0_i32_0 = arith.constant 0 : i32
    %c0_i32_1 = arith.constant 0 : i32
    return %c0_i32, %c0_i32_0 : i32, i32
  }
  func.func @transform_4(%arg0: i32) -> (i32, i32, i32) {
    %c0_i32 = arith.constant 0 : i32
    %c0_i32_0 = arith.constant 0 : i32
    %c0_i32_1 = arith.constant 0 : i32
    return %arg0, %c0_i32, %c0_i32_0 : i32, i32, i32
  }
  func.func @transform_5(%arg0: i32) -> (i32, i32, i32) {
    %c0_i32 = arith.constant 0 : i32
    %c0_i32_0 = arith.constant 0 : i32
    %c0_i32_1 = arith.constant 0 : i32
    return %arg0, %c0_i32, %c0_i32_0 : i32, i32, i32
  }
  func.func @transform_6(%arg0: i32) -> (i32, i32, i32) {
    %c0_i32 = arith.constant 0 : i32
    %c0_i32_0 = arith.constant 0 : i32
    %c0_i32_1 = arith.constant 0 : i32
    return %arg0, %c0_i32, %c0_i32_0 : i32, i32, i32
  }
}

module attributes {stable_mosaic.version = 11 : i64} {
  func.func @_bn_relu_pool_kernel(%arg0: i32, %arg1: memref<1x288x128xbf16, #tpu.memory_space<vmem>>, %arg2: memref<1x128xf32, #tpu.memory_space<vmem>>, %arg3: memref<1x128xf32, #tpu.memory_space<vmem>>, %arg4: memref<1x288x128xbf16, #tpu.memory_space<vmem>>, %arg5: memref<1x8x8x128xbf16, #tpu.memory_space<vmem>>) attributes {dimension_semantics = [#tpu.dimension_semantics<parallel>], iteration_bounds = array<i64: 2>, scalar_prefetch = 0 : i64, scratch_operands = 0 : i64, tpu.core_type = #tpu.core_type<tc>, window_params = [{transform_indices = @transform_0, window_bounds = array<i64: 1, 288, 128>}, {pipeline_mode = #tpu.pipeline_mode<synchronous>, transform_indices = @transform_1, window_bounds = array<i64: 1, 128>}, {pipeline_mode = #tpu.pipeline_mode<synchronous>, transform_indices = @transform_2, window_bounds = array<i64: 1, 128>}, {transform_indices = @transform_3, window_bounds = array<i64: 1, 288, 128>}, {transform_indices = @transform_4, window_bounds = array<i64: 1, 8, 8, 128>}]} {
    %c0 = arith.constant 0 : index
    %c0_0 = arith.constant 0 : index
    %0 = vector.load %arg2[%c0, %c0_0] : memref<1x128xf32, #tpu.memory_space<vmem>>, vector<1x128xf32>
    %c0_1 = arith.constant 0 : index
    %c0_2 = arith.constant 0 : index
    %1 = vector.load %arg3[%c0_1, %c0_2] : memref<1x128xf32, #tpu.memory_space<vmem>>, vector<1x128xf32>
    %2 = tpu.iota {dimensions = array<i32: 0>} : vector<16x18xi32>
    %3 = tpu.iota {dimensions = array<i32: 1>} : vector<16x18xi32>
    %c8_i32 = arith.constant 8 : i32
    %4 = vector.broadcast %c8_i32 : i32 to vector<16x18xi32>
    %5 = arith.cmpi slt, %2, %4 : vector<16x18xi32>
    %c2_i32 = arith.constant 2 : i32
    %6 = vector.broadcast %c2_i32 : i32 to vector<16x18xi32>
    %7 = arith.muli %6, %2 : vector<16x18xi32>
    %8 = arith.cmpi eq, %3, %7 : vector<16x18xi32>
    %9 = arith.andi %5, %8 : vector<16x18xi1>
    %c8_i32_3 = arith.constant 8 : i32
    %10 = vector.broadcast %c8_i32_3 : i32 to vector<16x18xi32>
    %11 = arith.cmpi sge, %2, %10 : vector<16x18xi32>
    %c8_i32_4 = arith.constant 8 : i32
    %12 = vector.broadcast %c8_i32_4 : i32 to vector<16x18xi32>
    %13 = arith.subi %2, %12 : vector<16x18xi32>
    %c2_i32_5 = arith.constant 2 : i32
    %14 = vector.broadcast %c2_i32_5 : i32 to vector<16x18xi32>
    %15 = arith.muli %14, %13 : vector<16x18xi32>
    %c1_i32 = arith.constant 1 : i32
    %16 = vector.broadcast %c1_i32 : i32 to vector<16x18xi32>
    %17 = arith.addi %15, %16 : vector<16x18xi32>
    %18 = arith.cmpi eq, %3, %17 : vector<16x18xi32>
    %19 = arith.andi %11, %18 : vector<16x18xi1>
    %20 = arith.ori %9, %19 : vector<16x18xi1>
    %21 = arith.extui %20 : vector<16x18xi1> to vector<16x18xi32>
    %22 = arith.sitofp %21 : vector<16x18xi32> to vector<16x18xf32>
    %c0_6 = arith.constant 0 : index
    %c0_7 = arith.constant 0 : index
    %c0_8 = arith.constant 0 : index
    %23 = vector.load %arg1[%c0_6, %c0_7, %c0_8] : memref<1x288x128xbf16, #tpu.memory_space<vmem>>, vector<1x36x128xbf16>
    %24 = vector.shape_cast %23 : vector<1x36x128xbf16> to vector<36x128xbf16>
    %25 = arith.extf %24 : vector<36x128xbf16> to vector<36x128xf32>
    %26 = vector.broadcast %0 : vector<1x128xf32> to vector<36x128xf32>
    %27 = arith.mulf %25, %26 : vector<36x128xf32>
    %28 = vector.broadcast %1 : vector<1x128xf32> to vector<36x128xf32>
    %29 = arith.addf %27, %28 : vector<36x128xf32>
    %cst = arith.constant 0.000000e+00 : f32
    %30 = vector.broadcast %cst : f32 to vector<36x128xf32>
    %31 = arith.maximumf %29, %30 : vector<36x128xf32>
    %32 = arith.truncf %31 : vector<36x128xf32> to vector<36x128xbf16>
    %c0_9 = arith.constant 0 : index
    %c0_10 = arith.constant 0 : index
    %c0_11 = arith.constant 0 : index
    %33 = vector.load %arg4[%c0_9, %c0_10, %c0_11] : memref<1x288x128xbf16, #tpu.memory_space<vmem>>, vector<1x36x128xbf16>
    %34 = vector.shape_cast %33 : vector<1x36x128xbf16> to vector<36x128xbf16>
    %35 = vector.shape_cast %32 : vector<36x128xbf16> to vector<1x36x128xbf16>
    tpu.vector_store %arg4[%c0_9, %c0_10, %c0_11], %35 {strides = array<i32>} : memref<1x288x128xbf16, #tpu.memory_space<vmem>>, vector<1x36x128xbf16>,
    %36 = vector.extract_strided_slice %31 {offsets = [0, 0], sizes = [18, 128], strides = [1, 1]} : vector<36x128xf32> to vector<18x128xf32>
    %37 = vector.extract_strided_slice %31 {offsets = [18, 0], sizes = [18, 128], strides = [1, 1]} : vector<36x128xf32> to vector<18x128xf32>
    %38 = arith.maximumf %36, %37 : vector<18x128xf32>
    %cst_12 = arith.constant dense<0.000000e+00> : vector<16x128xf32>
    %39 = tpu.matmul %22, %38, %cst_12 {dimension_numbers = #tpu.dot_dimension_numbers<[1], [0], [0], [1], [0, 0, 1, 1], [], []>} : vector<16x18xf32>, vector<18x128xf32>, vector<16x128xf32> -> vector<16x128xf32>
    %40 = vector.extract_strided_slice %39 {offsets = [0, 0], sizes = [8, 128], strides = [1, 1]} : vector<16x128xf32> to vector<8x128xf32>
    %41 = vector.extract_strided_slice %39 {offsets = [8, 0], sizes = [8, 128], strides = [1, 1]} : vector<16x128xf32> to vector<8x128xf32>
    %42 = arith.maximumf %40, %41 : vector<8x128xf32>
    %43 = arith.truncf %42 : vector<8x128xf32> to vector<8x128xbf16>
    %c0_13 = arith.constant 0 : index
    %c0_14 = arith.constant 0 : index
    %c0_15 = arith.constant 0 : index
    %c0_16 = arith.constant 0 : index
    %44 = vector.load %arg5[%c0_13, %c0_14, %c0_15, %c0_16] : memref<1x8x8x128xbf16, #tpu.memory_space<vmem>>, vector<1x1x8x128xbf16>
    %45 = vector.shape_cast %44 : vector<1x1x8x128xbf16> to vector<8x128xbf16>
    %46 = vector.shape_cast %43 : vector<8x128xbf16> to vector<1x1x8x128xbf16>
    tpu.vector_store %arg5[%c0_13, %c0_14, %c0_15, %c0_16], %46 {strides = array<i32>} : memref<1x8x8x128xbf16, #tpu.memory_space<vmem>>, vector<1x1x8x128xbf16>,
    %c0_17 = arith.constant 0 : index
    %c36 = arith.constant 36 : index
    %c0_18 = arith.constant 0 : index
    %47 = vector.load %arg1[%c0_17, %c36, %c0_18] : memref<1x288x128xbf16, #tpu.memory_space<vmem>>, vector<1x36x128xbf16>
    %48 = vector.shape_cast %47 : vector<1x36x128xbf16> to vector<36x128xbf16>
    %49 = arith.extf %48 : vector<36x128xbf16> to vector<36x128xf32>
    %50 = vector.broadcast %0 : vector<1x128xf32> to vector<36x128xf32>
    %51 = arith.mulf %49, %50 : vector<36x128xf32>
    %52 = vector.broadcast %1 : vector<1x128xf32> to vector<36x128xf32>
    %53 = arith.addf %51, %52 : vector<36x128xf32>
    %cst_19 = arith.constant 0.000000e+00 : f32
    %54 = vector.broadcast %cst_19 : f32 to vector<36x128xf32>
    %55 = arith.maximumf %53, %54 : vector<36x128xf32>
    %56 = arith.truncf %55 : vector<36x128xf32> to vector<36x128xbf16>
    %c0_20 = arith.constant 0 : index
    %c36_21 = arith.constant 36 : index
    %c0_22 = arith.constant 0 : index
    %57 = vector.load %arg4[%c0_20, %c36_21, %c0_22] : memref<1x288x128xbf16, #tpu.memory_space<vmem>>, vector<1x36x128xbf16>
    %58 = vector.shape_cast %57 : vector<1x36x128xbf16> to vector<36x128xbf16>
    %59 = vector.shape_cast %56 : vector<36x128xbf16> to vector<1x36x128xbf16>
    tpu.vector_store %arg4[%c0_20, %c36_21, %c0_22], %59 {strides = array<i32>} : memref<1x288x128xbf16, #tpu.memory_space<vmem>>, vector<1x36x128xbf16>,
    %60 = vector.extract_strided_slice %55 {offsets = [0, 0], sizes = [18, 128], strides = [1, 1]} : vector<36x128xf32> to vector<18x128xf32>
    %61 = vector.extract_strided_slice %55 {offsets = [18, 0], sizes = [18, 128], strides = [1, 1]} : vector<36x128xf32> to vector<18x128xf32>
    %62 = arith.maximumf %60, %61 : vector<18x128xf32>
    %cst_23 = arith.constant dense<0.000000e+00> : vector<16x128xf32>
    %63 = tpu.matmul %22, %62, %cst_23 {dimension_numbers = #tpu.dot_dimension_numbers<[1], [0], [0], [1], [0, 0, 1, 1], [], []>} : vector<16x18xf32>, vector<18x128xf32>, vector<16x128xf32> -> vector<16x128xf32>
    %64 = vector.extract_strided_slice %63 {offsets = [0, 0], sizes = [8, 128], strides = [1, 1]} : vector<16x128xf32> to vector<8x128xf32>
    %65 = vector.extract_strided_slice %63 {offsets = [8, 0], sizes = [8, 128], strides = [1, 1]} : vector<16x128xf32> to vector<8x128xf32>
    %66 = arith.maximumf %64, %65 : vector<8x128xf32>
    %67 = arith.truncf %66 : vector<8x128xf32> to vector<8x128xbf16>
    %c0_24 = arith.constant 0 : index
    %c1 = arith.constant 1 : index
    %c0_25 = arith.constant 0 : index
    %c0_26 = arith.constant 0 : index
    %68 = vector.load %arg5[%c0_24, %c1, %c0_25, %c0_26] : memref<1x8x8x128xbf16, #tpu.memory_space<vmem>>, vector<1x1x8x128xbf16>
    %69 = vector.shape_cast %68 : vector<1x1x8x128xbf16> to vector<8x128xbf16>
    %70 = vector.shape_cast %67 : vector<8x128xbf16> to vector<1x1x8x128xbf16>
    tpu.vector_store %arg5[%c0_24, %c1, %c0_25, %c0_26], %70 {strides = array<i32>} : memref<1x8x8x128xbf16, #tpu.memory_space<vmem>>, vector<1x1x8x128xbf16>,
    %c0_27 = arith.constant 0 : index
    %c72 = arith.constant 72 : index
    %c0_28 = arith.constant 0 : index
    %71 = vector.load %arg1[%c0_27, %c72, %c0_28] : memref<1x288x128xbf16, #tpu.memory_space<vmem>>, vector<1x36x128xbf16>
    %72 = vector.shape_cast %71 : vector<1x36x128xbf16> to vector<36x128xbf16>
    %73 = arith.extf %72 : vector<36x128xbf16> to vector<36x128xf32>
    %74 = vector.broadcast %0 : vector<1x128xf32> to vector<36x128xf32>
    %75 = arith.mulf %73, %74 : vector<36x128xf32>
    %76 = vector.broadcast %1 : vector<1x128xf32> to vector<36x128xf32>
    %77 = arith.addf %75, %76 : vector<36x128xf32>
    %cst_29 = arith.constant 0.000000e+00 : f32
    %78 = vector.broadcast %cst_29 : f32 to vector<36x128xf32>
    %79 = arith.maximumf %77, %78 : vector<36x128xf32>
    %80 = arith.truncf %79 : vector<36x128xf32> to vector<36x128xbf16>
    %c0_30 = arith.constant 0 : index
    %c72_31 = arith.constant 72 : index
    %c0_32 = arith.constant 0 : index
    %81 = vector.load %arg4[%c0_30, %c72_31, %c0_32] : memref<1x288x128xbf16, #tpu.memory_space<vmem>>, vector<1x36x128xbf16>
    %82 = vector.shape_cast %81 : vector<1x36x128xbf16> to vector<36x128xbf16>
    %83 = vector.shape_cast %80 : vector<36x128xbf16> to vector<1x36x128xbf16>
    tpu.vector_store %arg4[%c0_30, %c72_31, %c0_32], %83 {strides = array<i32>} : memref<1x288x128xbf16, #tpu.memory_space<vmem>>, vector<1x36x128xbf16>,
    %84 = vector.extract_strided_slice %79 {offsets = [0, 0], sizes = [18, 128], strides = [1, 1]} : vector<36x128xf32> to vector<18x128xf32>
    %85 = vector.extract_strided_slice %79 {offsets = [18, 0], sizes = [18, 128], strides = [1, 1]} : vector<36x128xf32> to vector<18x128xf32>
    %86 = arith.maximumf %84, %85 : vector<18x128xf32>
    %cst_33 = arith.constant dense<0.000000e+00> : vector<16x128xf32>
    %87 = tpu.matmul %22, %86, %cst_33 {dimension_numbers = #tpu.dot_dimension_numbers<[1], [0], [0], [1], [0, 0, 1, 1], [], []>} : vector<16x18xf32>, vector<18x128xf32>, vector<16x128xf32> -> vector<16x128xf32>
    %88 = vector.extract_strided_slice %87 {offsets = [0, 0], sizes = [8, 128], strides = [1, 1]} : vector<16x128xf32> to vector<8x128xf32>
    %89 = vector.extract_strided_slice %87 {offsets = [8, 0], sizes = [8, 128], strides = [1, 1]} : vector<16x128xf32> to vector<8x128xf32>
    %90 = arith.maximumf %88, %89 : vector<8x128xf32>
    %91 = arith.truncf %90 : vector<8x128xf32> to vector<8x128xbf16>
    %c0_34 = arith.constant 0 : index
    %c2 = arith.constant 2 : index
    %c0_35 = arith.constant 0 : index
    %c0_36 = arith.constant 0 : index
    %92 = vector.load %arg5[%c0_34, %c2, %c0_35, %c0_36] : memref<1x8x8x128xbf16, #tpu.memory_space<vmem>>, vector<1x1x8x128xbf16>
    %93 = vector.shape_cast %92 : vector<1x1x8x128xbf16> to vector<8x128xbf16>
    %94 = vector.shape_cast %91 : vector<8x128xbf16> to vector<1x1x8x128xbf16>
    tpu.vector_store %arg5[%c0_34, %c2, %c0_35, %c0_36], %94 {strides = array<i32>} : memref<1x8x8x128xbf16, #tpu.memory_space<vmem>>, vector<1x1x8x128xbf16>,
    %c0_37 = arith.constant 0 : index
    %c108 = arith.constant 108 : index
    %c0_38 = arith.constant 0 : index
    %95 = vector.load %arg1[%c0_37, %c108, %c0_38] : memref<1x288x128xbf16, #tpu.memory_space<vmem>>, vector<1x36x128xbf16>
    %96 = vector.shape_cast %95 : vector<1x36x128xbf16> to vector<36x128xbf16>
    %97 = arith.extf %96 : vector<36x128xbf16> to vector<36x128xf32>
    %98 = vector.broadcast %0 : vector<1x128xf32> to vector<36x128xf32>
    %99 = arith.mulf %97, %98 : vector<36x128xf32>
    %100 = vector.broadcast %1 : vector<1x128xf32> to vector<36x128xf32>
    %101 = arith.addf %99, %100 : vector<36x128xf32>
    %cst_39 = arith.constant 0.000000e+00 : f32
    %102 = vector.broadcast %cst_39 : f32 to vector<36x128xf32>
    %103 = arith.maximumf %101, %102 : vector<36x128xf32>
    %104 = arith.truncf %103 : vector<36x128xf32> to vector<36x128xbf16>
    %c0_40 = arith.constant 0 : index
    %c108_41 = arith.constant 108 : index
    %c0_42 = arith.constant 0 : index
    %105 = vector.load %arg4[%c0_40, %c108_41, %c0_42] : memref<1x288x128xbf16, #tpu.memory_space<vmem>>, vector<1x36x128xbf16>
    %106 = vector.shape_cast %105 : vector<1x36x128xbf16> to vector<36x128xbf16>
    %107 = vector.shape_cast %104 : vector<36x128xbf16> to vector<1x36x128xbf16>
    tpu.vector_store %arg4[%c0_40, %c108_41, %c0_42], %107 {strides = array<i32>} : memref<1x288x128xbf16, #tpu.memory_space<vmem>>, vector<1x36x128xbf16>,
    %108 = vector.extract_strided_slice %103 {offsets = [0, 0], sizes = [18, 128], strides = [1, 1]} : vector<36x128xf32> to vector<18x128xf32>
    %109 = vector.extract_strided_slice %103 {offsets = [18, 0], sizes = [18, 128], strides = [1, 1]} : vector<36x128xf32> to vector<18x128xf32>
    %110 = arith.maximumf %108, %109 : vector<18x128xf32>
    %cst_43 = arith.constant dense<0.000000e+00> : vector<16x128xf32>
    %111 = tpu.matmul %22, %110, %cst_43 {dimension_numbers = #tpu.dot_dimension_numbers<[1], [0], [0], [1], [0, 0, 1, 1], [], []>} : vector<16x18xf32>, vector<18x128xf32>, vector<16x128xf32> -> vector<16x128xf32>
    %112 = vector.extract_strided_slice %111 {offsets = [0, 0], sizes = [8, 128], strides = [1, 1]} : vector<16x128xf32> to vector<8x128xf32>
    %113 = vector.extract_strided_slice %111 {offsets = [8, 0], sizes = [8, 128], strides = [1, 1]} : vector<16x128xf32> to vector<8x128xf32>
    %114 = arith.maximumf %112, %113 : vector<8x128xf32>
    %115 = arith.truncf %114 : vector<8x128xf32> to vector<8x128xbf16>
    %c0_44 = arith.constant 0 : index
    %c3 = arith.constant 3 : index
    %c0_45 = arith.constant 0 : index
    %c0_46 = arith.constant 0 : index
    %116 = vector.load %arg5[%c0_44, %c3, %c0_45, %c0_46] : memref<1x8x8x128xbf16, #tpu.memory_space<vmem>>, vector<1x1x8x128xbf16>
    %117 = vector.shape_cast %116 : vector<1x1x8x128xbf16> to vector<8x128xbf16>
    %118 = vector.shape_cast %115 : vector<8x128xbf16> to vector<1x1x8x128xbf16>
    tpu.vector_store %arg5[%c0_44, %c3, %c0_45, %c0_46], %118 {strides = array<i32>} : memref<1x8x8x128xbf16, #tpu.memory_space<vmem>>, vector<1x1x8x128xbf16>,
    %c0_47 = arith.constant 0 : index
    %c144 = arith.constant 144 : index
    %c0_48 = arith.constant 0 : index
    %119 = vector.load %arg1[%c0_47, %c144, %c0_48] : memref<1x288x128xbf16, #tpu.memory_space<vmem>>, vector<1x36x128xbf16>
    %120 = vector.shape_cast %119 : vector<1x36x128xbf16> to vector<36x128xbf16>
    %121 = arith.extf %120 : vector<36x128xbf16> to vector<36x128xf32>
    %122 = vector.broadcast %0 : vector<1x128xf32> to vector<36x128xf32>
    %123 = arith.mulf %121, %122 : vector<36x128xf32>
    %124 = vector.broadcast %1 : vector<1x128xf32> to vector<36x128xf32>
    %125 = arith.addf %123, %124 : vector<36x128xf32>
    %cst_49 = arith.constant 0.000000e+00 : f32
    %126 = vector.broadcast %cst_49 : f32 to vector<36x128xf32>
    %127 = arith.maximumf %125, %126 : vector<36x128xf32>
    %128 = arith.truncf %127 : vector<36x128xf32> to vector<36x128xbf16>
    %c0_50 = arith.constant 0 : index
    %c144_51 = arith.constant 144 : index
    %c0_52 = arith.constant 0 : index
    %129 = vector.load %arg4[%c0_50, %c144_51, %c0_52] : memref<1x288x128xbf16, #tpu.memory_space<vmem>>, vector<1x36x128xbf16>
    %130 = vector.shape_cast %129 : vector<1x36x128xbf16> to vector<36x128xbf16>
    %131 = vector.shape_cast %128 : vector<36x128xbf16> to vector<1x36x128xbf16>
    tpu.vector_store %arg4[%c0_50, %c144_51, %c0_52], %131 {strides = array<i32>} : memref<1x288x128xbf16, #tpu.memory_space<vmem>>, vector<1x36x128xbf16>,
    %132 = vector.extract_strided_slice %127 {offsets = [0, 0], sizes = [18, 128], strides = [1, 1]} : vector<36x128xf32> to vector<18x128xf32>
    %133 = vector.extract_strided_slice %127 {offsets = [18, 0], sizes = [18, 128], strides = [1, 1]} : vector<36x128xf32> to vector<18x128xf32>
    %134 = arith.maximumf %132, %133 : vector<18x128xf32>
    %cst_53 = arith.constant dense<0.000000e+00> : vector<16x128xf32>
    %135 = tpu.matmul %22, %134, %cst_53 {dimension_numbers = #tpu.dot_dimension_numbers<[1], [0], [0], [1], [0, 0, 1, 1], [], []>} : vector<16x18xf32>, vector<18x128xf32>, vector<16x128xf32> -> vector<16x128xf32>
    %136 = vector.extract_strided_slice %135 {offsets = [0, 0], sizes = [8, 128], strides = [1, 1]} : vector<16x128xf32> to vector<8x128xf32>
    %137 = vector.extract_strided_slice %135 {offsets = [8, 0], sizes = [8, 128], strides = [1, 1]} : vector<16x128xf32> to vector<8x128xf32>
    %138 = arith.maximumf %136, %137 : vector<8x128xf32>
    %139 = arith.truncf %138 : vector<8x128xf32> to vector<8x128xbf16>
    %c0_54 = arith.constant 0 : index
    %c4 = arith.constant 4 : index
    %c0_55 = arith.constant 0 : index
    %c0_56 = arith.constant 0 : index
    %140 = vector.load %arg5[%c0_54, %c4, %c0_55, %c0_56] : memref<1x8x8x128xbf16, #tpu.memory_space<vmem>>, vector<1x1x8x128xbf16>
    %141 = vector.shape_cast %140 : vector<1x1x8x128xbf16> to vector<8x128xbf16>
    %142 = vector.shape_cast %139 : vector<8x128xbf16> to vector<1x1x8x128xbf16>
    tpu.vector_store %arg5[%c0_54, %c4, %c0_55, %c0_56], %142 {strides = array<i32>} : memref<1x8x8x128xbf16, #tpu.memory_space<vmem>>, vector<1x1x8x128xbf16>,
    %c0_57 = arith.constant 0 : index
    %c180 = arith.constant 180 : index
    %c0_58 = arith.constant 0 : index
    %143 = vector.load %arg1[%c0_57, %c180, %c0_58] : memref<1x288x128xbf16, #tpu.memory_space<vmem>>, vector<1x36x128xbf16>
    %144 = vector.shape_cast %143 : vector<1x36x128xbf16> to vector<36x128xbf16>
    %145 = arith.extf %144 : vector<36x128xbf16> to vector<36x128xf32>
    %146 = vector.broadcast %0 : vector<1x128xf32> to vector<36x128xf32>
    %147 = arith.mulf %145, %146 : vector<36x128xf32>
    %148 = vector.broadcast %1 : vector<1x128xf32> to vector<36x128xf32>
    %149 = arith.addf %147, %148 : vector<36x128xf32>
    %cst_59 = arith.constant 0.000000e+00 : f32
    %150 = vector.broadcast %cst_59 : f32 to vector<36x128xf32>
    %151 = arith.maximumf %149, %150 : vector<36x128xf32>
    %152 = arith.truncf %151 : vector<36x128xf32> to vector<36x128xbf16>
    %c0_60 = arith.constant 0 : index
    %c180_61 = arith.constant 180 : index
    %c0_62 = arith.constant 0 : index
    %153 = vector.load %arg4[%c0_60, %c180_61, %c0_62] : memref<1x288x128xbf16, #tpu.memory_space<vmem>>, vector<1x36x128xbf16>
    %154 = vector.shape_cast %153 : vector<1x36x128xbf16> to vector<36x128xbf16>
    %155 = vector.shape_cast %152 : vector<36x128xbf16> to vector<1x36x128xbf16>
    tpu.vector_store %arg4[%c0_60, %c180_61, %c0_62], %155 {strides = array<i32>} : memref<1x288x128xbf16, #tpu.memory_space<vmem>>, vector<1x36x128xbf16>,
    %156 = vector.extract_strided_slice %151 {offsets = [0, 0], sizes = [18, 128], strides = [1, 1]} : vector<36x128xf32> to vector<18x128xf32>
    %157 = vector.extract_strided_slice %151 {offsets = [18, 0], sizes = [18, 128], strides = [1, 1]} : vector<36x128xf32> to vector<18x128xf32>
    %158 = arith.maximumf %156, %157 : vector<18x128xf32>
    %cst_63 = arith.constant dense<0.000000e+00> : vector<16x128xf32>
    %159 = tpu.matmul %22, %158, %cst_63 {dimension_numbers = #tpu.dot_dimension_numbers<[1], [0], [0], [1], [0, 0, 1, 1], [], []>} : vector<16x18xf32>, vector<18x128xf32>, vector<16x128xf32> -> vector<16x128xf32>
    %160 = vector.extract_strided_slice %159 {offsets = [0, 0], sizes = [8, 128], strides = [1, 1]} : vector<16x128xf32> to vector<8x128xf32>
    %161 = vector.extract_strided_slice %159 {offsets = [8, 0], sizes = [8, 128], strides = [1, 1]} : vector<16x128xf32> to vector<8x128xf32>
    %162 = arith.maximumf %160, %161 : vector<8x128xf32>
    %163 = arith.truncf %162 : vector<8x128xf32> to vector<8x128xbf16>
    %c0_64 = arith.constant 0 : index
    %c5 = arith.constant 5 : index
    %c0_65 = arith.constant 0 : index
    %c0_66 = arith.constant 0 : index
    %164 = vector.load %arg5[%c0_64, %c5, %c0_65, %c0_66] : memref<1x8x8x128xbf16, #tpu.memory_space<vmem>>, vector<1x1x8x128xbf16>
    %165 = vector.shape_cast %164 : vector<1x1x8x128xbf16> to vector<8x128xbf16>
    %166 = vector.shape_cast %163 : vector<8x128xbf16> to vector<1x1x8x128xbf16>
    tpu.vector_store %arg5[%c0_64, %c5, %c0_65, %c0_66], %166 {strides = array<i32>} : memref<1x8x8x128xbf16, #tpu.memory_space<vmem>>, vector<1x1x8x128xbf16>,
    %c0_67 = arith.constant 0 : index
    %c216 = arith.constant 216 : index
    %c0_68 = arith.constant 0 : index
    %167 = vector.load %arg1[%c0_67, %c216, %c0_68] : memref<1x288x128xbf16, #tpu.memory_space<vmem>>, vector<1x36x128xbf16>
    %168 = vector.shape_cast %167 : vector<1x36x128xbf16> to vector<36x128xbf16>
    %169 = arith.extf %168 : vector<36x128xbf16> to vector<36x128xf32>
    %170 = vector.broadcast %0 : vector<1x128xf32> to vector<36x128xf32>
    %171 = arith.mulf %169, %170 : vector<36x128xf32>
    %172 = vector.broadcast %1 : vector<1x128xf32> to vector<36x128xf32>
    %173 = arith.addf %171, %172 : vector<36x128xf32>
    %cst_69 = arith.constant 0.000000e+00 : f32
    %174 = vector.broadcast %cst_69 : f32 to vector<36x128xf32>
    %175 = arith.maximumf %173, %174 : vector<36x128xf32>
    %176 = arith.truncf %175 : vector<36x128xf32> to vector<36x128xbf16>
    %c0_70 = arith.constant 0 : index
    %c216_71 = arith.constant 216 : index
    %c0_72 = arith.constant 0 : index
    %177 = vector.load %arg4[%c0_70, %c216_71, %c0_72] : memref<1x288x128xbf16, #tpu.memory_space<vmem>>, vector<1x36x128xbf16>
    %178 = vector.shape_cast %177 : vector<1x36x128xbf16> to vector<36x128xbf16>
    %179 = vector.shape_cast %176 : vector<36x128xbf16> to vector<1x36x128xbf16>
    tpu.vector_store %arg4[%c0_70, %c216_71, %c0_72], %179 {strides = array<i32>} : memref<1x288x128xbf16, #tpu.memory_space<vmem>>, vector<1x36x128xbf16>,
    %180 = vector.extract_strided_slice %175 {offsets = [0, 0], sizes = [18, 128], strides = [1, 1]} : vector<36x128xf32> to vector<18x128xf32>
    %181 = vector.extract_strided_slice %175 {offsets = [18, 0], sizes = [18, 128], strides = [1, 1]} : vector<36x128xf32> to vector<18x128xf32>
    %182 = arith.maximumf %180, %181 : vector<18x128xf32>
    %cst_73 = arith.constant dense<0.000000e+00> : vector<16x128xf32>
    %183 = tpu.matmul %22, %182, %cst_73 {dimension_numbers = #tpu.dot_dimension_numbers<[1], [0], [0], [1], [0, 0, 1, 1], [], []>} : vector<16x18xf32>, vector<18x128xf32>, vector<16x128xf32> -> vector<16x128xf32>
    %184 = vector.extract_strided_slice %183 {offsets = [0, 0], sizes = [8, 128], strides = [1, 1]} : vector<16x128xf32> to vector<8x128xf32>
    %185 = vector.extract_strided_slice %183 {offsets = [8, 0], sizes = [8, 128], strides = [1, 1]} : vector<16x128xf32> to vector<8x128xf32>
    %186 = arith.maximumf %184, %185 : vector<8x128xf32>
    %187 = arith.truncf %186 : vector<8x128xf32> to vector<8x128xbf16>
    %c0_74 = arith.constant 0 : index
    %c6 = arith.constant 6 : index
    %c0_75 = arith.constant 0 : index
    %c0_76 = arith.constant 0 : index
    %188 = vector.load %arg5[%c0_74, %c6, %c0_75, %c0_76] : memref<1x8x8x128xbf16, #tpu.memory_space<vmem>>, vector<1x1x8x128xbf16>
    %189 = vector.shape_cast %188 : vector<1x1x8x128xbf16> to vector<8x128xbf16>
    %190 = vector.shape_cast %187 : vector<8x128xbf16> to vector<1x1x8x128xbf16>
    tpu.vector_store %arg5[%c0_74, %c6, %c0_75, %c0_76], %190 {strides = array<i32>} : memref<1x8x8x128xbf16, #tpu.memory_space<vmem>>, vector<1x1x8x128xbf16>,
    %c0_77 = arith.constant 0 : index
    %c252 = arith.constant 252 : index
    %c0_78 = arith.constant 0 : index
    %191 = vector.load %arg1[%c0_77, %c252, %c0_78] : memref<1x288x128xbf16, #tpu.memory_space<vmem>>, vector<1x36x128xbf16>
    %192 = vector.shape_cast %191 : vector<1x36x128xbf16> to vector<36x128xbf16>
    %193 = arith.extf %192 : vector<36x128xbf16> to vector<36x128xf32>
    %194 = vector.broadcast %0 : vector<1x128xf32> to vector<36x128xf32>
    %195 = arith.mulf %193, %194 : vector<36x128xf32>
    %196 = vector.broadcast %1 : vector<1x128xf32> to vector<36x128xf32>
    %197 = arith.addf %195, %196 : vector<36x128xf32>
    %cst_79 = arith.constant 0.000000e+00 : f32
    %198 = vector.broadcast %cst_79 : f32 to vector<36x128xf32>
    %199 = arith.maximumf %197, %198 : vector<36x128xf32>
    %200 = arith.truncf %199 : vector<36x128xf32> to vector<36x128xbf16>
    %c0_80 = arith.constant 0 : index
    %c252_81 = arith.constant 252 : index
    %c0_82 = arith.constant 0 : index
    %201 = vector.load %arg4[%c0_80, %c252_81, %c0_82] : memref<1x288x128xbf16, #tpu.memory_space<vmem>>, vector<1x36x128xbf16>
    %202 = vector.shape_cast %201 : vector<1x36x128xbf16> to vector<36x128xbf16>
    %203 = vector.shape_cast %200 : vector<36x128xbf16> to vector<1x36x128xbf16>
    tpu.vector_store %arg4[%c0_80, %c252_81, %c0_82], %203 {strides = array<i32>} : memref<1x288x128xbf16, #tpu.memory_space<vmem>>, vector<1x36x128xbf16>,
    %204 = vector.extract_strided_slice %199 {offsets = [0, 0], sizes = [18, 128], strides = [1, 1]} : vector<36x128xf32> to vector<18x128xf32>
    %205 = vector.extract_strided_slice %199 {offsets = [18, 0], sizes = [18, 128], strides = [1, 1]} : vector<36x128xf32> to vector<18x128xf32>
    %206 = arith.maximumf %204, %205 : vector<18x128xf32>
    %cst_83 = arith.constant dense<0.000000e+00> : vector<16x128xf32>
    %207 = tpu.matmul %22, %206, %cst_83 {dimension_numbers = #tpu.dot_dimension_numbers<[1], [0], [0], [1], [0, 0, 1, 1], [], []>} : vector<16x18xf32>, vector<18x128xf32>, vector<16x128xf32> -> vector<16x128xf32>
    %208 = vector.extract_strided_slice %207 {offsets = [0, 0], sizes = [8, 128], strides = [1, 1]} : vector<16x128xf32> to vector<8x128xf32>
    %209 = vector.extract_strided_slice %207 {offsets = [8, 0], sizes = [8, 128], strides = [1, 1]} : vector<16x128xf32> to vector<8x128xf32>
    %210 = arith.maximumf %208, %209 : vector<8x128xf32>
    %211 = arith.truncf %210 : vector<8x128xf32> to vector<8x128xbf16>
    %c0_84 = arith.constant 0 : index
    %c7 = arith.constant 7 : index
    %c0_85 = arith.constant 0 : index
    %c0_86 = arith.constant 0 : index
    %212 = vector.load %arg5[%c0_84, %c7, %c0_85, %c0_86] : memref<1x8x8x128xbf16, #tpu.memory_space<vmem>>, vector<1x1x8x128xbf16>
    %213 = vector.shape_cast %212 : vector<1x1x8x128xbf16> to vector<8x128xbf16>
    %214 = vector.shape_cast %211 : vector<8x128xbf16> to vector<1x1x8x128xbf16>
    tpu.vector_store %arg5[%c0_84, %c7, %c0_85, %c0_86], %214 {strides = array<i32>} : memref<1x8x8x128xbf16, #tpu.memory_space<vmem>>, vector<1x1x8x128xbf16>,
    return
  }
  func.func @transform_0(%arg0: i32) -> (i32, i32, i32) {
    %c0_i32 = arith.constant 0 : i32
    %c0_i32_0 = arith.constant 0 : i32
    %c0_i32_1 = arith.constant 0 : i32
    return %arg0, %c0_i32, %c0_i32_0 : i32, i32, i32
  }
  func.func @transform_1(%arg0: i32) -> (i32, i32) {
    %c0_i32 = arith.constant 0 : i32
    %c0_i32_0 = arith.constant 0 : i32
    %c0_i32_1 = arith.constant 0 : i32
    return %c0_i32, %c0_i32_0 : i32, i32
  }
  func.func @transform_2(%arg0: i32) -> (i32, i32) {
    %c0_i32 = arith.constant 0 : i32
    %c0_i32_0 = arith.constant 0 : i32
    %c0_i32_1 = arith.constant 0 : i32
    return %c0_i32, %c0_i32_0 : i32, i32
  }
  func.func @transform_3(%arg0: i32) -> (i32, i32, i32) {
    %c0_i32 = arith.constant 0 : i32
    %c0_i32_0 = arith.constant 0 : i32
    %c0_i32_1 = arith.constant 0 : i32
    return %arg0, %c0_i32, %c0_i32_0 : i32, i32, i32
  }
  func.func @transform_4(%arg0: i32) -> (i32, i32, i32, i32) {
    %c0_i32 = arith.constant 0 : i32
    %c0_i32_0 = arith.constant 0 : i32
    %c0_i32_1 = arith.constant 0 : i32
    %c0_i32_2 = arith.constant 0 : i32
    return %arg0, %c0_i32, %c0_i32_0, %c0_i32_1 : i32, i32, i32, i32
  }
}

</mosaic_0001>

<llo_original>
// kernel: encoder_block_forward.3
$region0: #{encoder_block_forward.3}
  #allocation0 [shape = 'u32[]', space=smem, size = 0x4, offset = 0x4, fixed_abs, tag = 'smem constant byte address 0x4 - core index']
  #allocation1 [shape = 'u32[144,128]{1,0:T(1,128)}', space=vmem, size = 0x12000, scoped, tag = 'internal scratch']
  %s0 = inlined_call_operand.vmem [shape: bf16[2,288,36], index: 0, kind: input, shape index: {}]
  %s1 = inlined_call_operand.vmem [shape: bf16[36,128], index: 1, kind: input, shape index: {}]
  %s2 = inlined_call_operand.vmem [shape: bf16[2,288,128], index: 2, kind: output, shape index: {0}]
  %s3 = inlined_call_operand.vmem [shape: f32[2,1,128], index: 3, kind: output, shape index: {1}]
  %s4 = inlined_call_operand.vmem [shape: f32[2,1,128], index: 4, kind: output, shape index: {2}]
  %5 = xla_tuple %s2, %s3, %s4
  %s6 = sld [smem:[#allocation0]]
  $region57: #{encoder_block_forward.3} parent=0
    _
  %s8 = ssub.s32 1, %s6
  %s9 = scalar_select 0, %s8, %s6
  loop: start=0, step=1, limit=4
  $region2: #{encoder_block_forward.3} parent=0 // loop_pre_header
    _
  $region3: #{encoder_block_forward.3} parent=0 // loop_header
    %s11 = sphi 0, %s15
    %p12 = scmp.ge.s32.totalorder %s11, 4
    %s21 = sphi 0, %s23
    %s24 = sphi 0, %s21
    %s25 = sphi 0, %s24
    %s41 = sphi 0, %s25
    %s45 = sphi 0, %s45
    %s47 = sphi 0, %s45
    %s48 = sphi 0, %s47
    %s62 = sphi 0, %s48
    %s68 = sphi 0, %s70
    %s71 = sphi 0, %s68
    %s72 = sphi 0, %s71
    %s88 = sphi 0, %s72
    %s94 = sphi 0, %s96
    %s97 = sphi 0, %s94
    %s98 = sphi 0, %s97
    %s114 = sphi 0, %s98
    %s120 = sphi 0, %s122
    %s123 = sphi 0, %s120
    %s124 = sphi 0, %s123
    %s140 = sphi 0, %s124
  $region4: #{encoder_block_forward.3} parent=0 // loop_header_branch
    %14 = sbr.rel (%p12) target = $region8
  $region5: #{encoder_block_forward.3} parent=0 // loop_body
    %s16 = ssub.s32 %s11, 1
    %s17 = ssub.s32 %s11, 2
    %s18 = sadd.s32 %s11, 1
    %s19 = ssub.s32 %s11, %s18
    %p20 = scmp.eq.s32.totalorder %s19, 0
    %s22 = sadd.s32 %s21, 1
    %s23 = scalar_select %p20, %s21, %s22
    %p26 = pneg %p20
    %p27 = scmp.eq.s32.totalorder %s11, 1
    %p28 = por %p26, %p27
    %p29 = scmp.ne.s32.totalorder %s21, %s24
    %p30 = scmp.eq.s32.totalorder %s11, 0
    %p31 = por %p29, %p30
    %p32 = scmp.ne.s32.totalorder %s21, %s24
    %p33 = scmp.eq.s32.totalorder %s16, 1
    %p34 = por %p32, %p33
    %p35 = scmp.ne.s32.totalorder %s24, %s25
    %p36 = scmp.eq.s32.totalorder %s16, 0
    %p37 = por %p35, %p36
    %p38 = scmp.ne.s32.totalorder %s24, %s25
    %p39 = scmp.eq.s32.totalorder %s17, 1
    %p40 = por %p38, %p39
    %p42 = scmp.ne.s32.totalorder %s25, %s41
    %p43 = scmp.eq.s32.totalorder %s17, 0
    %p44 = por %p42, %p43
    %s46 = sadd.s32 %s45, 1
    %p49 = scmp.eq.s32.totalorder %s11, 1
    %p50 = scmp.ne.s32.totalorder %s45, %s47
    %p51 = scmp.eq.s32.totalorder %s11, 0
    %p52 = por %p50, %p51
    %p53 = scmp.ne.s32.totalorder %s45, %s47
    %p54 = scmp.eq.s32.totalorder %s16, 1
    %p55 = por %p53, %p54
    %p56 = scmp.ne.s32.totalorder %s47, %s48
    %p57 = scmp.eq.s32.totalorder %s16, 0
    %p58 = por %p56, %p57
    %p59 = scmp.ne.s32.totalorder %s47, %s48
    %p60 = scmp.eq.s32.totalorder %s17, 1
    %p61 = por %p59, %p60
    %p63 = scmp.ne.s32.totalorder %s48, %s62
    %p64 = scmp.eq.s32.totalorder %s17, 0
    %p65 = por %p63, %p64
    %s66 = ssub.s32 %s11, %s18
    %p67 = scmp.eq.s32.totalorder %s66, 0
    %s69 = sadd.s32 %s68, 1
    %s70 = scalar_select %p67, %s68, %s69
    %p73 = pneg %p67
    %p74 = scmp.eq.s32.totalorder %s11, 1
    %p75 = por %p73, %p74
    %p76 = scmp.ne.s32.totalorder %s68, %s71
    %p77 = scmp.eq.s32.totalorder %s11, 0
    %p78 = por %p76, %p77
    %p79 = scmp.ne.s32.totalorder %s68, %s71
    %p80 = scmp.eq.s32.totalorder %s16, 1
    %p81 = por %p79, %p80
    %p82 = scmp.ne.s32.totalorder %s71, %s72
    %p83 = scmp.eq.s32.totalorder %s16, 0
    %p84 = por %p82, %p83
    %p85 = scmp.ne.s32.totalorder %s71, %s72
    %p86 = scmp.eq.s32.totalorder %s17, 1
    %p87 = por %p85, %p86
    %p89 = scmp.ne.s32.totalorder %s72, %s88
    %p90 = scmp.eq.s32.totalorder %s17, 0
    %p91 = por %p89, %p90
    %s92 = ssub.s32 %s11, %s18
    %p93 = scmp.eq.s32.totalorder %s92, 0
    %s95 = sadd.s32 %s94, 1
    %s96 = scalar_select %p93, %s94, %s95
    %p99 = pneg %p93
    %p100 = scmp.eq.s32.totalorder %s11, 1
    %p101 = por %p99, %p100
    %p102 = scmp.ne.s32.totalorder %s94, %s97
    %p103 = scmp.eq.s32.totalorder %s11, 0
    %p104 = por %p102, %p103
    %p105 = scmp.ne.s32.totalorder %s94, %s97
    %p106 = scmp.eq.s32.totalorder %s16, 1
    %p107 = por %p105, %p106
    %p108 = scmp.ne.s32.totalorder %s97, %s98
    %p109 = scmp.eq.s32.totalorder %s16, 0
    %p110 = por %p108, %p109
    %p111 = scmp.ne.s32.totalorder %s97, %s98
    %p112 = scmp.eq.s32.totalorder %s17, 1
    %p113 = por %p111, %p112
    %p115 = scmp.ne.s32.totalorder %s98, %s114
    %p116 = scmp.eq.s32.totalorder %s17, 0
    %p117 = por %p115, %p116
    %s118 = ssub.s32 %s11, %s18
    %p119 = scmp.eq.s32.totalorder %s118, 0
    %s121 = sadd.s32 %s120, 1
    %s122 = scalar_select %p119, %s120, %s121
    %p125 = pneg %p119
    %p126 = scmp.eq.s32.totalorder %s11, 1
    %p127 = por %p125, %p126
    %p128 = scmp.ne.s32.totalorder %s120, %s123
    %p129 = scmp.eq.s32.totalorder %s11, 0
    %p130 = por %p128, %p129
    %p131 = scmp.ne.s32.totalorder %s120, %s123
    %p132 = scmp.eq.s32.totalorder %s16, 1
    %p133 = por %p131, %p132
    %p134 = scmp.ne.s32.totalorder %s123, %s124
    %p135 = scmp.eq.s32.totalorder %s16, 0
    %p136 = por %p134, %p135
    %p137 = scmp.ne.s32.totalorder %s123, %s124
    %p138 = scmp.eq.s32.totalorder %s17, 1
    %p139 = por %p137, %p138
    %p141 = scmp.ne.s32.totalorder %s124, %s140
    %p142 = scmp.eq.s32.totalorder %s17, 0
    %p143 = por %p141, %p142
    %p144 = scmp.le.s32.totalorder 1, %s11
    %p145 = scmp.lt.s32.totalorder %s11, 3
    %p146 = pnand %p144, %p145
    %p147 = pneg %p146
    // Predicated region
    $region9: #{encoder_block_forward.3} parent=5 // pred_check
      _
    $region10: #{encoder_block_forward.3} parent=5 // pred_check_branch
      %149 = sbr.rel (%p146) target = $region12
    $region11: #{encoder_block_forward.3} parent=5 // pred_region
      %s150 = ssub.s32 %s11, 1
      // Predicated region
      $region13: #{encoder_block_forward.3} parent=11 // pred_check
        %p151 = pneg %p58
      $region14: #{encoder_block_forward.3} parent=11 // pred_check_branch
        %153 = sbr.rel (%p151) target = $region16
      $region15: #{encoder_block_forward.3} parent=11 // pred_region
        _
      $region16: #{encoder_block_forward.3} parent=11 // pred_fallthru
        _
    $region12: #{encoder_block_forward.3} parent=5 // pred_fallthru
      _
    %p154 = scmp.lt.s32.totalorder %s11, 2
    // Predicated region
    $region17: #{encoder_block_forward.3} parent=5 // pred_check
      %p155 = pneg %p154
    $region18: #{encoder_block_forward.3} parent=5 // pred_check_branch
      %157 = sbr.rel (%p155) target = $region20
    $region19: #{encoder_block_forward.3} parent=5 // pred_region
      // Predicated region
      $region21: #{encoder_block_forward.3} parent=19 // pred_check
        %p158 = pneg %p31
      $region22: #{encoder_block_forward.3} parent=19 // pred_check_branch
        %160 = sbr.rel (%p158) target = $region24
      $region23: #{encoder_block_forward.3} parent=19 // pred_region
        %p161 = scmp.lt.s32.totalorder %s11, 1
        %s162 = scalar_select %p161, %s11, 1
        %s163 = smul.addr %s162, 36
        %s164 = smul.addr %s163, 4
        %s165 = scalar_lea.vmem %s0, %s164
      $region24: #{encoder_block_forward.3} parent=19 // pred_fallthru
        _
    $region20: #{encoder_block_forward.3} parent=5 // pred_fallthru
      _
    %p166 = scmp.le.s32.totalorder 1, %s11
    %p167 = scmp.lt.s32.totalorder %s11, 3
    %p168 = pnand %p166, %p167
    %p169 = pneg %p168
    // Predicated region
    $region25: #{encoder_block_forward.3} parent=5 // pred_check
      _
    $region26: #{encoder_block_forward.3} parent=5 // pred_check_branch
      %171 = sbr.rel (%p168) target = $region28
    $region27: #{encoder_block_forward.3} parent=5 // pred_region
      %s172 = ssub.s32 %s11, 1
      %p173 = scmp.lt.s32.totalorder %s16, 1
      %s174 = scalar_select %p173, %s16, 1
      %s175 = smul.addr %s174, 36
      %s176 = smul.addr %s175, 4
      %s177 = scalar_lea.vmem %s0, %s176
      %p178 = pneg %p37
      %p179 = pneg %p34
      %p180 = pneg %p58
      %p181 = pneg %p55
      %p182 = pneg %p84
      %p183 = pneg %p81
      %p184 = scmp.lt.s32.totalorder %s16, 1
      %s185 = scalar_select %p184, %s16, 1
      %s186 = smul.addr %s185, 36
      %s187 = smul.addr %s186, 4
      %s188 = scalar_lea.vmem %s2, %s187
      %p189 = pneg %p110
      %p190 = pneg %p107
      %p191 = scmp.lt.s32.totalorder %s16, 1
      %s192 = scalar_select %p191, %s16, 1
      %s193 = scalar_lea.vmem %s3, %s192
      %p194 = pneg %p136
      %p195 = pneg %p133
      %p196 = scmp.lt.s32.totalorder %s16, 1
      %s197 = scalar_select %p196, %s16, 1
      %s198 = scalar_lea.vmem %s4, %s197
      %p199 = scmp.lt.s32.totalorder %s16, 1
      %s200 = scalar_select %p199, %s16, 1
      %s201 = smul.addr %s200, 36
      %s202 = smul.addr %s201, 4
      %s203 = scalar_lea.vmem %s0, %s202
      %p204 = scmp.lt.s32.totalorder %s16, 1
      %s205 = scalar_select %p204, %s16, 1
      %s206 = smul.addr %s205, 36
      %s207 = smul.addr %s206, 4
      %s208 = scalar_lea.vmem %s2, %s207
      %p209 = scmp.lt.s32.totalorder %s16, 1
      %s210 = scalar_select %p209, %s16, 1
      %s211 = scalar_lea.vmem %s3, %s210
      %p212 = scmp.lt.s32.totalorder %s16, 1
      %s213 = scalar_select %p212, %s16, 1
      %s214 = scalar_lea.vmem %s4, %s213
      %v216 = vld [vmem:[%s203] sm:$0xf]
      %v217 = vld [vmem:[%s203 + $0x4] sm:$0xf]
      %v218 = vld [vmem:[%s203 + $0x8] sm:$0xf]
      %v219 = vld [vmem:[%s203 + $0xc] sm:$0xf]
      %v220 = vld [vmem:[%s203 + $0x10] sm:$0xf]
      %v221 = vld [vmem:[%s203 + $0x14] sm:$0xf]
      %v222 = vld [vmem:[%s203 + $0x18] sm:$0xf]
      %v223 = vld [vmem:[%s203 + $0x1c] sm:$0xf]
      %v224 = vld [vmem:[%s203 + $0x20] sm:$0xf]
      %v225 = vld [vmem:[%s203 + $0x24] sm:$0xf]
      %v226 = vld [vmem:[%s203 + $0x28] sm:$0xf]
      %v227 = vld [vmem:[%s203 + $0x2c] sm:$0xf]
      %v228 = vld [vmem:[%s203 + $0x30] sm:$0xf]
      %v229 = vld [vmem:[%s203 + $0x34] sm:$0xf]
      %v230 = vld [vmem:[%s203 + $0x38] sm:$0xf]
      %v231 = vld [vmem:[%s203 + $0x3c] sm:$0xf]
      %v232 = vld [vmem:[%s203 + $0x40] sm:$0xf]
      %v233 = vld [vmem:[%s203 + $0x44] sm:$0xf]
      %v234 = vld [vmem:[%s203 + $0x48] sm:$0xf]
      %v235 = vld [vmem:[%s203 + $0x4c] sm:$0xf]
      %v236 = vld [vmem:[%s203 + $0x50] sm:$0xf]
      %v237 = vld [vmem:[%s203 + $0x54] sm:$0xf]
      %v238 = vld [vmem:[%s203 + $0x58] sm:$0xf]
      %v239 = vld [vmem:[%s203 + $0x5c] sm:$0xf]
      %v240 = vld [vmem:[%s203 + $0x60] sm:$0xf]
      %v241 = vld [vmem:[%s203 + $0x64] sm:$0xf]
      %v242 = vld [vmem:[%s203 + $0x68] sm:$0xf]
      %v243 = vld [vmem:[%s203 + $0x6c] sm:$0xf]
      %v244 = vld [vmem:[%s203 + $0x70] sm:$0xf]
      %v245 = vld [vmem:[%s203 + $0x74] sm:$0xf]
      %v246 = vld [vmem:[%s203 + $0x78] sm:$0xf]
      %v247 = vld [vmem:[%s203 + $0x7c] sm:$0xf]
      %v248 = vld [vmem:[%s203 + $0x80] sm:$0xf]
      %v249 = vld [vmem:[%s203 + $0x84] sm:$0xf]
      %v250 = vld [vmem:[%s203 + $0x88] sm:$0xf]
      %v251 = vld [vmem:[%s203 + $0x8c] sm:$0xf]
      %v252 = vld [vmem:[%s1] sm:$0xf]
      %v253 = vld [vmem:[%s1 + $0x4] sm:$0xf]
      %v254 = vld [vmem:[%s1 + $0x8] sm:$0xf]
      %v255 = vld [vmem:[%s1 + $0xc] sm:$0xf]
      %v256 = vld [vmem:[%s1 + $0x10] sm:$0x3]
      %v293 = vunpack.c.l.b16 %v216
      %v294 = vunpack.c.l.b16 %v217
      %v295 = vunpack.c.l.b16 %v218
      %v296 = vunpack.c.l.b16 %v219
      %v297 = vunpack.c.l.b16 %v220
      %v298 = vunpack.c.l.b16 %v221
      %v299 = vunpack.c.l.b16 %v222
      %v300 = vunpack.c.l.b16 %v223
      %v301 = vunpack.c.l.b16 %v224
      %v302 = vunpack.c.l.b16 %v225
      %v303 = vunpack.c.l.b16 %v226
      %v304 = vunpack.c.l.b16 %v227
      %v305 = vunpack.c.l.b16 %v228
      %v306 = vunpack.c.l.b16 %v229
      %v307 = vunpack.c.l.b16 %v230
      %v308 = vunpack.c.l.b16 %v231
      %v309 = vunpack.c.l.b16 %v232
      %v310 = vunpack.c.l.b16 %v233
      %v311 = vunpack.c.l.b16 %v234
      %v312 = vunpack.c.l.b16 %v235
      %v313 = vunpack.c.l.b16 %v236
      %v314 = vunpack.c.l.b16 %v237
      %v315 = vunpack.c.l.b16 %v238
      %v316 = vunpack.c.l.b16 %v239
      %v317 = vunpack.c.l.b16 %v240
      %v318 = vunpack.c.l.b16 %v241
      %v319 = vunpack.c.l.b16 %v242
      %v320 = vunpack.c.l.b16 %v243
      %v321 = vunpack.c.l.b16 %v244
      %v322 = vunpack.c.l.b16 %v245
      %v323 = vunpack.c.l.b16 %v246
      %v324 = vunpack.c.l.b16 %v247
      %v325 = vunpack.c.l.b16 %v248
      %v326 = vunpack.c.l.b16 %v249
      %v327 = vunpack.c.l.b16 %v250
      %v328 = vunpack.c.l.b16 %v251
      %v329 = vpack.c.b16 %v294, %v293
      %v330 = vpack.c.b16 %v296, %v295
      %v331 = vpack.c.b16 %v298, %v297
      %v332 = vpack.c.b16 %v300, %v299
      %v333 = vpack.c.b16 %v302, %v301
      %v334 = vpack.c.b16 %v304, %v303
      %v335 = vpack.c.b16 %v306, %v305
      %v336 = vpack.c.b16 %v308, %v307
      %v337 = vpack.c.b16 %v310, %v309
      %v338 = vpack.c.b16 %v312, %v311
      %v339 = vpack.c.b16 %v314, %v313
      %v340 = vpack.c.b16 %v316, %v315
      %v341 = vpack.c.b16 %v318, %v317
      %v342 = vpack.c.b16 %v320, %v319
      %v343 = vpack.c.b16 %v322, %v321
      %v344 = vpack.c.b16 %v324, %v323
      %v345 = vpack.c.b16 %v326, %v325
      %v346 = vpack.c.b16 %v328, %v327
      %v352 = vunpack.c.l.b16 %v252
      %v353 = vunpack.c.l.b16 %v253
      %v354 = vunpack.c.l.b16 %v254
      %v355 = vunpack.c.l.b16 %v255
      %v356 = vunpack.c.l.b16 %v256
      %v357 = vpack.c.b16 %v353, %v352
      %v358 = vpack.c.b16 %v355, %v354
      %v359 = vpack.c.b16 %v356, %v356
      %vm362 = vcmask 293888
      %v364 = vsel %vm362, %v329, 0
      %v367 = vsel %vm362, %v330, 0
      %v370 = vsel %vm362, %v331, 0
      %v373 = vsel %vm362, %v332, 0
      %v376 = vsel %vm362, %v333, 0
      %v379 = vsel %vm362, %v334, 0
      %v382 = vsel %vm362, %v335, 0
      %v385 = vsel %vm362, %v336, 0
      %v388 = vsel %vm362, %v337, 0
      %v391 = vsel %vm362, %v338, 0
      %v394 = vsel %vm362, %v339, 0
      %v397 = vsel %vm362, %v340, 0
      %v400 = vsel %vm362, %v341, 0
      %v403 = vsel %vm362, %v342, 0
      %v406 = vsel %vm362, %v343, 0
      %v409 = vsel %vm362, %v344, 0
      %v412 = vsel %vm362, %v345, 0
      %v415 = vsel %vm362, %v346, 0
      %vm417 = vcmask 1041408
      %v419 = vsel %vm417, %v359, 0
      %421 = vmatprep.subr.bf16.mxu0 0
      %422 = vmatpush1.bf16.msra.mxu0 %v357
      %423 = vmatprep.subr.bf16.mxu0 0
      %424 = vmatpush1.bf16.msra.mxu0 %v358
      %425 = vmatprep.subr.bf16.mxu0 0
      %426 = vmatpush1.bf16.msra.mxu0 %v419
      %427 = vmatprep.subr.bf16.mxu0 0
      %428 = vmatpush1.bf16.msra.mxu0 0
      %429 = vmatprep.subr.bf16.mxu0 0
      %430 = vmatpush1.bf16.msra.mxu0 0
      %431 = vmatprep.subr.bf16.mxu0 0
      %432 = vmatpush1.bf16.msra.mxu0 0
      %433 = vmatprep.subr.bf16.mxu0 0
      %434 = vmatpush1.bf16.msra.mxu0 0
      %435 = vmatprep.subr.bf16.mxu0 0
      %436 = vmatpush1.bf16.msra.mxu0 0
      %437 = vmatprep.subr.bf16.mxu0 0
      %438 = vmatpush1.bf16.msra.mxu0 0
      %439 = vmatprep.subr.bf16.mxu0 0
      %440 = vmatpush1.bf16.msra.mxu0 0
      %441 = vmatprep.subr.bf16.mxu0 0
      %442 = vmatpush1.bf16.msra.mxu0 0
      %443 = vmatprep.subr.bf16.mxu0 0
      %444 = vmatpush1.bf16.msra.mxu0 0
      %445 = vmatprep.subr.bf16.mxu0 0
      %446 = vmatpush1.bf16.msra.mxu0 0
      %447 = vmatprep.subr.bf16.mxu0 0
      %448 = vmatpush1.bf16.msra.mxu0 0
      %449 = vmatprep.subr.bf16.mxu0 0
      %450 = vmatpush1.bf16.msra.mxu0 0
      %451 = vmatprep.subr.bf16.mxu0 0
      %452 = vmatpush1.bf16.msra.mxu0 0
      %453 = vmatprep.mubr.bf16.mxu0 0
      %454 = vmatmul.mubr.bf16.gmra.mrb[0].mxu0 %v364
      %v455 = vpop.f32.mrb[0].mxu0
      %v456 = vadd.f32 0.0, %v455
      %v457 = vpop.f32.mrb[0].mxu0
      %v458 = vpop.f32.mrb[0].mxu0
      %v459 = vadd.f32 0.0, %v458
      %v460 = vpop.f32.mrb[0].mxu0
      %461 = vmatprep.mubr.bf16.mxu0 0
      %462 = vmatmul.mubr.bf16.gmra.mrb[0].mxu0 %v367
      %v463 = vpop.f32.mrb[0].mxu0
      %v464 = vadd.f32 0.0, %v463
      %v465 = vpop.f32.mrb[0].mxu0
      %v466 = vpop.f32.mrb[0].mxu0
      %v467 = vadd.f32 0.0, %v466
      %v468 = vpop.f32.mrb[0].mxu0
      %469 = vmatprep.mubr.bf16.mxu0 0
      %470 = vmatmul.mubr.bf16.gmra.mrb[0].mxu0 %v370
      %v471 = vpop.f32.mrb[0].mxu0
      %v472 = vadd.f32 0.0, %v471
      %v473 = vpop.f32.mrb[0].mxu0
      %v474 = vpop.f32.mrb[0].mxu0
      %v475 = vadd.f32 0.0, %v474
      %v476 = vpop.f32.mrb[0].mxu0
      %477 = vmatprep.mubr.bf16.mxu0 0
      %478 = vmatmul.mubr.bf16.gmra.mrb[0].mxu0 %v373
      %v479 = vpop.f32.mrb[0].mxu0
      %v480 = vadd.f32 0.0, %v479
      %v481 = vpop.f32.mrb[0].mxu0
      %v482 = vpop.f32.mrb[0].mxu0
      %v483 = vadd.f32 0.0, %v482
      %v484 = vpop.f32.mrb[0].mxu0
      %485 = vmatprep.mubr.bf16.mxu0 0
      %486 = vmatmul.mubr.bf16.gmra.mrb[0].mxu0 %v376
      %v487 = vpop.f32.mrb[0].mxu0
      %v488 = vadd.f32 0.0, %v487
      %v489 = vpop.f32.mrb[0].mxu0
      %v490 = vpop.f32.mrb[0].mxu0
      %v491 = vadd.f32 0.0, %v490
      %v492 = vpop.f32.mrb[0].mxu0
      %493 = vmatprep.mubr.bf16.mxu0 0
      %494 = vmatmul.mubr.bf16.gmra.mrb[0].mxu0 %v379
      %v495 = vpop.f32.mrb[0].mxu0
      %v496 = vadd.f32 0.0, %v495
      %v497 = vpop.f32.mrb[0].mxu0
      %v498 = vpop.f32.mrb[0].mxu0
      %v499 = vadd.f32 0.0, %v498
      %v500 = vpop.f32.mrb[0].mxu0
      %501 = vmatprep.mubr.bf16.mxu0 0
      %502 = vmatmul.mubr.bf16.gmra.mrb[0].mxu0 %v382
      %v503 = vpop.f32.mrb[0].mxu0
      %v504 = vadd.f32 0.0, %v503
      %v505 = vpop.f32.mrb[0].mxu0
      %v506 = vpop.f32.mrb[0].mxu0
      %v507 = vadd.f32 0.0, %v506
      %v508 = vpop.f32.mrb[0].mxu0
      %509 = vmatprep.mubr.bf16.mxu0 0
      %510 = vmatmul.mubr.bf16.gmra.mrb[0].mxu0 %v385
      %v511 = vpop.f32.mrb[0].mxu0
      %v512 = vadd.f32 0.0, %v511
      %v513 = vpop.f32.mrb[0].mxu0
      %v514 = vpop.f32.mrb[0].mxu0
      %v515 = vadd.f32 0.0, %v514
      %v516 = vpop.f32.mrb[0].mxu0
      %517 = vmatprep.mubr.bf16.mxu0 0
      %518 = vmatmul.mubr.bf16.gmra.mrb[0].mxu0 %v388
      %v519 = vpop.f32.mrb[0].mxu0
      %v520 = vadd.f32 0.0, %v519
      %v521 = vpop.f32.mrb[0].mxu0
      %v522 = vpop.f32.mrb[0].mxu0
      %v523 = vadd.f32 0.0, %v522
      %v524 = vpop.f32.mrb[0].mxu0
      %525 = vmatprep.mubr.bf16.mxu0 0
      %526 = vmatmul.mubr.bf16.gmra.mrb[0].mxu0 %v391
      %v527 = vpop.f32.mrb[0].mxu0
      %v528 = vadd.f32 0.0, %v527
      %v529 = vpop.f32.mrb[0].mxu0
      %v530 = vpop.f32.mrb[0].mxu0
      %v531 = vadd.f32 0.0, %v530
      %v532 = vpop.f32.mrb[0].mxu0
      %533 = vmatprep.mubr.bf16.mxu0 0
      %534 = vmatmul.mubr.bf16.gmra.mrb[0].mxu0 %v394
      %v535 = vpop.f32.mrb[0].mxu0
      %v536 = vadd.f32 0.0, %v535
      %v537 = vpop.f32.mrb[0].mxu0
      %v538 = vpop.f32.mrb[0].mxu0
      %v539 = vadd.f32 0.0, %v538
      %v540 = vpop.f32.mrb[0].mxu0
      %541 = vmatprep.mubr.bf16.mxu0 0
      %542 = vmatmul.mubr.bf16.gmra.mrb[0].mxu0 %v397
      %v543 = vpop.f32.mrb[0].mxu0
      %v544 = vadd.f32 0.0, %v543
      %v545 = vpop.f32.mrb[0].mxu0
      %v546 = vpop.f32.mrb[0].mxu0
      %v547 = vadd.f32 0.0, %v546
      %v548 = vpop.f32.mrb[0].mxu0
      %549 = vmatprep.mubr.bf16.mxu0 0
      %550 = vmatmul.mubr.bf16.gmra.mrb[0].mxu0 %v400
      %v551 = vpop.f32.mrb[0].mxu0
      %v552 = vadd.f32 0.0, %v551
      %v553 = vpop.f32.mrb[0].mxu0
      %v554 = vpop.f32.mrb[0].mxu0
      %v555 = vadd.f32 0.0, %v554
      %v556 = vpop.f32.mrb[0].mxu0
      %557 = vmatprep.mubr.bf16.mxu0 0
      %558 = vmatmul.mubr.bf16.gmra.mrb[0].mxu0 %v403
      %v559 = vpop.f32.mrb[0].mxu0
      %v560 = vadd.f32 0.0, %v559
      %v561 = vpop.f32.mrb[0].mxu0
      %v562 = vpop.f32.mrb[0].mxu0
      %v563 = vadd.f32 0.0, %v562
      %v564 = vpop.f32.mrb[0].mxu0
      %565 = vmatprep.mubr.bf16.mxu0 0
      %566 = vmatmul.mubr.bf16.gmra.mrb[0].mxu0 %v406
      %v567 = vpop.f32.mrb[0].mxu0
      %v568 = vadd.f32 0.0, %v567
      %v569 = vpop.f32.mrb[0].mxu0
      %v570 = vpop.f32.mrb[0].mxu0
      %v571 = vadd.f32 0.0, %v570
      %v572 = vpop.f32.mrb[0].mxu0
      %573 = vmatprep.mubr.bf16.mxu0 0
      %574 = vmatmul.mubr.bf16.gmra.mrb[0].mxu0 %v409
      %v575 = vpop.f32.mrb[0].mxu0
      %v576 = vadd.f32 0.0, %v575
      %v577 = vpop.f32.mrb[0].mxu0
      %v578 = vpop.f32.mrb[0].mxu0
      %v579 = vadd.f32 0.0, %v578
      %v580 = vpop.f32.mrb[0].mxu0
      %581 = vmatprep.mubr.bf16.mxu0 0
      %582 = vmatmul.mubr.bf16.gmra.mrb[0].mxu0 %v412
      %v583 = vpop.f32.mrb[0].mxu0
      %v584 = vadd.f32 0.0, %v583
      %v585 = vpop.f32.mrb[0].mxu0
      %v586 = vpop.f32.mrb[0].mxu0
      %v587 = vadd.f32 0.0, %v586
      %v588 = vpop.f32.mrb[0].mxu0
      %589 = vmatprep.mubr.bf16.mxu0 0
      %590 = vmatmul.mubr.bf16.gmra.mrb[0].mxu0 %v415
      %v591 = vpop.f32.mrb[0].mxu0
      %v592 = vadd.f32 0.0, %v591
      %v593 = vpop.f32.mrb[0].mxu0
      %v594 = vpop.f32.mrb[0].mxu0
      %v595 = vadd.f32 0.0, %v594
      %v596 = vpop.f32.mrb[0].mxu0
      %597 = vdwg.mxu0
      %v598 = vpack.c.bf16 %v459, %v456
      %v599 = vpack.c.bf16 %v467, %v464
      %v600 = vpack.c.bf16 %v475, %v472
      %v601 = vpack.c.bf16 %v483, %v480
      %v602 = vpack.c.bf16 %v491, %v488
      %v603 = vpack.c.bf16 %v499, %v496
      %v604 = vpack.c.bf16 %v507, %v504
      %v605 = vpack.c.bf16 %v515, %v512
      %v606 = vpack.c.bf16 %v523, %v520
      %v607 = vpack.c.bf16 %v531, %v528
      %v608 = vpack.c.bf16 %v539, %v536
      %v609 = vpack.c.bf16 %v547, %v544
      %v610 = vpack.c.bf16 %v555, %v552
      %v611 = vpack.c.bf16 %v563, %v560
      %v612 = vpack.c.bf16 %v571, %v568
      %v613 = vpack.c.bf16 %v579, %v576
      %v614 = vpack.c.bf16 %v587, %v584
      %v615 = vpack.c.bf16 %v595, %v592
      %v634 = vunpack.c.l.b16 %v598
      %v635 = vunpack.c.h.b16 %v598
      %v636 = vunpack.c.l.b16 %v599
      %v637 = vunpack.c.h.b16 %v599
      %v638 = vunpack.c.l.b16 %v600
      %v639 = vunpack.c.h.b16 %v600
      %v640 = vunpack.c.l.b16 %v601
      %v641 = vunpack.c.h.b16 %v601
      %v642 = vunpack.c.l.b16 %v602
      %v643 = vunpack.c.h.b16 %v602
      %v644 = vunpack.c.l.b16 %v603
      %v645 = vunpack.c.h.b16 %v603
      %v646 = vunpack.c.l.b16 %v604
      %v647 = vunpack.c.h.b16 %v604
      %v648 = vunpack.c.l.b16 %v605
      %v649 = vunpack.c.h.b16 %v605
      %v650 = vunpack.c.l.b16 %v606
      %v651 = vunpack.c.h.b16 %v606
      %v652 = vunpack.c.l.b16 %v607
      %v653 = vunpack.c.h.b16 %v607
      %v654 = vunpack.c.l.b16 %v608
      %v655 = vunpack.c.h.b16 %v608
      %v656 = vunpack.c.l.b16 %v609
      %v657 = vunpack.c.h.b16 %v609
      %v658 = vunpack.c.l.b16 %v610
      %v659 = vunpack.c.h.b16 %v610
      %v660 = vunpack.c.l.b16 %v611
      %v661 = vunpack.c.h.b16 %v611
      %v662 = vunpack.c.l.b16 %v612
      %v663 = vunpack.c.h.b16 %v612
      %v664 = vunpack.c.l.b16 %v613
      %v665 = vunpack.c.h.b16 %v613
      %v666 = vunpack.c.l.b16 %v614
      %v667 = vunpack.c.h.b16 %v614
      %v668 = vunpack.c.l.b16 %v615
      %v669 = vunpack.c.h.b16 %v615
      %v670 = vpack.c.b16 %v634, %v634
      %v671 = vpack.c.b16 %v635, %v635
      %v672 = vpack.c.b16 %v636, %v636
      %v673 = vpack.c.b16 %v637, %v637
      %v674 = vpack.c.b16 %v638, %v638
      %v675 = vpack.c.b16 %v639, %v639
      %v676 = vpack.c.b16 %v640, %v640
      %v677 = vpack.c.b16 %v641, %v641
      %v678 = vpack.c.b16 %v642, %v642
      %v679 = vpack.c.b16 %v643, %v643
      %v680 = vpack.c.b16 %v644, %v644
      %v681 = vpack.c.b16 %v645, %v645
      %v682 = vpack.c.b16 %v646, %v646
      %v683 = vpack.c.b16 %v647, %v647
      %v684 = vpack.c.b16 %v648, %v648
      %v685 = vpack.c.b16 %v649, %v649
      %v686 = vpack.c.b16 %v650, %v650
      %v687 = vpack.c.b16 %v651, %v651
      %v688 = vpack.c.b16 %v652, %v652
      %v689 = vpack.c.b16 %v653, %v653
      %v690 = vpack.c.b16 %v654, %v654
      %v691 = vpack.c.b16 %v655, %v655
      %v692 = vpack.c.b16 %v656, %v656
      %v693 = vpack.c.b16 %v657, %v657
      %v694 = vpack.c.b16 %v658, %v658
      %v695 = vpack.c.b16 %v659, %v659
      %v696 = vpack.c.b16 %v660, %v660
      %v697 = vpack.c.b16 %v661, %v661
      %v698 = vpack.c.b16 %v662, %v662
      %v699 = vpack.c.b16 %v663, %v663
      %v700 = vpack.c.b16 %v664, %v664
      %v701 = vpack.c.b16 %v665, %v665
      %v702 = vpack.c.b16 %v666, %v666
      %v703 = vpack.c.b16 %v667, %v667
      %v704 = vpack.c.b16 %v668, %v668
      %v705 = vpack.c.b16 %v669, %v669
      %742 = vst [vmem:[%s208] sm:$0xf] %v670
      %743 = vst [vmem:[%s208 + $0x4] sm:$0xf] %v671
      %744 = vst [vmem:[%s208 + $0x8] sm:$0xf] %v672
      %745 = vst [vmem:[%s208 + $0xc] sm:$0xf] %v673
      %746 = vst [vmem:[%s208 + $0x10] sm:$0xf] %v674
      %747 = vst [vmem:[%s208 + $0x14] sm:$0xf] %v675
      %748 = vst [vmem:[%s208 + $0x18] sm:$0xf] %v676
      %749 = vst [vmem:[%s208 + $0x1c] sm:$0xf] %v677
      %750 = vst [vmem:[%s208 + $0x20] sm:$0xf] %v678
      %751 = vst [vmem:[%s208 + $0x24] sm:$0xf] %v679
      %752 = vst [vmem:[%s208 + $0x28] sm:$0xf] %v680
      %753 = vst [vmem:[%s208 + $0x2c] sm:$0xf] %v681
      %754 = vst [vmem:[%s208 + $0x30] sm:$0xf] %v682
      %755 = vst [vmem:[%s208 + $0x34] sm:$0xf] %v683
      %756 = vst [vmem:[%s208 + $0x38] sm:$0xf] %v684
      %757 = vst [vmem:[%s208 + $0x3c] sm:$0xf] %v685
      %758 = vst [vmem:[%s208 + $0x40] sm:$0xf] %v686
      %759 = vst [vmem:[%s208 + $0x44] sm:$0xf] %v687
      %760 = vst [vmem:[%s208 + $0x48] sm:$0xf] %v688
      %761 = vst [vmem:[%s208 + $0x4c] sm:$0xf] %v689
      %762 = vst [vmem:[%s208 + $0x50] sm:$0xf] %v690
      %763 = vst [vmem:[%s208 + $0x54] sm:$0xf] %v691
      %764 = vst [vmem:[%s208 + $0x58] sm:$0xf] %v692
      %765 = vst [vmem:[%s208 + $0x5c] sm:$0xf] %v693
      %766 = vst [vmem:[%s208 + $0x60] sm:$0xf] %v694
      %767 = vst [vmem:[%s208 + $0x64] sm:$0xf] %v695
      %768 = vst [vmem:[%s208 + $0x68] sm:$0xf] %v696
      %769 = vst [vmem:[%s208 + $0x6c] sm:$0xf] %v697
      %770 = vst [vmem:[%s208 + $0x70] sm:$0xf] %v698
      %771 = vst [vmem:[%s208 + $0x74] sm:$0xf] %v699
      %772 = vst [vmem:[%s208 + $0x78] sm:$0xf] %v700
      %773 = vst [vmem:[%s208 + $0x7c] sm:$0xf] %v701
      %774 = vst [vmem:[%s208 + $0x80] sm:$0xf] %v702
      %775 = vst [vmem:[%s208 + $0x84] sm:$0xf] %v703
      %776 = vst [vmem:[%s208 + $0x88] sm:$0xf] %v704
      %777 = vst [vmem:[%s208 + $0x8c] sm:$0xf] %v705
      %v778 = vlaneseq
      %v779 = vshrl.u32 %v778, 7
      %v780 = vadd.s32 %v779, 8
      %v781 = vadd.s32 %v779, 16
      %v782 = vadd.s32 %v779, 24
      %v783 = vadd.s32 %v779, 32
      %v784 = vadd.s32 %v779, 40
      %v785 = vadd.s32 %v779, 48
      %v786 = vadd.s32 %v779, 56
      %v787 = vadd.s32 %v779, 64
      %v788 = vadd.s32 %v779, 72
      %v789 = vadd.s32 %v779, 80
      %v790 = vadd.s32 %v779, 88
      %v791 = vadd.s32 %v779, 96
      %v792 = vadd.s32 %v779, 104
      %v793 = vadd.s32 %v779, 112
      %v794 = vadd.s32 %v779, 120
      %v795 = vadd.s32 %v779, 128
      %v796 = vadd.s32 %v779, 136
      %v797 = vadd.s32 %v779, 144
      %v798 = vadd.s32 %v779, 152
      %v799 = vadd.s32 %v779, 160
      %v800 = vadd.s32 %v779, 168
      %v801 = vadd.s32 %v779, 176
      %v802 = vadd.s32 %v779, 184
      %v803 = vadd.s32 %v779, 192
      %v804 = vadd.s32 %v779, 200
      %v805 = vadd.s32 %v779, 208
      %v806 = vadd.s32 %v779, 216
      %v807 = vadd.s32 %v779, 224
      %v808 = vadd.s32 %v779, 232
      %v809 = vadd.s32 %v779, 240
      %v810 = vadd.s32 %v779, 248
      %v811 = vadd.s32 %v779, 256
      %v812 = vadd.s32 %v779, 264
      %v813 = vadd.s32 %v779, 272
      %v814 = vadd.s32 %v779, 280
      %v815 = vcvt.s32.f32 %v779
      %v816 = vcvt.s32.f32 %v780
      %v817 = vcvt.s32.f32 %v781
      %v818 = vcvt.s32.f32 %v782
      %v819 = vcvt.s32.f32 %v783
      %v820 = vcvt.s32.f32 %v784
      %v821 = vcvt.s32.f32 %v785
      %v822 = vcvt.s32.f32 %v786
      %v823 = vcvt.s32.f32 %v787
      %v824 = vcvt.s32.f32 %v788
      %v825 = vcvt.s32.f32 %v789
      %v826 = vcvt.s32.f32 %v790
      %v827 = vcvt.s32.f32 %v791
      %v828 = vcvt.s32.f32 %v792
      %v829 = vcvt.s32.f32 %v793
      %v830 = vcvt.s32.f32 %v794
      %v831 = vcvt.s32.f32 %v795
      %v832 = vcvt.s32.f32 %v796
      %v833 = vcvt.s32.f32 %v797
      %v834 = vcvt.s32.f32 %v798
      %v835 = vcvt.s32.f32 %v799
      %v836 = vcvt.s32.f32 %v800
      %v837 = vcvt.s32.f32 %v801
      %v838 = vcvt.s32.f32 %v802
      %v839 = vcvt.s32.f32 %v803
      %v840 = vcvt.s32.f32 %v804
      %v841 = vcvt.s32.f32 %v805
      %v842 = vcvt.s32.f32 %v806
      %v843 = vcvt.s32.f32 %v807
      %v844 = vcvt.s32.f32 %v808
      %v845 = vcvt.s32.f32 %v809
      %v846 = vcvt.s32.f32 %v810
      %v847 = vcvt.s32.f32 %v811
      %v848 = vcvt.s32.f32 %v812
      %v849 = vcvt.s32.f32 %v813
      %v850 = vcvt.s32.f32 %v814
      %v851 = vadd.f32 %v815, 0.5
      %v852 = vadd.f32 %v816, 0.5
      %v853 = vadd.f32 %v817, 0.5
      %v854 = vadd.f32 %v818, 0.5
      %v855 = vadd.f32 %v819, 0.5
      %v856 = vadd.f32 %v820, 0.5
      %v857 = vadd.f32 %v821, 0.5
      %v858 = vadd.f32 %v822, 0.5
      %v859 = vadd.f32 %v823, 0.5
      %v860 = vadd.f32 %v824, 0.5
      %v861 = vadd.f32 %v825, 0.5
      %v862 = vadd.f32 %v826, 0.5
      %v863 = vadd.f32 %v827, 0.5
      %v864 = vadd.f32 %v828, 0.5
      %v865 = vadd.f32 %v829, 0.5
      %v866 = vadd.f32 %v830, 0.5
      %v867 = vadd.f32 %v831, 0.5
      %v868 = vadd.f32 %v832, 0.5
      %v869 = vadd.f32 %v833, 0.5
      %v870 = vadd.f32 %v834, 0.5
      %v871 = vadd.f32 %v835, 0.5
      %v872 = vadd.f32 %v836, 0.5
      %v873 = vadd.f32 %v837, 0.5
      %v874 = vadd.f32 %v838, 0.5
      %v875 = vadd.f32 %v839, 0.5
      %v876 = vadd.f32 %v840, 0.5
      %v877 = vadd.f32 %v841, 0.5
      %v878 = vadd.f32 %v842, 0.5
      %v879 = vadd.f32 %v843, 0.5
      %v880 = vadd.f32 %v844, 0.5
      %v881 = vadd.f32 %v845, 0.5
      %v882 = vadd.f32 %v846, 0.5
      %v883 = vadd.f32 %v847, 0.5
      %v884 = vadd.f32 %v848, 0.5
      %v885 = vadd.f32 %v849, 0.5
      %v886 = vadd.f32 %v850, 0.5
      %v887 = vmul.f32 %v851, 0.055555556
      %v888 = vmul.f32 %v852, 0.055555556
      %v889 = vmul.f32 %v853, 0.055555556
      %v890 = vmul.f32 %v854, 0.055555556
      %v891 = vmul.f32 %v855, 0.055555556
      %v892 = vmul.f32 %v856, 0.055555556
      %v893 = vmul.f32 %v857, 0.055555556
      %v894 = vmul.f32 %v858, 0.055555556
      %v895 = vmul.f32 %v859, 0.055555556
      %v896 = vmul.f32 %v860, 0.055555556
      %v897 = vmul.f32 %v861, 0.055555556
      %v898 = vmul.f32 %v862, 0.055555556
      %v899 = vmul.f32 %v863, 0.055555556
      %v900 = vmul.f32 %v864, 0.055555556
      %v901 = vmul.f32 %v865, 0.055555556
      %v902 = vmul.f32 %v866, 0.055555556
      %v903 = vmul.f32 %v867, 0.055555556
      %v904 = vmul.f32 %v868, 0.055555556
      %v905 = vmul.f32 %v869, 0.055555556
      %v906 = vmul.f32 %v870, 0.055555556
      %v907 = vmul.f32 %v871, 0.055555556
      %v908 = vmul.f32 %v872, 0.055555556
      %v909 = vmul.f32 %v873, 0.055555556
      %v910 = vmul.f32 %v874, 0.055555556
      %v911 = vmul.f32 %v875, 0.055555556
      %v912 = vmul.f32 %v876, 0.055555556
      %v913 = vmul.f32 %v877, 0.055555556
      %v914 = vmul.f32 %v878, 0.055555556
      %v915 = vmul.f32 %v879, 0.055555556
      %v916 = vmul.f32 %v880, 0.055555556
      %v917 = vmul.f32 %v881, 0.055555556
      %v918 = vmul.f32 %v882, 0.055555556
      %v919 = vmul.f32 %v883, 0.055555556
      %v920 = vmul.f32 %v884, 0.055555556
      %v921 = vmul.f32 %v885, 0.055555556
      %v922 = vmul.f32 %v886, 0.055555556
      %v923 = vfloor.f32 %v887
      %v924 = vfloor.f32 %v888
      %v925 = vfloor.f32 %v889
      %v926 = vfloor.f32 %v890
      %v927 = vfloor.f32 %v891
      %v928 = vfloor.f32 %v892
      %v929 = vfloor.f32 %v893
      %v930 = vfloor.f32 %v894
      %v931 = vfloor.f32 %v895
      %v932 = vfloor.f32 %v896
      %v933 = vfloor.f32 %v897
      %v934 = vfloor.f32 %v898
      %v935 = vfloor.f32 %v899
      %v936 = vfloor.f32 %v900
      %v937 = vfloor.f32 %v901
      %v938 = vfloor.f32 %v902
      %v939 = vfloor.f32 %v903
      %v940 = vfloor.f32 %v904
      %v941 = vfloor.f32 %v905
      %v942 = vfloor.f32 %v906
      %v943 = vfloor.f32 %v907
      %v944 = vfloor.f32 %v908
      %v945 = vfloor.f32 %v909
      %v946 = vfloor.f32 %v910
      %v947 = vfloor.f32 %v911
      %v948 = vfloor.f32 %v912
      %v949 = vfloor.f32 %v913
      %v950 = vfloor.f32 %v914
      %v951 = vfloor.f32 %v915
      %v952 = vfloor.f32 %v916
      %v953 = vfloor.f32 %v917
      %v954 = vfloor.f32 %v918
      %v955 = vfloor.f32 %v919
      %v956 = vfloor.f32 %v920
      %v957 = vfloor.f32 %v921
      %v958 = vfloor.f32 %v922
      %v959 = vmul.f32 %v923, 18.0
      %v960 = vmul.f32 %v924, 18.0
      %v961 = vmul.f32 %v925, 18.0
      %v962 = vmul.f32 %v926, 18.0
      %v963 = vmul.f32 %v927, 18.0
      %v964 = vmul.f32 %v928, 18.0
      %v965 = vmul.f32 %v929, 18.0
      %v966 = vmul.f32 %v930, 18.0
      %v967 = vmul.f32 %v931, 18.0
      %v968 = vmul.f32 %v932, 18.0
      %v969 = vmul.f32 %v933, 18.0
      %v970 = vmul.f32 %v934, 18.0
      %v971 = vmul.f32 %v935, 18.0
      %v972 = vmul.f32 %v936, 18.0
      %v973 = vmul.f32 %v937, 18.0
      %v974 = vmul.f32 %v938, 18.0
      %v975 = vmul.f32 %v939, 18.0
      %v976 = vmul.f32 %v940, 18.0
      %v977 = vmul.f32 %v941, 18.0
      %v978 = vmul.f32 %v942, 18.0
      %v979 = vmul.f32 %v943, 18.0
      %v980 = vmul.f32 %v944, 18.0
      %v981 = vmul.f32 %v945, 18.0
      %v982 = vmul.f32 %v946, 18.0
      %v983 = vmul.f32 %v947, 18.0
      %v984 = vmul.f32 %v948, 18.0
      %v985 = vmul.f32 %v949, 18.0
      %v986 = vmul.f32 %v950, 18.0
      %v987 = vmul.f32 %v951, 18.0
      %v988 = vmul.f32 %v952, 18.0
      %v989 = vmul.f32 %v953, 18.0
      %v990 = vmul.f32 %v954, 18.0
      %v991 = vmul.f32 %v955, 18.0
      %v992 = vmul.f32 %v956, 18.0
      %v993 = vmul.f32 %v957, 18.0
      %v994 = vmul.f32 %v958, 18.0
      %v995 = vsub.f32 %v815, %v959
      %v996 = vsub.f32 %v816, %v960
      %v997 = vsub.f32 %v817, %v961
      %v998 = vsub.f32 %v818, %v962
      %v999 = vsub.f32 %v819, %v963
      %v1000 = vsub.f32 %v820, %v964
      %v1001 = vsub.f32 %v821, %v965
      %v1002 = vsub.f32 %v822, %v966
      %v1003 = vsub.f32 %v823, %v967
      %v1004 = vsub.f32 %v824, %v968
      %v1005 = vsub.f32 %v825, %v969
      %v1006 = vsub.f32 %v826, %v970
      %v1007 = vsub.f32 %v827, %v971
      %v1008 = vsub.f32 %v828, %v972
      %v1009 = vsub.f32 %v829, %v973
      %v1010 = vsub.f32 %v830, %v974
      %v1011 = vsub.f32 %v831, %v975
      %v1012 = vsub.f32 %v832, %v976
      %v1013 = vsub.f32 %v833, %v977
      %v1014 = vsub.f32 %v834, %v978
      %v1015 = vsub.f32 %v835, %v979
      %v1016 = vsub.f32 %v836, %v980
      %v1017 = vsub.f32 %v837, %v981
      %v1018 = vsub.f32 %v838, %v982
      %v1019 = vsub.f32 %v839, %v983
      %v1020 = vsub.f32 %v840, %v984
      %v1021 = vsub.f32 %v841, %v985
      %v1022 = vsub.f32 %v842, %v986
      %v1023 = vsub.f32 %v843, %v987
      %v1024 = vsub.f32 %v844, %v988
      %v1025 = vsub.f32 %v845, %v989
      %v1026 = vsub.f32 %v846, %v990
      %v1027 = vsub.f32 %v847, %v991
      %v1028 = vsub.f32 %v848, %v992
      %v1029 = vsub.f32 %v849, %v993
      %v1030 = vsub.f32 %v850, %v994
      %vm1031 = vcmp.lt.f32.partialorder %v995, 15.5
      %vm1032 = vcmp.lt.f32.partialorder %v996, 15.5
      %vm1033 = vcmp.lt.f32.partialorder %v997, 15.5
      %vm1034 = vcmp.lt.f32.partialorder %v998, 15.5
      %vm1035 = vcmp.lt.f32.partialorder %v999, 15.5
      %vm1036 = vcmp.lt.f32.partialorder %v1000, 15.5
      %vm1037 = vcmp.lt.f32.partialorder %v1001, 15.5
      %vm1038 = vcmp.lt.f32.partialorder %v1002, 15.5
      %vm1039 = vcmp.lt.f32.partialorder %v1003, 15.5
      %vm1040 = vcmp.lt.f32.partialorder %v1004, 15.5
      %vm1041 = vcmp.lt.f32.partialorder %v1005, 15.5
      %vm1042 = vcmp.lt.f32.partialorder %v1006, 15.5
      %vm1043 = vcmp.lt.f32.partialorder %v1007, 15.5
      %vm1044 = vcmp.lt.f32.partialorder %v1008, 15.5
      %vm1045 = vcmp.lt.f32.partialorder %v1009, 15.5
      %vm1046 = vcmp.lt.f32.partialorder %v1010, 15.5
      %vm1047 = vcmp.lt.f32.partialorder %v1011, 15.5
      %vm1048 = vcmp.lt.f32.partialorder %v1012, 15.5
      %vm1049 = vcmp.lt.f32.partialorder %v1013, 15.5
      %vm1050 = vcmp.lt.f32.partialorder %v1014, 15.5
      %vm1051 = vcmp.lt.f32.partialorder %v1015, 15.5
      %vm1052 = vcmp.lt.f32.partialorder %v1016, 15.5
      %vm1053 = vcmp.lt.f32.partialorder %v1017, 15.5
      %vm1054 = vcmp.lt.f32.partialorder %v1018, 15.5
      %vm1055 = vcmp.lt.f32.partialorder %v1019, 15.5
      %vm1056 = vcmp.lt.f32.partialorder %v1020, 15.5
      %vm1057 = vcmp.lt.f32.partialorder %v1021, 15.5
      %vm1058 = vcmp.lt.f32.partialorder %v1022, 15.5
      %vm1059 = vcmp.lt.f32.partialorder %v1023, 15.5
      %vm1060 = vcmp.lt.f32.partialorder %v1024, 15.5
      %vm1061 = vcmp.lt.f32.partialorder %v1025, 15.5
      %vm1062 = vcmp.lt.f32.partialorder %v1026, 15.5
      %vm1063 = vcmp.lt.f32.partialorder %v1027, 15.5
      %vm1064 = vcmp.lt.f32.partialorder %v1028, 15.5
      %vm1065 = vcmp.lt.f32.partialorder %v1029, 15.5
      %vm1066 = vcmp.lt.f32.partialorder %v1030, 15.5
      %v1067 = vsel %vm1031, 1, 0
      %v1068 = vsel %vm1032, 1, 0
      %v1069 = vsel %vm1033, 1, 0
      %v1070 = vsel %vm1034, 1, 0
      %v1071 = vsel %vm1035, 1, 0
      %v1072 = vsel %vm1036, 1, 0
      %v1073 = vsel %vm1037, 1, 0
      %v1074 = vsel %vm1038, 1, 0
      %v1075 = vsel %vm1039, 1, 0
      %v1076 = vsel %vm1040, 1, 0
      %v1077 = vsel %vm1041, 1, 0
      %v1078 = vsel %vm1042, 1, 0
      %v1079 = vsel %vm1043, 1, 0
      %v1080 = vsel %vm1044, 1, 0
      %v1081 = vsel %vm1045, 1, 0
      %v1082 = vsel %vm1046, 1, 0
      %v1083 = vsel %vm1047, 1, 0
      %v1084 = vsel %vm1048, 1, 0
      %v1085 = vsel %vm1049, 1, 0
      %v1086 = vsel %vm1050, 1, 0
      %v1087 = vsel %vm1051, 1, 0
      %v1088 = vsel %vm1052, 1, 0
      %v1089 = vsel %vm1053, 1, 0
      %v1090 = vsel %vm1054, 1, 0
      %v1091 = vsel %vm1055, 1, 0
      %v1092 = vsel %vm1056, 1, 0
      %v1093 = vsel %vm1057, 1, 0
      %v1094 = vsel %vm1058, 1, 0
      %v1095 = vsel %vm1059, 1, 0
      %v1096 = vsel %vm1060, 1, 0
      %v1097 = vsel %vm1061, 1, 0
      %v1098 = vsel %vm1062, 1, 0
      %v1099 = vsel %vm1063, 1, 0
      %v1100 = vsel %vm1064, 1, 0
      %v1101 = vsel %vm1065, 1, 0
      %v1102 = vsel %vm1066, 1, 0
      %v1103 = vcvt.s32.f32 %v1067
      %v1104 = vcvt.s32.f32 %v1068
      %v1105 = vcvt.s32.f32 %v1069
      %v1106 = vcvt.s32.f32 %v1070
      %v1107 = vcvt.s32.f32 %v1071
      %v1108 = vcvt.s32.f32 %v1072
      %v1109 = vcvt.s32.f32 %v1073
      %v1110 = vcvt.s32.f32 %v1074
      %v1111 = vcvt.s32.f32 %v1075
      %v1112 = vcvt.s32.f32 %v1076
      %v1113 = vcvt.s32.f32 %v1077
      %v1114 = vcvt.s32.f32 %v1078
      %v1115 = vcvt.s32.f32 %v1079
      %v1116 = vcvt.s32.f32 %v1080
      %v1117 = vcvt.s32.f32 %v1081
      %v1118 = vcvt.s32.f32 %v1082
      %v1119 = vcvt.s32.f32 %v1083
      %v1120 = vcvt.s32.f32 %v1084
      %v1121 = vcvt.s32.f32 %v1085
      %v1122 = vcvt.s32.f32 %v1086
      %v1123 = vcvt.s32.f32 %v1087
      %v1124 = vcvt.s32.f32 %v1088
      %v1125 = vcvt.s32.f32 %v1089
      %v1126 = vcvt.s32.f32 %v1090
      %v1127 = vcvt.s32.f32 %v1091
      %v1128 = vcvt.s32.f32 %v1092
      %v1129 = vcvt.s32.f32 %v1093
      %v1130 = vcvt.s32.f32 %v1094
      %v1131 = vcvt.s32.f32 %v1095
      %v1132 = vcvt.s32.f32 %v1096
      %v1133 = vcvt.s32.f32 %v1097
      %v1134 = vcvt.s32.f32 %v1098
      %v1135 = vcvt.s32.f32 %v1099
      %v1136 = vcvt.s32.f32 %v1100
      %v1137 = vcvt.s32.f32 %v1101
      %v1138 = vcvt.s32.f32 %v1102
      %v1139 = vmul.f32 %v456, %v1103
      %v1140 = vmul.f32 %v459, %v1104
      %v1141 = vmul.f32 %v464, %v1105
      %v1142 = vmul.f32 %v467, %v1106
      %v1143 = vmul.f32 %v472, %v1107
      %v1144 = vmul.f32 %v475, %v1108
      %v1145 = vmul.f32 %v480, %v1109
      %v1146 = vmul.f32 %v483, %v1110
      %v1147 = vmul.f32 %v488, %v1111
      %v1148 = vmul.f32 %v491, %v1112
      %v1149 = vmul.f32 %v496, %v1113
      %v1150 = vmul.f32 %v499, %v1114
      %v1151 = vmul.f32 %v504, %v1115
      %v1152 = vmul.f32 %v507, %v1116
      %v1153 = vmul.f32 %v512, %v1117
      %v1154 = vmul.f32 %v515, %v1118
      %v1155 = vmul.f32 %v520, %v1119
      %v1156 = vmul.f32 %v523, %v1120
      %v1157 = vmul.f32 %v528, %v1121
      %v1158 = vmul.f32 %v531, %v1122
      %v1159 = vmul.f32 %v536, %v1123
      %v1160 = vmul.f32 %v539, %v1124
      %v1161 = vmul.f32 %v544, %v1125
      %v1162 = vmul.f32 %v547, %v1126
      %v1163 = vmul.f32 %v552, %v1127
      %v1164 = vmul.f32 %v555, %v1128
      %v1165 = vmul.f32 %v560, %v1129
      %v1166 = vmul.f32 %v563, %v1130
      %v1167 = vmul.f32 %v568, %v1131
      %v1168 = vmul.f32 %v571, %v1132
      %v1169 = vmul.f32 %v576, %v1133
      %v1170 = vmul.f32 %v579, %v1134
      %v1171 = vmul.f32 %v584, %v1135
      %v1172 = vmul.f32 %v587, %v1136
      %v1173 = vmul.f32 %v592, %v1137
      %v1174 = vmul.f32 %v595, %v1138
      %v1175 = vadd.f32 %v1139, %v1140
      %v1176 = vadd.f32 %v1175, %v1141
      %v1177 = vadd.f32 %v1176, %v1142
      %v1178 = vadd.f32 %v1177, %v1143
      %v1179 = vadd.f32 %v1178, %v1144
      %v1180 = vadd.f32 %v1179, %v1145
      %v1181 = vadd.f32 %v1180, %v1146
      %v1182 = vadd.f32 %v1181, %v1147
      %v1183 = vadd.f32 %v1182, %v1148
      %v1184 = vadd.f32 %v1183, %v1149
      %v1185 = vadd.f32 %v1184, %v1150
      %v1186 = vadd.f32 %v1185, %v1151
      %v1187 = vadd.f32 %v1186, %v1152
      %v1188 = vadd.f32 %v1187, %v1153
      %v1189 = vadd.f32 %v1188, %v1154
      %v1190 = vadd.f32 %v1189, %v1155
      %v1191 = vadd.f32 %v1190, %v1156
      %v1192 = vadd.f32 %v1191, %v1157
      %v1193 = vadd.f32 %v1192, %v1158
      %v1194 = vadd.f32 %v1193, %v1159
      %v1195 = vadd.f32 %v1194, %v1160
      %v1196 = vadd.f32 %v1195, %v1161
      %v1197 = vadd.f32 %v1196, %v1162
      %v1198 = vadd.f32 %v1197, %v1163
      %v1199 = vadd.f32 %v1198, %v1164
      %v1200 = vadd.f32 %v1199, %v1165
      %v1201 = vadd.f32 %v1200, %v1166
      %v1202 = vadd.f32 %v1201, %v1167
      %v1203 = vadd.f32 %v1202, %v1168
      %v1204 = vadd.f32 %v1203, %v1169
      %v1205 = vadd.f32 %v1204, %v1170
      %v1206 = vadd.f32 %v1205, %v1171
      %v1207 = vadd.f32 %v1206, %v1172
      %v1208 = vadd.f32 %v1207, %v1173
      %v1209 = vadd.f32 %v1208, %v1174
      %v1210 = vrot.slane %v1209, 4
      %v1211 = vadd.f32 %v1209, %v1210
      %v1212 = vrot.slane %v1211, 2
      %v1213 = vadd.f32 %v1211, %v1212
      %v1214 = vrot.slane %v1213, 1
      %v1215 = vadd.f32 %v1213, %v1214
      %1216 = vst [vmem:[%s211] sm:$0x1] %v1215
      %v1217 = vmul.f32 %v1139, %v1139
      %v1218 = vmul.f32 %v1140, %v1140
      %v1219 = vmul.f32 %v1141, %v1141
      %v1220 = vmul.f32 %v1142, %v1142
      %v1221 = vmul.f32 %v1143, %v1143
      %v1222 = vmul.f32 %v1144, %v1144
      %v1223 = vmul.f32 %v1145, %v1145
      %v1224 = vmul.f32 %v1146, %v1146
      %v1225 = vmul.f32 %v1147, %v1147
      %v1226 = vmul.f32 %v1148, %v1148
      %v1227 = vmul.f32 %v1149, %v1149
      %v1228 = vmul.f32 %v1150, %v1150
      %v1229 = vmul.f32 %v1151, %v1151
      %v1230 = vmul.f32 %v1152, %v1152
      %v1231 = vmul.f32 %v1153, %v1153
      %v1232 = vmul.f32 %v1154, %v1154
      %v1233 = vmul.f32 %v1155, %v1155
      %v1234 = vmul.f32 %v1156, %v1156
      %v1235 = vmul.f32 %v1157, %v1157
      %v1236 = vmul.f32 %v1158, %v1158
      %v1237 = vmul.f32 %v1159, %v1159
      %v1238 = vmul.f32 %v1160, %v1160
      %v1239 = vmul.f32 %v1161, %v1161
      %v1240 = vmul.f32 %v1162, %v1162
      %v1241 = vmul.f32 %v1163, %v1163
      %v1242 = vmul.f32 %v1164, %v1164
      %v1243 = vmul.f32 %v1165, %v1165
      %v1244 = vmul.f32 %v1166, %v1166
      %v1245 = vmul.f32 %v1167, %v1167
      %v1246 = vmul.f32 %v1168, %v1168
      %v1247 = vmul.f32 %v1169, %v1169
      %v1248 = vmul.f32 %v1170, %v1170
      %v1249 = vmul.f32 %v1171, %v1171
      %v1250 = vmul.f32 %v1172, %v1172
      %v1251 = vmul.f32 %v1173, %v1173
      %v1252 = vmul.f32 %v1174, %v1174
      %v1253 = vadd.f32 %v1217, %v1218
      %v1254 = vadd.f32 %v1253, %v1219
      %v1255 = vadd.f32 %v1254, %v1220
      %v1256 = vadd.f32 %v1255, %v1221
      %v1257 = vadd.f32 %v1256, %v1222
      %v1258 = vadd.f32 %v1257, %v1223
      %v1259 = vadd.f32 %v1258, %v1224
      %v1260 = vadd.f32 %v1259, %v1225
      %v1261 = vadd.f32 %v1260, %v1226
      %v1262 = vadd.f32 %v1261, %v1227
      %v1263 = vadd.f32 %v1262, %v1228
      %v1264 = vadd.f32 %v1263, %v1229
      %v1265 = vadd.f32 %v1264, %v1230
      %v1266 = vadd.f32 %v1265, %v1231
      %v1267 = vadd.f32 %v1266, %v1232
      %v1268 = vadd.f32 %v1267, %v1233
      %v1269 = vadd.f32 %v1268, %v1234
      %v1270 = vadd.f32 %v1269, %v1235
      %v1271 = vadd.f32 %v1270, %v1236
      %v1272 = vadd.f32 %v1271, %v1237
      %v1273 = vadd.f32 %v1272, %v1238
      %v1274 = vadd.f32 %v1273, %v1239
      %v1275 = vadd.f32 %v1274, %v1240
      %v1276 = vadd.f32 %v1275, %v1241
      %v1277 = vadd.f32 %v1276, %v1242
      %v1278 = vadd.f32 %v1277, %v1243
      %v1279 = vadd.f32 %v1278, %v1244
      %v1280 = vadd.f32 %v1279, %v1245
      %v1281 = vadd.f32 %v1280, %v1246
      %v1282 = vadd.f32 %v1281, %v1247
      %v1283 = vadd.f32 %v1282, %v1248
      %v1284 = vadd.f32 %v1283, %v1249
      %v1285 = vadd.f32 %v1284, %v1250
      %v1286 = vadd.f32 %v1285, %v1251
      %v1287 = vadd.f32 %v1286, %v1252
      %v1288 = vrot.slane %v1287, 4
      %v1289 = vadd.f32 %v1287, %v1288
      %v1290 = vrot.slane %v1289, 2
      %v1291 = vadd.f32 %v1289, %v1290
      %v1292 = vrot.slane %v1291, 1
      %v1293 = vadd.f32 %v1291, %v1292
      %1294 = vst [vmem:[%s214] sm:$0x1] %v1293
      %p1295 = scmp.lt.s32.totalorder %s16, 1
      %s1296 = scalar_select %p1295, %s16, 1
      %s1297 = smul.addr %s1296, 36
      %s1298 = smul.addr %s1297, 4
      %s1299 = scalar_lea.vmem %s2, %s1298
      %p1300 = scmp.lt.s32.totalorder %s16, 1
      %s1301 = scalar_select %p1300, %s16, 1
      %s1302 = scalar_lea.vmem %s3, %s1301
      %p1303 = scmp.lt.s32.totalorder %s16, 1
      %s1304 = scalar_select %p1303, %s16, 1
      %s1305 = scalar_lea.vmem %s4, %s1304
      // Predicated region
      $region29: #{encoder_block_forward.3} parent=27 // pred_check
        %p1306 = pneg %p81
      $region30: #{encoder_block_forward.3} parent=27 // pred_check_branch
        %1308 = sbr.rel (%p1306) target = $region32
      $region31: #{encoder_block_forward.3} parent=27 // pred_region
        _
      $region32: #{encoder_block_forward.3} parent=27 // pred_fallthru
        _
      // Predicated region
      $region33: #{encoder_block_forward.3} parent=27 // pred_check
        %p1309 = pneg %p107
      $region34: #{encoder_block_forward.3} parent=27 // pred_check_branch
        %1311 = sbr.rel (%p1309) target = $region36
      $region35: #{encoder_block_forward.3} parent=27 // pred_region
        _
      $region36: #{encoder_block_forward.3} parent=27 // pred_fallthru
        _
      // Predicated region
      $region37: #{encoder_block_forward.3} parent=27 // pred_check
        %p1312 = pneg %p133
      $region38: #{encoder_block_forward.3} parent=27 // pred_check_branch
        %1314 = sbr.rel (%p1312) target = $region40
      $region39: #{encoder_block_forward.3} parent=27 // pred_region
        _
      $region40: #{encoder_block_forward.3} parent=27 // pred_fallthru
        _
    $region28: #{encoder_block_forward.3} parent=5 // pred_fallthru
      _
    %p1315 = scmp.le.s32.totalorder 2, %s11
    // Predicated region
    $region41: #{encoder_block_forward.3} parent=5 // pred_check
      %p1316 = pneg %p1315
    $region42: #{encoder_block_forward.3} parent=5 // pred_check_branch
      %1318 = sbr.rel (%p1316) target = $region44
    $region43: #{encoder_block_forward.3} parent=5 // pred_region
      %s1319 = ssub.s32 %s11, 2
      // Predicated region
      $region45: #{encoder_block_forward.3} parent=43 // pred_check
        %p1320 = pneg %p87
      $region46: #{encoder_block_forward.3} parent=43 // pred_check_branch
        %1322 = sbr.rel (%p1320) target = $region48
      $region47: #{encoder_block_forward.3} parent=43 // pred_region
        %p1323 = scmp.lt.s32.totalorder %s17, 1
        %s1324 = scalar_select %p1323, %s17, 1
        %s1325 = smul.addr %s1324, 36
        %s1326 = smul.addr %s1325, 4
        %s1327 = scalar_lea.vmem %s2, %s1326
      $region48: #{encoder_block_forward.3} parent=43 // pred_fallthru
        _
      // Predicated region
      $region49: #{encoder_block_forward.3} parent=43 // pred_check
        %p1328 = pneg %p113
      $region50: #{encoder_block_forward.3} parent=43 // pred_check_branch
        %1330 = sbr.rel (%p1328) target = $region52
      $region51: #{encoder_block_forward.3} parent=43 // pred_region
        %p1331 = scmp.lt.s32.totalorder %s17, 1
        %s1332 = scalar_select %p1331, %s17, 1
        %s1333 = scalar_lea.vmem %s3, %s1332
      $region52: #{encoder_block_forward.3} parent=43 // pred_fallthru
        _
      // Predicated region
      $region53: #{encoder_block_forward.3} parent=43 // pred_check
        %p1334 = pneg %p139
      $region54: #{encoder_block_forward.3} parent=43 // pred_check_branch
        %1336 = sbr.rel (%p1334) target = $region56
      $region55: #{encoder_block_forward.3} parent=43 // pred_region
        %p1337 = scmp.lt.s32.totalorder %s17, 1
        %s1338 = scalar_select %p1337, %s17, 1
        %s1339 = scalar_lea.vmem %s4, %s1338
      $region56: #{encoder_block_forward.3} parent=43 // pred_fallthru
        _
    $region44: #{encoder_block_forward.3} parent=5 // pred_fallthru
      _
  $region6: #{encoder_block_forward.3} parent=0 // loop_footer
    %s15 = sadd.s32 1, %s11
  $region7: #{encoder_block_forward.3} parent=0 // loop_footer_branch
    %10 = sbr.rel target = $region3
  $region8: #{encoder_block_forward.3} parent=0 // loop_exit
    _

// kernel: encoder_block_forward.5
$region0: #{encoder_block_forward.5}
  #allocation0 [shape = 'u32[]', space=smem, size = 0x4, offset = 0x4, fixed_abs, tag = 'smem constant byte address 0x4 - core index']
  #allocation1 [shape = 'u32[144,128]{1,0:T(1,128)}', space=vmem, size = 0x12000, scoped, tag = 'internal scratch']
  %s0 = inlined_call_operand.vmem [shape: bf16[2,288,128], index: 0, kind: input, shape index: {}]
  %s1 = inlined_call_operand.vmem [shape: f32[1,128], index: 1, kind: input, shape index: {}]
  %s2 = inlined_call_operand.vmem [shape: f32[1,128], index: 2, kind: input, shape index: {}]
  %s3 = inlined_call_operand.vmem [shape: bf16[2,288,128], index: 3, kind: output, shape index: {0}]
  %s4 = inlined_call_operand.vmem [shape: bf16[2,8,8,128], index: 4, kind: output, shape index: {1}]
  %5 = xla_tuple %s3, %s4
  %s6 = sld [smem:[#allocation0]]
  $region53: #{encoder_block_forward.5} parent=0
    _
  %s8 = ssub.s32 1, %s6
  %s9 = scalar_select 0, %s8, %s6
  loop: start=0, step=1, limit=4
  $region2: #{encoder_block_forward.5} parent=0 // loop_pre_header
    _
  $region3: #{encoder_block_forward.5} parent=0 // loop_header
    %s11 = sphi 0, %s15
    %p12 = scmp.ge.s32.totalorder %s11, 4
    %s21 = sphi 0, %s23
    %s24 = sphi 0, %s21
    %s25 = sphi 0, %s24
    %s41 = sphi 0, %s25
    %s45 = sphi 0, %s45
    %s47 = sphi 0, %s45
    %s48 = sphi 0, %s47
    %s62 = sphi 0, %s48
    %s66 = sphi 0, %s66
    %s68 = sphi 0, %s66
    %s69 = sphi 0, %s68
    %s83 = sphi 0, %s69
    %s89 = sphi 0, %s91
    %s92 = sphi 0, %s89
    %s93 = sphi 0, %s92
    %s109 = sphi 0, %s93
    %s115 = sphi 0, %s117
    %s118 = sphi 0, %s115
    %s119 = sphi 0, %s118
    %s135 = sphi 0, %s119
  $region4: #{encoder_block_forward.5} parent=0 // loop_header_branch
    %14 = sbr.rel (%p12) target = $region8
  $region5: #{encoder_block_forward.5} parent=0 // loop_body
    %s16 = ssub.s32 %s11, 1
    %s17 = ssub.s32 %s11, 2
    %s18 = sadd.s32 %s11, 1
    %s19 = ssub.s32 %s11, %s18
    %p20 = scmp.eq.s32.totalorder %s19, 0
    %s22 = sadd.s32 %s21, 1
    %s23 = scalar_select %p20, %s21, %s22
    %p26 = pneg %p20
    %p27 = scmp.eq.s32.totalorder %s11, 1
    %p28 = por %p26, %p27
    %p29 = scmp.ne.s32.totalorder %s21, %s24
    %p30 = scmp.eq.s32.totalorder %s11, 0
    %p31 = por %p29, %p30
    %p32 = scmp.ne.s32.totalorder %s21, %s24
    %p33 = scmp.eq.s32.totalorder %s16, 1
    %p34 = por %p32, %p33
    %p35 = scmp.ne.s32.totalorder %s24, %s25
    %p36 = scmp.eq.s32.totalorder %s16, 0
    %p37 = por %p35, %p36
    %p38 = scmp.ne.s32.totalorder %s24, %s25
    %p39 = scmp.eq.s32.totalorder %s17, 1
    %p40 = por %p38, %p39
    %p42 = scmp.ne.s32.totalorder %s25, %s41
    %p43 = scmp.eq.s32.totalorder %s17, 0
    %p44 = por %p42, %p43
    %s46 = sadd.s32 %s45, 1
    %p49 = scmp.eq.s32.totalorder %s11, 1
    %p50 = scmp.ne.s32.totalorder %s45, %s47
    %p51 = scmp.eq.s32.totalorder %s11, 0
    %p52 = por %p50, %p51
    %p53 = scmp.ne.s32.totalorder %s45, %s47
    %p54 = scmp.eq.s32.totalorder %s16, 1
    %p55 = por %p53, %p54
    %p56 = scmp.ne.s32.totalorder %s47, %s48
    %p57 = scmp.eq.s32.totalorder %s16, 0
    %p58 = por %p56, %p57
    %p59 = scmp.ne.s32.totalorder %s47, %s48
    %p60 = scmp.eq.s32.totalorder %s17, 1
    %p61 = por %p59, %p60
    %p63 = scmp.ne.s32.totalorder %s48, %s62
    %p64 = scmp.eq.s32.totalorder %s17, 0
    %p65 = por %p63, %p64
    %s67 = sadd.s32 %s66, 1
    %p70 = scmp.eq.s32.totalorder %s11, 1
    %p71 = scmp.ne.s32.totalorder %s66, %s68
    %p72 = scmp.eq.s32.totalorder %s11, 0
    %p73 = por %p71, %p72
    %p74 = scmp.ne.s32.totalorder %s66, %s68
    %p75 = scmp.eq.s32.totalorder %s16, 1
    %p76 = por %p74, %p75
    %p77 = scmp.ne.s32.totalorder %s68, %s69
    %p78 = scmp.eq.s32.totalorder %s16, 0
    %p79 = por %p77, %p78
    %p80 = scmp.ne.s32.totalorder %s68, %s69
    %p81 = scmp.eq.s32.totalorder %s17, 1
    %p82 = por %p80, %p81
    %p84 = scmp.ne.s32.totalorder %s69, %s83
    %p85 = scmp.eq.s32.totalorder %s17, 0
    %p86 = por %p84, %p85
    %s87 = ssub.s32 %s11, %s18
    %p88 = scmp.eq.s32.totalorder %s87, 0
    %s90 = sadd.s32 %s89, 1
    %s91 = scalar_select %p88, %s89, %s90
    %p94 = pneg %p88
    %p95 = scmp.eq.s32.totalorder %s11, 1
    %p96 = por %p94, %p95
    %p97 = scmp.ne.s32.totalorder %s89, %s92
    %p98 = scmp.eq.s32.totalorder %s11, 0
    %p99 = por %p97, %p98
    %p100 = scmp.ne.s32.totalorder %s89, %s92
    %p101 = scmp.eq.s32.totalorder %s16, 1
    %p102 = por %p100, %p101
    %p103 = scmp.ne.s32.totalorder %s92, %s93
    %p104 = scmp.eq.s32.totalorder %s16, 0
    %p105 = por %p103, %p104
    %p106 = scmp.ne.s32.totalorder %s92, %s93
    %p107 = scmp.eq.s32.totalorder %s17, 1
    %p108 = por %p106, %p107
    %p110 = scmp.ne.s32.totalorder %s93, %s109
    %p111 = scmp.eq.s32.totalorder %s17, 0
    %p112 = por %p110, %p111
    %s113 = ssub.s32 %s11, %s18
    %p114 = scmp.eq.s32.totalorder %s113, 0
    %s116 = sadd.s32 %s115, 1
    %s117 = scalar_select %p114, %s115, %s116
    %p120 = pneg %p114
    %p121 = scmp.eq.s32.totalorder %s11, 1
    %p122 = por %p120, %p121
    %p123 = scmp.ne.s32.totalorder %s115, %s118
    %p124 = scmp.eq.s32.totalorder %s11, 0
    %p125 = por %p123, %p124
    %p126 = scmp.ne.s32.totalorder %s115, %s118
    %p127 = scmp.eq.s32.totalorder %s16, 1
    %p128 = por %p126, %p127
    %p129 = scmp.ne.s32.totalorder %s118, %s119
    %p130 = scmp.eq.s32.totalorder %s16, 0
    %p131 = por %p129, %p130
    %p132 = scmp.ne.s32.totalorder %s118, %s119
    %p133 = scmp.eq.s32.totalorder %s17, 1
    %p134 = por %p132, %p133
    %p136 = scmp.ne.s32.totalorder %s119, %s135
    %p137 = scmp.eq.s32.totalorder %s17, 0
    %p138 = por %p136, %p137
    %p139 = scmp.le.s32.totalorder 1, %s11
    %p140 = scmp.lt.s32.totalorder %s11, 3
    %p141 = pnand %p139, %p140
    %p142 = pneg %p141
    // Predicated region
    $region9: #{encoder_block_forward.5} parent=5 // pred_check
      _
    $region10: #{encoder_block_forward.5} parent=5 // pred_check_branch
      %144 = sbr.rel (%p141) target = $region12
    $region11: #{encoder_block_forward.5} parent=5 // pred_region
      %s145 = ssub.s32 %s11, 1
      // Predicated region
      $region13: #{encoder_block_forward.5} parent=11 // pred_check
        %p146 = pneg %p58
      $region14: #{encoder_block_forward.5} parent=11 // pred_check_branch
        %148 = sbr.rel (%p146) target = $region16
      $region15: #{encoder_block_forward.5} parent=11 // pred_region
        _
      $region16: #{encoder_block_forward.5} parent=11 // pred_fallthru
        _
      // Predicated region
      $region17: #{encoder_block_forward.5} parent=11 // pred_check
        %p149 = pneg %p79
      $region18: #{encoder_block_forward.5} parent=11 // pred_check_branch
        %151 = sbr.rel (%p149) target = $region20
      $region19: #{encoder_block_forward.5} parent=11 // pred_region
        _
      $region20: #{encoder_block_forward.5} parent=11 // pred_fallthru
        _
    $region12: #{encoder_block_forward.5} parent=5 // pred_fallthru
      _
    %p152 = scmp.lt.s32.totalorder %s11, 2
    // Predicated region
    $region21: #{encoder_block_forward.5} parent=5 // pred_check
      %p153 = pneg %p152
    $region22: #{encoder_block_forward.5} parent=5 // pred_check_branch
      %155 = sbr.rel (%p153) target = $region24
    $region23: #{encoder_block_forward.5} parent=5 // pred_region
      // Predicated region
      $region25: #{encoder_block_forward.5} parent=23 // pred_check
        %p156 = pneg %p31
      $region26: #{encoder_block_forward.5} parent=23 // pred_check_branch
        %158 = sbr.rel (%p156) target = $region28
      $region27: #{encoder_block_forward.5} parent=23 // pred_region
        %p159 = scmp.lt.s32.totalorder %s11, 1
        %s160 = scalar_select %p159, %s11, 1
        %s161 = smul.addr %s160, 36
        %s162 = smul.addr %s161, 4
        %s163 = scalar_lea.vmem %s0, %s162
      $region28: #{encoder_block_forward.5} parent=23 // pred_fallthru
        _
    $region24: #{encoder_block_forward.5} parent=5 // pred_fallthru
      _
    %p164 = scmp.le.s32.totalorder 1, %s11
    %p165 = scmp.lt.s32.totalorder %s11, 3
    %p166 = pnand %p164, %p165
    %p167 = pneg %p166
    // Predicated region
    $region29: #{encoder_block_forward.5} parent=5 // pred_check
      _
    $region30: #{encoder_block_forward.5} parent=5 // pred_check_branch
      %169 = sbr.rel (%p166) target = $region32
    $region31: #{encoder_block_forward.5} parent=5 // pred_region
      %s170 = ssub.s32 %s11, 1
      %p171 = scmp.lt.s32.totalorder %s16, 1
      %s172 = scalar_select %p171, %s16, 1
      %s173 = smul.addr %s172, 36
      %s174 = smul.addr %s173, 4
      %s175 = scalar_lea.vmem %s0, %s174
      %p176 = pneg %p37
      %p177 = pneg %p34
      %p178 = pneg %p58
      %p179 = pneg %p55
      %p180 = pneg %p79
      %p181 = pneg %p76
      %p182 = pneg %p105
      %p183 = pneg %p102
      %p184 = scmp.lt.s32.totalorder %s16, 1
      %s185 = scalar_select %p184, %s16, 1
      %s186 = smul.addr %s185, 36
      %s187 = smul.addr %s186, 4
      %s188 = scalar_lea.vmem %s3, %s187
      %p189 = pneg %p131
      %p190 = pneg %p128
      %p191 = scmp.lt.s32.totalorder %s16, 1
      %s192 = scalar_select %p191, %s16, 1
      %s193 = smul.addr %s192, 8
      %s194 = smul.addr %s193, 4
      %s195 = scalar_lea.vmem %s4, %s194
      %p196 = scmp.lt.s32.totalorder %s16, 1
      %s197 = scalar_select %p196, %s16, 1
      %s198 = smul.addr %s197, 36
      %s199 = smul.addr %s198, 4
      %s200 = scalar_lea.vmem %s0, %s199
      %p201 = scmp.lt.s32.totalorder %s16, 1
      %s202 = scalar_select %p201, %s16, 1
      %s203 = smul.addr %s202, 36
      %s204 = smul.addr %s203, 4
      %s205 = scalar_lea.vmem %s3, %s204
      %p206 = scmp.lt.s32.totalorder %s16, 1
      %s207 = scalar_select %p206, %s16, 1
      %s208 = smul.addr %s207, 8
      %s209 = smul.addr %s208, 4
      %s210 = scalar_lea.vmem %s4, %s209
      %v211 = vld [vmem:[%s1] sm:$0x1]
      %v212 = vld [vmem:[%s2] sm:$0x1]
      %v213 = vlaneseq
      %v214 = vshrl.u32 %v213, 7
      %v215 = vadd.s32 %v214, 8
      %v216 = vlaneseq
      %v217 = vand.u32 %v216, 127
      %vm218 = vcmp.lt.s32.totalorder %v214, 8
      %vm219 = vcmp.lt.s32.totalorder %v215, 8
      %v220 = vmul.u32 %v214, 2
      %v221 = vmul.u32 %v215, 2
      %vm222 = vcmp.eq.s32.totalorder %v217, %v220
      %vm223 = vcmp.eq.s32.totalorder %v217, %v221
      %vm224 = vmand %vm218, %vm222
      %vm225 = vmand %vm219, %vm223
      %vm226 = vcmp.ge.s32.totalorder %v214, 8
      %vm227 = vcmp.ge.s32.totalorder %v215, 8
      %v228 = vsub.s32 %v214, 8
      %v229 = vmul.u32 %v228, 2
      %v230 = vadd.s32 %v229, 1
      %v231 = vadd.s32 %v220, 1
      %vm232 = vcmp.eq.s32.totalorder %v217, %v230
      %vm233 = vcmp.eq.s32.totalorder %v217, %v231
      %vm234 = vmand %vm226, %vm232
      %vm235 = vmand %vm227, %vm233
      %vm236 = vmor %vm224, %vm234
      %vm237 = vmor %vm225, %vm235
      %v238 = vsel %vm236, 1, 0
      %v239 = vsel %vm237, 1, 0
      %v240 = vcvt.s32.f32 %v238
      %v241 = vcvt.s32.f32 %v239
      %v242 = vld [vmem:[%s200] sm:$0xf]
      %v243 = vld [vmem:[%s200 + $0x4] sm:$0xf]
      %v244 = vld [vmem:[%s200 + $0x8] sm:$0xf]
      %v245 = vld [vmem:[%s200 + $0xc] sm:$0xf]
      %v246 = vld [vmem:[%s200 + $0x10] sm:$0x3]
      %v247 = vunpack.c.l.bf16 %v242
      %v248 = vunpack.c.l.bf16 %v243
      %v249 = vunpack.c.l.bf16 %v244
      %v250 = vunpack.c.l.bf16 %v245
      %v251 = vunpack.c.l.bf16 %v246
      %v253 = vlaneseq
      %v254 = vshrl.u32 %v253, 7
      %v255 = vsub.s32 0, %v254
      %v256 = vrot.slane %v211, %v255
      %v258 = vmul.f32 %v247, %v256
      %v259 = vmul.f32 %v248, %v256
      %v260 = vmul.f32 %v249, %v256
      %v261 = vmul.f32 %v250, %v256
      %v262 = vmul.f32 %v251, %v256
      %v264 = vlaneseq
      %v265 = vshrl.u32 %v264, 7
      %v266 = vsub.s32 0, %v265
      %v267 = vrot.slane %v212, %v266
      %v269 = vadd.f32 %v258, %v267
      %v270 = vadd.f32 %v259, %v267
      %v271 = vadd.f32 %v260, %v267
      %v272 = vadd.f32 %v261, %v267
      %v273 = vadd.f32 %v262, %v267
      %v274 = vmax.f32 %v269, 0.0
      %v275 = vmax.f32 %v270, 0.0
      %v276 = vmax.f32 %v271, 0.0
      %v277 = vmax.f32 %v272, 0.0
      %v278 = vmax.f32 %v273, 0.0
      %v279 = vpack.c.bf16 %v275, %v274
      %v280 = vpack.c.bf16 %v277, %v276
      %v281 = vpack.c.bf16 %v278, %v278
      %v285 = vunpack.c.l.b16 %v279
      %v286 = vunpack.c.h.b16 %v279
      %v287 = vunpack.c.l.b16 %v280
      %v288 = vunpack.c.h.b16 %v280
      %v289 = vunpack.c.l.b16 %v281
      %v290 = vpack.c.b16 %v285, %v285
      %v291 = vpack.c.b16 %v286, %v286
      %v292 = vpack.c.b16 %v287, %v287
      %v293 = vpack.c.b16 %v288, %v288
      %v294 = vpack.c.b16 %v289, %v289
      %300 = vst [vmem:[%s205] sm:$0xf] %v290
      %301 = vst [vmem:[%s205 + $0x4] sm:$0xf] %v291
      %302 = vst [vmem:[%s205 + $0x8] sm:$0xf] %v292
      %303 = vst [vmem:[%s205 + $0xc] sm:$0xf] %v293
      %304 = vst [vmem:[%s205 + $0x10] sm:$0x3] %v294
      %vm308 = vcmask 1045504
      %v309 = vrot.slane %v276, 2
      %v310 = vrot.slane %v277, 2
      %v311 = vsel %vm308, %v309, %v310
      %v312 = vrot.slane %v278, 2
      %v313 = vsel %vm308, %v310, %v312
      %v317 = vmax.f32 %v274, %v311
      %v318 = vmax.f32 %v275, %v313
      %v319 = vmax.f32 %v276, %v312
      %vm320 = vcmask 146432
      %v322 = vsel %vm320, %v240, 0
      %v325 = vsel %vm320, %v241, 0
      %vm327 = vcmask 1041408
      %v329 = vsel %vm327, %v319, 0
      %331 = vmatprep.subr.mxu0 0.0
      %332 = vmatpush1.msra.mxu0 %v317
      %333 = vmatprep.subr.mxu0 0.0
      %334 = vmatpush1.msra.mxu0 %v318
      %335 = vmatprep.subr.mxu0 0.0
      %336 = vmatpush1.msra.mxu0 %v329
      %337 = vmatprep.subr.mxu0 0.0
      %338 = vmatpush1.msra.mxu0 0.0
      %339 = vmatprep.subr.mxu0 0.0
      %340 = vmatpush1.msra.mxu0 0.0
      %341 = vmatprep.subr.mxu0 0.0
      %342 = vmatpush1.msra.mxu0 0.0
      %343 = vmatprep.subr.mxu0 0.0
      %344 = vmatpush1.msra.mxu0 0.0
      %345 = vmatprep.subr.mxu0 0.0
      %346 = vmatpush1.msra.mxu0 0.0
      %347 = vmatprep.subr.mxu0 0.0
      %348 = vmatpush1.msra.mxu0 0.0
      %349 = vmatprep.subr.mxu0 0.0
      %350 = vmatpush1.msra.mxu0 0.0
      %351 = vmatprep.subr.mxu0 0.0
      %352 = vmatpush1.msra.mxu0 0.0
      %353 = vmatprep.subr.mxu0 0.0
      %354 = vmatpush1.msra.mxu0 0.0
      %355 = vmatprep.subr.mxu0 0.0
      %356 = vmatpush1.msra.mxu0 0.0
      %357 = vmatprep.subr.mxu0 0.0
      %358 = vmatpush1.msra.mxu0 0.0
      %359 = vmatprep.subr.mxu0 0.0
      %360 = vmatpush1.msra.mxu0 0.0
      %361 = vmatprep.subr.mxu0 0.0
      %362 = vmatpush1.msra.mxu0 0.0
      %363 = vmatprep.subr.mxu0 0.0
      %364 = vmatpush1.msra.mxu0 0.0
      %365 = vmatprep.subr.mxu0 0.0
      %366 = vmatpush1.msra.mxu0 0.0
      %367 = vmatprep.subr.mxu0 0.0
      %368 = vmatpush1.msra.mxu0 0.0
      %369 = vmatprep.subr.mxu0 0.0
      %370 = vmatpush1.msra.mxu0 0.0
      %371 = vmatprep.subr.mxu0 0.0
      %372 = vmatpush1.msra.mxu0 0.0
      %373 = vmatprep.subr.mxu0 0.0
      %374 = vmatpush1.msra.mxu0 0.0
      %375 = vmatprep.subr.mxu0 0.0
      %376 = vmatpush1.msra.mxu0 0.0
      %377 = vmatprep.subr.mxu0 0.0
      %378 = vmatpush1.msra.mxu0 0.0
      %379 = vmatprep.subr.mxu0 0.0
      %380 = vmatpush1.msra.mxu0 0.0
      %381 = vmatprep.subr.mxu0 0.0
      %382 = vmatpush1.msra.mxu0 0.0
      %383 = vmatprep.subr.mxu0 0.0
      %384 = vmatpush1.msra.mxu0 0.0
      %385 = vmatprep.subr.mxu0 0.0
      %386 = vmatpush1.msra.mxu0 0.0
      %387 = vmatprep.subr.mxu0 0.0
      %388 = vmatpush1.msra.mxu0 0.0
      %389 = vmatprep.subr.mxu0 0.0
      %390 = vmatpush1.msra.mxu0 0.0
      %391 = vmatprep.subr.mxu0 0.0
      %392 = vmatpush1.msra.mxu0 0.0
      %393 = vmatprep.subr.mxu0 0.0
      %394 = vmatpush1.msra.mxu0 0.0
      %395 = vmatprep.mubr.f32.mxu0 0.0
      %396 = vmatmul.mubr.f32.gmra.mrb[0].mxu0 %v322
      %v397 = vpop.f32.mrb[0].mxu0
      %v398 = vadd.f32 0.0, %v397
      %v399 = vpop.f32.mrb[0].mxu0
      %400 = vmatprep.mubr.f32.mxu0 0.0
      %401 = vmatmul.mubr.f32.gmra.mrb[0].mxu0 %v325
      %v402 = vpop.f32.mrb[0].mxu0
      %v403 = vadd.f32 0.0, %v402
      %v404 = vpop.f32.mrb[0].mxu0
      %405 = vdwg.mxu0
      %v406 = vmax.f32 %v398, %v403
      %v407 = vpack.c.bf16 %v406, %v406
      %408 = vst [vmem:[%s210] sm:$0xf] %v407
      %v409 = vld [vmem:[%s200 + $0x10] sm:$0xc]
      %v410 = vld [vmem:[%s200 + $0x14] sm:$0xf]
      %v411 = vld [vmem:[%s200 + $0x18] sm:$0xf]
      %v412 = vld [vmem:[%s200 + $0x1c] sm:$0xf]
      %v413 = vld [vmem:[%s200 + $0x20] sm:$0xf]
      %v414 = vunpack.c.l.bf16 %v409
      %v415 = vunpack.c.l.bf16 %v410
      %v416 = vunpack.c.l.bf16 %v411
      %v417 = vunpack.c.l.bf16 %v412
      %v418 = vunpack.c.l.bf16 %v413
      %v419 = vmul.f32 %v414, %v256
      %v420 = vmul.f32 %v415, %v256
      %v421 = vmul.f32 %v416, %v256
      %v422 = vmul.f32 %v417, %v256
      %v423 = vmul.f32 %v418, %v256
      %v424 = vadd.f32 %v419, %v267
      %v425 = vadd.f32 %v420, %v267
      %v426 = vadd.f32 %v421, %v267
      %v427 = vadd.f32 %v422, %v267
      %v428 = vadd.f32 %v423, %v267
      %v429 = vmax.f32 %v424, 0.0
      %v430 = vmax.f32 %v425, 0.0
      %v431 = vmax.f32 %v426, 0.0
      %v432 = vmax.f32 %v427, 0.0
      %v433 = vmax.f32 %v428, 0.0
      %v434 = vpack.c.bf16 %v430, %v429
      %v435 = vpack.c.bf16 %v432, %v431
      %v436 = vpack.c.bf16 %v433, %v433
      %v440 = vunpack.c.l.b16 %v434
      %v441 = vunpack.c.h.b16 %v434
      %v442 = vunpack.c.l.b16 %v435
      %v443 = vunpack.c.h.b16 %v435
      %v444 = vunpack.c.l.b16 %v436
      %v445 = vpack.c.b16 %v440, %v440
      %v446 = vpack.c.b16 %v441, %v441
      %v447 = vpack.c.b16 %v442, %v442
      %v448 = vpack.c.b16 %v443, %v443
      %v449 = vpack.c.b16 %v444, %v444
      %455 = vst [vmem:[%s205 + $0x10] sm:$0xc] %v445
      %456 = vst [vmem:[%s205 + $0x14] sm:$0xf] %v446
      %457 = vst [vmem:[%s205 + $0x18] sm:$0xf] %v447
      %458 = vst [vmem:[%s205 + $0x1c] sm:$0xf] %v448
      %459 = vst [vmem:[%s205 + $0x20] sm:$0xf] %v449
      %v463 = vrot.slane %v431, 2
      %v464 = vrot.slane %v432, 2
      %v465 = vsel %vm308, %v463, %v464
      %v466 = vrot.slane %v433, 2
      %v467 = vsel %vm308, %v464, %v466
      %v471 = vmax.f32 %v429, %v465
      %v472 = vmax.f32 %v430, %v467
      %v473 = vmax.f32 %v431, %v466
      %vm477 = vcmask 1043456
      %v478 = vrot.slane %v471, 4
      %v479 = vrot.slane %v472, 4
      %v480 = vsel %vm477, %v478, %v479
      %v481 = vrot.slane %v473, 4
      %v482 = vsel %vm477, %v479, %v481
      %v485 = vsel %vm327, %v481, 0
      %487 = vmatprep.subr.mxu0 0.0
      %488 = vmatpush1.msra.mxu0 %v480
      %489 = vmatprep.subr.mxu0 0.0
      %490 = vmatpush1.msra.mxu0 %v482
      %491 = vmatprep.subr.mxu0 0.0
      %492 = vmatpush1.msra.mxu0 %v485
      %493 = vmatprep.subr.mxu0 0.0
      %494 = vmatpush1.msra.mxu0 0.0
      %495 = vmatprep.subr.mxu0 0.0
      %496 = vmatpush1.msra.mxu0 0.0
      %497 = vmatprep.subr.mxu0 0.0
      %498 = vmatpush1.msra.mxu0 0.0
      %499 = vmatprep.subr.mxu0 0.0
      %500 = vmatpush1.msra.mxu0 0.0
      %501 = vmatprep.subr.mxu0 0.0
      %502 = vmatpush1.msra.mxu0 0.0
      %503 = vmatprep.subr.mxu0 0.0
      %504 = vmatpush1.msra.mxu0 0.0
      %505 = vmatprep.subr.mxu0 0.0
      %506 = vmatpush1.msra.mxu0 0.0
      %507 = vmatprep.subr.mxu0 0.0
      %508 = vmatpush1.msra.mxu0 0.0
      %509 = vmatprep.subr.mxu0 0.0
      %510 = vmatpush1.msra.mxu0 0.0
      %511 = vmatprep.subr.mxu0 0.0
      %512 = vmatpush1.msra.mxu0 0.0
      %513 = vmatprep.subr.mxu0 0.0
      %514 = vmatpush1.msra.mxu0 0.0
      %515 = vmatprep.subr.mxu0 0.0
      %516 = vmatpush1.msra.mxu0 0.0
      %517 = vmatprep.subr.mxu0 0.0
      %518 = vmatpush1.msra.mxu0 0.0
      %519 = vmatprep.subr.mxu0 0.0
      %520 = vmatpush1.msra.mxu0 0.0
      %521 = vmatprep.subr.mxu0 0.0
      %522 = vmatpush1.msra.mxu0 0.0
      %523 = vmatprep.subr.mxu0 0.0
      %524 = vmatpush1.msra.mxu0 0.0
      %525 = vmatprep.subr.mxu0 0.0
      %526 = vmatpush1.msra.mxu0 0.0
      %527 = vmatprep.subr.mxu0 0.0
      %528 = vmatpush1.msra.mxu0 0.0
      %529 = vmatprep.subr.mxu0 0.0
      %530 = vmatpush1.msra.mxu0 0.0
      %531 = vmatprep.subr.mxu0 0.0
      %532 = vmatpush1.msra.mxu0 0.0
      %533 = vmatprep.subr.mxu0 0.0
      %534 = vmatpush1.msra.mxu0 0.0
      %535 = vmatprep.subr.mxu0 0.0
      %536 = vmatpush1.msra.mxu0 0.0
      %537 = vmatprep.subr.mxu0 0.0
      %538 = vmatpush1.msra.mxu0 0.0
      %539 = vmatprep.subr.mxu0 0.0
      %540 = vmatpush1.msra.mxu0 0.0
      %541 = vmatprep.subr.mxu0 0.0
      %542 = vmatpush1.msra.mxu0 0.0
      %543 = vmatprep.subr.mxu0 0.0
      %544 = vmatpush1.msra.mxu0 0.0
      %545 = vmatprep.subr.mxu0 0.0
      %546 = vmatpush1.msra.mxu0 0.0
      %547 = vmatprep.subr.mxu0 0.0
      %548 = vmatpush1.msra.mxu0 0.0
      %549 = vmatprep.subr.mxu0 0.0
      %550 = vmatpush1.msra.mxu0 0.0
      %551 = vmatprep.mubr.f32.mxu0 0.0
      %552 = vmatmul.mubr.f32.gmra.mrb[0].mxu0 %v322
      %v553 = vpop.f32.mrb[0].mxu0
      %v554 = vadd.f32 0.0, %v553
      %v555 = vpop.f32.mrb[0].mxu0
      %556 = vmatprep.mubr.f32.mxu0 0.0
      %557 = vmatmul.mubr.f32.gmra.mrb[0].mxu0 %v325
      %v558 = vpop.f32.mrb[0].mxu0
      %v559 = vadd.f32 0.0, %v558
      %v560 = vpop.f32.mrb[0].mxu0
      %561 = vdwg.mxu0
      %v562 = vmax.f32 %v554, %v559
      %v563 = vpack.c.bf16 %v562, %v562
      %s564 = scalar_lea.vmem %s210, 4
      %565 = vst [vmem:[%s564] sm:$0xf] %v563
      %v566 = vld [vmem:[%s200 + $0x24] sm:$0xf]
      %v567 = vld [vmem:[%s200 + $0x28] sm:$0xf]
      %v568 = vld [vmem:[%s200 + $0x2c] sm:$0xf]
      %v569 = vld [vmem:[%s200 + $0x30] sm:$0xf]
      %v570 = vld [vmem:[%s200 + $0x34] sm:$0x3]
      %v571 = vunpack.c.l.bf16 %v566
      %v572 = vunpack.c.l.bf16 %v567
      %v573 = vunpack.c.l.bf16 %v568
      %v574 = vunpack.c.l.bf16 %v569
      %v575 = vunpack.c.l.bf16 %v570
      %v576 = vmul.f32 %v571, %v256
      %v577 = vmul.f32 %v572, %v256
      %v578 = vmul.f32 %v573, %v256
      %v579 = vmul.f32 %v574, %v256
      %v580 = vmul.f32 %v575, %v256
      %v581 = vadd.f32 %v576, %v267
      %v582 = vadd.f32 %v577, %v267
      %v583 = vadd.f32 %v578, %v267
      %v584 = vadd.f32 %v579, %v267
      %v585 = vadd.f32 %v580, %v267
      %v586 = vmax.f32 %v581, 0.0
      %v587 = vmax.f32 %v582, 0.0
      %v588 = vmax.f32 %v583, 0.0
      %v589 = vmax.f32 %v584, 0.0
      %v590 = vmax.f32 %v585, 0.0
      %v591 = vpack.c.bf16 %v587, %v586
      %v592 = vpack.c.bf16 %v589, %v588
      %v593 = vpack.c.bf16 %v590, %v590
      %v597 = vunpack.c.l.b16 %v591
      %v598 = vunpack.c.h.b16 %v591
      %v599 = vunpack.c.l.b16 %v592
      %v600 = vunpack.c.h.b16 %v592
      %v601 = vunpack.c.l.b16 %v593
      %v602 = vpack.c.b16 %v597, %v597
      %v603 = vpack.c.b16 %v598, %v598
      %v604 = vpack.c.b16 %v599, %v599
      %v605 = vpack.c.b16 %v600, %v600
      %v606 = vpack.c.b16 %v601, %v601
      %612 = vst [vmem:[%s205 + $0x24] sm:$0xf] %v602
      %613 = vst [vmem:[%s205 + $0x28] sm:$0xf] %v603
      %614 = vst [vmem:[%s205 + $0x2c] sm:$0xf] %v604
      %615 = vst [vmem:[%s205 + $0x30] sm:$0xf] %v605
      %616 = vst [vmem:[%s205 + $0x34] sm:$0x3] %v606
      %v620 = vrot.slane %v588, 2
      %v621 = vrot.slane %v589, 2
      %v622 = vsel %vm308, %v620, %v621
      %v623 = vrot.slane %v590, 2
      %v624 = vsel %vm308, %v621, %v623
      %v628 = vmax.f32 %v586, %v622
      %v629 = vmax.f32 %v587, %v624
      %v630 = vmax.f32 %v588, %v623
      %v632 = vsel %vm327, %v630, 0
      %634 = vmatprep.subr.mxu0 0.0
      %635 = vmatpush1.msra.mxu0 %v628
      %636 = vmatprep.subr.mxu0 0.0
      %637 = vmatpush1.msra.mxu0 %v629
      %638 = vmatprep.subr.mxu0 0.0
      %639 = vmatpush1.msra.mxu0 %v632
      %640 = vmatprep.subr.mxu0 0.0
      %641 = vmatpush1.msra.mxu0 0.0
      %642 = vmatprep.subr.mxu0 0.0
      %643 = vmatpush1.msra.mxu0 0.0
      %644 = vmatprep.subr.mxu0 0.0
      %645 = vmatpush1.msra.mxu0 0.0
      %646 = vmatprep.subr.mxu0 0.0
      %647 = vmatpush1.msra.mxu0 0.0
      %648 = vmatprep.subr.mxu0 0.0
      %649 = vmatpush1.msra.mxu0 0.0
      %650 = vmatprep.subr.mxu0 0.0
      %651 = vmatpush1.msra.mxu0 0.0
      %652 = vmatprep.subr.mxu0 0.0
      %653 = vmatpush1.msra.mxu0 0.0
      %654 = vmatprep.subr.mxu0 0.0
      %655 = vmatpush1.msra.mxu0 0.0
      %656 = vmatprep.subr.mxu0 0.0
      %657 = vmatpush1.msra.mxu0 0.0
      %658 = vmatprep.subr.mxu0 0.0
      %659 = vmatpush1.msra.mxu0 0.0
      %660 = vmatprep.subr.mxu0 0.0
      %661 = vmatpush1.msra.mxu0 0.0
      %662 = vmatprep.subr.mxu0 0.0
      %663 = vmatpush1.msra.mxu0 0.0
      %664 = vmatprep.subr.mxu0 0.0
      %665 = vmatpush1.msra.mxu0 0.0
      %666 = vmatprep.subr.mxu0 0.0
      %667 = vmatpush1.msra.mxu0 0.0
      %668 = vmatprep.subr.mxu0 0.0
      %669 = vmatpush1.msra.mxu0 0.0
      %670 = vmatprep.subr.mxu0 0.0
      %671 = vmatpush1.msra.mxu0 0.0
      %672 = vmatprep.subr.mxu0 0.0
      %673 = vmatpush1.msra.mxu0 0.0
      %674 = vmatprep.subr.mxu0 0.0
      %675 = vmatpush1.msra.mxu0 0.0
      %676 = vmatprep.subr.mxu0 0.0
      %677 = vmatpush1.msra.mxu0 0.0
      %678 = vmatprep.subr.mxu0 0.0
      %679 = vmatpush1.msra.mxu0 0.0
      %680 = vmatprep.subr.mxu0 0.0
      %681 = vmatpush1.msra.mxu0 0.0
      %682 = vmatprep.subr.mxu0 0.0
      %683 = vmatpush1.msra.mxu0 0.0
      %684 = vmatprep.subr.mxu0 0.0
      %685 = vmatpush1.msra.mxu0 0.0
      %686 = vmatprep.subr.mxu0 0.0
      %687 = vmatpush1.msra.mxu0 0.0
      %688 = vmatprep.subr.mxu0 0.0
      %689 = vmatpush1.msra.mxu0 0.0
      %690 = vmatprep.subr.mxu0 0.0
      %691 = vmatpush1.msra.mxu0 0.0
      %692 = vmatprep.subr.mxu0 0.0
      %693 = vmatpush1.msra.mxu0 0.0
      %694 = vmatprep.subr.mxu0 0.0
      %695 = vmatpush1.msra.mxu0 0.0
      %696 = vmatprep.subr.mxu0 0.0
      %697 = vmatpush1.msra.mxu0 0.0
      %698 = vmatprep.mubr.f32.mxu0 0.0
      %699 = vmatmul.mubr.f32.gmra.mrb[0].mxu0 %v322
      %v700 = vpop.f32.mrb[0].mxu0
      %v701 = vadd.f32 0.0, %v700
      %v702 = vpop.f32.mrb[0].mxu0
      %703 = vmatprep.mubr.f32.mxu0 0.0
      %704 = vmatmul.mubr.f32.gmra.mrb[0].mxu0 %v325
      %v705 = vpop.f32.mrb[0].mxu0
      %v706 = vadd.f32 0.0, %v705
      %v707 = vpop.f32.mrb[0].mxu0
      %708 = vdwg.mxu0
      %v709 = vmax.f32 %v701, %v706
      %v710 = vpack.c.bf16 %v709, %v709
      %s711 = scalar_lea.vmem %s210, 8
      %712 = vst [vmem:[%s711] sm:$0xf] %v710
      %v713 = vld [vmem:[%s200 + $0x34] sm:$0xc]
      %v714 = vld [vmem:[%s200 + $0x38] sm:$0xf]
      %v715 = vld [vmem:[%s200 + $0x3c] sm:$0xf]
      %v716 = vld [vmem:[%s200 + $0x40] sm:$0xf]
      %v717 = vld [vmem:[%s200 + $0x44] sm:$0xf]
      %v718 = vunpack.c.l.bf16 %v713
      %v719 = vunpack.c.l.bf16 %v714
      %v720 = vunpack.c.l.bf16 %v715
      %v721 = vunpack.c.l.bf16 %v716
      %v722 = vunpack.c.l.bf16 %v717
      %v723 = vmul.f32 %v718, %v256
      %v724 = vmul.f32 %v719, %v256
      %v725 = vmul.f32 %v720, %v256
      %v726 = vmul.f32 %v721, %v256
      %v727 = vmul.f32 %v722, %v256
      %v728 = vadd.f32 %v723, %v267
      %v729 = vadd.f32 %v724, %v267
      %v730 = vadd.f32 %v725, %v267
      %v731 = vadd.f32 %v726, %v267
      %v732 = vadd.f32 %v727, %v267
      %v733 = vmax.f32 %v728, 0.0
      %v734 = vmax.f32 %v729, 0.0
      %v735 = vmax.f32 %v730, 0.0
      %v736 = vmax.f32 %v731, 0.0
      %v737 = vmax.f32 %v732, 0.0
      %v738 = vpack.c.bf16 %v734, %v733
      %v739 = vpack.c.bf16 %v736, %v735
      %v740 = vpack.c.bf16 %v737, %v737
      %v744 = vunpack.c.l.b16 %v738
      %v745 = vunpack.c.h.b16 %v738
      %v746 = vunpack.c.l.b16 %v739
      %v747 = vunpack.c.h.b16 %v739
      %v748 = vunpack.c.l.b16 %v740
      %v749 = vpack.c.b16 %v744, %v744
      %v750 = vpack.c.b16 %v745, %v745
      %v751 = vpack.c.b16 %v746, %v746
      %v752 = vpack.c.b16 %v747, %v747
      %v753 = vpack.c.b16 %v748, %v748
      %759 = vst [vmem:[%s205 + $0x34] sm:$0xc] %v749
      %760 = vst [vmem:[%s205 + $0x38] sm:$0xf] %v750
      %761 = vst [vmem:[%s205 + $0x3c] sm:$0xf] %v751
      %762 = vst [vmem:[%s205 + $0x40] sm:$0xf] %v752
      %763 = vst [vmem:[%s205 + $0x44] sm:$0xf] %v753
      %v767 = vrot.slane %v735, 2
      %v768 = vrot.slane %v736, 2
      %v769 = vsel %vm308, %v767, %v768
      %v770 = vrot.slane %v737, 2
      %v771 = vsel %vm308, %v768, %v770
      %v775 = vmax.f32 %v733, %v769
      %v776 = vmax.f32 %v734, %v771
      %v777 = vmax.f32 %v735, %v770
      %v781 = vrot.slane %v775, 4
      %v782 = vrot.slane %v776, 4
      %v783 = vsel %vm477, %v781, %v782
      %v784 = vrot.slane %v777, 4
      %v785 = vsel %vm477, %v782, %v784
      %v788 = vsel %vm327, %v784, 0
      %790 = vmatprep.subr.mxu0 0.0
      %791 = vmatpush1.msra.mxu0 %v783
      %792 = vmatprep.subr.mxu0 0.0
      %793 = vmatpush1.msra.mxu0 %v785
      %794 = vmatprep.subr.mxu0 0.0
      %795 = vmatpush1.msra.mxu0 %v788
      %796 = vmatprep.subr.mxu0 0.0
      %797 = vmatpush1.msra.mxu0 0.0
      %798 = vmatprep.subr.mxu0 0.0
      %799 = vmatpush1.msra.mxu0 0.0
      %800 = vmatprep.subr.mxu0 0.0
      %801 = vmatpush1.msra.mxu0 0.0
      %802 = vmatprep.subr.mxu0 0.0
      %803 = vmatpush1.msra.mxu0 0.0
      %804 = vmatprep.subr.mxu0 0.0
      %805 = vmatpush1.msra.mxu0 0.0
      %806 = vmatprep.subr.mxu0 0.0
      %807 = vmatpush1.msra.mxu0 0.0
      %808 = vmatprep.subr.mxu0 0.0
      %809 = vmatpush1.msra.mxu0 0.0
      %810 = vmatprep.subr.mxu0 0.0
      %811 = vmatpush1.msra.mxu0 0.0
      %812 = vmatprep.subr.mxu0 0.0
      %813 = vmatpush1.msra.mxu0 0.0
      %814 = vmatprep.subr.mxu0 0.0
      %815 = vmatpush1.msra.mxu0 0.0
      %816 = vmatprep.subr.mxu0 0.0
      %817 = vmatpush1.msra.mxu0 0.0
      %818 = vmatprep.subr.mxu0 0.0
      %819 = vmatpush1.msra.mxu0 0.0
      %820 = vmatprep.subr.mxu0 0.0
      %821 = vmatpush1.msra.mxu0 0.0
      %822 = vmatprep.subr.mxu0 0.0
      %823 = vmatpush1.msra.mxu0 0.0
      %824 = vmatprep.subr.mxu0 0.0
      %825 = vmatpush1.msra.mxu0 0.0
      %826 = vmatprep.subr.mxu0 0.0
      %827 = vmatpush1.msra.mxu0 0.0
      %828 = vmatprep.subr.mxu0 0.0
      %829 = vmatpush1.msra.mxu0 0.0
      %830 = vmatprep.subr.mxu0 0.0
      %831 = vmatpush1.msra.mxu0 0.0
      %832 = vmatprep.subr.mxu0 0.0
      %833 = vmatpush1.msra.mxu0 0.0
      %834 = vmatprep.subr.mxu0 0.0
      %835 = vmatpush1.msra.mxu0 0.0
      %836 = vmatprep.subr.mxu0 0.0
      %837 = vmatpush1.msra.mxu0 0.0
      %838 = vmatprep.subr.mxu0 0.0
      %839 = vmatpush1.msra.mxu0 0.0
      %840 = vmatprep.subr.mxu0 0.0
      %841 = vmatpush1.msra.mxu0 0.0
      %842 = vmatprep.subr.mxu0 0.0
      %843 = vmatpush1.msra.mxu0 0.0
      %844 = vmatprep.subr.mxu0 0.0
      %845 = vmatpush1.msra.mxu0 0.0
      %846 = vmatprep.subr.mxu0 0.0
      %847 = vmatpush1.msra.mxu0 0.0
      %848 = vmatprep.subr.mxu0 0.0
      %849 = vmatpush1.msra.mxu0 0.0
      %850 = vmatprep.subr.mxu0 0.0
      %851 = vmatpush1.msra.mxu0 0.0
      %852 = vmatprep.subr.mxu0 0.0
      %853 = vmatpush1.msra.mxu0 0.0
      %854 = vmatprep.mubr.f32.mxu0 0.0
      %855 = vmatmul.mubr.f32.gmra.mrb[0].mxu0 %v322
      %v856 = vpop.f32.mrb[0].mxu0
      %v857 = vadd.f32 0.0, %v856
      %v858 = vpop.f32.mrb[0].mxu0
      %859 = vmatprep.mubr.f32.mxu0 0.0
      %860 = vmatmul.mubr.f32.gmra.mrb[0].mxu0 %v325
      %v861 = vpop.f32.mrb[0].mxu0
      %v862 = vadd.f32 0.0, %v861
      %v863 = vpop.f32.mrb[0].mxu0
      %864 = vdwg.mxu0
      %v865 = vmax.f32 %v857, %v862
      %v866 = vpack.c.bf16 %v865, %v865
      %s867 = scalar_lea.vmem %s210, 12
      %868 = vst [vmem:[%s867] sm:$0xf] %v866
      %v869 = vld [vmem:[%s200 + $0x48] sm:$0xf]
      %v870 = vld [vmem:[%s200 + $0x4c] sm:$0xf]
      %v871 = vld [vmem:[%s200 + $0x50] sm:$0xf]
      %v872 = vld [vmem:[%s200 + $0x54] sm:$0xf]
      %v873 = vld [vmem:[%s200 + $0x58] sm:$0x3]
      %v874 = vunpack.c.l.bf16 %v869
      %v875 = vunpack.c.l.bf16 %v870
      %v876 = vunpack.c.l.bf16 %v871
      %v877 = vunpack.c.l.bf16 %v872
      %v878 = vunpack.c.l.bf16 %v873
      %v879 = vmul.f32 %v874, %v256
      %v880 = vmul.f32 %v875, %v256
      %v881 = vmul.f32 %v876, %v256
      %v882 = vmul.f32 %v877, %v256
      %v883 = vmul.f32 %v878, %v256
      %v884 = vadd.f32 %v879, %v267
      %v885 = vadd.f32 %v880, %v267
      %v886 = vadd.f32 %v881, %v267
      %v887 = vadd.f32 %v882, %v267
      %v888 = vadd.f32 %v883, %v267
      %v889 = vmax.f32 %v884, 0.0
      %v890 = vmax.f32 %v885, 0.0
      %v891 = vmax.f32 %v886, 0.0
      %v892 = vmax.f32 %v887, 0.0
      %v893 = vmax.f32 %v888, 0.0
      %v894 = vpack.c.bf16 %v890, %v889
      %v895 = vpack.c.bf16 %v892, %v891
      %v896 = vpack.c.bf16 %v893, %v893
      %v900 = vunpack.c.l.b16 %v894
      %v901 = vunpack.c.h.b16 %v894
      %v902 = vunpack.c.l.b16 %v895
      %v903 = vunpack.c.h.b16 %v895
      %v904 = vunpack.c.l.b16 %v896
      %v905 = vpack.c.b16 %v900, %v900
      %v906 = vpack.c.b16 %v901, %v901
      %v907 = vpack.c.b16 %v902, %v902
      %v908 = vpack.c.b16 %v903, %v903
      %v909 = vpack.c.b16 %v904, %v904
      %915 = vst [vmem:[%s205 + $0x48] sm:$0xf] %v905
      %916 = vst [vmem:[%s205 + $0x4c] sm:$0xf] %v906
      %917 = vst [vmem:[%s205 + $0x50] sm:$0xf] %v907
      %918 = vst [vmem:[%s205 + $0x54] sm:$0xf] %v908
      %919 = vst [vmem:[%s205 + $0x58] sm:$0x3] %v909
      %v923 = vrot.slane %v891, 2
      %v924 = vrot.slane %v892, 2
      %v925 = vsel %vm308, %v923, %v924
      %v926 = vrot.slane %v893, 2
      %v927 = vsel %vm308, %v924, %v926
      %v931 = vmax.f32 %v889, %v925
      %v932 = vmax.f32 %v890, %v927
      %v933 = vmax.f32 %v891, %v926
      %v935 = vsel %vm327, %v933, 0
      %937 = vmatprep.subr.mxu0 0.0
      %938 = vmatpush1.msra.mxu0 %v931
      %939 = vmatprep.subr.mxu0 0.0
      %940 = vmatpush1.msra.mxu0 %v932
      %941 = vmatprep.subr.mxu0 0.0
      %942 = vmatpush1.msra.mxu0 %v935
      %943 = vmatprep.subr.mxu0 0.0
      %944 = vmatpush1.msra.mxu0 0.0
      %945 = vmatprep.subr.mxu0 0.0
      %946 = vmatpush1.msra.mxu0 0.0
      %947 = vmatprep.subr.mxu0 0.0
      %948 = vmatpush1.msra.mxu0 0.0
      %949 = vmatprep.subr.mxu0 0.0
      %950 = vmatpush1.msra.mxu0 0.0
      %951 = vmatprep.subr.mxu0 0.0
      %952 = vmatpush1.msra.mxu0 0.0
      %953 = vmatprep.subr.mxu0 0.0
      %954 = vmatpush1.msra.mxu0 0.0
      %955 = vmatprep.subr.mxu0 0.0
      %956 = vmatpush1.msra.mxu0 0.0
      %957 = vmatprep.subr.mxu0 0.0
      %958 = vmatpush1.msra.mxu0 0.0
      %959 = vmatprep.subr.mxu0 0.0
      %960 = vmatpush1.msra.mxu0 0.0
      %961 = vmatprep.subr.mxu0 0.0
      %962 = vmatpush1.msra.mxu0 0.0
      %963 = vmatprep.subr.mxu0 0.0
      %964 = vmatpush1.msra.mxu0 0.0
      %965 = vmatprep.subr.mxu0 0.0
      %966 = vmatpush1.msra.mxu0 0.0
      %967 = vmatprep.subr.mxu0 0.0
      %968 = vmatpush1.msra.mxu0 0.0
      %969 = vmatprep.subr.mxu0 0.0
      %970 = vmatpush1.msra.mxu0 0.0
      %971 = vmatprep.subr.mxu0 0.0
      %972 = vmatpush1.msra.mxu0 0.0
      %973 = vmatprep.subr.mxu0 0.0
      %974 = vmatpush1.msra.mxu0 0.0
      %975 = vmatprep.subr.mxu0 0.0
      %976 = vmatpush1.msra.mxu0 0.0
      %977 = vmatprep.subr.mxu0 0.0
      %978 = vmatpush1.msra.mxu0 0.0
      %979 = vmatprep.subr.mxu0 0.0
      %980 = vmatpush1.msra.mxu0 0.0
      %981 = vmatprep.subr.mxu0 0.0
      %982 = vmatpush1.msra.mxu0 0.0
      %983 = vmatprep.subr.mxu0 0.0
      %984 = vmatpush1.msra.mxu0 0.0
      %985 = vmatprep.subr.mxu0 0.0
      %986 = vmatpush1.msra.mxu0 0.0
      %987 = vmatprep.subr.mxu0 0.0
      %988 = vmatpush1.msra.mxu0 0.0
      %989 = vmatprep.subr.mxu0 0.0
      %990 = vmatpush1.msra.mxu0 0.0
      %991 = vmatprep.subr.mxu0 0.0
      %992 = vmatpush1.msra.mxu0 0.0
      %993 = vmatprep.subr.mxu0 0.0
      %994 = vmatpush1.msra.mxu0 0.0
      %995 = vmatprep.subr.mxu0 0.0
      %996 = vmatpush1.msra.mxu0 0.0
      %997 = vmatprep.subr.mxu0 0.0
      %998 = vmatpush1.msra.mxu0 0.0
      %999 = vmatprep.subr.mxu0 0.0
      %1000 = vmatpush1.msra.mxu0 0.0
      %1001 = vmatprep.mubr.f32.mxu0 0.0
      %1002 = vmatmul.mubr.f32.gmra.mrb[0].mxu0 %v322
      %v1003 = vpop.f32.mrb[0].mxu0
      %v1004 = vadd.f32 0.0, %v1003
      %v1005 = vpop.f32.mrb[0].mxu0
      %1006 = vmatprep.mubr.f32.mxu0 0.0
      %1007 = vmatmul.mubr.f32.gmra.mrb[0].mxu0 %v325
      %v1008 = vpop.f32.mrb[0].mxu0
      %v1009 = vadd.f32 0.0, %v1008
      %v1010 = vpop.f32.mrb[0].mxu0
      %1011 = vdwg.mxu0
      %v1012 = vmax.f32 %v1004, %v1009
      %v1013 = vpack.c.bf16 %v1012, %v1012
      %s1014 = scalar_lea.vmem %s210, 16
      %1015 = vst [vmem:[%s1014] sm:$0xf] %v1013
      %v1016 = vld [vmem:[%s200 + $0x58] sm:$0xc]
      %v1017 = vld [vmem:[%s200 + $0x5c] sm:$0xf]
      %v1018 = vld [vmem:[%s200 + $0x60] sm:$0xf]
      %v1019 = vld [vmem:[%s200 + $0x64] sm:$0xf]
      %v1020 = vld [vmem:[%s200 + $0x68] sm:$0xf]
      %v1021 = vunpack.c.l.bf16 %v1016
      %v1022 = vunpack.c.l.bf16 %v1017
      %v1023 = vunpack.c.l.bf16 %v1018
      %v1024 = vunpack.c.l.bf16 %v1019
      %v1025 = vunpack.c.l.bf16 %v1020
      %v1026 = vmul.f32 %v1021, %v256
      %v1027 = vmul.f32 %v1022, %v256
      %v1028 = vmul.f32 %v1023, %v256
      %v1029 = vmul.f32 %v1024, %v256
      %v1030 = vmul.f32 %v1025, %v256
      %v1031 = vadd.f32 %v1026, %v267
      %v1032 = vadd.f32 %v1027, %v267
      %v1033 = vadd.f32 %v1028, %v267
      %v1034 = vadd.f32 %v1029, %v267
      %v1035 = vadd.f32 %v1030, %v267
      %v1036 = vmax.f32 %v1031, 0.0
      %v1037 = vmax.f32 %v1032, 0.0
      %v1038 = vmax.f32 %v1033, 0.0
      %v1039 = vmax.f32 %v1034, 0.0
      %v1040 = vmax.f32 %v1035, 0.0
      %v1041 = vpack.c.bf16 %v1037, %v1036
      %v1042 = vpack.c.bf16 %v1039, %v1038
      %v1043 = vpack.c.bf16 %v1040, %v1040
      %v1047 = vunpack.c.l.b16 %v1041
      %v1048 = vunpack.c.h.b16 %v1041
      %v1049 = vunpack.c.l.b16 %v1042
      %v1050 = vunpack.c.h.b16 %v1042
      %v1051 = vunpack.c.l.b16 %v1043
      %v1052 = vpack.c.b16 %v1047, %v1047
      %v1053 = vpack.c.b16 %v1048, %v1048
      %v1054 = vpack.c.b16 %v1049, %v1049
      %v1055 = vpack.c.b16 %v1050, %v1050
      %v1056 = vpack.c.b16 %v1051, %v1051
      %1062 = vst [vmem:[%s205 + $0x58] sm:$0xc] %v1052
      %1063 = vst [vmem:[%s205 + $0x5c] sm:$0xf] %v1053
      %1064 = vst [vmem:[%s205 + $0x60] sm:$0xf] %v1054
      %1065 = vst [vmem:[%s205 + $0x64] sm:$0xf] %v1055
      %1066 = vst [vmem:[%s205 + $0x68] sm:$0xf] %v1056
      %v1070 = vrot.slane %v1038, 2
      %v1071 = vrot.slane %v1039, 2
      %v1072 = vsel %vm308, %v1070, %v1071
      %v1073 = vrot.slane %v1040, 2
      %v1074 = vsel %vm308, %v1071, %v1073
      %v1078 = vmax.f32 %v1036, %v1072
      %v1079 = vmax.f32 %v1037, %v1074
      %v1080 = vmax.f32 %v1038, %v1073
      %v1084 = vrot.slane %v1078, 4
      %v1085 = vrot.slane %v1079, 4
      %v1086 = vsel %vm477, %v1084, %v1085
      %v1087 = vrot.slane %v1080, 4
      %v1088 = vsel %vm477, %v1085, %v1087
      %v1091 = vsel %vm327, %v1087, 0
      %1093 = vmatprep.subr.mxu0 0.0
      %1094 = vmatpush1.msra.mxu0 %v1086
      %1095 = vmatprep.subr.mxu0 0.0
      %1096 = vmatpush1.msra.mxu0 %v1088
      %1097 = vmatprep.subr.mxu0 0.0
      %1098 = vmatpush1.msra.mxu0 %v1091
      %1099 = vmatprep.subr.mxu0 0.0
      %1100 = vmatpush1.msra.mxu0 0.0
      %1101 = vmatprep.subr.mxu0 0.0
      %1102 = vmatpush1.msra.mxu0 0.0
      %1103 = vmatprep.subr.mxu0 0.0
      %1104 = vmatpush1.msra.mxu0 0.0
      %1105 = vmatprep.subr.mxu0 0.0
      %1106 = vmatpush1.msra.mxu0 0.0
      %1107 = vmatprep.subr.mxu0 0.0
      %1108 = vmatpush1.msra.mxu0 0.0
      %1109 = vmatprep.subr.mxu0 0.0
      %1110 = vmatpush1.msra.mxu0 0.0
      %1111 = vmatprep.subr.mxu0 0.0
      %1112 = vmatpush1.msra.mxu0 0.0
      %1113 = vmatprep.subr.mxu0 0.0
      %1114 = vmatpush1.msra.mxu0 0.0
      %1115 = vmatprep.subr.mxu0 0.0
      %1116 = vmatpush1.msra.mxu0 0.0
      %1117 = vmatprep.subr.mxu0 0.0
      %1118 = vmatpush1.msra.mxu0 0.0
      %1119 = vmatprep.subr.mxu0 0.0
      %1120 = vmatpush1.msra.mxu0 0.0
      %1121 = vmatprep.subr.mxu0 0.0
      %1122 = vmatpush1.msra.mxu0 0.0
      %1123 = vmatprep.subr.mxu0 0.0
      %1124 = vmatpush1.msra.mxu0 0.0
      %1125 = vmatprep.subr.mxu0 0.0
      %1126 = vmatpush1.msra.mxu0 0.0
      %1127 = vmatprep.subr.mxu0 0.0
      %1128 = vmatpush1.msra.mxu0 0.0
      %1129 = vmatprep.subr.mxu0 0.0
      %1130 = vmatpush1.msra.mxu0 0.0
      %1131 = vmatprep.subr.mxu0 0.0
      %1132 = vmatpush1.msra.mxu0 0.0
      %1133 = vmatprep.subr.mxu0 0.0
      %1134 = vmatpush1.msra.mxu0 0.0
      %1135 = vmatprep.subr.mxu0 0.0
      %1136 = vmatpush1.msra.mxu0 0.0
      %1137 = vmatprep.subr.mxu0 0.0
      %1138 = vmatpush1.msra.mxu0 0.0
      %1139 = vmatprep.subr.mxu0 0.0
      %1140 = vmatpush1.msra.mxu0 0.0
      %1141 = vmatprep.subr.mxu0 0.0
      %1142 = vmatpush1.msra.mxu0 0.0
      %1143 = vmatprep.subr.mxu0 0.0
      %1144 = vmatpush1.msra.mxu0 0.0
      %1145 = vmatprep.subr.mxu0 0.0
      %1146 = vmatpush1.msra.mxu0 0.0
      %1147 = vmatprep.subr.mxu0 0.0
      %1148 = vmatpush1.msra.mxu0 0.0
      %1149 = vmatprep.subr.mxu0 0.0
      %1150 = vmatpush1.msra.mxu0 0.0
      %1151 = vmatprep.subr.mxu0 0.0
      %1152 = vmatpush1.msra.mxu0 0.0
      %1153 = vmatprep.subr.mxu0 0.0
      %1154 = vmatpush1.msra.mxu0 0.0
      %1155 = vmatprep.subr.mxu0 0.0
      %1156 = vmatpush1.msra.mxu0 0.0
      %1157 = vmatprep.mubr.f32.mxu0 0.0
      %1158 = vmatmul.mubr.f32.gmra.mrb[0].mxu0 %v322
      %v1159 = vpop.f32.mrb[0].mxu0
      %v1160 = vadd.f32 0.0, %v1159
      %v1161 = vpop.f32.mrb[0].mxu0
      %1162 = vmatprep.mubr.f32.mxu0 0.0
      %1163 = vmatmul.mubr.f32.gmra.mrb[0].mxu0 %v325
      %v1164 = vpop.f32.mrb[0].mxu0
      %v1165 = vadd.f32 0.0, %v1164
      %v1166 = vpop.f32.mrb[0].mxu0
      %1167 = vdwg.mxu0
      %v1168 = vmax.f32 %v1160, %v1165
      %v1169 = vpack.c.bf16 %v1168, %v1168
      %s1170 = scalar_lea.vmem %s210, 20
      %1171 = vst [vmem:[%s1170] sm:$0xf] %v1169
      %v1172 = vld [vmem:[%s200 + $0x6c] sm:$0xf]
      %v1173 = vld [vmem:[%s200 + $0x70] sm:$0xf]
      %v1174 = vld [vmem:[%s200 + $0x74] sm:$0xf]
      %v1175 = vld [vmem:[%s200 + $0x78] sm:$0xf]
      %v1176 = vld [vmem:[%s200 + $0x7c] sm:$0x3]
      %v1177 = vunpack.c.l.bf16 %v1172
      %v1178 = vunpack.c.l.bf16 %v1173
      %v1179 = vunpack.c.l.bf16 %v1174
      %v1180 = vunpack.c.l.bf16 %v1175
      %v1181 = vunpack.c.l.bf16 %v1176
      %v1182 = vmul.f32 %v1177, %v256
      %v1183 = vmul.f32 %v1178, %v256
      %v1184 = vmul.f32 %v1179, %v256
      %v1185 = vmul.f32 %v1180, %v256
      %v1186 = vmul.f32 %v1181, %v256
      %v1187 = vadd.f32 %v1182, %v267
      %v1188 = vadd.f32 %v1183, %v267
      %v1189 = vadd.f32 %v1184, %v267
      %v1190 = vadd.f32 %v1185, %v267
      %v1191 = vadd.f32 %v1186, %v267
      %v1192 = vmax.f32 %v1187, 0.0
      %v1193 = vmax.f32 %v1188, 0.0
      %v1194 = vmax.f32 %v1189, 0.0
      %v1195 = vmax.f32 %v1190, 0.0
      %v1196 = vmax.f32 %v1191, 0.0
      %v1197 = vpack.c.bf16 %v1193, %v1192
      %v1198 = vpack.c.bf16 %v1195, %v1194
      %v1199 = vpack.c.bf16 %v1196, %v1196
      %v1203 = vunpack.c.l.b16 %v1197
      %v1204 = vunpack.c.h.b16 %v1197
      %v1205 = vunpack.c.l.b16 %v1198
      %v1206 = vunpack.c.h.b16 %v1198
      %v1207 = vunpack.c.l.b16 %v1199
      %v1208 = vpack.c.b16 %v1203, %v1203
      %v1209 = vpack.c.b16 %v1204, %v1204
      %v1210 = vpack.c.b16 %v1205, %v1205
      %v1211 = vpack.c.b16 %v1206, %v1206
      %v1212 = vpack.c.b16 %v1207, %v1207
      %1218 = vst [vmem:[%s205 + $0x6c] sm:$0xf] %v1208
      %1219 = vst [vmem:[%s205 + $0x70] sm:$0xf] %v1209
      %1220 = vst [vmem:[%s205 + $0x74] sm:$0xf] %v1210
      %1221 = vst [vmem:[%s205 + $0x78] sm:$0xf] %v1211
      %1222 = vst [vmem:[%s205 + $0x7c] sm:$0x3] %v1212
      %v1226 = vrot.slane %v1194, 2
      %v1227 = vrot.slane %v1195, 2
      %v1228 = vsel %vm308, %v1226, %v1227
      %v1229 = vrot.slane %v1196, 2
      %v1230 = vsel %vm308, %v1227, %v1229
      %v1234 = vmax.f32 %v1192, %v1228
      %v1235 = vmax.f32 %v1193, %v1230
      %v1236 = vmax.f32 %v1194, %v1229
      %v1238 = vsel %vm327, %v1236, 0
      %1240 = vmatprep.subr.mxu0 0.0
      %1241 = vmatpush1.msra.mxu0 %v1234
      %1242 = vmatprep.subr.mxu0 0.0
      %1243 = vmatpush1.msra.mxu0 %v1235
      %1244 = vmatprep.subr.mxu0 0.0
      %1245 = vmatpush1.msra.mxu0 %v1238
      %1246 = vmatprep.subr.mxu0 0.0
      %1247 = vmatpush1.msra.mxu0 0.0
      %1248 = vmatprep.subr.mxu0 0.0
      %1249 = vmatpush1.msra.mxu0 0.0
      %1250 = vmatprep.subr.mxu0 0.0
      %1251 = vmatpush1.msra.mxu0 0.0
      %1252 = vmatprep.subr.mxu0 0.0
      %1253 = vmatpush1.msra.mxu0 0.0
      %1254 = vmatprep.subr.mxu0 0.0
      %1255 = vmatpush1.msra.mxu0 0.0
      %1256 = vmatprep.subr.mxu0 0.0
      %1257 = vmatpush1.msra.mxu0 0.0
      %1258 = vmatprep.subr.mxu0 0.0
      %1259 = vmatpush1.msra.mxu0 0.0
      %1260 = vmatprep.subr.mxu0 0.0
      %1261 = vmatpush1.msra.mxu0 0.0
      %1262 = vmatprep.subr.mxu0 0.0
      %1263 = vmatpush1.msra.mxu0 0.0
      %1264 = vmatprep.subr.mxu0 0.0
      %1265 = vmatpush1.msra.mxu0 0.0
      %1266 = vmatprep.subr.mxu0 0.0
      %1267 = vmatpush1.msra.mxu0 0.0
      %1268 = vmatprep.subr.mxu0 0.0
      %1269 = vmatpush1.msra.mxu0 0.0
      %1270 = vmatprep.subr.mxu0 0.0
      %1271 = vmatpush1.msra.mxu0 0.0
      %1272 = vmatprep.subr.mxu0 0.0
      %1273 = vmatpush1.msra.mxu0 0.0
      %1274 = vmatprep.subr.mxu0 0.0
      %1275 = vmatpush1.msra.mxu0 0.0
      %1276 = vmatprep.subr.mxu0 0.0
      %1277 = vmatpush1.msra.mxu0 0.0
      %1278 = vmatprep.subr.mxu0 0.0
      %1279 = vmatpush1.msra.mxu0 0.0
      %1280 = vmatprep.subr.mxu0 0.0
      %1281 = vmatpush1.msra.mxu0 0.0
      %1282 = vmatprep.subr.mxu0 0.0
      %1283 = vmatpush1.msra.mxu0 0.0
      %1284 = vmatprep.subr.mxu0 0.0
      %1285 = vmatpush1.msra.mxu0 0.0
      %1286 = vmatprep.subr.mxu0 0.0
      %1287 = vmatpush1.msra.mxu0 0.0
      %1288 = vmatprep.subr.mxu0 0.0
      %1289 = vmatpush1.msra.mxu0 0.0
      %1290 = vmatprep.subr.mxu0 0.0
      %1291 = vmatpush1.msra.mxu0 0.0
      %1292 = vmatprep.subr.mxu0 0.0
      %1293 = vmatpush1.msra.mxu0 0.0
      %1294 = vmatprep.subr.mxu0 0.0
      %1295 = vmatpush1.msra.mxu0 0.0
      %1296 = vmatprep.subr.mxu0 0.0
      %1297 = vmatpush1.msra.mxu0 0.0
      %1298 = vmatprep.subr.mxu0 0.0
      %1299 = vmatpush1.msra.mxu0 0.0
      %1300 = vmatprep.subr.mxu0 0.0
      %1301 = vmatpush1.msra.mxu0 0.0
      %1302 = vmatprep.subr.mxu0 0.0
      %1303 = vmatpush1.msra.mxu0 0.0
      %1304 = vmatprep.mubr.f32.mxu0 0.0
      %1305 = vmatmul.mubr.f32.gmra.mrb[0].mxu0 %v322
      %v1306 = vpop.f32.mrb[0].mxu0
      %v1307 = vadd.f32 0.0, %v1306
      %v1308 = vpop.f32.mrb[0].mxu0
      %1309 = vmatprep.mubr.f32.mxu0 0.0
      %1310 = vmatmul.mubr.f32.gmra.mrb[0].mxu0 %v325
      %v1311 = vpop.f32.mrb[0].mxu0
      %v1312 = vadd.f32 0.0, %v1311
      %v1313 = vpop.f32.mrb[0].mxu0
      %1314 = vdwg.mxu0
      %v1315 = vmax.f32 %v1307, %v1312
      %v1316 = vpack.c.bf16 %v1315, %v1315
      %s1317 = scalar_lea.vmem %s210, 24
      %1318 = vst [vmem:[%s1317] sm:$0xf] %v1316
      %v1319 = vld [vmem:[%s200 + $0x7c] sm:$0xc]
      %v1320 = vld [vmem:[%s200 + $0x80] sm:$0xf]
      %v1321 = vld [vmem:[%s200 + $0x84] sm:$0xf]
      %v1322 = vld [vmem:[%s200 + $0x88] sm:$0xf]
      %v1323 = vld [vmem:[%s200 + $0x8c] sm:$0xf]
      %v1324 = vunpack.c.l.bf16 %v1319
      %v1325 = vunpack.c.l.bf16 %v1320
      %v1326 = vunpack.c.l.bf16 %v1321
      %v1327 = vunpack.c.l.bf16 %v1322
      %v1328 = vunpack.c.l.bf16 %v1323
      %v1329 = vmul.f32 %v1324, %v256
      %v1330 = vmul.f32 %v1325, %v256
      %v1331 = vmul.f32 %v1326, %v256
      %v1332 = vmul.f32 %v1327, %v256
      %v1333 = vmul.f32 %v1328, %v256
      %v1334 = vadd.f32 %v1329, %v267
      %v1335 = vadd.f32 %v1330, %v267
      %v1336 = vadd.f32 %v1331, %v267
      %v1337 = vadd.f32 %v1332, %v267
      %v1338 = vadd.f32 %v1333, %v267
      %v1339 = vmax.f32 %v1334, 0.0
      %v1340 = vmax.f32 %v1335, 0.0
      %v1341 = vmax.f32 %v1336, 0.0
      %v1342 = vmax.f32 %v1337, 0.0
      %v1343 = vmax.f32 %v1338, 0.0
      %v1344 = vpack.c.bf16 %v1340, %v1339
      %v1345 = vpack.c.bf16 %v1342, %v1341
      %v1346 = vpack.c.bf16 %v1343, %v1343
      %v1350 = vunpack.c.l.b16 %v1344
      %v1351 = vunpack.c.h.b16 %v1344
      %v1352 = vunpack.c.l.b16 %v1345
      %v1353 = vunpack.c.h.b16 %v1345
      %v1354 = vunpack.c.l.b16 %v1346
      %v1355 = vpack.c.b16 %v1350, %v1350
      %v1356 = vpack.c.b16 %v1351, %v1351
      %v1357 = vpack.c.b16 %v1352, %v1352
      %v1358 = vpack.c.b16 %v1353, %v1353
      %v1359 = vpack.c.b16 %v1354, %v1354
      %1365 = vst [vmem:[%s205 + $0x7c] sm:$0xc] %v1355
      %1366 = vst [vmem:[%s205 + $0x80] sm:$0xf] %v1356
      %1367 = vst [vmem:[%s205 + $0x84] sm:$0xf] %v1357
      %1368 = vst [vmem:[%s205 + $0x88] sm:$0xf] %v1358
      %1369 = vst [vmem:[%s205 + $0x8c] sm:$0xf] %v1359
      %v1373 = vrot.slane %v1341, 2
      %v1374 = vrot.slane %v1342, 2
      %v1375 = vsel %vm308, %v1373, %v1374
      %v1376 = vrot.slane %v1343, 2
      %v1377 = vsel %vm308, %v1374, %v1376
      %v1381 = vmax.f32 %v1339, %v1375
      %v1382 = vmax.f32 %v1340, %v1377
      %v1383 = vmax.f32 %v1341, %v1376
      %v1387 = vrot.slane %v1381, 4
      %v1388 = vrot.slane %v1382, 4
      %v1389 = vsel %vm477, %v1387, %v1388
      %v1390 = vrot.slane %v1383, 4
      %v1391 = vsel %vm477, %v1388, %v1390
      %v1394 = vsel %vm327, %v1390, 0
      %1396 = vmatprep.subr.mxu0 0.0
      %1397 = vmatpush1.msra.mxu0 %v1389
      %1398 = vmatprep.subr.mxu0 0.0
      %1399 = vmatpush1.msra.mxu0 %v1391
      %1400 = vmatprep.subr.mxu0 0.0
      %1401 = vmatpush1.msra.mxu0 %v1394
      %1402 = vmatprep.subr.mxu0 0.0
      %1403 = vmatpush1.msra.mxu0 0.0
      %1404 = vmatprep.subr.mxu0 0.0
      %1405 = vmatpush1.msra.mxu0 0.0
      %1406 = vmatprep.subr.mxu0 0.0
      %1407 = vmatpush1.msra.mxu0 0.0
      %1408 = vmatprep.subr.mxu0 0.0
      %1409 = vmatpush1.msra.mxu0 0.0
      %1410 = vmatprep.subr.mxu0 0.0
      %1411 = vmatpush1.msra.mxu0 0.0
      %1412 = vmatprep.subr.mxu0 0.0
      %1413 = vmatpush1.msra.mxu0 0.0
      %1414 = vmatprep.subr.mxu0 0.0
      %1415 = vmatpush1.msra.mxu0 0.0
      %1416 = vmatprep.subr.mxu0 0.0
      %1417 = vmatpush1.msra.mxu0 0.0
      %1418 = vmatprep.subr.mxu0 0.0
      %1419 = vmatpush1.msra.mxu0 0.0
      %1420 = vmatprep.subr.mxu0 0.0
      %1421 = vmatpush1.msra.mxu0 0.0
      %1422 = vmatprep.subr.mxu0 0.0
      %1423 = vmatpush1.msra.mxu0 0.0
      %1424 = vmatprep.subr.mxu0 0.0
      %1425 = vmatpush1.msra.mxu0 0.0
      %1426 = vmatprep.subr.mxu0 0.0
      %1427 = vmatpush1.msra.mxu0 0.0
      %1428 = vmatprep.subr.mxu0 0.0
      %1429 = vmatpush1.msra.mxu0 0.0
      %1430 = vmatprep.subr.mxu0 0.0
      %1431 = vmatpush1.msra.mxu0 0.0
      %1432 = vmatprep.subr.mxu0 0.0
      %1433 = vmatpush1.msra.mxu0 0.0
      %1434 = vmatprep.subr.mxu0 0.0
      %1435 = vmatpush1.msra.mxu0 0.0
      %1436 = vmatprep.subr.mxu0 0.0
      %1437 = vmatpush1.msra.mxu0 0.0
      %1438 = vmatprep.subr.mxu0 0.0
      %1439 = vmatpush1.msra.mxu0 0.0
      %1440 = vmatprep.subr.mxu0 0.0
      %1441 = vmatpush1.msra.mxu0 0.0
      %1442 = vmatprep.subr.mxu0 0.0
      %1443 = vmatpush1.msra.mxu0 0.0
      %1444 = vmatprep.subr.mxu0 0.0
      %1445 = vmatpush1.msra.mxu0 0.0
      %1446 = vmatprep.subr.mxu0 0.0
      %1447 = vmatpush1.msra.mxu0 0.0
      %1448 = vmatprep.subr.mxu0 0.0
      %1449 = vmatpush1.msra.mxu0 0.0
      %1450 = vmatprep.subr.mxu0 0.0
      %1451 = vmatpush1.msra.mxu0 0.0
      %1452 = vmatprep.subr.mxu0 0.0
      %1453 = vmatpush1.msra.mxu0 0.0
      %1454 = vmatprep.subr.mxu0 0.0
      %1455 = vmatpush1.msra.mxu0 0.0
      %1456 = vmatprep.subr.mxu0 0.0
      %1457 = vmatpush1.msra.mxu0 0.0
      %1458 = vmatprep.subr.mxu0 0.0
      %1459 = vmatpush1.msra.mxu0 0.0
      %1460 = vmatprep.mubr.f32.mxu0 0.0
      %1461 = vmatmul.mubr.f32.gmra.mrb[0].mxu0 %v322
      %v1462 = vpop.f32.mrb[0].mxu0
      %v1463 = vadd.f32 0.0, %v1462
      %v1464 = vpop.f32.mrb[0].mxu0
      %1465 = vmatprep.mubr.f32.mxu0 0.0
      %1466 = vmatmul.mubr.f32.gmra.mrb[0].mxu0 %v325
      %v1467 = vpop.f32.mrb[0].mxu0
      %v1468 = vadd.f32 0.0, %v1467
      %v1469 = vpop.f32.mrb[0].mxu0
      %1470 = vdwg.mxu0
      %v1471 = vmax.f32 %v1463, %v1468
      %v1472 = vpack.c.bf16 %v1471, %v1471
      %s1473 = scalar_lea.vmem %s210, 28
      %1474 = vst [vmem:[%s1473] sm:$0xf] %v1472
      %p1475 = scmp.lt.s32.totalorder %s16, 1
      %s1476 = scalar_select %p1475, %s16, 1
      %s1477 = smul.addr %s1476, 36
      %s1478 = smul.addr %s1477, 4
      %s1479 = scalar_lea.vmem %s3, %s1478
      %p1480 = scmp.lt.s32.totalorder %s16, 1
      %s1481 = scalar_select %p1480, %s16, 1
      %s1482 = smul.addr %s1481, 8
      %s1483 = smul.addr %s1482, 4
      %s1484 = scalar_lea.vmem %s4, %s1483
      // Predicated region
      $region33: #{encoder_block_forward.5} parent=31 // pred_check
        %p1485 = pneg %p102
      $region34: #{encoder_block_forward.5} parent=31 // pred_check_branch
        %1487 = sbr.rel (%p1485) target = $region36
      $region35: #{encoder_block_forward.5} parent=31 // pred_region
        _
      $region36: #{encoder_block_forward.5} parent=31 // pred_fallthru
        _
      // Predicated region
      $region37: #{encoder_block_forward.5} parent=31 // pred_check
        %p1488 = pneg %p128
      $region38: #{encoder_block_forward.5} parent=31 // pred_check_branch
        %1490 = sbr.rel (%p1488) target = $region40
      $region39: #{encoder_block_forward.5} parent=31 // pred_region
        _
      $region40: #{encoder_block_forward.5} parent=31 // pred_fallthru
        _
    $region32: #{encoder_block_forward.5} parent=5 // pred_fallthru
      _
    %p1491 = scmp.le.s32.totalorder 2, %s11
    // Predicated region
    $region41: #{encoder_block_forward.5} parent=5 // pred_check
      %p1492 = pneg %p1491
    $region42: #{encoder_block_forward.5} parent=5 // pred_check_branch
      %1494 = sbr.rel (%p1492) target = $region44
    $region43: #{encoder_block_forward.5} parent=5 // pred_region
      %s1495 = ssub.s32 %s11, 2
      // Predicated region
      $region45: #{encoder_block_forward.5} parent=43 // pred_check
        %p1496 = pneg %p108
      $region46: #{encoder_block_forward.5} parent=43 // pred_check_branch
        %1498 = sbr.rel (%p1496) target = $region48
      $region47: #{encoder_block_forward.5} parent=43 // pred_region
        %p1499 = scmp.lt.s32.totalorder %s17, 1
        %s1500 = scalar_select %p1499, %s17, 1
        %s1501 = smul.addr %s1500, 36
        %s1502 = smul.addr %s1501, 4
        %s1503 = scalar_lea.vmem %s3, %s1502
      $region48: #{encoder_block_forward.5} parent=43 // pred_fallthru
        _
      // Predicated region
      $region49: #{encoder_block_forward.5} parent=43 // pred_check
        %p1504 = pneg %p134
      $region50: #{encoder_block_forward.5} parent=43 // pred_check_branch
        %1506 = sbr.rel (%p1504) target = $region52
      $region51: #{encoder_block_forward.5} parent=43 // pred_region
        %p1507 = scmp.lt.s32.totalorder %s17, 1
        %s1508 = scalar_select %p1507, %s17, 1
        %s1509 = smul.addr %s1508, 8
        %s1510 = smul.addr %s1509, 4
        %s1511 = scalar_lea.vmem %s4, %s1510
      $region52: #{encoder_block_forward.5} parent=43 // pred_fallthru
        _
    $region44: #{encoder_block_forward.5} parent=5 // pred_fallthru
      _
  $region6: #{encoder_block_forward.5} parent=0 // loop_footer
    %s15 = sadd.s32 1, %s11
  $region7: #{encoder_block_forward.5} parent=0 // loop_footer_branch
    %10 = sbr.rel target = $region3
  $region8: #{encoder_block_forward.5} parent=0 // loop_exit
    _

// kernel: encoder_block_forward.4
$region0: #{encoder_block_forward.4}
  #allocation0 [shape = 'u32[]', space=smem, size = 0x4, offset = 0x4, fixed_abs, tag = 'smem constant byte address 0x4 - core index']
  #allocation1 [shape = 'u32[144,128]{1,0:T(1,128)}', space=vmem, size = 0x12000, scoped, tag = 'internal scratch']
  #allocation2 [shape = 'bf16[342,128]{1,0:T(8,128)(2,1)}', space=vmem, size = 0x15800, scoped, tag = 'scratch operand']
  %s0 = inlined_call_operand.vmem [shape: bf16[2,288,128], index: 0, kind: input, shape index: {}]
  %s1 = inlined_call_operand.vmem [shape: f32[1,128], index: 1, kind: input, shape index: {}]
  %s2 = inlined_call_operand.vmem [shape: f32[1,128], index: 2, kind: input, shape index: {}]
  %s3 = inlined_call_operand.vmem [shape: bf16[1152,128], index: 3, kind: input, shape index: {}]
  %s4 = inlined_call_operand.vmem [shape: bf16[2,288,128], index: 4, kind: output, shape index: {0}]
  %s5 = inlined_call_operand.vmem [shape: f32[2,1,128], index: 5, kind: output, shape index: {1}]
  %s6 = inlined_call_operand.vmem [shape: f32[2,1,128], index: 6, kind: output, shape index: {2}]
  %7 = xla_tuple %s4, %s5, %s6
  %s8 = sld [smem:[#allocation0]]
  $region65: #{encoder_block_forward.4} parent=0
    _
  %s10 = ssub.s32 1, %s8
  %s11 = scalar_select 0, %s10, %s8
  loop: start=0, step=1, limit=4
  $region2: #{encoder_block_forward.4} parent=0 // loop_pre_header
    _
  $region3: #{encoder_block_forward.4} parent=0 // loop_header
    %s13 = sphi 0, %s17
    %p14 = scmp.ge.s32.totalorder %s13, 4
    %s23 = sphi 0, %s25
    %s26 = sphi 0, %s23
    %s27 = sphi 0, %s26
    %s43 = sphi 0, %s27
    %s47 = sphi 0, %s47
    %s49 = sphi 0, %s47
    %s50 = sphi 0, %s49
    %s64 = sphi 0, %s50
    %s68 = sphi 0, %s68
    %s70 = sphi 0, %s68
    %s71 = sphi 0, %s70
    %s85 = sphi 0, %s71
    %s89 = sphi 0, %s89
    %s91 = sphi 0, %s89
    %s92 = sphi 0, %s91
    %s106 = sphi 0, %s92
    %s112 = sphi 0, %s114
    %s115 = sphi 0, %s112
    %s116 = sphi 0, %s115
    %s132 = sphi 0, %s116
    %s138 = sphi 0, %s140
    %s141 = sphi 0, %s138
    %s142 = sphi 0, %s141
    %s158 = sphi 0, %s142
    %s164 = sphi 0, %s166
    %s167 = sphi 0, %s164
    %s168 = sphi 0, %s167
    %s184 = sphi 0, %s168
  $region4: #{encoder_block_forward.4} parent=0 // loop_header_branch
    %16 = sbr.rel (%p14) target = $region8
  $region5: #{encoder_block_forward.4} parent=0 // loop_body
    %s18 = ssub.s32 %s13, 1
    %s19 = ssub.s32 %s13, 2
    %s20 = sadd.s32 %s13, 1
    %s21 = ssub.s32 %s13, %s20
    %p22 = scmp.eq.s32.totalorder %s21, 0
    %s24 = sadd.s32 %s23, 1
    %s25 = scalar_select %p22, %s23, %s24
    %p28 = pneg %p22
    %p29 = scmp.eq.s32.totalorder %s13, 1
    %p30 = por %p28, %p29
    %p31 = scmp.ne.s32.totalorder %s23, %s26
    %p32 = scmp.eq.s32.totalorder %s13, 0
    %p33 = por %p31, %p32
    %p34 = scmp.ne.s32.totalorder %s23, %s26
    %p35 = scmp.eq.s32.totalorder %s18, 1
    %p36 = por %p34, %p35
    %p37 = scmp.ne.s32.totalorder %s26, %s27
    %p38 = scmp.eq.s32.totalorder %s18, 0
    %p39 = por %p37, %p38
    %p40 = scmp.ne.s32.totalorder %s26, %s27
    %p41 = scmp.eq.s32.totalorder %s19, 1
    %p42 = por %p40, %p41
    %p44 = scmp.ne.s32.totalorder %s27, %s43
    %p45 = scmp.eq.s32.totalorder %s19, 0
    %p46 = por %p44, %p45
    %s48 = sadd.s32 %s47, 1
    %p51 = scmp.eq.s32.totalorder %s13, 1
    %p52 = scmp.ne.s32.totalorder %s47, %s49
    %p53 = scmp.eq.s32.totalorder %s13, 0
    %p54 = por %p52, %p53
    %p55 = scmp.ne.s32.totalorder %s47, %s49
    %p56 = scmp.eq.s32.totalorder %s18, 1
    %p57 = por %p55, %p56
    %p58 = scmp.ne.s32.totalorder %s49, %s50
    %p59 = scmp.eq.s32.totalorder %s18, 0
    %p60 = por %p58, %p59
    %p61 = scmp.ne.s32.totalorder %s49, %s50
    %p62 = scmp.eq.s32.totalorder %s19, 1
    %p63 = por %p61, %p62
    %p65 = scmp.ne.s32.totalorder %s50, %s64
    %p66 = scmp.eq.s32.totalorder %s19, 0
    %p67 = por %p65, %p66
    %s69 = sadd.s32 %s68, 1
    %p72 = scmp.eq.s32.totalorder %s13, 1
    %p73 = scmp.ne.s32.totalorder %s68, %s70
    %p74 = scmp.eq.s32.totalorder %s13, 0
    %p75 = por %p73, %p74
    %p76 = scmp.ne.s32.totalorder %s68, %s70
    %p77 = scmp.eq.s32.totalorder %s18, 1
    %p78 = por %p76, %p77
    %p79 = scmp.ne.s32.totalorder %s70, %s71
    %p80 = scmp.eq.s32.totalorder %s18, 0
    %p81 = por %p79, %p80
    %p82 = scmp.ne.s32.totalorder %s70, %s71
    %p83 = scmp.eq.s32.totalorder %s19, 1
    %p84 = por %p82, %p83
    %p86 = scmp.ne.s32.totalorder %s71, %s85
    %p87 = scmp.eq.s32.totalorder %s19, 0
    %p88 = por %p86, %p87
    %s90 = sadd.s32 %s89, 1
    %p93 = scmp.eq.s32.totalorder %s13, 1
    %p94 = scmp.ne.s32.totalorder %s89, %s91
    %p95 = scmp.eq.s32.totalorder %s13, 0
    %p96 = por %p94, %p95
    %p97 = scmp.ne.s32.totalorder %s89, %s91
    %p98 = scmp.eq.s32.totalorder %s18, 1
    %p99 = por %p97, %p98
    %p100 = scmp.ne.s32.totalorder %s91, %s92
    %p101 = scmp.eq.s32.totalorder %s18, 0
    %p102 = por %p100, %p101
    %p103 = scmp.ne.s32.totalorder %s91, %s92
    %p104 = scmp.eq.s32.totalorder %s19, 1
    %p105 = por %p103, %p104
    %p107 = scmp.ne.s32.totalorder %s92, %s106
    %p108 = scmp.eq.s32.totalorder %s19, 0
    %p109 = por %p107, %p108
    %s110 = ssub.s32 %s13, %s20
    %p111 = scmp.eq.s32.totalorder %s110, 0
    %s113 = sadd.s32 %s112, 1
    %s114 = scalar_select %p111, %s112, %s113
    %p117 = pneg %p111
    %p118 = scmp.eq.s32.totalorder %s13, 1
    %p119 = por %p117, %p118
    %p120 = scmp.ne.s32.totalorder %s112, %s115
    %p121 = scmp.eq.s32.totalorder %s13, 0
    %p122 = por %p120, %p121
    %p123 = scmp.ne.s32.totalorder %s112, %s115
    %p124 = scmp.eq.s32.totalorder %s18, 1
    %p125 = por %p123, %p124
    %p126 = scmp.ne.s32.totalorder %s115, %s116
    %p127 = scmp.eq.s32.totalorder %s18, 0
    %p128 = por %p126, %p127
    %p129 = scmp.ne.s32.totalorder %s115, %s116
    %p130 = scmp.eq.s32.totalorder %s19, 1
    %p131 = por %p129, %p130
    %p133 = scmp.ne.s32.totalorder %s116, %s132
    %p134 = scmp.eq.s32.totalorder %s19, 0
    %p135 = por %p133, %p134
    %s136 = ssub.s32 %s13, %s20
    %p137 = scmp.eq.s32.totalorder %s136, 0
    %s139 = sadd.s32 %s138, 1
    %s140 = scalar_select %p137, %s138, %s139
    %p143 = pneg %p137
    %p144 = scmp.eq.s32.totalorder %s13, 1
    %p145 = por %p143, %p144
    %p146 = scmp.ne.s32.totalorder %s138, %s141
    %p147 = scmp.eq.s32.totalorder %s13, 0
    %p148 = por %p146, %p147
    %p149 = scmp.ne.s32.totalorder %s138, %s141
    %p150 = scmp.eq.s32.totalorder %s18, 1
    %p151 = por %p149, %p150
    %p152 = scmp.ne.s32.totalorder %s141, %s142
    %p153 = scmp.eq.s32.totalorder %s18, 0
    %p154 = por %p152, %p153
    %p155 = scmp.ne.s32.totalorder %s141, %s142
    %p156 = scmp.eq.s32.totalorder %s19, 1
    %p157 = por %p155, %p156
    %p159 = scmp.ne.s32.totalorder %s142, %s158
    %p160 = scmp.eq.s32.totalorder %s19, 0
    %p161 = por %p159, %p160
    %s162 = ssub.s32 %s13, %s20
    %p163 = scmp.eq.s32.totalorder %s162, 0
    %s165 = sadd.s32 %s164, 1
    %s166 = scalar_select %p163, %s164, %s165
    %p169 = pneg %p163
    %p170 = scmp.eq.s32.totalorder %s13, 1
    %p171 = por %p169, %p170
    %p172 = scmp.ne.s32.totalorder %s164, %s167
    %p173 = scmp.eq.s32.totalorder %s13, 0
    %p174 = por %p172, %p173
    %p175 = scmp.ne.s32.totalorder %s164, %s167
    %p176 = scmp.eq.s32.totalorder %s18, 1
    %p177 = por %p175, %p176
    %p178 = scmp.ne.s32.totalorder %s167, %s168
    %p179 = scmp.eq.s32.totalorder %s18, 0
    %p180 = por %p178, %p179
    %p181 = scmp.ne.s32.totalorder %s167, %s168
    %p182 = scmp.eq.s32.totalorder %s19, 1
    %p183 = por %p181, %p182
    %p185 = scmp.ne.s32.totalorder %s168, %s184
    %p186 = scmp.eq.s32.totalorder %s19, 0
    %p187 = por %p185, %p186
    %p188 = scmp.le.s32.totalorder 1, %s13
    %p189 = scmp.lt.s32.totalorder %s13, 3
    %p190 = pnand %p188, %p189
    %p191 = pneg %p190
    // Predicated region
    $region9: #{encoder_block_forward.4} parent=5 // pred_check
      _
    $region10: #{encoder_block_forward.4} parent=5 // pred_check_branch
      %193 = sbr.rel (%p190) target = $region12
    $region11: #{encoder_block_forward.4} parent=5 // pred_region
      %s194 = ssub.s32 %s13, 1
      // Predicated region
      $region13: #{encoder_block_forward.4} parent=11 // pred_check
        %p195 = pneg %p60
      $region14: #{encoder_block_forward.4} parent=11 // pred_check_branch
        %197 = sbr.rel (%p195) target = $region16
      $region15: #{encoder_block_forward.4} parent=11 // pred_region
        _
      $region16: #{encoder_block_forward.4} parent=11 // pred_fallthru
        _
      // Predicated region
      $region17: #{encoder_block_forward.4} parent=11 // pred_check
        %p198 = pneg %p81
      $region18: #{encoder_block_forward.4} parent=11 // pred_check_branch
        %200 = sbr.rel (%p198) target = $region20
      $region19: #{encoder_block_forward.4} parent=11 // pred_region
        _
      $region20: #{encoder_block_forward.4} parent=11 // pred_fallthru
        _
      // Predicated region
      $region21: #{encoder_block_forward.4} parent=11 // pred_check
        %p201 = pneg %p102
      $region22: #{encoder_block_forward.4} parent=11 // pred_check_branch
        %203 = sbr.rel (%p201) target = $region24
      $region23: #{encoder_block_forward.4} parent=11 // pred_region
        _
      $region24: #{encoder_block_forward.4} parent=11 // pred_fallthru
        _
    $region12: #{encoder_block_forward.4} parent=5 // pred_fallthru
      _
    %p204 = scmp.lt.s32.totalorder %s13, 2
    // Predicated region
    $region25: #{encoder_block_forward.4} parent=5 // pred_check
      %p205 = pneg %p204
    $region26: #{encoder_block_forward.4} parent=5 // pred_check_branch
      %207 = sbr.rel (%p205) target = $region28
    $region27: #{encoder_block_forward.4} parent=5 // pred_region
      // Predicated region
      $region29: #{encoder_block_forward.4} parent=27 // pred_check
        %p208 = pneg %p33
      $region30: #{encoder_block_forward.4} parent=27 // pred_check_branch
        %210 = sbr.rel (%p208) target = $region32
      $region31: #{encoder_block_forward.4} parent=27 // pred_region
        %p211 = scmp.lt.s32.totalorder %s13, 1
        %s212 = scalar_select %p211, %s13, 1
        %s213 = smul.addr %s212, 36
        %s214 = smul.addr %s213, 4
        %s215 = scalar_lea.vmem %s0, %s214
      $region32: #{encoder_block_forward.4} parent=27 // pred_fallthru
        _
    $region28: #{encoder_block_forward.4} parent=5 // pred_fallthru
      _
    %p216 = scmp.le.s32.totalorder 1, %s13
    %p217 = scmp.lt.s32.totalorder %s13, 3
    %p218 = pnand %p216, %p217
    %p219 = pneg %p218
    // Predicated region
    $region33: #{encoder_block_forward.4} parent=5 // pred_check
      _
    $region34: #{encoder_block_forward.4} parent=5 // pred_check_branch
      %221 = sbr.rel (%p218) target = $region36
    $region35: #{encoder_block_forward.4} parent=5 // pred_region
      %s222 = ssub.s32 %s13, 1
      %p223 = scmp.lt.s32.totalorder %s18, 1
      %s224 = scalar_select %p223, %s18, 1
      %s225 = smul.addr %s224, 36
      %s226 = smul.addr %s225, 4
      %s227 = scalar_lea.vmem %s0, %s226
      %p228 = pneg %p39
      %p229 = pneg %p36
      %p230 = pneg %p60
      %p231 = pneg %p57
      %p232 = pneg %p81
      %p233 = pneg %p78
      %p234 = pneg %p102
      %p235 = pneg %p99
      %p236 = pneg %p128
      %p237 = pneg %p125
      %p238 = scmp.lt.s32.totalorder %s18, 1
      %s239 = scalar_select %p238, %s18, 1
      %s240 = smul.addr %s239, 36
      %s241 = smul.addr %s240, 4
      %s242 = scalar_lea.vmem %s4, %s241
      %p243 = pneg %p154
      %p244 = pneg %p151
      %p245 = scmp.lt.s32.totalorder %s18, 1
      %s246 = scalar_select %p245, %s18, 1
      %s247 = scalar_lea.vmem %s5, %s246
      %p248 = pneg %p180
      %p249 = pneg %p177
      %p250 = scmp.lt.s32.totalorder %s18, 1
      %s251 = scalar_select %p250, %s18, 1
      %s252 = scalar_lea.vmem %s6, %s251
      %p253 = scmp.lt.s32.totalorder %s18, 1
      %s254 = scalar_select %p253, %s18, 1
      %s255 = smul.addr %s254, 36
      %s256 = smul.addr %s255, 4
      %s257 = scalar_lea.vmem %s0, %s256
      %p258 = scmp.lt.s32.totalorder %s18, 1
      %s259 = scalar_select %p258, %s18, 1
      %s260 = smul.addr %s259, 36
      %s261 = smul.addr %s260, 4
      %s262 = scalar_lea.vmem %s4, %s261
      %p263 = scmp.lt.s32.totalorder %s18, 1
      %s264 = scalar_select %p263, %s18, 1
      %s265 = scalar_lea.vmem %s5, %s264
      %p266 = scmp.lt.s32.totalorder %s18, 1
      %s267 = scalar_select %p266, %s18, 1
      %s268 = scalar_lea.vmem %s6, %s267
      %v270 = vlaneseq
      %v271 = vshrl.u32 %v270, 7
      %v272 = vadd.s32 %v271, 8
      %v273 = vadd.s32 %v271, 16
      %v274 = vadd.s32 %v271, 24
      %v275 = vadd.s32 %v271, 32
      %v276 = vadd.s32 %v271, 40
      %v277 = vadd.s32 %v271, 48
      %v278 = vadd.s32 %v271, 56
      %v279 = vadd.s32 %v271, 64
      %v280 = vadd.s32 %v271, 72
      %v281 = vadd.s32 %v271, 80
      %v282 = vadd.s32 %v271, 88
      %v283 = vadd.s32 %v271, 96
      %v284 = vadd.s32 %v271, 104
      %v285 = vadd.s32 %v271, 112
      %v286 = vadd.s32 %v271, 120
      %v287 = vadd.s32 %v271, 128
      %v288 = vadd.s32 %v271, 136
      %v289 = vadd.s32 %v271, 144
      %v290 = vadd.s32 %v271, 152
      %v291 = vadd.s32 %v271, 160
      %v292 = vadd.s32 %v271, 168
      %v293 = vadd.s32 %v271, 176
      %v294 = vadd.s32 %v271, 184
      %v295 = vadd.s32 %v271, 192
      %v296 = vadd.s32 %v271, 200
      %v297 = vadd.s32 %v271, 208
      %v298 = vadd.s32 %v271, 216
      %v299 = vadd.s32 %v271, 224
      %v300 = vadd.s32 %v271, 232
      %v301 = vadd.s32 %v271, 240
      %v302 = vadd.s32 %v271, 248
      %v303 = vadd.s32 %v271, 256
      %v304 = vadd.s32 %v271, 264
      %v305 = vadd.s32 %v271, 272
      %v306 = vadd.s32 %v271, 280
      %v307 = vcvt.s32.f32 %v271
      %v308 = vcvt.s32.f32 %v272
      %v309 = vcvt.s32.f32 %v273
      %v310 = vcvt.s32.f32 %v274
      %v311 = vcvt.s32.f32 %v275
      %v312 = vcvt.s32.f32 %v276
      %v313 = vcvt.s32.f32 %v277
      %v314 = vcvt.s32.f32 %v278
      %v315 = vcvt.s32.f32 %v279
      %v316 = vcvt.s32.f32 %v280
      %v317 = vcvt.s32.f32 %v281
      %v318 = vcvt.s32.f32 %v282
      %v319 = vcvt.s32.f32 %v283
      %v320 = vcvt.s32.f32 %v284
      %v321 = vcvt.s32.f32 %v285
      %v322 = vcvt.s32.f32 %v286
      %v323 = vcvt.s32.f32 %v287
      %v324 = vcvt.s32.f32 %v288
      %v325 = vcvt.s32.f32 %v289
      %v326 = vcvt.s32.f32 %v290
      %v327 = vcvt.s32.f32 %v291
      %v328 = vcvt.s32.f32 %v292
      %v329 = vcvt.s32.f32 %v293
      %v330 = vcvt.s32.f32 %v294
      %v331 = vcvt.s32.f32 %v295
      %v332 = vcvt.s32.f32 %v296
      %v333 = vcvt.s32.f32 %v297
      %v334 = vcvt.s32.f32 %v298
      %v335 = vcvt.s32.f32 %v299
      %v336 = vcvt.s32.f32 %v300
      %v337 = vcvt.s32.f32 %v301
      %v338 = vcvt.s32.f32 %v302
      %v339 = vcvt.s32.f32 %v303
      %v340 = vcvt.s32.f32 %v304
      %v341 = vcvt.s32.f32 %v305
      %v342 = vcvt.s32.f32 %v306
      %v343 = vadd.f32 %v307, 0.5
      %v344 = vadd.f32 %v308, 0.5
      %v345 = vadd.f32 %v309, 0.5
      %v346 = vadd.f32 %v310, 0.5
      %v347 = vadd.f32 %v311, 0.5
      %v348 = vadd.f32 %v312, 0.5
      %v349 = vadd.f32 %v313, 0.5
      %v350 = vadd.f32 %v314, 0.5
      %v351 = vadd.f32 %v315, 0.5
      %v352 = vadd.f32 %v316, 0.5
      %v353 = vadd.f32 %v317, 0.5
      %v354 = vadd.f32 %v318, 0.5
      %v355 = vadd.f32 %v319, 0.5
      %v356 = vadd.f32 %v320, 0.5
      %v357 = vadd.f32 %v321, 0.5
      %v358 = vadd.f32 %v322, 0.5
      %v359 = vadd.f32 %v323, 0.5
      %v360 = vadd.f32 %v324, 0.5
      %v361 = vadd.f32 %v325, 0.5
      %v362 = vadd.f32 %v326, 0.5
      %v363 = vadd.f32 %v327, 0.5
      %v364 = vadd.f32 %v328, 0.5
      %v365 = vadd.f32 %v329, 0.5
      %v366 = vadd.f32 %v330, 0.5
      %v367 = vadd.f32 %v331, 0.5
      %v368 = vadd.f32 %v332, 0.5
      %v369 = vadd.f32 %v333, 0.5
      %v370 = vadd.f32 %v334, 0.5
      %v371 = vadd.f32 %v335, 0.5
      %v372 = vadd.f32 %v336, 0.5
      %v373 = vadd.f32 %v337, 0.5
      %v374 = vadd.f32 %v338, 0.5
      %v375 = vadd.f32 %v339, 0.5
      %v376 = vadd.f32 %v340, 0.5
      %v377 = vadd.f32 %v341, 0.5
      %v378 = vadd.f32 %v342, 0.5
      %v379 = vmul.f32 %v343, 0.055555556
      %v380 = vmul.f32 %v344, 0.055555556
      %v381 = vmul.f32 %v345, 0.055555556
      %v382 = vmul.f32 %v346, 0.055555556
      %v383 = vmul.f32 %v347, 0.055555556
      %v384 = vmul.f32 %v348, 0.055555556
      %v385 = vmul.f32 %v349, 0.055555556
      %v386 = vmul.f32 %v350, 0.055555556
      %v387 = vmul.f32 %v351, 0.055555556
      %v388 = vmul.f32 %v352, 0.055555556
      %v389 = vmul.f32 %v353, 0.055555556
      %v390 = vmul.f32 %v354, 0.055555556
      %v391 = vmul.f32 %v355, 0.055555556
      %v392 = vmul.f32 %v356, 0.055555556
      %v393 = vmul.f32 %v357, 0.055555556
      %v394 = vmul.f32 %v358, 0.055555556
      %v395 = vmul.f32 %v359, 0.055555556
      %v396 = vmul.f32 %v360, 0.055555556
      %v397 = vmul.f32 %v361, 0.055555556
      %v398 = vmul.f32 %v362, 0.055555556
      %v399 = vmul.f32 %v363, 0.055555556
      %v400 = vmul.f32 %v364, 0.055555556
      %v401 = vmul.f32 %v365, 0.055555556
      %v402 = vmul.f32 %v366, 0.055555556
      %v403 = vmul.f32 %v367, 0.055555556
      %v404 = vmul.f32 %v368, 0.055555556
      %v405 = vmul.f32 %v369, 0.055555556
      %v406 = vmul.f32 %v370, 0.055555556
      %v407 = vmul.f32 %v371, 0.055555556
      %v408 = vmul.f32 %v372, 0.055555556
      %v409 = vmul.f32 %v373, 0.055555556
      %v410 = vmul.f32 %v374, 0.055555556
      %v411 = vmul.f32 %v375, 0.055555556
      %v412 = vmul.f32 %v376, 0.055555556
      %v413 = vmul.f32 %v377, 0.055555556
      %v414 = vmul.f32 %v378, 0.055555556
      %v415 = vfloor.f32 %v379
      %v416 = vfloor.f32 %v380
      %v417 = vfloor.f32 %v381
      %v418 = vfloor.f32 %v382
      %v419 = vfloor.f32 %v383
      %v420 = vfloor.f32 %v384
      %v421 = vfloor.f32 %v385
      %v422 = vfloor.f32 %v386
      %v423 = vfloor.f32 %v387
      %v424 = vfloor.f32 %v388
      %v425 = vfloor.f32 %v389
      %v426 = vfloor.f32 %v390
      %v427 = vfloor.f32 %v391
      %v428 = vfloor.f32 %v392
      %v429 = vfloor.f32 %v393
      %v430 = vfloor.f32 %v394
      %v431 = vfloor.f32 %v395
      %v432 = vfloor.f32 %v396
      %v433 = vfloor.f32 %v397
      %v434 = vfloor.f32 %v398
      %v435 = vfloor.f32 %v399
      %v436 = vfloor.f32 %v400
      %v437 = vfloor.f32 %v401
      %v438 = vfloor.f32 %v402
      %v439 = vfloor.f32 %v403
      %v440 = vfloor.f32 %v404
      %v441 = vfloor.f32 %v405
      %v442 = vfloor.f32 %v406
      %v443 = vfloor.f32 %v407
      %v444 = vfloor.f32 %v408
      %v445 = vfloor.f32 %v409
      %v446 = vfloor.f32 %v410
      %v447 = vfloor.f32 %v411
      %v448 = vfloor.f32 %v412
      %v449 = vfloor.f32 %v413
      %v450 = vfloor.f32 %v414
      %v451 = vmul.f32 %v415, 18.0
      %v452 = vmul.f32 %v416, 18.0
      %v453 = vmul.f32 %v417, 18.0
      %v454 = vmul.f32 %v418, 18.0
      %v455 = vmul.f32 %v419, 18.0
      %v456 = vmul.f32 %v420, 18.0
      %v457 = vmul.f32 %v421, 18.0
      %v458 = vmul.f32 %v422, 18.0
      %v459 = vmul.f32 %v423, 18.0
      %v460 = vmul.f32 %v424, 18.0
      %v461 = vmul.f32 %v425, 18.0
      %v462 = vmul.f32 %v426, 18.0
      %v463 = vmul.f32 %v427, 18.0
      %v464 = vmul.f32 %v428, 18.0
      %v465 = vmul.f32 %v429, 18.0
      %v466 = vmul.f32 %v430, 18.0
      %v467 = vmul.f32 %v431, 18.0
      %v468 = vmul.f32 %v432, 18.0
      %v469 = vmul.f32 %v433, 18.0
      %v470 = vmul.f32 %v434, 18.0
      %v471 = vmul.f32 %v435, 18.0
      %v472 = vmul.f32 %v436, 18.0
      %v473 = vmul.f32 %v437, 18.0
      %v474 = vmul.f32 %v438, 18.0
      %v475 = vmul.f32 %v439, 18.0
      %v476 = vmul.f32 %v440, 18.0
      %v477 = vmul.f32 %v441, 18.0
      %v478 = vmul.f32 %v442, 18.0
      %v479 = vmul.f32 %v443, 18.0
      %v480 = vmul.f32 %v444, 18.0
      %v481 = vmul.f32 %v445, 18.0
      %v482 = vmul.f32 %v446, 18.0
      %v483 = vmul.f32 %v447, 18.0
      %v484 = vmul.f32 %v448, 18.0
      %v485 = vmul.f32 %v449, 18.0
      %v486 = vmul.f32 %v450, 18.0
      %v487 = vsub.f32 %v307, %v451
      %v488 = vsub.f32 %v308, %v452
      %v489 = vsub.f32 %v309, %v453
      %v490 = vsub.f32 %v310, %v454
      %v491 = vsub.f32 %v311, %v455
      %v492 = vsub.f32 %v312, %v456
      %v493 = vsub.f32 %v313, %v457
      %v494 = vsub.f32 %v314, %v458
      %v495 = vsub.f32 %v315, %v459
      %v496 = vsub.f32 %v316, %v460
      %v497 = vsub.f32 %v317, %v461
      %v498 = vsub.f32 %v318, %v462
      %v499 = vsub.f32 %v319, %v463
      %v500 = vsub.f32 %v320, %v464
      %v501 = vsub.f32 %v321, %v465
      %v502 = vsub.f32 %v322, %v466
      %v503 = vsub.f32 %v323, %v467
      %v504 = vsub.f32 %v324, %v468
      %v505 = vsub.f32 %v325, %v469
      %v506 = vsub.f32 %v326, %v470
      %v507 = vsub.f32 %v327, %v471
      %v508 = vsub.f32 %v328, %v472
      %v509 = vsub.f32 %v329, %v473
      %v510 = vsub.f32 %v330, %v474
      %v511 = vsub.f32 %v331, %v475
      %v512 = vsub.f32 %v332, %v476
      %v513 = vsub.f32 %v333, %v477
      %v514 = vsub.f32 %v334, %v478
      %v515 = vsub.f32 %v335, %v479
      %v516 = vsub.f32 %v336, %v480
      %v517 = vsub.f32 %v337, %v481
      %v518 = vsub.f32 %v338, %v482
      %v519 = vsub.f32 %v339, %v483
      %v520 = vsub.f32 %v340, %v484
      %v521 = vsub.f32 %v341, %v485
      %v522 = vsub.f32 %v342, %v486
      %vm523 = vcmp.lt.f32.partialorder %v487, 15.5
      %vm524 = vcmp.lt.f32.partialorder %v488, 15.5
      %vm525 = vcmp.lt.f32.partialorder %v489, 15.5
      %vm526 = vcmp.lt.f32.partialorder %v490, 15.5
      %vm527 = vcmp.lt.f32.partialorder %v491, 15.5
      %vm528 = vcmp.lt.f32.partialorder %v492, 15.5
      %vm529 = vcmp.lt.f32.partialorder %v493, 15.5
      %vm530 = vcmp.lt.f32.partialorder %v494, 15.5
      %vm531 = vcmp.lt.f32.partialorder %v495, 15.5
      %vm532 = vcmp.lt.f32.partialorder %v496, 15.5
      %vm533 = vcmp.lt.f32.partialorder %v497, 15.5
      %vm534 = vcmp.lt.f32.partialorder %v498, 15.5
      %vm535 = vcmp.lt.f32.partialorder %v499, 15.5
      %vm536 = vcmp.lt.f32.partialorder %v500, 15.5
      %vm537 = vcmp.lt.f32.partialorder %v501, 15.5
      %vm538 = vcmp.lt.f32.partialorder %v502, 15.5
      %vm539 = vcmp.lt.f32.partialorder %v503, 15.5
      %vm540 = vcmp.lt.f32.partialorder %v504, 15.5
      %vm541 = vcmp.lt.f32.partialorder %v505, 15.5
      %vm542 = vcmp.lt.f32.partialorder %v506, 15.5
      %vm543 = vcmp.lt.f32.partialorder %v507, 15.5
      %vm544 = vcmp.lt.f32.partialorder %v508, 15.5
      %vm545 = vcmp.lt.f32.partialorder %v509, 15.5
      %vm546 = vcmp.lt.f32.partialorder %v510, 15.5
      %vm547 = vcmp.lt.f32.partialorder %v511, 15.5
      %vm548 = vcmp.lt.f32.partialorder %v512, 15.5
      %vm549 = vcmp.lt.f32.partialorder %v513, 15.5
      %vm550 = vcmp.lt.f32.partialorder %v514, 15.5
      %vm551 = vcmp.lt.f32.partialorder %v515, 15.5
      %vm552 = vcmp.lt.f32.partialorder %v516, 15.5
      %vm553 = vcmp.lt.f32.partialorder %v517, 15.5
      %vm554 = vcmp.lt.f32.partialorder %v518, 15.5
      %vm555 = vcmp.lt.f32.partialorder %v519, 15.5
      %vm556 = vcmp.lt.f32.partialorder %v520, 15.5
      %vm557 = vcmp.lt.f32.partialorder %v521, 15.5
      %vm558 = vcmp.lt.f32.partialorder %v522, 15.5
      %v559 = vsel %vm523, 1, 0
      %v560 = vsel %vm524, 1, 0
      %v561 = vsel %vm525, 1, 0
      %v562 = vsel %vm526, 1, 0
      %v563 = vsel %vm527, 1, 0
      %v564 = vsel %vm528, 1, 0
      %v565 = vsel %vm529, 1, 0
      %v566 = vsel %vm530, 1, 0
      %v567 = vsel %vm531, 1, 0
      %v568 = vsel %vm532, 1, 0
      %v569 = vsel %vm533, 1, 0
      %v570 = vsel %vm534, 1, 0
      %v571 = vsel %vm535, 1, 0
      %v572 = vsel %vm536, 1, 0
      %v573 = vsel %vm537, 1, 0
      %v574 = vsel %vm538, 1, 0
      %v575 = vsel %vm539, 1, 0
      %v576 = vsel %vm540, 1, 0
      %v577 = vsel %vm541, 1, 0
      %v578 = vsel %vm542, 1, 0
      %v579 = vsel %vm543, 1, 0
      %v580 = vsel %vm544, 1, 0
      %v581 = vsel %vm545, 1, 0
      %v582 = vsel %vm546, 1, 0
      %v583 = vsel %vm547, 1, 0
      %v584 = vsel %vm548, 1, 0
      %v585 = vsel %vm549, 1, 0
      %v586 = vsel %vm550, 1, 0
      %v587 = vsel %vm551, 1, 0
      %v588 = vsel %vm552, 1, 0
      %v589 = vsel %vm553, 1, 0
      %v590 = vsel %vm554, 1, 0
      %v591 = vsel %vm555, 1, 0
      %v592 = vsel %vm556, 1, 0
      %v593 = vsel %vm557, 1, 0
      %v594 = vsel %vm558, 1, 0
      %v595 = vcvt.s32.f32 %v559
      %v596 = vcvt.s32.f32 %v560
      %v597 = vcvt.s32.f32 %v561
      %v598 = vcvt.s32.f32 %v562
      %v599 = vcvt.s32.f32 %v563
      %v600 = vcvt.s32.f32 %v564
      %v601 = vcvt.s32.f32 %v565
      %v602 = vcvt.s32.f32 %v566
      %v603 = vcvt.s32.f32 %v567
      %v604 = vcvt.s32.f32 %v568
      %v605 = vcvt.s32.f32 %v569
      %v606 = vcvt.s32.f32 %v570
      %v607 = vcvt.s32.f32 %v571
      %v608 = vcvt.s32.f32 %v572
      %v609 = vcvt.s32.f32 %v573
      %v610 = vcvt.s32.f32 %v574
      %v611 = vcvt.s32.f32 %v575
      %v612 = vcvt.s32.f32 %v576
      %v613 = vcvt.s32.f32 %v577
      %v614 = vcvt.s32.f32 %v578
      %v615 = vcvt.s32.f32 %v579
      %v616 = vcvt.s32.f32 %v580
      %v617 = vcvt.s32.f32 %v581
      %v618 = vcvt.s32.f32 %v582
      %v619 = vcvt.s32.f32 %v583
      %v620 = vcvt.s32.f32 %v584
      %v621 = vcvt.s32.f32 %v585
      %v622 = vcvt.s32.f32 %v586
      %v623 = vcvt.s32.f32 %v587
      %v624 = vcvt.s32.f32 %v588
      %v625 = vcvt.s32.f32 %v589
      %v626 = vcvt.s32.f32 %v590
      %v627 = vcvt.s32.f32 %v591
      %v628 = vcvt.s32.f32 %v592
      %v629 = vcvt.s32.f32 %v593
      %v630 = vcvt.s32.f32 %v594
      %v631 = vld [vmem:[%s257] sm:$0xf]
      %v632 = vld [vmem:[%s257 + $0x4] sm:$0xf]
      %v633 = vld [vmem:[%s257 + $0x8] sm:$0xf]
      %v634 = vld [vmem:[%s257 + $0xc] sm:$0xf]
      %v635 = vld [vmem:[%s257 + $0x10] sm:$0xf]
      %v636 = vld [vmem:[%s257 + $0x14] sm:$0xf]
      %v637 = vld [vmem:[%s257 + $0x18] sm:$0xf]
      %v638 = vld [vmem:[%s257 + $0x1c] sm:$0xf]
      %v639 = vld [vmem:[%s257 + $0x20] sm:$0xf]
      %v640 = vld [vmem:[%s257 + $0x24] sm:$0xf]
      %v641 = vld [vmem:[%s257 + $0x28] sm:$0xf]
      %v642 = vld [vmem:[%s257 + $0x2c] sm:$0xf]
      %v643 = vld [vmem:[%s257 + $0x30] sm:$0xf]
      %v644 = vld [vmem:[%s257 + $0x34] sm:$0xf]
      %v645 = vld [vmem:[%s257 + $0x38] sm:$0xf]
      %v646 = vld [vmem:[%s257 + $0x3c] sm:$0xf]
      %v647 = vld [vmem:[%s257 + $0x40] sm:$0xf]
      %v648 = vld [vmem:[%s257 + $0x44] sm:$0xf]
      %v649 = vld [vmem:[%s257 + $0x48] sm:$0xf]
      %v650 = vld [vmem:[%s257 + $0x4c] sm:$0xf]
      %v651 = vld [vmem:[%s257 + $0x50] sm:$0xf]
      %v652 = vld [vmem:[%s257 + $0x54] sm:$0xf]
      %v653 = vld [vmem:[%s257 + $0x58] sm:$0xf]
      %v654 = vld [vmem:[%s257 + $0x5c] sm:$0xf]
      %v655 = vld [vmem:[%s257 + $0x60] sm:$0xf]
      %v656 = vld [vmem:[%s257 + $0x64] sm:$0xf]
      %v657 = vld [vmem:[%s257 + $0x68] sm:$0xf]
      %v658 = vld [vmem:[%s257 + $0x6c] sm:$0xf]
      %v659 = vld [vmem:[%s257 + $0x70] sm:$0xf]
      %v660 = vld [vmem:[%s257 + $0x74] sm:$0xf]
      %v661 = vld [vmem:[%s257 + $0x78] sm:$0xf]
      %v662 = vld [vmem:[%s257 + $0x7c] sm:$0xf]
      %v663 = vld [vmem:[%s257 + $0x80] sm:$0xf]
      %v664 = vld [vmem:[%s257 + $0x84] sm:$0xf]
      %v665 = vld [vmem:[%s257 + $0x88] sm:$0xf]
      %v666 = vld [vmem:[%s257 + $0x8c] sm:$0xf]
      %v667 = vunpack.c.l.bf16 %v631
      %v668 = vunpack.c.l.bf16 %v632
      %v669 = vunpack.c.l.bf16 %v633
      %v670 = vunpack.c.l.bf16 %v634
      %v671 = vunpack.c.l.bf16 %v635
      %v672 = vunpack.c.l.bf16 %v636
      %v673 = vunpack.c.l.bf16 %v637
      %v674 = vunpack.c.l.bf16 %v638
      %v675 = vunpack.c.l.bf16 %v639
      %v676 = vunpack.c.l.bf16 %v640
      %v677 = vunpack.c.l.bf16 %v641
      %v678 = vunpack.c.l.bf16 %v642
      %v679 = vunpack.c.l.bf16 %v643
      %v680 = vunpack.c.l.bf16 %v644
      %v681 = vunpack.c.l.bf16 %v645
      %v682 = vunpack.c.l.bf16 %v646
      %v683 = vunpack.c.l.bf16 %v647
      %v684 = vunpack.c.l.bf16 %v648
      %v685 = vunpack.c.l.bf16 %v649
      %v686 = vunpack.c.l.bf16 %v650
      %v687 = vunpack.c.l.bf16 %v651
      %v688 = vunpack.c.l.bf16 %v652
      %v689 = vunpack.c.l.bf16 %v653
      %v690 = vunpack.c.l.bf16 %v654
      %v691 = vunpack.c.l.bf16 %v655
      %v692 = vunpack.c.l.bf16 %v656
      %v693 = vunpack.c.l.bf16 %v657
      %v694 = vunpack.c.l.bf16 %v658
      %v695 = vunpack.c.l.bf16 %v659
      %v696 = vunpack.c.l.bf16 %v660
      %v697 = vunpack.c.l.bf16 %v661
      %v698 = vunpack.c.l.bf16 %v662
      %v699 = vunpack.c.l.bf16 %v663
      %v700 = vunpack.c.l.bf16 %v664
      %v701 = vunpack.c.l.bf16 %v665
      %v702 = vunpack.c.l.bf16 %v666
      %v703 = vld [vmem:[%s1] sm:$0x1]
      %v705 = vlaneseq
      %v706 = vshrl.u32 %v705, 7
      %v707 = vsub.s32 0, %v706
      %v708 = vrot.slane %v703, %v707
      %v710 = vmul.f32 %v667, %v708
      %v711 = vmul.f32 %v668, %v708
      %v712 = vmul.f32 %v669, %v708
      %v713 = vmul.f32 %v670, %v708
      %v714 = vmul.f32 %v671, %v708
      %v715 = vmul.f32 %v672, %v708
      %v716 = vmul.f32 %v673, %v708
      %v717 = vmul.f32 %v674, %v708
      %v718 = vmul.f32 %v675, %v708
      %v719 = vmul.f32 %v676, %v708
      %v720 = vmul.f32 %v677, %v708
      %v721 = vmul.f32 %v678, %v708
      %v722 = vmul.f32 %v679, %v708
      %v723 = vmul.f32 %v680, %v708
      %v724 = vmul.f32 %v681, %v708
      %v725 = vmul.f32 %v682, %v708
      %v726 = vmul.f32 %v683, %v708
      %v727 = vmul.f32 %v684, %v708
      %v728 = vmul.f32 %v685, %v708
      %v729 = vmul.f32 %v686, %v708
      %v730 = vmul.f32 %v687, %v708
      %v731 = vmul.f32 %v688, %v708
      %v732 = vmul.f32 %v689, %v708
      %v733 = vmul.f32 %v690, %v708
      %v734 = vmul.f32 %v691, %v708
      %v735 = vmul.f32 %v692, %v708
      %v736 = vmul.f32 %v693, %v708
      %v737 = vmul.f32 %v694, %v708
      %v738 = vmul.f32 %v695, %v708
      %v739 = vmul.f32 %v696, %v708
      %v740 = vmul.f32 %v697, %v708
      %v741 = vmul.f32 %v698, %v708
      %v742 = vmul.f32 %v699, %v708
      %v743 = vmul.f32 %v700, %v708
      %v744 = vmul.f32 %v701, %v708
      %v745 = vmul.f32 %v702, %v708
      %v746 = vld [vmem:[%s2] sm:$0x1]
      %v748 = vlaneseq
      %v749 = vshrl.u32 %v748, 7
      %v750 = vsub.s32 0, %v749
      %v751 = vrot.slane %v746, %v750
      %v753 = vadd.f32 %v710, %v751
      %v754 = vadd.f32 %v711, %v751
      %v755 = vadd.f32 %v712, %v751
      %v756 = vadd.f32 %v713, %v751
      %v757 = vadd.f32 %v714, %v751
      %v758 = vadd.f32 %v715, %v751
      %v759 = vadd.f32 %v716, %v751
      %v760 = vadd.f32 %v717, %v751
      %v761 = vadd.f32 %v718, %v751
      %v762 = vadd.f32 %v719, %v751
      %v763 = vadd.f32 %v720, %v751
      %v764 = vadd.f32 %v721, %v751
      %v765 = vadd.f32 %v722, %v751
      %v766 = vadd.f32 %v723, %v751
      %v767 = vadd.f32 %v724, %v751
      %v768 = vadd.f32 %v725, %v751
      %v769 = vadd.f32 %v726, %v751
      %v770 = vadd.f32 %v727, %v751
      %v771 = vadd.f32 %v728, %v751
      %v772 = vadd.f32 %v729, %v751
      %v773 = vadd.f32 %v730, %v751
      %v774 = vadd.f32 %v731, %v751
      %v775 = vadd.f32 %v732, %v751
      %v776 = vadd.f32 %v733, %v751
      %v777 = vadd.f32 %v734, %v751
      %v778 = vadd.f32 %v735, %v751
      %v779 = vadd.f32 %v736, %v751
      %v780 = vadd.f32 %v737, %v751
      %v781 = vadd.f32 %v738, %v751
      %v782 = vadd.f32 %v739, %v751
      %v783 = vadd.f32 %v740, %v751
      %v784 = vadd.f32 %v741, %v751
      %v785 = vadd.f32 %v742, %v751
      %v786 = vadd.f32 %v743, %v751
      %v787 = vadd.f32 %v744, %v751
      %v788 = vadd.f32 %v745, %v751
      %v789 = vmax.f32 %v753, 0.0
      %v790 = vmax.f32 %v754, 0.0
      %v791 = vmax.f32 %v755, 0.0
      %v792 = vmax.f32 %v756, 0.0
      %v793 = vmax.f32 %v757, 0.0
      %v794 = vmax.f32 %v758, 0.0
      %v795 = vmax.f32 %v759, 0.0
      %v796 = vmax.f32 %v760, 0.0
      %v797 = vmax.f32 %v761, 0.0
      %v798 = vmax.f32 %v762, 0.0
      %v799 = vmax.f32 %v763, 0.0
      %v800 = vmax.f32 %v764, 0.0
      %v801 = vmax.f32 %v765, 0.0
      %v802 = vmax.f32 %v766, 0.0
      %v803 = vmax.f32 %v767, 0.0
      %v804 = vmax.f32 %v768, 0.0
      %v805 = vmax.f32 %v769, 0.0
      %v806 = vmax.f32 %v770, 0.0
      %v807 = vmax.f32 %v771, 0.0
      %v808 = vmax.f32 %v772, 0.0
      %v809 = vmax.f32 %v773, 0.0
      %v810 = vmax.f32 %v774, 0.0
      %v811 = vmax.f32 %v775, 0.0
      %v812 = vmax.f32 %v776, 0.0
      %v813 = vmax.f32 %v777, 0.0
      %v814 = vmax.f32 %v778, 0.0
      %v815 = vmax.f32 %v779, 0.0
      %v816 = vmax.f32 %v780, 0.0
      %v817 = vmax.f32 %v781, 0.0
      %v818 = vmax.f32 %v782, 0.0
      %v819 = vmax.f32 %v783, 0.0
      %v820 = vmax.f32 %v784, 0.0
      %v821 = vmax.f32 %v785, 0.0
      %v822 = vmax.f32 %v786, 0.0
      %v823 = vmax.f32 %v787, 0.0
      %v824 = vmax.f32 %v788, 0.0
      %v825 = vmul.f32 %v789, %v595
      %v826 = vmul.f32 %v790, %v596
      %v827 = vmul.f32 %v791, %v597
      %v828 = vmul.f32 %v792, %v598
      %v829 = vmul.f32 %v793, %v599
      %v830 = vmul.f32 %v794, %v600
      %v831 = vmul.f32 %v795, %v601
      %v832 = vmul.f32 %v796, %v602
      %v833 = vmul.f32 %v797, %v603
      %v834 = vmul.f32 %v798, %v604
      %v835 = vmul.f32 %v799, %v605
      %v836 = vmul.f32 %v800, %v606
      %v837 = vmul.f32 %v801, %v607
      %v838 = vmul.f32 %v802, %v608
      %v839 = vmul.f32 %v803, %v609
      %v840 = vmul.f32 %v804, %v610
      %v841 = vmul.f32 %v805, %v611
      %v842 = vmul.f32 %v806, %v612
      %v843 = vmul.f32 %v807, %v613
      %v844 = vmul.f32 %v808, %v614
      %v845 = vmul.f32 %v809, %v615
      %v846 = vmul.f32 %v810, %v616
      %v847 = vmul.f32 %v811, %v617
      %v848 = vmul.f32 %v812, %v618
      %v849 = vmul.f32 %v813, %v619
      %v850 = vmul.f32 %v814, %v620
      %v851 = vmul.f32 %v815, %v621
      %v852 = vmul.f32 %v816, %v622
      %v853 = vmul.f32 %v817, %v623
      %v854 = vmul.f32 %v818, %v624
      %v855 = vmul.f32 %v819, %v625
      %v856 = vmul.f32 %v820, %v626
      %v857 = vmul.f32 %v821, %v627
      %v858 = vmul.f32 %v822, %v628
      %v859 = vmul.f32 %v823, %v629
      %v860 = vmul.f32 %v824, %v630
      %861 = vst [vmem:[#allocation2] sm:$0xf] 0
      %862 = vst [vmem:[#allocation2 + $0x4] sm:$0xf] 0
      %vm863 = vcmask 1041408
      %vm864 = vsmask.f32 1280
      %vm865 = vmand %vm863, %vm864
      %v866 = vld [vmem:[#allocation2 + $0x8] sm:$0x3]
      %v867 = vsel %vm865, 0, %v866
      %868 = vst [vmem:[#allocation2 + $0x8] sm:$0x3] %v867
      %vm869 = vcmask 1043457
      %vm870 = vsmask.f32 7942
      %vm871 = vmand %vm869, %vm870
      %v872 = vld [vmem:[#allocation2 + $0x98] sm:$0xe]
      %v873 = vsel %vm871, 0, %v872
      %874 = vst [vmem:[#allocation2 + $0x98] sm:$0xe] %v873
      %875 = vst [vmem:[#allocation2 + $0x9c] sm:$0xf] 0
      %876 = vst [vmem:[#allocation2 + $0xa0] sm:$0xf] 0
      %877 = vst [vmem:[#allocation2 + $0xa4] sm:$0xf] 0
      %878 = vst [vmem:[#allocation2 + $0xa8] sm:$0x7] 0
      %v879 = vpack.c.bf16 %v826, %v825
      %v880 = vpack.c.bf16 %v828, %v827
      %v881 = vpack.c.bf16 %v830, %v829
      %v882 = vpack.c.bf16 %v832, %v831
      %v883 = vpack.c.bf16 %v834, %v833
      %v884 = vpack.c.bf16 %v836, %v835
      %v885 = vpack.c.bf16 %v838, %v837
      %v886 = vpack.c.bf16 %v840, %v839
      %v887 = vpack.c.bf16 %v842, %v841
      %v888 = vpack.c.bf16 %v844, %v843
      %v889 = vpack.c.bf16 %v846, %v845
      %v890 = vpack.c.bf16 %v848, %v847
      %v891 = vpack.c.bf16 %v850, %v849
      %v892 = vpack.c.bf16 %v852, %v851
      %v893 = vpack.c.bf16 %v854, %v853
      %v894 = vpack.c.bf16 %v856, %v855
      %v895 = vpack.c.bf16 %v858, %v857
      %v896 = vpack.c.bf16 %v860, %v859
      %v915 = vunpack.c.l.b16 %v879
      %v916 = vunpack.c.h.b16 %v879
      %v917 = vunpack.c.l.b16 %v880
      %v918 = vunpack.c.h.b16 %v880
      %v919 = vunpack.c.l.b16 %v881
      %v920 = vunpack.c.h.b16 %v881
      %v921 = vunpack.c.l.b16 %v882
      %v922 = vunpack.c.h.b16 %v882
      %v923 = vunpack.c.l.b16 %v883
      %v924 = vunpack.c.h.b16 %v883
      %v925 = vunpack.c.l.b16 %v884
      %v926 = vunpack.c.h.b16 %v884
      %v927 = vunpack.c.l.b16 %v885
      %v928 = vunpack.c.h.b16 %v885
      %v929 = vunpack.c.l.b16 %v886
      %v930 = vunpack.c.h.b16 %v886
      %v931 = vunpack.c.l.b16 %v887
      %v932 = vunpack.c.h.b16 %v887
      %v933 = vunpack.c.l.b16 %v888
      %v934 = vunpack.c.h.b16 %v888
      %v935 = vunpack.c.l.b16 %v889
      %v936 = vunpack.c.h.b16 %v889
      %v937 = vunpack.c.l.b16 %v890
      %v938 = vunpack.c.h.b16 %v890
      %v939 = vunpack.c.l.b16 %v891
      %v940 = vunpack.c.h.b16 %v891
      %v941 = vunpack.c.l.b16 %v892
      %v942 = vunpack.c.h.b16 %v892
      %v943 = vunpack.c.l.b16 %v893
      %v944 = vunpack.c.h.b16 %v893
      %v945 = vunpack.c.l.b16 %v894
      %v946 = vunpack.c.h.b16 %v894
      %v947 = vunpack.c.l.b16 %v895
      %v948 = vunpack.c.h.b16 %v895
      %v949 = vunpack.c.l.b16 %v896
      %v950 = vunpack.c.h.b16 %v896
      %v951 = vpack.c.b16 %v915, %v915
      %v952 = vpack.c.b16 %v916, %v916
      %v953 = vpack.c.b16 %v917, %v917
      %v954 = vpack.c.b16 %v918, %v918
      %v955 = vpack.c.b16 %v919, %v919
      %v956 = vpack.c.b16 %v920, %v920
      %v957 = vpack.c.b16 %v921, %v921
      %v958 = vpack.c.b16 %v922, %v922
      %v959 = vpack.c.b16 %v923, %v923
      %v960 = vpack.c.b16 %v924, %v924
      %v961 = vpack.c.b16 %v925, %v925
      %v962 = vpack.c.b16 %v926, %v926
      %v963 = vpack.c.b16 %v927, %v927
      %v964 = vpack.c.b16 %v928, %v928
      %v965 = vpack.c.b16 %v929, %v929
      %v966 = vpack.c.b16 %v930, %v930
      %v967 = vpack.c.b16 %v931, %v931
      %v968 = vpack.c.b16 %v932, %v932
      %v969 = vpack.c.b16 %v933, %v933
      %v970 = vpack.c.b16 %v934, %v934
      %v971 = vpack.c.b16 %v935, %v935
      %v972 = vpack.c.b16 %v936, %v936
      %v973 = vpack.c.b16 %v937, %v937
      %v974 = vpack.c.b16 %v938, %v938
      %v975 = vpack.c.b16 %v939, %v939
      %v976 = vpack.c.b16 %v940, %v940
      %v977 = vpack.c.b16 %v941, %v941
      %v978 = vpack.c.b16 %v942, %v942
      %v979 = vpack.c.b16 %v943, %v943
      %v980 = vpack.c.b16 %v944, %v944
      %v981 = vpack.c.b16 %v945, %v945
      %v982 = vpack.c.b16 %v946, %v946
      %v983 = vpack.c.b16 %v947, %v947
      %v984 = vpack.c.b16 %v948, %v948
      %v985 = vpack.c.b16 %v949, %v949
      %v986 = vpack.c.b16 %v950, %v950
      %vm987 = vsmask.f32 5392
      %vm988 = vmor %vm864, %vm987
      %v990 = vshrl.u32 %v951, 16
      %v992 = vrot.slane %v990, 6
      %v993 = vshll.u32 %v951, 16
      %v995 = vrot.slane %v993, 7
      %v996 = vor.u32 %v992, %v995
      %v997 = vrot.slane %v996, 4
      %v999 = vshrl.u32 %v952, 16
      %v1001 = vrot.slane %v999, 6
      %v1002 = vshll.u32 %v952, 16
      %v1004 = vrot.slane %v1002, 7
      %v1005 = vor.u32 %v1001, %v1004
      %v1006 = vsel %vm988, %v997, %v1005
      %v1007 = vrot.slane %v1005, 4
      %v1009 = vshrl.u32 %v953, 16
      %v1011 = vrot.slane %v1009, 6
      %v1012 = vshll.u32 %v953, 16
      %v1014 = vrot.slane %v1012, 7
      %v1015 = vor.u32 %v1011, %v1014
      %v1016 = vsel %vm988, %v1007, %v1015
      %v1017 = vrot.slane %v1015, 4
      %v1019 = vshrl.u32 %v954, 16
      %v1021 = vrot.slane %v1019, 6
      %v1022 = vshll.u32 %v954, 16
      %v1024 = vrot.slane %v1022, 7
      %v1025 = vor.u32 %v1021, %v1024
      %v1026 = vsel %vm988, %v1017, %v1025
      %v1027 = vrot.slane %v1025, 4
      %v1029 = vshrl.u32 %v955, 16
      %v1031 = vrot.slane %v1029, 6
      %v1032 = vshll.u32 %v955, 16
      %v1034 = vrot.slane %v1032, 7
      %v1035 = vor.u32 %v1031, %v1034
      %v1036 = vsel %vm988, %v1027, %v1035
      %v1037 = vrot.slane %v1035, 4
      %v1039 = vshrl.u32 %v956, 16
      %v1041 = vrot.slane %v1039, 6
      %v1042 = vshll.u32 %v956, 16
      %v1044 = vrot.slane %v1042, 7
      %v1045 = vor.u32 %v1041, %v1044
      %v1046 = vsel %vm988, %v1037, %v1045
      %v1047 = vrot.slane %v1045, 4
      %v1049 = vshrl.u32 %v957, 16
      %v1051 = vrot.slane %v1049, 6
      %v1052 = vshll.u32 %v957, 16
      %v1054 = vrot.slane %v1052, 7
      %v1055 = vor.u32 %v1051, %v1054
      %v1056 = vsel %vm988, %v1047, %v1055
      %v1057 = vrot.slane %v1055, 4
      %v1059 = vshrl.u32 %v958, 16
      %v1061 = vrot.slane %v1059, 6
      %v1062 = vshll.u32 %v958, 16
      %v1064 = vrot.slane %v1062, 7
      %v1065 = vor.u32 %v1061, %v1064
      %v1066 = vsel %vm988, %v1057, %v1065
      %v1067 = vrot.slane %v1065, 4
      %v1069 = vshrl.u32 %v959, 16
      %v1071 = vrot.slane %v1069, 6
      %v1072 = vshll.u32 %v959, 16
      %v1074 = vrot.slane %v1072, 7
      %v1075 = vor.u32 %v1071, %v1074
      %v1076 = vsel %vm988, %v1067, %v1075
      %v1077 = vrot.slane %v1075, 4
      %v1079 = vshrl.u32 %v960, 16
      %v1081 = vrot.slane %v1079, 6
      %v1082 = vshll.u32 %v960, 16
      %v1084 = vrot.slane %v1082, 7
      %v1085 = vor.u32 %v1081, %v1084
      %v1086 = vsel %vm988, %v1077, %v1085
      %v1087 = vrot.slane %v1085, 4
      %v1089 = vshrl.u32 %v961, 16
      %v1091 = vrot.slane %v1089, 6
      %v1092 = vshll.u32 %v961, 16
      %v1094 = vrot.slane %v1092, 7
      %v1095 = vor.u32 %v1091, %v1094
      %v1096 = vsel %vm988, %v1087, %v1095
      %v1097 = vrot.slane %v1095, 4
      %v1099 = vshrl.u32 %v962, 16
      %v1101 = vrot.slane %v1099, 6
      %v1102 = vshll.u32 %v962, 16
      %v1104 = vrot.slane %v1102, 7
      %v1105 = vor.u32 %v1101, %v1104
      %v1106 = vsel %vm988, %v1097, %v1105
      %v1107 = vrot.slane %v1105, 4
      %v1109 = vshrl.u32 %v963, 16
      %v1111 = vrot.slane %v1109, 6
      %v1112 = vshll.u32 %v963, 16
      %v1114 = vrot.slane %v1112, 7
      %v1115 = vor.u32 %v1111, %v1114
      %v1116 = vsel %vm988, %v1107, %v1115
      %v1117 = vrot.slane %v1115, 4
      %v1119 = vshrl.u32 %v964, 16
      %v1121 = vrot.slane %v1119, 6
      %v1122 = vshll.u32 %v964, 16
      %v1124 = vrot.slane %v1122, 7
      %v1125 = vor.u32 %v1121, %v1124
      %v1126 = vsel %vm988, %v1117, %v1125
      %v1127 = vrot.slane %v1125, 4
      %v1129 = vshrl.u32 %v965, 16
      %v1131 = vrot.slane %v1129, 6
      %v1132 = vshll.u32 %v965, 16
      %v1134 = vrot.slane %v1132, 7
      %v1135 = vor.u32 %v1131, %v1134
      %v1136 = vsel %vm988, %v1127, %v1135
      %v1137 = vrot.slane %v1135, 4
      %v1139 = vshrl.u32 %v966, 16
      %v1141 = vrot.slane %v1139, 6
      %v1142 = vshll.u32 %v966, 16
      %v1144 = vrot.slane %v1142, 7
      %v1145 = vor.u32 %v1141, %v1144
      %v1146 = vsel %vm988, %v1137, %v1145
      %v1147 = vrot.slane %v1145, 4
      %v1149 = vshrl.u32 %v967, 16
      %v1151 = vrot.slane %v1149, 6
      %v1152 = vshll.u32 %v967, 16
      %v1154 = vrot.slane %v1152, 7
      %v1155 = vor.u32 %v1151, %v1154
      %v1156 = vsel %vm988, %v1147, %v1155
      %v1157 = vrot.slane %v1155, 4
      %v1159 = vshrl.u32 %v968, 16
      %v1161 = vrot.slane %v1159, 6
      %v1162 = vshll.u32 %v968, 16
      %v1164 = vrot.slane %v1162, 7
      %v1165 = vor.u32 %v1161, %v1164
      %v1166 = vsel %vm988, %v1157, %v1165
      %v1167 = vrot.slane %v1165, 4
      %v1169 = vshrl.u32 %v969, 16
      %v1171 = vrot.slane %v1169, 6
      %v1172 = vshll.u32 %v969, 16
      %v1174 = vrot.slane %v1172, 7
      %v1175 = vor.u32 %v1171, %v1174
      %v1176 = vsel %vm988, %v1167, %v1175
      %v1177 = vrot.slane %v1175, 4
      %v1179 = vshrl.u32 %v970, 16
      %v1181 = vrot.slane %v1179, 6
      %v1182 = vshll.u32 %v970, 16
      %v1184 = vrot.slane %v1182, 7
      %v1185 = vor.u32 %v1181, %v1184
      %v1186 = vsel %vm988, %v1177, %v1185
      %v1187 = vrot.slane %v1185, 4
      %v1189 = vshrl.u32 %v971, 16
      %v1191 = vrot.slane %v1189, 6
      %v1192 = vshll.u32 %v971, 16
      %v1194 = vrot.slane %v1192, 7
      %v1195 = vor.u32 %v1191, %v1194
      %v1196 = vsel %vm988, %v1187, %v1195
      %v1197 = vrot.slane %v1195, 4
      %v1199 = vshrl.u32 %v972, 16
      %v1201 = vrot.slane %v1199, 6
      %v1202 = vshll.u32 %v972, 16
      %v1204 = vrot.slane %v1202, 7
      %v1205 = vor.u32 %v1201, %v1204
      %v1206 = vsel %vm988, %v1197, %v1205
      %v1207 = vrot.slane %v1205, 4
      %v1209 = vshrl.u32 %v973, 16
      %v1211 = vrot.slane %v1209, 6
      %v1212 = vshll.u32 %v973, 16
      %v1214 = vrot.slane %v1212, 7
      %v1215 = vor.u32 %v1211, %v1214
      %v1216 = vsel %vm988, %v1207, %v1215
      %v1217 = vrot.slane %v1215, 4
      %v1219 = vshrl.u32 %v974, 16
      %v1221 = vrot.slane %v1219, 6
      %v1222 = vshll.u32 %v974, 16
      %v1224 = vrot.slane %v1222, 7
      %v1225 = vor.u32 %v1221, %v1224
      %v1226 = vsel %vm988, %v1217, %v1225
      %v1227 = vrot.slane %v1225, 4
      %v1229 = vshrl.u32 %v975, 16
      %v1231 = vrot.slane %v1229, 6
      %v1232 = vshll.u32 %v975, 16
      %v1234 = vrot.slane %v1232, 7
      %v1235 = vor.u32 %v1231, %v1234
      %v1236 = vsel %vm988, %v1227, %v1235
      %v1237 = vrot.slane %v1235, 4
      %v1239 = vshrl.u32 %v976, 16
      %v1241 = vrot.slane %v1239, 6
      %v1242 = vshll.u32 %v976, 16
      %v1244 = vrot.slane %v1242, 7
      %v1245 = vor.u32 %v1241, %v1244
      %v1246 = vsel %vm988, %v1237, %v1245
      %v1247 = vrot.slane %v1245, 4
      %v1249 = vshrl.u32 %v977, 16
      %v1251 = vrot.slane %v1249, 6
      %v1252 = vshll.u32 %v977, 16
      %v1254 = vrot.slane %v1252, 7
      %v1255 = vor.u32 %v1251, %v1254
      %v1256 = vsel %vm988, %v1247, %v1255
      %v1257 = vrot.slane %v1255, 4
      %v1259 = vshrl.u32 %v978, 16
      %v1261 = vrot.slane %v1259, 6
      %v1262 = vshll.u32 %v978, 16
      %v1264 = vrot.slane %v1262, 7
      %v1265 = vor.u32 %v1261, %v1264
      %v1266 = vsel %vm988, %v1257, %v1265
      %v1267 = vrot.slane %v1265, 4
      %v1269 = vshrl.u32 %v979, 16
      %v1271 = vrot.slane %v1269, 6
      %v1272 = vshll.u32 %v979, 16
      %v1274 = vrot.slane %v1272, 7
      %v1275 = vor.u32 %v1271, %v1274
      %v1276 = vsel %vm988, %v1267, %v1275
      %v1277 = vrot.slane %v1275, 4
      %v1279 = vshrl.u32 %v980, 16
      %v1281 = vrot.slane %v1279, 6
      %v1282 = vshll.u32 %v980, 16
      %v1284 = vrot.slane %v1282, 7
      %v1285 = vor.u32 %v1281, %v1284
      %v1286 = vsel %vm988, %v1277, %v1285
      %v1287 = vrot.slane %v1285, 4
      %v1289 = vshrl.u32 %v981, 16
      %v1291 = vrot.slane %v1289, 6
      %v1292 = vshll.u32 %v981, 16
      %v1294 = vrot.slane %v1292, 7
      %v1295 = vor.u32 %v1291, %v1294
      %v1296 = vsel %vm988, %v1287, %v1295
      %v1297 = vrot.slane %v1295, 4
      %v1299 = vshrl.u32 %v982, 16
      %v1301 = vrot.slane %v1299, 6
      %v1302 = vshll.u32 %v982, 16
      %v1304 = vrot.slane %v1302, 7
      %v1305 = vor.u32 %v1301, %v1304
      %v1306 = vsel %vm988, %v1297, %v1305
      %v1307 = vrot.slane %v1305, 4
      %v1309 = vshrl.u32 %v983, 16
      %v1311 = vrot.slane %v1309, 6
      %v1312 = vshll.u32 %v983, 16
      %v1314 = vrot.slane %v1312, 7
      %v1315 = vor.u32 %v1311, %v1314
      %v1316 = vsel %vm988, %v1307, %v1315
      %v1317 = vrot.slane %v1315, 4
      %v1319 = vshrl.u32 %v984, 16
      %v1321 = vrot.slane %v1319, 6
      %v1322 = vshll.u32 %v984, 16
      %v1324 = vrot.slane %v1322, 7
      %v1325 = vor.u32 %v1321, %v1324
      %v1326 = vsel %vm988, %v1317, %v1325
      %v1327 = vrot.slane %v1325, 4
      %v1329 = vshrl.u32 %v985, 16
      %v1331 = vrot.slane %v1329, 6
      %v1332 = vshll.u32 %v985, 16
      %v1334 = vrot.slane %v1332, 7
      %v1335 = vor.u32 %v1331, %v1334
      %v1336 = vsel %vm988, %v1327, %v1335
      %v1337 = vrot.slane %v1335, 4
      %v1339 = vshrl.u32 %v986, 16
      %v1341 = vrot.slane %v1339, 6
      %v1342 = vshll.u32 %v986, 16
      %v1344 = vrot.slane %v1342, 7
      %v1345 = vor.u32 %v1341, %v1344
      %v1346 = vsel %vm988, %v1337, %v1345
      %v1347 = vrot.slane %v1345, 4
      %v1385 = vld [vmem:[#allocation2 + $0x8] sm:$0xe]
      %v1386 = vsel %vm871, %v996, %v1385
      %1387 = vst [vmem:[#allocation2 + $0x8] sm:$0xe] %v1386
      %1388 = vst [vmem:[#allocation2 + $0xc] sm:$0xf] %v1006
      %1389 = vst [vmem:[#allocation2 + $0x10] sm:$0xf] %v1016
      %1390 = vst [vmem:[#allocation2 + $0x14] sm:$0xf] %v1026
      %1391 = vst [vmem:[#allocation2 + $0x18] sm:$0xf] %v1036
      %1392 = vst [vmem:[#allocation2 + $0x1c] sm:$0xf] %v1046
      %1393 = vst [vmem:[#allocation2 + $0x20] sm:$0xf] %v1056
      %1394 = vst [vmem:[#allocation2 + $0x24] sm:$0xf] %v1066
      %1395 = vst [vmem:[#allocation2 + $0x28] sm:$0xf] %v1076
      %1396 = vst [vmem:[#allocation2 + $0x2c] sm:$0xf] %v1086
      %1397 = vst [vmem:[#allocation2 + $0x30] sm:$0xf] %v1096
      %1398 = vst [vmem:[#allocation2 + $0x34] sm:$0xf] %v1106
      %1399 = vst [vmem:[#allocation2 + $0x38] sm:$0xf] %v1116
      %1400 = vst [vmem:[#allocation2 + $0x3c] sm:$0xf] %v1126
      %1401 = vst [vmem:[#allocation2 + $0x40] sm:$0xf] %v1136
      %1402 = vst [vmem:[#allocation2 + $0x44] sm:$0xf] %v1146
      %1403 = vst [vmem:[#allocation2 + $0x48] sm:$0xf] %v1156
      %1404 = vst [vmem:[#allocation2 + $0x4c] sm:$0xf] %v1166
      %1405 = vst [vmem:[#allocation2 + $0x50] sm:$0xf] %v1176
      %1406 = vst [vmem:[#allocation2 + $0x54] sm:$0xf] %v1186
      %1407 = vst [vmem:[#allocation2 + $0x58] sm:$0xf] %v1196
      %1408 = vst [vmem:[#allocation2 + $0x5c] sm:$0xf] %v1206
      %1409 = vst [vmem:[#allocation2 + $0x60] sm:$0xf] %v1216
      %1410 = vst [vmem:[#allocation2 + $0x64] sm:$0xf] %v1226
      %1411 = vst [vmem:[#allocation2 + $0x68] sm:$0xf] %v1236
      %1412 = vst [vmem:[#allocation2 + $0x6c] sm:$0xf] %v1246
      %1413 = vst [vmem:[#allocation2 + $0x70] sm:$0xf] %v1256
      %1414 = vst [vmem:[#allocation2 + $0x74] sm:$0xf] %v1266
      %1415 = vst [vmem:[#allocation2 + $0x78] sm:$0xf] %v1276
      %1416 = vst [vmem:[#allocation2 + $0x7c] sm:$0xf] %v1286
      %1417 = vst [vmem:[#allocation2 + $0x80] sm:$0xf] %v1296
      %1418 = vst [vmem:[#allocation2 + $0x84] sm:$0xf] %v1306
      %1419 = vst [vmem:[#allocation2 + $0x88] sm:$0xf] %v1316
      %1420 = vst [vmem:[#allocation2 + $0x8c] sm:$0xf] %v1326
      %1421 = vst [vmem:[#allocation2 + $0x90] sm:$0xf] %v1336
      %1422 = vst [vmem:[#allocation2 + $0x94] sm:$0xf] %v1346
      %v1423 = vld [vmem:[#allocation2 + $0x98] sm:$0x3]
      %v1424 = vsel %vm865, %v1347, %v1423
      %1425 = vst [vmem:[#allocation2 + $0x98] sm:$0x3] %v1424
      %v1426 = vld [vmem:[#allocation2] sm:$0xf]
      %v1427 = vld [vmem:[#allocation2 + $0x4] sm:$0xf]
      %v1428 = vld [vmem:[#allocation2 + $0x8] sm:$0xf]
      %v1429 = vld [vmem:[#allocation2 + $0xc] sm:$0xf]
      %v1430 = vld [vmem:[#allocation2 + $0x10] sm:$0xf]
      %v1431 = vld [vmem:[#allocation2 + $0x14] sm:$0xf]
      %v1432 = vld [vmem:[#allocation2 + $0x18] sm:$0xf]
      %v1433 = vld [vmem:[#allocation2 + $0x1c] sm:$0xf]
      %v1434 = vld [vmem:[#allocation2 + $0x20] sm:$0xf]
      %v1435 = vld [vmem:[#allocation2 + $0x24] sm:$0xf]
      %v1436 = vld [vmem:[#allocation2 + $0x28] sm:$0xf]
      %v1437 = vld [vmem:[#allocation2 + $0x2c] sm:$0xf]
      %v1438 = vld [vmem:[#allocation2 + $0x30] sm:$0xf]
      %v1439 = vld [vmem:[#allocation2 + $0x34] sm:$0xf]
      %v1440 = vld [vmem:[#allocation2 + $0x38] sm:$0xf]
      %v1441 = vld [vmem:[#allocation2 + $0x3c] sm:$0xf]
      %v1442 = vld [vmem:[#allocation2 + $0x40] sm:$0xf]
      %v1443 = vld [vmem:[#allocation2 + $0x44] sm:$0xf]
      %v1444 = vld [vmem:[#allocation2 + $0x48] sm:$0xf]
      %v1445 = vld [vmem:[#allocation2 + $0x4c] sm:$0xf]
      %v1446 = vld [vmem:[#allocation2 + $0x50] sm:$0xf]
      %v1447 = vld [vmem:[#allocation2 + $0x54] sm:$0xf]
      %v1448 = vld [vmem:[#allocation2 + $0x58] sm:$0xf]
      %v1449 = vld [vmem:[#allocation2 + $0x5c] sm:$0xf]
      %v1450 = vld [vmem:[#allocation2 + $0x60] sm:$0xf]
      %v1451 = vld [vmem:[#allocation2 + $0x64] sm:$0xf]
      %v1452 = vld [vmem:[#allocation2 + $0x68] sm:$0xf]
      %v1453 = vld [vmem:[#allocation2 + $0x6c] sm:$0xf]
      %v1454 = vld [vmem:[#allocation2 + $0x70] sm:$0xf]
      %v1455 = vld [vmem:[#allocation2 + $0x74] sm:$0xf]
      %v1456 = vld [vmem:[#allocation2 + $0x78] sm:$0xf]
      %v1457 = vld [vmem:[#allocation2 + $0x7c] sm:$0xf]
      %v1458 = vld [vmem:[#allocation2 + $0x80] sm:$0xf]
      %v1459 = vld [vmem:[#allocation2 + $0x84] sm:$0xf]
      %v1460 = vld [vmem:[#allocation2 + $0x88] sm:$0xf]
      %v1461 = vld [vmem:[#allocation2 + $0x8c] sm:$0xf]
      %v1462 = vld [vmem:[#allocation2 + $0x90] sm:$0x1]
      %v1463 = vld [vmem:[#allocation2] sm:$0xe]
      %v1464 = vld [vmem:[#allocation2 + $0x8] sm:$0xe]
      %v1465 = vld [vmem:[#allocation2 + $0x90] sm:$0xf]
      %v1466 = vld [vmem:[#allocation2 + $0x94] sm:$0xf]
      %v1467 = vld [vmem:[#allocation2 + $0x98] sm:$0x1]
      %v1468 = vld [vmem:[#allocation2 + $0x98] sm:$0x3]
      %v1469 = vld [vmem:[#allocation2 + $0x8] sm:$0xc]
      %v1470 = vld [vmem:[#allocation2 + $0x10] sm:$0xc]
      %v1471 = vld [vmem:[#allocation2 + $0x98] sm:$0xf]
      %v1472 = vld [vmem:[#allocation2 + $0x9c] sm:$0xf]
      %v1473 = vld [vmem:[#allocation2 + $0xa0] sm:$0x3]
      %v1474 = vld [vmem:[#allocation2 + $0xa0] sm:$0x7]
      %v1475 = vld [vmem:[#allocation2 + $0x10] sm:$0x8]
      %v1512 = vunpack.c.l.b16 %v1426
      %v1513 = vunpack.c.l.b16 %v1427
      %v1514 = vunpack.c.l.b16 %v1428
      %v1515 = vunpack.c.l.b16 %v1429
      %v1516 = vunpack.c.l.b16 %v1430
      %v1517 = vunpack.c.l.b16 %v1431
      %v1518 = vunpack.c.l.b16 %v1432
      %v1519 = vunpack.c.l.b16 %v1433
      %v1520 = vunpack.c.l.b16 %v1434
      %v1521 = vunpack.c.l.b16 %v1435
      %v1522 = vunpack.c.l.b16 %v1436
      %v1523 = vunpack.c.l.b16 %v1437
      %v1524 = vunpack.c.l.b16 %v1438
      %v1525 = vunpack.c.l.b16 %v1439
      %v1526 = vunpack.c.l.b16 %v1440
      %v1527 = vunpack.c.l.b16 %v1441
      %v1528 = vunpack.c.l.b16 %v1442
      %v1529 = vunpack.c.l.b16 %v1443
      %v1530 = vunpack.c.l.b16 %v1444
      %v1531 = vunpack.c.l.b16 %v1445
      %v1532 = vunpack.c.l.b16 %v1446
      %v1533 = vunpack.c.l.b16 %v1447
      %v1534 = vunpack.c.l.b16 %v1448
      %v1535 = vunpack.c.l.b16 %v1449
      %v1536 = vunpack.c.l.b16 %v1450
      %v1537 = vunpack.c.l.b16 %v1451
      %v1538 = vunpack.c.l.b16 %v1452
      %v1539 = vunpack.c.l.b16 %v1453
      %v1540 = vunpack.c.l.b16 %v1454
      %v1541 = vunpack.c.l.b16 %v1455
      %v1542 = vunpack.c.l.b16 %v1456
      %v1543 = vunpack.c.l.b16 %v1457
      %v1544 = vunpack.c.l.b16 %v1458
      %v1545 = vunpack.c.l.b16 %v1459
      %v1546 = vunpack.c.l.b16 %v1460
      %v1547 = vunpack.c.l.b16 %v1461
      %v1548 = vpack.c.b16 %v1513, %v1512
      %v1549 = vpack.c.b16 %v1515, %v1514
      %v1550 = vpack.c.b16 %v1517, %v1516
      %v1551 = vpack.c.b16 %v1519, %v1518
      %v1552 = vpack.c.b16 %v1521, %v1520
      %v1553 = vpack.c.b16 %v1523, %v1522
      %v1554 = vpack.c.b16 %v1525, %v1524
      %v1555 = vpack.c.b16 %v1527, %v1526
      %v1556 = vpack.c.b16 %v1529, %v1528
      %v1557 = vpack.c.b16 %v1531, %v1530
      %v1558 = vpack.c.b16 %v1533, %v1532
      %v1559 = vpack.c.b16 %v1535, %v1534
      %v1560 = vpack.c.b16 %v1537, %v1536
      %v1561 = vpack.c.b16 %v1539, %v1538
      %v1562 = vpack.c.b16 %v1541, %v1540
      %v1563 = vpack.c.b16 %v1543, %v1542
      %v1564 = vpack.c.b16 %v1545, %v1544
      %v1565 = vpack.c.b16 %v1547, %v1546
      %v1585 = vunpack.c.l.b16 %v1462
      %v1586 = vpack.c.b16 %v1585, %v1585
      %vm1587 = vsmask.f32 7424
      %v1589 = vshrl.u32 %v1548, 16
      %v1591 = vshll.u32 %v1548, 16
      %v1593 = vrot.slane %v1591, 1
      %v1594 = vor.u32 %v1589, %v1593
      %v1596 = vshll.u32 %v1549, 16
      %v1598 = vrot.slane %v1596, 1
      %v1599 = vsel %vm1587, %v1594, %v1598
      %v1600 = vshrl.u32 %v1549, 16
      %v1602 = vor.u32 %v1600, %v1598
      %v1604 = vshll.u32 %v1550, 16
      %v1606 = vrot.slane %v1604, 1
      %v1607 = vsel %vm1587, %v1602, %v1606
      %v1608 = vshrl.u32 %v1550, 16
      %v1610 = vor.u32 %v1608, %v1606
      %v1612 = vshll.u32 %v1551, 16
      %v1614 = vrot.slane %v1612, 1
      %v1615 = vsel %vm1587, %v1610, %v1614
      %v1616 = vshrl.u32 %v1551, 16
      %v1618 = vor.u32 %v1616, %v1614
      %v1620 = vshll.u32 %v1552, 16
      %v1622 = vrot.slane %v1620, 1
      %v1623 = vsel %vm1587, %v1618, %v1622
      %v1624 = vshrl.u32 %v1552, 16
      %v1626 = vor.u32 %v1624, %v1622
      %v1628 = vshll.u32 %v1553, 16
      %v1630 = vrot.slane %v1628, 1
      %v1631 = vsel %vm1587, %v1626, %v1630
      %v1632 = vshrl.u32 %v1553, 16
      %v1634 = vor.u32 %v1632, %v1630
      %v1636 = vshll.u32 %v1554, 16
      %v1638 = vrot.slane %v1636, 1
      %v1639 = vsel %vm1587, %v1634, %v1638
      %v1640 = vshrl.u32 %v1554, 16
      %v1642 = vor.u32 %v1640, %v1638
      %v1644 = vshll.u32 %v1555, 16
      %v1646 = vrot.slane %v1644, 1
      %v1647 = vsel %vm1587, %v1642, %v1646
      %v1648 = vshrl.u32 %v1555, 16
      %v1650 = vor.u32 %v1648, %v1646
      %v1652 = vshll.u32 %v1556, 16
      %v1654 = vrot.slane %v1652, 1
      %v1655 = vsel %vm1587, %v1650, %v1654
      %v1656 = vshrl.u32 %v1556, 16
      %v1658 = vor.u32 %v1656, %v1654
      %v1660 = vshll.u32 %v1557, 16
      %v1662 = vrot.slane %v1660, 1
      %v1663 = vsel %vm1587, %v1658, %v1662
      %v1664 = vshrl.u32 %v1557, 16
      %v1666 = vor.u32 %v1664, %v1662
      %v1668 = vshll.u32 %v1558, 16
      %v1670 = vrot.slane %v1668, 1
      %v1671 = vsel %vm1587, %v1666, %v1670
      %v1672 = vshrl.u32 %v1558, 16
      %v1674 = vor.u32 %v1672, %v1670
      %v1676 = vshll.u32 %v1559, 16
      %v1678 = vrot.slane %v1676, 1
      %v1679 = vsel %vm1587, %v1674, %v1678
      %v1680 = vshrl.u32 %v1559, 16
      %v1682 = vor.u32 %v1680, %v1678
      %v1684 = vshll.u32 %v1560, 16
      %v1686 = vrot.slane %v1684, 1
      %v1687 = vsel %vm1587, %v1682, %v1686
      %v1688 = vshrl.u32 %v1560, 16
      %v1690 = vor.u32 %v1688, %v1686
      %v1692 = vshll.u32 %v1561, 16
      %v1694 = vrot.slane %v1692, 1
      %v1695 = vsel %vm1587, %v1690, %v1694
      %v1696 = vshrl.u32 %v1561, 16
      %v1698 = vor.u32 %v1696, %v1694
      %v1700 = vshll.u32 %v1562, 16
      %v1702 = vrot.slane %v1700, 1
      %v1703 = vsel %vm1587, %v1698, %v1702
      %v1704 = vshrl.u32 %v1562, 16
      %v1706 = vor.u32 %v1704, %v1702
      %v1708 = vshll.u32 %v1563, 16
      %v1710 = vrot.slane %v1708, 1
      %v1711 = vsel %vm1587, %v1706, %v1710
      %v1712 = vshrl.u32 %v1563, 16
      %v1714 = vor.u32 %v1712, %v1710
      %v1716 = vshll.u32 %v1564, 16
      %v1718 = vrot.slane %v1716, 1
      %v1719 = vsel %vm1587, %v1714, %v1718
      %v1720 = vshrl.u32 %v1564, 16
      %v1722 = vor.u32 %v1720, %v1718
      %v1724 = vshll.u32 %v1565, 16
      %v1726 = vrot.slane %v1724, 1
      %v1727 = vsel %vm1587, %v1722, %v1726
      %v1728 = vshrl.u32 %v1565, 16
      %v1730 = vor.u32 %v1728, %v1726
      %v1732 = vshll.u32 %v1586, 16
      %v1734 = vrot.slane %v1732, 1
      %v1735 = vsel %vm1587, %v1730, %v1734
      %v1755 = vunpack.c.l.b16 %v1463
      %v1756 = vpack.c.b16 %v1513, %v1755
      %vm1757 = vcmask 1046528
      %v1758 = vrot.slane %v1756, 1
      %v1759 = vrot.slane %v1549, 1
      %v1760 = vsel %vm1757, %v1758, %v1759
      %v1761 = vrot.slane %v1550, 1
      %v1762 = vsel %vm1757, %v1759, %v1761
      %v1763 = vrot.slane %v1551, 1
      %v1764 = vsel %vm1757, %v1761, %v1763
      %v1765 = vrot.slane %v1552, 1
      %v1766 = vsel %vm1757, %v1763, %v1765
      %v1767 = vrot.slane %v1553, 1
      %v1768 = vsel %vm1757, %v1765, %v1767
      %v1769 = vrot.slane %v1554, 1
      %v1770 = vsel %vm1757, %v1767, %v1769
      %v1771 = vrot.slane %v1555, 1
      %v1772 = vsel %vm1757, %v1769, %v1771
      %v1773 = vrot.slane %v1556, 1
      %v1774 = vsel %vm1757, %v1771, %v1773
      %v1775 = vrot.slane %v1557, 1
      %v1776 = vsel %vm1757, %v1773, %v1775
      %v1777 = vrot.slane %v1558, 1
      %v1778 = vsel %vm1757, %v1775, %v1777
      %v1779 = vrot.slane %v1559, 1
      %v1780 = vsel %vm1757, %v1777, %v1779
      %v1781 = vrot.slane %v1560, 1
      %v1782 = vsel %vm1757, %v1779, %v1781
      %v1783 = vrot.slane %v1561, 1
      %v1784 = vsel %vm1757, %v1781, %v1783
      %v1785 = vrot.slane %v1562, 1
      %v1786 = vsel %vm1757, %v1783, %v1785
      %v1787 = vrot.slane %v1563, 1
      %v1788 = vsel %vm1757, %v1785, %v1787
      %v1789 = vrot.slane %v1564, 1
      %v1790 = vsel %vm1757, %v1787, %v1789
      %v1791 = vrot.slane %v1565, 1
      %v1792 = vsel %vm1757, %v1789, %v1791
      %v1793 = vrot.slane %v1586, 1
      %v1794 = vsel %vm1757, %v1791, %v1793
      %v1817 = vunpack.c.l.b16 %v1464
      %v1818 = vunpack.c.l.b16 %v1465
      %v1819 = vunpack.c.l.b16 %v1466
      %v1820 = vunpack.c.l.b16 %v1467
      %v1821 = vpack.c.b16 %v1515, %v1817
      %v1822 = vpack.c.b16 %v1819, %v1818
      %v1823 = vpack.c.b16 %v1820, %v1820
      %v1824 = vrot.slane %v1821, 1
      %v1825 = vsel %vm1757, %v1824, %v1761
      %v1826 = vrot.slane %v1822, 1
      %v1827 = vsel %vm1757, %v1791, %v1826
      %v1828 = vrot.slane %v1823, 1
      %v1829 = vsel %vm1757, %v1826, %v1828
      %v1834 = vunpack.c.l.b16 %v1468
      %v1835 = vpack.c.b16 %v1834, %v1834
      %vm1836 = vsmask.f32 6400
      %v1838 = vshrl.u32 %v1821, 16
      %v1840 = vrot.slane %v1838, 1
      %v1841 = vshll.u32 %v1821, 16
      %v1843 = vrot.slane %v1841, 2
      %v1844 = vor.u32 %v1840, %v1843
      %v1845 = vrot.slane %v1608, 1
      %v1846 = vrot.slane %v1604, 2
      %v1847 = vor.u32 %v1845, %v1846
      %v1848 = vsel %vm1836, %v1844, %v1847
      %v1849 = vrot.slane %v1616, 1
      %v1850 = vrot.slane %v1612, 2
      %v1851 = vor.u32 %v1849, %v1850
      %v1852 = vsel %vm1836, %v1847, %v1851
      %v1853 = vrot.slane %v1624, 1
      %v1854 = vrot.slane %v1620, 2
      %v1855 = vor.u32 %v1853, %v1854
      %v1856 = vsel %vm1836, %v1851, %v1855
      %v1857 = vrot.slane %v1632, 1
      %v1858 = vrot.slane %v1628, 2
      %v1859 = vor.u32 %v1857, %v1858
      %v1860 = vsel %vm1836, %v1855, %v1859
      %v1861 = vrot.slane %v1640, 1
      %v1862 = vrot.slane %v1636, 2
      %v1863 = vor.u32 %v1861, %v1862
      %v1864 = vsel %vm1836, %v1859, %v1863
      %v1865 = vrot.slane %v1648, 1
      %v1866 = vrot.slane %v1644, 2
      %v1867 = vor.u32 %v1865, %v1866
      %v1868 = vsel %vm1836, %v1863, %v1867
      %v1869 = vrot.slane %v1656, 1
      %v1870 = vrot.slane %v1652, 2
      %v1871 = vor.u32 %v1869, %v1870
      %v1872 = vsel %vm1836, %v1867, %v1871
      %v1873 = vrot.slane %v1664, 1
      %v1874 = vrot.slane %v1660, 2
      %v1875 = vor.u32 %v1873, %v1874
      %v1876 = vsel %vm1836, %v1871, %v1875
      %v1877 = vrot.slane %v1672, 1
      %v1878 = vrot.slane %v1668, 2
      %v1879 = vor.u32 %v1877, %v1878
      %v1880 = vsel %vm1836, %v1875, %v1879
      %v1881 = vrot.slane %v1680, 1
      %v1882 = vrot.slane %v1676, 2
      %v1883 = vor.u32 %v1881, %v1882
      %v1884 = vsel %vm1836, %v1879, %v1883
      %v1885 = vrot.slane %v1688, 1
      %v1886 = vrot.slane %v1684, 2
      %v1887 = vor.u32 %v1885, %v1886
      %v1888 = vsel %vm1836, %v1883, %v1887
      %v1889 = vrot.slane %v1696, 1
      %v1890 = vrot.slane %v1692, 2
      %v1891 = vor.u32 %v1889, %v1890
      %v1892 = vsel %vm1836, %v1887, %v1891
      %v1893 = vrot.slane %v1704, 1
      %v1894 = vrot.slane %v1700, 2
      %v1895 = vor.u32 %v1893, %v1894
      %v1896 = vsel %vm1836, %v1891, %v1895
      %v1897 = vrot.slane %v1712, 1
      %v1898 = vrot.slane %v1708, 2
      %v1899 = vor.u32 %v1897, %v1898
      %v1900 = vsel %vm1836, %v1895, %v1899
      %v1901 = vrot.slane %v1720, 1
      %v1902 = vrot.slane %v1716, 2
      %v1903 = vor.u32 %v1901, %v1902
      %v1904 = vsel %vm1836, %v1899, %v1903
      %v1905 = vrot.slane %v1728, 1
      %v1906 = vrot.slane %v1724, 2
      %v1907 = vor.u32 %v1905, %v1906
      %v1908 = vsel %vm1836, %v1903, %v1907
      %v1910 = vshrl.u32 %v1822, 16
      %v1912 = vrot.slane %v1910, 1
      %v1913 = vshll.u32 %v1822, 16
      %v1915 = vrot.slane %v1913, 2
      %v1916 = vor.u32 %v1912, %v1915
      %v1917 = vsel %vm1836, %v1907, %v1916
      %v1919 = vshrl.u32 %v1835, 16
      %v1921 = vrot.slane %v1919, 1
      %v1922 = vshll.u32 %v1835, 16
      %v1924 = vrot.slane %v1922, 2
      %v1925 = vor.u32 %v1921, %v1924
      %v1926 = vsel %vm1836, %v1916, %v1925
      %v1946 = vunpack.c.l.b16 %v1469
      %v1947 = vpack.c.b16 %v1515, %v1946
      %vm1948 = vcmask 1045504
      %v1949 = vrot.slane %v1947, 2
      %v1950 = vrot.slane %v1550, 2
      %v1951 = vsel %vm1948, %v1949, %v1950
      %v1952 = vrot.slane %v1551, 2
      %v1953 = vsel %vm1948, %v1950, %v1952
      %v1954 = vrot.slane %v1552, 2
      %v1955 = vsel %vm1948, %v1952, %v1954
      %v1956 = vrot.slane %v1553, 2
      %v1957 = vsel %vm1948, %v1954, %v1956
      %v1958 = vrot.slane %v1554, 2
      %v1959 = vsel %vm1948, %v1956, %v1958
      %v1960 = vrot.slane %v1555, 2
      %v1961 = vsel %vm1948, %v1958, %v1960
      %v1962 = vrot.slane %v1556, 2
      %v1963 = vsel %vm1948, %v1960, %v1962
      %v1964 = vrot.slane %v1557, 2
      %v1965 = vsel %vm1948, %v1962, %v1964
      %v1966 = vrot.slane %v1558, 2
      %v1967 = vsel %vm1948, %v1964, %v1966
      %v1968 = vrot.slane %v1559, 2
      %v1969 = vsel %vm1948, %v1966, %v1968
      %v1970 = vrot.slane %v1560, 2
      %v1971 = vsel %vm1948, %v1968, %v1970
      %v1972 = vrot.slane %v1561, 2
      %v1973 = vsel %vm1948, %v1970, %v1972
      %v1974 = vrot.slane %v1562, 2
      %v1975 = vsel %vm1948, %v1972, %v1974
      %v1976 = vrot.slane %v1563, 2
      %v1977 = vsel %vm1948, %v1974, %v1976
      %v1978 = vrot.slane %v1564, 2
      %v1979 = vsel %vm1948, %v1976, %v1978
      %v1980 = vrot.slane %v1565, 2
      %v1981 = vsel %vm1948, %v1978, %v1980
      %v1982 = vrot.slane %v1822, 2
      %v1983 = vsel %vm1948, %v1980, %v1982
      %v1984 = vrot.slane %v1835, 2
      %v1985 = vsel %vm1948, %v1982, %v1984
      %v2008 = vunpack.c.l.b16 %v1470
      %v2009 = vunpack.c.l.b16 %v1471
      %v2010 = vunpack.c.l.b16 %v1472
      %v2011 = vunpack.c.l.b16 %v1473
      %v2012 = vpack.c.b16 %v1517, %v2008
      %v2013 = vpack.c.b16 %v2010, %v2009
      %v2014 = vpack.c.b16 %v2011, %v2011
      %v2015 = vrot.slane %v2012, 2
      %v2016 = vsel %vm1948, %v2015, %v1952
      %v2017 = vrot.slane %v2013, 2
      %v2018 = vsel %vm1948, %v1982, %v2017
      %v2019 = vrot.slane %v2014, 2
      %v2020 = vsel %vm1948, %v2017, %v2019
      %v2025 = vunpack.c.l.b16 %v1474
      %v2026 = vpack.c.b16 %v2025, %v2025
      %vm2027 = vsmask.f32 5376
      %v2029 = vshrl.u32 %v2012, 16
      %v2031 = vrot.slane %v2029, 2
      %v2032 = vshll.u32 %v2012, 16
      %v2034 = vrot.slane %v2032, 3
      %v2035 = vor.u32 %v2031, %v2034
      %v2036 = vrot.slane %v1616, 2
      %v2037 = vrot.slane %v1612, 3
      %v2038 = vor.u32 %v2036, %v2037
      %v2039 = vsel %vm2027, %v2035, %v2038
      %v2040 = vrot.slane %v1624, 2
      %v2041 = vrot.slane %v1620, 3
      %v2042 = vor.u32 %v2040, %v2041
      %v2043 = vsel %vm2027, %v2038, %v2042
      %v2044 = vrot.slane %v1632, 2
      %v2045 = vrot.slane %v1628, 3
      %v2046 = vor.u32 %v2044, %v2045
      %v2047 = vsel %vm2027, %v2042, %v2046
      %v2048 = vrot.slane %v1640, 2
      %v2049 = vrot.slane %v1636, 3
      %v2050 = vor.u32 %v2048, %v2049
      %v2051 = vsel %vm2027, %v2046, %v2050
      %v2052 = vrot.slane %v1648, 2
      %v2053 = vrot.slane %v1644, 3
      %v2054 = vor.u32 %v2052, %v2053
      %v2055 = vsel %vm2027, %v2050, %v2054
      %v2056 = vrot.slane %v1656, 2
      %v2057 = vrot.slane %v1652, 3
      %v2058 = vor.u32 %v2056, %v2057
      %v2059 = vsel %vm2027, %v2054, %v2058
      %v2060 = vrot.slane %v1664, 2
      %v2061 = vrot.slane %v1660, 3
      %v2062 = vor.u32 %v2060, %v2061
      %v2063 = vsel %vm2027, %v2058, %v2062
      %v2064 = vrot.slane %v1672, 2
      %v2065 = vrot.slane %v1668, 3
      %v2066 = vor.u32 %v2064, %v2065
      %v2067 = vsel %vm2027, %v2062, %v2066
      %v2068 = vrot.slane %v1680, 2
      %v2069 = vrot.slane %v1676, 3
      %v2070 = vor.u32 %v2068, %v2069
      %v2071 = vsel %vm2027, %v2066, %v2070
      %v2072 = vrot.slane %v1688, 2
      %v2073 = vrot.slane %v1684, 3
      %v2074 = vor.u32 %v2072, %v2073
      %v2075 = vsel %vm2027, %v2070, %v2074
      %v2076 = vrot.slane %v1696, 2
      %v2077 = vrot.slane %v1692, 3
      %v2078 = vor.u32 %v2076, %v2077
      %v2079 = vsel %vm2027, %v2074, %v2078
      %v2080 = vrot.slane %v1704, 2
      %v2081 = vrot.slane %v1700, 3
      %v2082 = vor.u32 %v2080, %v2081
      %v2083 = vsel %vm2027, %v2078, %v2082
      %v2084 = vrot.slane %v1712, 2
      %v2085 = vrot.slane %v1708, 3
      %v2086 = vor.u32 %v2084, %v2085
      %v2087 = vsel %vm2027, %v2082, %v2086
      %v2088 = vrot.slane %v1720, 2
      %v2089 = vrot.slane %v1716, 3
      %v2090 = vor.u32 %v2088, %v2089
      %v2091 = vsel %vm2027, %v2086, %v2090
      %v2092 = vrot.slane %v1728, 2
      %v2093 = vrot.slane %v1724, 3
      %v2094 = vor.u32 %v2092, %v2093
      %v2095 = vsel %vm2027, %v2090, %v2094
      %v2096 = vrot.slane %v1910, 2
      %v2097 = vrot.slane %v1913, 3
      %v2098 = vor.u32 %v2096, %v2097
      %v2099 = vsel %vm2027, %v2094, %v2098
      %v2101 = vshrl.u32 %v2013, 16
      %v2103 = vrot.slane %v2101, 2
      %v2104 = vshll.u32 %v2013, 16
      %v2106 = vrot.slane %v2104, 3
      %v2107 = vor.u32 %v2103, %v2106
      %v2108 = vsel %vm2027, %v2098, %v2107
      %v2110 = vshrl.u32 %v2026, 16
      %v2112 = vrot.slane %v2110, 2
      %v2113 = vshll.u32 %v2026, 16
      %v2115 = vrot.slane %v2113, 3
      %v2116 = vor.u32 %v2112, %v2115
      %v2117 = vsel %vm2027, %v2107, %v2116
      %v2137 = vunpack.c.l.b16 %v1475
      %v2138 = vpack.c.b16 %v1517, %v2137
      %vm2139 = vcmask 1044480
      %v2140 = vrot.slane %v2138, 3
      %v2141 = vrot.slane %v1551, 3
      %v2142 = vsel %vm2139, %v2140, %v2141
      %v2143 = vrot.slane %v1552, 3
      %v2144 = vsel %vm2139, %v2141, %v2143
      %v2145 = vrot.slane %v1553, 3
      %v2146 = vsel %vm2139, %v2143, %v2145
      %v2147 = vrot.slane %v1554, 3
      %v2148 = vsel %vm2139, %v2145, %v2147
      %v2149 = vrot.slane %v1555, 3
      %v2150 = vsel %vm2139, %v2147, %v2149
      %v2151 = vrot.slane %v1556, 3
      %v2152 = vsel %vm2139, %v2149, %v2151
      %v2153 = vrot.slane %v1557, 3
      %v2154 = vsel %vm2139, %v2151, %v2153
      %v2155 = vrot.slane %v1558, 3
      %v2156 = vsel %vm2139, %v2153, %v2155
      %v2157 = vrot.slane %v1559, 3
      %v2158 = vsel %vm2139, %v2155, %v2157
      %v2159 = vrot.slane %v1560, 3
      %v2160 = vsel %vm2139, %v2157, %v2159
      %v2161 = vrot.slane %v1561, 3
      %v2162 = vsel %vm2139, %v2159, %v2161
      %v2163 = vrot.slane %v1562, 3
      %v2164 = vsel %vm2139, %v2161, %v2163
      %v2165 = vrot.slane %v1563, 3
      %v2166 = vsel %vm2139, %v2163, %v2165
      %v2167 = vrot.slane %v1564, 3
      %v2168 = vsel %vm2139, %v2165, %v2167
      %v2169 = vrot.slane %v1565, 3
      %v2170 = vsel %vm2139, %v2167, %v2169
      %v2171 = vrot.slane %v1822, 3
      %v2172 = vsel %vm2139, %v2169, %v2171
      %v2173 = vrot.slane %v2013, 3
      %v2174 = vsel %vm2139, %v2171, %v2173
      %v2175 = vrot.slane %v2026, 3
      %v2176 = vsel %vm2139, %v2173, %v2175
      %v2195 = vld [vmem:[%s3] sm:$0xf]
      %v2196 = vld [vmem:[%s3 + $0x4] sm:$0xf]
      %v2197 = vld [vmem:[%s3 + $0x8] sm:$0xf]
      %v2198 = vld [vmem:[%s3 + $0xc] sm:$0xf]
      %v2199 = vld [vmem:[%s3 + $0x10] sm:$0xf]
      %v2200 = vld [vmem:[%s3 + $0x14] sm:$0xf]
      %v2201 = vld [vmem:[%s3 + $0x18] sm:$0xf]
      %v2202 = vld [vmem:[%s3 + $0x1c] sm:$0xf]
      %v2203 = vld [vmem:[%s3 + $0x20] sm:$0xf]
      %v2204 = vld [vmem:[%s3 + $0x24] sm:$0xf]
      %v2205 = vld [vmem:[%s3 + $0x28] sm:$0xf]
      %v2206 = vld [vmem:[%s3 + $0x2c] sm:$0xf]
      %v2207 = vld [vmem:[%s3 + $0x30] sm:$0xf]
      %v2208 = vld [vmem:[%s3 + $0x34] sm:$0xf]
      %v2209 = vld [vmem:[%s3 + $0x38] sm:$0xf]
      %v2210 = vld [vmem:[%s3 + $0x3c] sm:$0xf]
      %v2211 = vld [vmem:[%s3 + $0x40] sm:$0xf]
      %v2212 = vld [vmem:[%s3 + $0x44] sm:$0xf]
      %v2213 = vld [vmem:[%s3 + $0x48] sm:$0xf]
      %v2214 = vld [vmem:[%s3 + $0x4c] sm:$0xf]
      %v2215 = vld [vmem:[%s3 + $0x50] sm:$0xf]
      %v2216 = vld [vmem:[%s3 + $0x54] sm:$0xf]
      %v2217 = vld [vmem:[%s3 + $0x58] sm:$0xf]
      %v2218 = vld [vmem:[%s3 + $0x5c] sm:$0xf]
      %v2219 = vld [vmem:[%s3 + $0x60] sm:$0xf]
      %v2220 = vld [vmem:[%s3 + $0x64] sm:$0xf]
      %v2221 = vld [vmem:[%s3 + $0x68] sm:$0xf]
      %v2222 = vld [vmem:[%s3 + $0x6c] sm:$0xf]
      %v2223 = vld [vmem:[%s3 + $0x70] sm:$0xf]
      %v2224 = vld [vmem:[%s3 + $0x74] sm:$0xf]
      %v2225 = vld [vmem:[%s3 + $0x78] sm:$0xf]
      %v2226 = vld [vmem:[%s3 + $0x7c] sm:$0xf]
      %v2227 = vld [vmem:[%s3 + $0x80] sm:$0xf]
      %v2228 = vld [vmem:[%s3 + $0x84] sm:$0xf]
      %v2229 = vld [vmem:[%s3 + $0x88] sm:$0xf]
      %v2230 = vld [vmem:[%s3 + $0x8c] sm:$0xf]
      %v2231 = vld [vmem:[%s3 + $0x90] sm:$0xf]
      %v2232 = vld [vmem:[%s3 + $0x94] sm:$0xf]
      %v2233 = vld [vmem:[%s3 + $0x98] sm:$0xf]
      %v2234 = vld [vmem:[%s3 + $0x9c] sm:$0xf]
      %v2235 = vld [vmem:[%s3 + $0xa0] sm:$0xf]
      %v2236 = vld [vmem:[%s3 + $0xa4] sm:$0xf]
      %v2237 = vld [vmem:[%s3 + $0xa8] sm:$0xf]
      %v2238 = vld [vmem:[%s3 + $0xac] sm:$0xf]
      %v2239 = vld [vmem:[%s3 + $0xb0] sm:$0xf]
      %v2240 = vld [vmem:[%s3 + $0xb4] sm:$0xf]
      %v2241 = vld [vmem:[%s3 + $0xb8] sm:$0xf]
      %v2242 = vld [vmem:[%s3 + $0xbc] sm:$0xf]
      %v2243 = vld [vmem:[%s3 + $0xc0] sm:$0xf]
      %v2244 = vld [vmem:[%s3 + $0xc4] sm:$0xf]
      %v2245 = vld [vmem:[%s3 + $0xc8] sm:$0xf]
      %v2246 = vld [vmem:[%s3 + $0xcc] sm:$0xf]
      %v2247 = vld [vmem:[%s3 + $0xd0] sm:$0xf]
      %v2248 = vld [vmem:[%s3 + $0xd4] sm:$0xf]
      %v2249 = vld [vmem:[%s3 + $0xd8] sm:$0xf]
      %v2250 = vld [vmem:[%s3 + $0xdc] sm:$0xf]
      %v2251 = vld [vmem:[%s3 + $0xe0] sm:$0xf]
      %v2252 = vld [vmem:[%s3 + $0xe4] sm:$0xf]
      %v2253 = vld [vmem:[%s3 + $0xe8] sm:$0xf]
      %v2254 = vld [vmem:[%s3 + $0xec] sm:$0xf]
      %v2255 = vld [vmem:[%s3 + $0xf0] sm:$0xf]
      %v2256 = vld [vmem:[%s3 + $0xf4] sm:$0xf]
      %v2257 = vld [vmem:[%s3 + $0xf8] sm:$0xf]
      %v2258 = vld [vmem:[%s3 + $0xfc] sm:$0xf]
      %v2259 = vld [vmem:[%s3 + $0x100] sm:$0xf]
      %v2260 = vld [vmem:[%s3 + $0x104] sm:$0xf]
      %v2261 = vld [vmem:[%s3 + $0x108] sm:$0xf]
      %v2262 = vld [vmem:[%s3 + $0x10c] sm:$0xf]
      %v2263 = vld [vmem:[%s3 + $0x110] sm:$0xf]
      %v2264 = vld [vmem:[%s3 + $0x114] sm:$0xf]
      %v2265 = vld [vmem:[%s3 + $0x118] sm:$0xf]
      %v2266 = vld [vmem:[%s3 + $0x11c] sm:$0xf]
      %v2267 = vld [vmem:[%s3 + $0x120] sm:$0xf]
      %v2268 = vld [vmem:[%s3 + $0x124] sm:$0xf]
      %v2269 = vld [vmem:[%s3 + $0x128] sm:$0xf]
      %v2270 = vld [vmem:[%s3 + $0x12c] sm:$0xf]
      %v2271 = vld [vmem:[%s3 + $0x130] sm:$0xf]
      %v2272 = vld [vmem:[%s3 + $0x134] sm:$0xf]
      %v2273 = vld [vmem:[%s3 + $0x138] sm:$0xf]
      %v2274 = vld [vmem:[%s3 + $0x13c] sm:$0xf]
      %v2275 = vld [vmem:[%s3 + $0x140] sm:$0xf]
      %v2276 = vld [vmem:[%s3 + $0x144] sm:$0xf]
      %v2277 = vld [vmem:[%s3 + $0x148] sm:$0xf]
      %v2278 = vld [vmem:[%s3 + $0x14c] sm:$0xf]
      %v2279 = vld [vmem:[%s3 + $0x150] sm:$0xf]
      %v2280 = vld [vmem:[%s3 + $0x154] sm:$0xf]
      %v2281 = vld [vmem:[%s3 + $0x158] sm:$0xf]
      %v2282 = vld [vmem:[%s3 + $0x15c] sm:$0xf]
      %v2283 = vld [vmem:[%s3 + $0x160] sm:$0xf]
      %v2284 = vld [vmem:[%s3 + $0x164] sm:$0xf]
      %v2285 = vld [vmem:[%s3 + $0x168] sm:$0xf]
      %v2286 = vld [vmem:[%s3 + $0x16c] sm:$0xf]
      %v2287 = vld [vmem:[%s3 + $0x170] sm:$0xf]
      %v2288 = vld [vmem:[%s3 + $0x174] sm:$0xf]
      %v2289 = vld [vmem:[%s3 + $0x178] sm:$0xf]
      %v2290 = vld [vmem:[%s3 + $0x17c] sm:$0xf]
      %v2291 = vld [vmem:[%s3 + $0x180] sm:$0xf]
      %v2292 = vld [vmem:[%s3 + $0x184] sm:$0xf]
      %v2293 = vld [vmem:[%s3 + $0x188] sm:$0xf]
      %v2294 = vld [vmem:[%s3 + $0x18c] sm:$0xf]
      %v2295 = vld [vmem:[%s3 + $0x190] sm:$0xf]
      %v2296 = vld [vmem:[%s3 + $0x194] sm:$0xf]
      %v2297 = vld [vmem:[%s3 + $0x198] sm:$0xf]
      %v2298 = vld [vmem:[%s3 + $0x19c] sm:$0xf]
      %v2299 = vld [vmem:[%s3 + $0x1a0] sm:$0xf]
      %v2300 = vld [vmem:[%s3 + $0x1a4] sm:$0xf]
      %v2301 = vld [vmem:[%s3 + $0x1a8] sm:$0xf]
      %v2302 = vld [vmem:[%s3 + $0x1ac] sm:$0xf]
      %v2303 = vld [vmem:[%s3 + $0x1b0] sm:$0xf]
      %v2304 = vld [vmem:[%s3 + $0x1b4] sm:$0xf]
      %v2305 = vld [vmem:[%s3 + $0x1b8] sm:$0xf]
      %v2306 = vld [vmem:[%s3 + $0x1bc] sm:$0xf]
      %v2307 = vld [vmem:[%s3 + $0x1c0] sm:$0xf]
      %v2308 = vld [vmem:[%s3 + $0x1c4] sm:$0xf]
      %v2309 = vld [vmem:[%s3 + $0x1c8] sm:$0xf]
      %v2310 = vld [vmem:[%s3 + $0x1cc] sm:$0xf]
      %v2311 = vld [vmem:[%s3 + $0x1d0] sm:$0xf]
      %v2312 = vld [vmem:[%s3 + $0x1d4] sm:$0xf]
      %v2313 = vld [vmem:[%s3 + $0x1d8] sm:$0xf]
      %v2314 = vld [vmem:[%s3 + $0x1dc] sm:$0xf]
      %v2315 = vld [vmem:[%s3 + $0x1e0] sm:$0xf]
      %v2316 = vld [vmem:[%s3 + $0x1e4] sm:$0xf]
      %v2317 = vld [vmem:[%s3 + $0x1e8] sm:$0xf]
      %v2318 = vld [vmem:[%s3 + $0x1ec] sm:$0xf]
      %v2319 = vld [vmem:[%s3 + $0x1f0] sm:$0xf]
      %v2320 = vld [vmem:[%s3 + $0x1f4] sm:$0xf]
      %v2321 = vld [vmem:[%s3 + $0x1f8] sm:$0xf]
      %v2322 = vld [vmem:[%s3 + $0x1fc] sm:$0xf]
      %v2323 = vld [vmem:[%s3 + $0x200] sm:$0xf]
      %v2324 = vld [vmem:[%s3 + $0x204] sm:$0xf]
      %v2325 = vld [vmem:[%s3 + $0x208] sm:$0xf]
      %v2326 = vld [vmem:[%s3 + $0x20c] sm:$0xf]
      %v2327 = vld [vmem:[%s3 + $0x210] sm:$0xf]
      %v2328 = vld [vmem:[%s3 + $0x214] sm:$0xf]
      %v2329 = vld [vmem:[%s3 + $0x218] sm:$0xf]
      %v2330 = vld [vmem:[%s3 + $0x21c] sm:$0xf]
      %v2331 = vld [vmem:[%s3 + $0x220] sm:$0xf]
      %v2332 = vld [vmem:[%s3 + $0x224] sm:$0xf]
      %v2333 = vld [vmem:[%s3 + $0x228] sm:$0xf]
      %v2334 = vld [vmem:[%s3 + $0x22c] sm:$0xf]
      %v2335 = vld [vmem:[%s3 + $0x230] sm:$0xf]
      %v2336 = vld [vmem:[%s3 + $0x234] sm:$0xf]
      %v2337 = vld [vmem:[%s3 + $0x238] sm:$0xf]
      %v2338 = vld [vmem:[%s3 + $0x23c] sm:$0xf]
      %v2483 = vunpack.c.l.b16 %v2195
      %v2484 = vunpack.c.l.b16 %v2196
      %v2485 = vunpack.c.l.b16 %v2197
      %v2486 = vunpack.c.l.b16 %v2198
      %v2487 = vunpack.c.l.b16 %v2199
      %v2488 = vunpack.c.l.b16 %v2200
      %v2489 = vunpack.c.l.b16 %v2201
      %v2490 = vunpack.c.l.b16 %v2202
      %v2491 = vunpack.c.l.b16 %v2203
      %v2492 = vunpack.c.l.b16 %v2204
      %v2493 = vunpack.c.l.b16 %v2205
      %v2494 = vunpack.c.l.b16 %v2206
      %v2495 = vunpack.c.l.b16 %v2207
      %v2496 = vunpack.c.l.b16 %v2208
      %v2497 = vunpack.c.l.b16 %v2209
      %v2498 = vunpack.c.l.b16 %v2210
      %v2499 = vunpack.c.l.b16 %v2211
      %v2500 = vunpack.c.l.b16 %v2212
      %v2501 = vunpack.c.l.b16 %v2213
      %v2502 = vunpack.c.l.b16 %v2214
      %v2503 = vunpack.c.l.b16 %v2215
      %v2504 = vunpack.c.l.b16 %v2216
      %v2505 = vunpack.c.l.b16 %v2217
      %v2506 = vunpack.c.l.b16 %v2218
      %v2507 = vunpack.c.l.b16 %v2219
      %v2508 = vunpack.c.l.b16 %v2220
      %v2509 = vunpack.c.l.b16 %v2221
      %v2510 = vunpack.c.l.b16 %v2222
      %v2511 = vunpack.c.l.b16 %v2223
      %v2512 = vunpack.c.l.b16 %v2224
      %v2513 = vunpack.c.l.b16 %v2225
      %v2514 = vunpack.c.l.b16 %v2226
      %v2515 = vunpack.c.l.b16 %v2227
      %v2516 = vunpack.c.l.b16 %v2228
      %v2517 = vunpack.c.l.b16 %v2229
      %v2518 = vunpack.c.l.b16 %v2230
      %v2519 = vunpack.c.l.b16 %v2231
      %v2520 = vunpack.c.l.b16 %v2232
      %v2521 = vunpack.c.l.b16 %v2233
      %v2522 = vunpack.c.l.b16 %v2234
      %v2523 = vunpack.c.l.b16 %v2235
      %v2524 = vunpack.c.l.b16 %v2236
      %v2525 = vunpack.c.l.b16 %v2237
      %v2526 = vunpack.c.l.b16 %v2238
      %v2527 = vunpack.c.l.b16 %v2239
      %v2528 = vunpack.c.l.b16 %v2240
      %v2529 = vunpack.c.l.b16 %v2241
      %v2530 = vunpack.c.l.b16 %v2242
      %v2531 = vunpack.c.l.b16 %v2243
      %v2532 = vunpack.c.l.b16 %v2244
      %v2533 = vunpack.c.l.b16 %v2245
      %v2534 = vunpack.c.l.b16 %v2246
      %v2535 = vunpack.c.l.b16 %v2247
      %v2536 = vunpack.c.l.b16 %v2248
      %v2537 = vunpack.c.l.b16 %v2249
      %v2538 = vunpack.c.l.b16 %v2250
      %v2539 = vunpack.c.l.b16 %v2251
      %v2540 = vunpack.c.l.b16 %v2252
      %v2541 = vunpack.c.l.b16 %v2253
      %v2542 = vunpack.c.l.b16 %v2254
      %v2543 = vunpack.c.l.b16 %v2255
      %v2544 = vunpack.c.l.b16 %v2256
      %v2545 = vunpack.c.l.b16 %v2257
      %v2546 = vunpack.c.l.b16 %v2258
      %v2547 = vunpack.c.l.b16 %v2259
      %v2548 = vunpack.c.l.b16 %v2260
      %v2549 = vunpack.c.l.b16 %v2261
      %v2550 = vunpack.c.l.b16 %v2262
      %v2551 = vunpack.c.l.b16 %v2263
      %v2552 = vunpack.c.l.b16 %v2264
      %v2553 = vunpack.c.l.b16 %v2265
      %v2554 = vunpack.c.l.b16 %v2266
      %v2555 = vunpack.c.l.b16 %v2267
      %v2556 = vunpack.c.l.b16 %v2268
      %v2557 = vunpack.c.l.b16 %v2269
      %v2558 = vunpack.c.l.b16 %v2270
      %v2559 = vunpack.c.l.b16 %v2271
      %v2560 = vunpack.c.l.b16 %v2272
      %v2561 = vunpack.c.l.b16 %v2273
      %v2562 = vunpack.c.l.b16 %v2274
      %v2563 = vunpack.c.l.b16 %v2275
      %v2564 = vunpack.c.l.b16 %v2276
      %v2565 = vunpack.c.l.b16 %v2277
      %v2566 = vunpack.c.l.b16 %v2278
      %v2567 = vunpack.c.l.b16 %v2279
      %v2568 = vunpack.c.l.b16 %v2280
      %v2569 = vunpack.c.l.b16 %v2281
      %v2570 = vunpack.c.l.b16 %v2282
      %v2571 = vunpack.c.l.b16 %v2283
      %v2572 = vunpack.c.l.b16 %v2284
      %v2573 = vunpack.c.l.b16 %v2285
      %v2574 = vunpack.c.l.b16 %v2286
      %v2575 = vunpack.c.l.b16 %v2287
      %v2576 = vunpack.c.l.b16 %v2288
      %v2577 = vunpack.c.l.b16 %v2289
      %v2578 = vunpack.c.l.b16 %v2290
      %v2579 = vunpack.c.l.b16 %v2291
      %v2580 = vunpack.c.l.b16 %v2292
      %v2581 = vunpack.c.l.b16 %v2293
      %v2582 = vunpack.c.l.b16 %v2294
      %v2583 = vunpack.c.l.b16 %v2295
      %v2584 = vunpack.c.l.b16 %v2296
      %v2585 = vunpack.c.l.b16 %v2297
      %v2586 = vunpack.c.l.b16 %v2298
      %v2587 = vunpack.c.l.b16 %v2299
      %v2588 = vunpack.c.l.b16 %v2300
      %v2589 = vunpack.c.l.b16 %v2301
      %v2590 = vunpack.c.l.b16 %v2302
      %v2591 = vunpack.c.l.b16 %v2303
      %v2592 = vunpack.c.l.b16 %v2304
      %v2593 = vunpack.c.l.b16 %v2305
      %v2594 = vunpack.c.l.b16 %v2306
      %v2595 = vunpack.c.l.b16 %v2307
      %v2596 = vunpack.c.l.b16 %v2308
      %v2597 = vunpack.c.l.b16 %v2309
      %v2598 = vunpack.c.l.b16 %v2310
      %v2599 = vunpack.c.l.b16 %v2311
      %v2600 = vunpack.c.l.b16 %v2312
      %v2601 = vunpack.c.l.b16 %v2313
      %v2602 = vunpack.c.l.b16 %v2314
      %v2603 = vunpack.c.l.b16 %v2315
      %v2604 = vunpack.c.l.b16 %v2316
      %v2605 = vunpack.c.l.b16 %v2317
      %v2606 = vunpack.c.l.b16 %v2318
      %v2607 = vunpack.c.l.b16 %v2319
      %v2608 = vunpack.c.l.b16 %v2320
      %v2609 = vunpack.c.l.b16 %v2321
      %v2610 = vunpack.c.l.b16 %v2322
      %v2611 = vunpack.c.l.b16 %v2323
      %v2612 = vunpack.c.l.b16 %v2324
      %v2613 = vunpack.c.l.b16 %v2325
      %v2614 = vunpack.c.l.b16 %v2326
      %v2615 = vunpack.c.l.b16 %v2327
      %v2616 = vunpack.c.l.b16 %v2328
      %v2617 = vunpack.c.l.b16 %v2329
      %v2618 = vunpack.c.l.b16 %v2330
      %v2619 = vunpack.c.l.b16 %v2331
      %v2620 = vunpack.c.l.b16 %v2332
      %v2621 = vunpack.c.l.b16 %v2333
      %v2622 = vunpack.c.l.b16 %v2334
      %v2623 = vunpack.c.l.b16 %v2335
      %v2624 = vunpack.c.l.b16 %v2336
      %v2625 = vunpack.c.l.b16 %v2337
      %v2626 = vunpack.c.l.b16 %v2338
      %v2627 = vpack.c.b16 %v2484, %v2483
      %v2628 = vpack.c.b16 %v2486, %v2485
      %v2629 = vpack.c.b16 %v2488, %v2487
      %v2630 = vpack.c.b16 %v2490, %v2489
      %v2631 = vpack.c.b16 %v2492, %v2491
      %v2632 = vpack.c.b16 %v2494, %v2493
      %v2633 = vpack.c.b16 %v2496, %v2495
      %v2634 = vpack.c.b16 %v2498, %v2497
      %v2635 = vpack.c.b16 %v2500, %v2499
      %v2636 = vpack.c.b16 %v2502, %v2501
      %v2637 = vpack.c.b16 %v2504, %v2503
      %v2638 = vpack.c.b16 %v2506, %v2505
      %v2639 = vpack.c.b16 %v2508, %v2507
      %v2640 = vpack.c.b16 %v2510, %v2509
      %v2641 = vpack.c.b16 %v2512, %v2511
      %v2642 = vpack.c.b16 %v2514, %v2513
      %v2643 = vpack.c.b16 %v2516, %v2515
      %v2644 = vpack.c.b16 %v2518, %v2517
      %v2645 = vpack.c.b16 %v2520, %v2519
      %v2646 = vpack.c.b16 %v2522, %v2521
      %v2647 = vpack.c.b16 %v2524, %v2523
      %v2648 = vpack.c.b16 %v2526, %v2525
      %v2649 = vpack.c.b16 %v2528, %v2527
      %v2650 = vpack.c.b16 %v2530, %v2529
      %v2651 = vpack.c.b16 %v2532, %v2531
      %v2652 = vpack.c.b16 %v2534, %v2533
      %v2653 = vpack.c.b16 %v2536, %v2535
      %v2654 = vpack.c.b16 %v2538, %v2537
      %v2655 = vpack.c.b16 %v2540, %v2539
      %v2656 = vpack.c.b16 %v2542, %v2541
      %v2657 = vpack.c.b16 %v2544, %v2543
      %v2658 = vpack.c.b16 %v2546, %v2545
      %v2659 = vpack.c.b16 %v2548, %v2547
      %v2660 = vpack.c.b16 %v2550, %v2549
      %v2661 = vpack.c.b16 %v2552, %v2551
      %v2662 = vpack.c.b16 %v2554, %v2553
      %v2663 = vpack.c.b16 %v2556, %v2555
      %v2664 = vpack.c.b16 %v2558, %v2557
      %v2665 = vpack.c.b16 %v2560, %v2559
      %v2666 = vpack.c.b16 %v2562, %v2561
      %v2667 = vpack.c.b16 %v2564, %v2563
      %v2668 = vpack.c.b16 %v2566, %v2565
      %v2669 = vpack.c.b16 %v2568, %v2567
      %v2670 = vpack.c.b16 %v2570, %v2569
      %v2671 = vpack.c.b16 %v2572, %v2571
      %v2672 = vpack.c.b16 %v2574, %v2573
      %v2673 = vpack.c.b16 %v2576, %v2575
      %v2674 = vpack.c.b16 %v2578, %v2577
      %v2675 = vpack.c.b16 %v2580, %v2579
      %v2676 = vpack.c.b16 %v2582, %v2581
      %v2677 = vpack.c.b16 %v2584, %v2583
      %v2678 = vpack.c.b16 %v2586, %v2585
      %v2679 = vpack.c.b16 %v2588, %v2587
      %v2680 = vpack.c.b16 %v2590, %v2589
      %v2681 = vpack.c.b16 %v2592, %v2591
      %v2682 = vpack.c.b16 %v2594, %v2593
      %v2683 = vpack.c.b16 %v2596, %v2595
      %v2684 = vpack.c.b16 %v2598, %v2597
      %v2685 = vpack.c.b16 %v2600, %v2599
      %v2686 = vpack.c.b16 %v2602, %v2601
      %v2687 = vpack.c.b16 %v2604, %v2603
      %v2688 = vpack.c.b16 %v2606, %v2605
      %v2689 = vpack.c.b16 %v2608, %v2607
      %v2690 = vpack.c.b16 %v2610, %v2609
      %v2691 = vpack.c.b16 %v2612, %v2611
      %v2692 = vpack.c.b16 %v2614, %v2613
      %v2693 = vpack.c.b16 %v2616, %v2615
      %v2694 = vpack.c.b16 %v2618, %v2617
      %v2695 = vpack.c.b16 %v2620, %v2619
      %v2696 = vpack.c.b16 %v2622, %v2621
      %v2697 = vpack.c.b16 %v2624, %v2623
      %v2698 = vpack.c.b16 %v2626, %v2625
      %2771 = vmatprep.subr.bf16.mxu0 0
      %2772 = vmatpush1.bf16.msra.mxu0 %v2627
      %2773 = vmatprep.subr.bf16.mxu0 0
      %2774 = vmatpush1.bf16.msra.mxu0 %v2628
      %2775 = vmatprep.subr.bf16.mxu0 0
      %2776 = vmatpush1.bf16.msra.mxu0 %v2629
      %2777 = vmatprep.subr.bf16.mxu0 0
      %2778 = vmatpush1.bf16.msra.mxu0 %v2630
      %2779 = vmatprep.subr.bf16.mxu0 0
      %2780 = vmatpush1.bf16.msra.mxu0 %v2631
      %2781 = vmatprep.subr.bf16.mxu0 0
      %2782 = vmatpush1.bf16.msra.mxu0 %v2632
      %2783 = vmatprep.subr.bf16.mxu0 0
      %2784 = vmatpush1.bf16.msra.mxu0 %v2633
      %2785 = vmatprep.subr.bf16.mxu0 0
      %2786 = vmatpush1.bf16.msra.mxu0 %v2634
      %2787 = vmatprep.subr.bf16.mxu0 0
      %2788 = vmatpush1.bf16.msra.mxu0 %v2635
      %2789 = vmatprep.subr.bf16.mxu0 0
      %2790 = vmatpush1.bf16.msra.mxu0 %v2636
      %2791 = vmatprep.subr.bf16.mxu0 0
      %2792 = vmatpush1.bf16.msra.mxu0 %v2637
      %2793 = vmatprep.subr.bf16.mxu0 0
      %2794 = vmatpush1.bf16.msra.mxu0 %v2638
      %2795 = vmatprep.subr.bf16.mxu0 0
      %2796 = vmatpush1.bf16.msra.mxu0 %v2639
      %2797 = vmatprep.subr.bf16.mxu0 0
      %2798 = vmatpush1.bf16.msra.mxu0 %v2640
      %2799 = vmatprep.subr.bf16.mxu0 0
      %2800 = vmatpush1.bf16.msra.mxu0 %v2641
      %2801 = vmatprep.subr.bf16.mxu0 0
      %2802 = vmatpush1.bf16.msra.mxu0 %v2642
      %2803 = vmatprep.mubr.bf16.mxu0 %v1599
      %2804 = vmatmul.mubr.bf16.gmra.mrb[0].mxu0 %v1548
      %v2805 = vpop.f32.mrb[0].mxu0
      %v2806 = vadd.f32 0.0, %v2805
      %v2807 = vpop.f32.mrb[0].mxu0
      %v2808 = vpop.f32.mrb[0].mxu0
      %v2809 = vadd.f32 0.0, %v2808
      %v2810 = vpop.f32.mrb[0].mxu0
      %2811 = vmatprep.mubr.bf16.mxu0 %v1607
      %2812 = vmatmul.mubr.bf16.gmra.mrb[0].mxu0 %v1549
      %v2813 = vpop.f32.mrb[0].mxu0
      %v2814 = vadd.f32 0.0, %v2813
      %v2815 = vpop.f32.mrb[0].mxu0
      %v2816 = vpop.f32.mrb[0].mxu0
      %v2817 = vadd.f32 0.0, %v2816
      %v2818 = vpop.f32.mrb[0].mxu0
      %2819 = vmatprep.mubr.bf16.mxu0 %v1615
      %2820 = vmatmul.mubr.bf16.gmra.mrb[0].mxu0 %v1550
      %v2821 = vpop.f32.mrb[0].mxu0
      %v2822 = vadd.f32 0.0, %v2821
      %v2823 = vpop.f32.mrb[0].mxu0
      %v2824 = vpop.f32.mrb[0].mxu0
      %v2825 = vadd.f32 0.0, %v2824
      %v2826 = vpop.f32.mrb[0].mxu0
      %2827 = vmatprep.mubr.bf16.mxu0 %v1623
      %2828 = vmatmul.mubr.bf16.gmra.mrb[0].mxu0 %v1551
      %v2829 = vpop.f32.mrb[0].mxu0
      %v2830 = vadd.f32 0.0, %v2829
      %v2831 = vpop.f32.mrb[0].mxu0
      %v2832 = vpop.f32.mrb[0].mxu0
      %v2833 = vadd.f32 0.0, %v2832
      %v2834 = vpop.f32.mrb[0].mxu0
      %2835 = vmatprep.mubr.bf16.mxu0 %v1631
      %2836 = vmatmul.mubr.bf16.gmra.mrb[0].mxu0 %v1552
      %v2837 = vpop.f32.mrb[0].mxu0
      %v2838 = vadd.f32 0.0, %v2837
      %v2839 = vpop.f32.mrb[0].mxu0
      %v2840 = vpop.f32.mrb[0].mxu0
      %v2841 = vadd.f32 0.0, %v2840
      %v2842 = vpop.f32.mrb[0].mxu0
      %2843 = vmatprep.mubr.bf16.mxu0 %v1639
      %2844 = vmatmul.mubr.bf16.gmra.mrb[0].mxu0 %v1553
      %v2845 = vpop.f32.mrb[0].mxu0
      %v2846 = vadd.f32 0.0, %v2845
      %v2847 = vpop.f32.mrb[0].mxu0
      %v2848 = vpop.f32.mrb[0].mxu0
      %v2849 = vadd.f32 0.0, %v2848
      %v2850 = vpop.f32.mrb[0].mxu0
      %2851 = vmatprep.mubr.bf16.mxu0 %v1647
      %2852 = vmatmul.mubr.bf16.gmra.mrb[0].mxu0 %v1554
      %v2853 = vpop.f32.mrb[0].mxu0
      %v2854 = vadd.f32 0.0, %v2853
      %v2855 = vpop.f32.mrb[0].mxu0
      %v2856 = vpop.f32.mrb[0].mxu0
      %v2857 = vadd.f32 0.0, %v2856
      %v2858 = vpop.f32.mrb[0].mxu0
      %2859 = vmatprep.mubr.bf16.mxu0 %v1655
      %2860 = vmatmul.mubr.bf16.gmra.mrb[0].mxu0 %v1555
      %v2861 = vpop.f32.mrb[0].mxu0
      %v2862 = vadd.f32 0.0, %v2861
      %v2863 = vpop.f32.mrb[0].mxu0
      %v2864 = vpop.f32.mrb[0].mxu0
      %v2865 = vadd.f32 0.0, %v2864
      %v2866 = vpop.f32.mrb[0].mxu0
      %2867 = vmatprep.mubr.bf16.mxu0 %v1663
      %2868 = vmatmul.mubr.bf16.gmra.mrb[0].mxu0 %v1556
      %v2869 = vpop.f32.mrb[0].mxu0
      %v2870 = vadd.f32 0.0, %v2869
      %v2871 = vpop.f32.mrb[0].mxu0
      %v2872 = vpop.f32.mrb[0].mxu0
      %v2873 = vadd.f32 0.0, %v2872
      %v2874 = vpop.f32.mrb[0].mxu0
      %2875 = vmatprep.mubr.bf16.mxu0 %v1671
      %2876 = vmatmul.mubr.bf16.gmra.mrb[0].mxu0 %v1557
      %v2877 = vpop.f32.mrb[0].mxu0
      %v2878 = vadd.f32 0.0, %v2877
      %v2879 = vpop.f32.mrb[0].mxu0
      %v2880 = vpop.f32.mrb[0].mxu0
      %v2881 = vadd.f32 0.0, %v2880
      %v2882 = vpop.f32.mrb[0].mxu0
      %2883 = vmatprep.mubr.bf16.mxu0 %v1679
      %2884 = vmatmul.mubr.bf16.gmra.mrb[0].mxu0 %v1558
      %v2885 = vpop.f32.mrb[0].mxu0
      %v2886 = vadd.f32 0.0, %v2885
      %v2887 = vpop.f32.mrb[0].mxu0
      %v2888 = vpop.f32.mrb[0].mxu0
      %v2889 = vadd.f32 0.0, %v2888
      %v2890 = vpop.f32.mrb[0].mxu0
      %2891 = vmatprep.mubr.bf16.mxu0 %v1687
      %2892 = vmatmul.mubr.bf16.gmra.mrb[0].mxu0 %v1559
      %v2893 = vpop.f32.mrb[0].mxu0
      %v2894 = vadd.f32 0.0, %v2893
      %v2895 = vpop.f32.mrb[0].mxu0
      %v2896 = vpop.f32.mrb[0].mxu0
      %v2897 = vadd.f32 0.0, %v2896
      %v2898 = vpop.f32.mrb[0].mxu0
      %2899 = vmatprep.mubr.bf16.mxu0 %v1695
      %2900 = vmatmul.mubr.bf16.gmra.mrb[0].mxu0 %v1560
      %v2901 = vpop.f32.mrb[0].mxu0
      %v2902 = vadd.f32 0.0, %v2901
      %v2903 = vpop.f32.mrb[0].mxu0
      %v2904 = vpop.f32.mrb[0].mxu0
      %v2905 = vadd.f32 0.0, %v2904
      %v2906 = vpop.f32.mrb[0].mxu0
      %2907 = vmatprep.mubr.bf16.mxu0 %v1703
      %2908 = vmatmul.mubr.bf16.gmra.mrb[0].mxu0 %v1561
      %v2909 = vpop.f32.mrb[0].mxu0
      %v2910 = vadd.f32 0.0, %v2909
      %v2911 = vpop.f32.mrb[0].mxu0
      %v2912 = vpop.f32.mrb[0].mxu0
      %v2913 = vadd.f32 0.0, %v2912
      %v2914 = vpop.f32.mrb[0].mxu0
      %2915 = vmatprep.mubr.bf16.mxu0 %v1711
      %2916 = vmatmul.mubr.bf16.gmra.mrb[0].mxu0 %v1562
      %v2917 = vpop.f32.mrb[0].mxu0
      %v2918 = vadd.f32 0.0, %v2917
      %v2919 = vpop.f32.mrb[0].mxu0
      %v2920 = vpop.f32.mrb[0].mxu0
      %v2921 = vadd.f32 0.0, %v2920
      %v2922 = vpop.f32.mrb[0].mxu0
      %2923 = vmatprep.mubr.bf16.mxu0 %v1719
      %2924 = vmatmul.mubr.bf16.gmra.mrb[0].mxu0 %v1563
      %v2925 = vpop.f32.mrb[0].mxu0
      %v2926 = vadd.f32 0.0, %v2925
      %v2927 = vpop.f32.mrb[0].mxu0
      %v2928 = vpop.f32.mrb[0].mxu0
      %v2929 = vadd.f32 0.0, %v2928
      %v2930 = vpop.f32.mrb[0].mxu0
      %2931 = vmatprep.mubr.bf16.mxu0 %v1727
      %2932 = vmatmul.mubr.bf16.gmra.mrb[0].mxu0 %v1564
      %v2933 = vpop.f32.mrb[0].mxu0
      %v2934 = vadd.f32 0.0, %v2933
      %v2935 = vpop.f32.mrb[0].mxu0
      %v2936 = vpop.f32.mrb[0].mxu0
      %v2937 = vadd.f32 0.0, %v2936
      %v2938 = vpop.f32.mrb[0].mxu0
      %2939 = vmatprep.mubr.bf16.mxu0 %v1735
      %2940 = vmatmul.mubr.bf16.gmra.mrb[0].mxu0 %v1565
      %v2941 = vpop.f32.mrb[0].mxu0
      %v2942 = vadd.f32 0.0, %v2941
      %v2943 = vpop.f32.mrb[0].mxu0
      %v2944 = vpop.f32.mrb[0].mxu0
      %v2945 = vadd.f32 0.0, %v2944
      %v2946 = vpop.f32.mrb[0].mxu0
      %2947 = vdwg.mxu0
      %2948 = vmatprep.subr.bf16.mxu0 0
      %2949 = vmatpush1.bf16.msra.mxu0 %v2643
      %2950 = vmatprep.subr.bf16.mxu0 0
      %2951 = vmatpush1.bf16.msra.mxu0 %v2644
      %2952 = vmatprep.subr.bf16.mxu0 0
      %2953 = vmatpush1.bf16.msra.mxu0 %v2645
      %2954 = vmatprep.subr.bf16.mxu0 0
      %2955 = vmatpush1.bf16.msra.mxu0 %v2646
      %2956 = vmatprep.subr.bf16.mxu0 0
      %2957 = vmatpush1.bf16.msra.mxu0 %v2647
      %2958 = vmatprep.subr.bf16.mxu0 0
      %2959 = vmatpush1.bf16.msra.mxu0 %v2648
      %2960 = vmatprep.subr.bf16.mxu0 0
      %2961 = vmatpush1.bf16.msra.mxu0 %v2649
      %2962 = vmatprep.subr.bf16.mxu0 0
      %2963 = vmatpush1.bf16.msra.mxu0 %v2650
      %2964 = vmatprep.subr.bf16.mxu0 0
      %2965 = vmatpush1.bf16.msra.mxu0 %v2651
      %2966 = vmatprep.subr.bf16.mxu0 0
      %2967 = vmatpush1.bf16.msra.mxu0 %v2652
      %2968 = vmatprep.subr.bf16.mxu0 0
      %2969 = vmatpush1.bf16.msra.mxu0 %v2653
      %2970 = vmatprep.subr.bf16.mxu0 0
      %2971 = vmatpush1.bf16.msra.mxu0 %v2654
      %2972 = vmatprep.subr.bf16.mxu0 0
      %2973 = vmatpush1.bf16.msra.mxu0 %v2655
      %2974 = vmatprep.subr.bf16.mxu0 0
      %2975 = vmatpush1.bf16.msra.mxu0 %v2656
      %2976 = vmatprep.subr.bf16.mxu0 0
      %2977 = vmatpush1.bf16.msra.mxu0 %v2657
      %2978 = vmatprep.subr.bf16.mxu0 0
      %2979 = vmatpush1.bf16.msra.mxu0 %v2658
      %2980 = vmatprep.mubr.bf16.mxu0 %v1825
      %2981 = vmatmul.mubr.bf16.gmra.mrb[0].mxu0 %v1760
      %v2982 = vpop.f32.mrb[0].mxu0
      %v2983 = vadd.f32 %v2806, %v2982
      %v2984 = vpop.f32.mrb[0].mxu0
      %v2985 = vpop.f32.mrb[0].mxu0
      %v2986 = vadd.f32 %v2809, %v2985
      %v2987 = vpop.f32.mrb[0].mxu0
      %2988 = vmatprep.mubr.bf16.mxu0 %v1764
      %2989 = vmatmul.mubr.bf16.gmra.mrb[0].mxu0 %v1762
      %v2990 = vpop.f32.mrb[0].mxu0
      %v2991 = vadd.f32 %v2814, %v2990
      %v2992 = vpop.f32.mrb[0].mxu0
      %v2993 = vpop.f32.mrb[0].mxu0
      %v2994 = vadd.f32 %v2817, %v2993
      %v2995 = vpop.f32.mrb[0].mxu0
      %2996 = vmatprep.mubr.bf16.mxu0 %v1766
      %2997 = vmatmul.mubr.bf16.gmra.mrb[0].mxu0 %v1764
      %v2998 = vpop.f32.mrb[0].mxu0
      %v2999 = vadd.f32 %v2822, %v2998
      %v3000 = vpop.f32.mrb[0].mxu0
      %v3001 = vpop.f32.mrb[0].mxu0
      %v3002 = vadd.f32 %v2825, %v3001
      %v3003 = vpop.f32.mrb[0].mxu0
      %3004 = vmatprep.mubr.bf16.mxu0 %v1768
      %3005 = vmatmul.mubr.bf16.gmra.mrb[0].mxu0 %v1766
      %v3006 = vpop.f32.mrb[0].mxu0
      %v3007 = vadd.f32 %v2830, %v3006
      %v3008 = vpop.f32.mrb[0].mxu0
      %v3009 = vpop.f32.mrb[0].mxu0
      %v3010 = vadd.f32 %v2833, %v3009
      %v3011 = vpop.f32.mrb[0].mxu0
      %3012 = vmatprep.mubr.bf16.mxu0 %v1770
      %3013 = vmatmul.mubr.bf16.gmra.mrb[0].mxu0 %v1768
      %v3014 = vpop.f32.mrb[0].mxu0
      %v3015 = vadd.f32 %v2838, %v3014
      %v3016 = vpop.f32.mrb[0].mxu0
      %v3017 = vpop.f32.mrb[0].mxu0
      %v3018 = vadd.f32 %v2841, %v3017
      %v3019 = vpop.f32.mrb[0].mxu0
      %3020 = vmatprep.mubr.bf16.mxu0 %v1772
      %3021 = vmatmul.mubr.bf16.gmra.mrb[0].mxu0 %v1770
      %v3022 = vpop.f32.mrb[0].mxu0
      %v3023 = vadd.f32 %v2846, %v3022
      %v3024 = vpop.f32.mrb[0].mxu0
      %v3025 = vpop.f32.mrb[0].mxu0
      %v3026 = vadd.f32 %v2849, %v3025
      %v3027 = vpop.f32.mrb[0].mxu0
      %3028 = vmatprep.mubr.bf16.mxu0 %v1774
      %3029 = vmatmul.mubr.bf16.gmra.mrb[0].mxu0 %v1772
      %v3030 = vpop.f32.mrb[0].mxu0
      %v3031 = vadd.f32 %v2854, %v3030
      %v3032 = vpop.f32.mrb[0].mxu0
      %v3033 = vpop.f32.mrb[0].mxu0
      %v3034 = vadd.f32 %v2857, %v3033
      %v3035 = vpop.f32.mrb[0].mxu0
      %3036 = vmatprep.mubr.bf16.mxu0 %v1776
      %3037 = vmatmul.mubr.bf16.gmra.mrb[0].mxu0 %v1774
      %v3038 = vpop.f32.mrb[0].mxu0
      %v3039 = vadd.f32 %v2862, %v3038
      %v3040 = vpop.f32.mrb[0].mxu0
      %v3041 = vpop.f32.mrb[0].mxu0
      %v3042 = vadd.f32 %v2865, %v3041
      %v3043 = vpop.f32.mrb[0].mxu0
      %3044 = vmatprep.mubr.bf16.mxu0 %v1778
      %3045 = vmatmul.mubr.bf16.gmra.mrb[0].mxu0 %v1776
      %v3046 = vpop.f32.mrb[0].mxu0
      %v3047 = vadd.f32 %v2870, %v3046
      %v3048 = vpop.f32.mrb[0].mxu0
      %v3049 = vpop.f32.mrb[0].mxu0
      %v3050 = vadd.f32 %v2873, %v3049
      %v3051 = vpop.f32.mrb[0].mxu0
      %3052 = vmatprep.mubr.bf16.mxu0 %v1780
      %3053 = vmatmul.mubr.bf16.gmra.mrb[0].mxu0 %v1778
      %v3054 = vpop.f32.mrb[0].mxu0
      %v3055 = vadd.f32 %v2878, %v3054
      %v3056 = vpop.f32.mrb[0].mxu0
      %v3057 = vpop.f32.mrb[0].mxu0
      %v3058 = vadd.f32 %v2881, %v3057
      %v3059 = vpop.f32.mrb[0].mxu0
      %3060 = vmatprep.mubr.bf16.mxu0 %v1782
      %3061 = vmatmul.mubr.bf16.gmra.mrb[0].mxu0 %v1780
      %v3062 = vpop.f32.mrb[0].mxu0
      %v3063 = vadd.f32 %v2886, %v3062
      %v3064 = vpop.f32.mrb[0].mxu0
      %v3065 = vpop.f32.mrb[0].mxu0
      %v3066 = vadd.f32 %v2889, %v3065
      %v3067 = vpop.f32.mrb[0].mxu0
      %3068 = vmatprep.mubr.bf16.mxu0 %v1784
      %3069 = vmatmul.mubr.bf16.gmra.mrb[0].mxu0 %v1782
      %v3070 = vpop.f32.mrb[0].mxu0
      %v3071 = vadd.f32 %v2894, %v3070
      %v3072 = vpop.f32.mrb[0].mxu0
      %v3073 = vpop.f32.mrb[0].mxu0
      %v3074 = vadd.f32 %v2897, %v3073
      %v3075 = vpop.f32.mrb[0].mxu0
      %3076 = vmatprep.mubr.bf16.mxu0 %v1786
      %3077 = vmatmul.mubr.bf16.gmra.mrb[0].mxu0 %v1784
      %v3078 = vpop.f32.mrb[0].mxu0
      %v3079 = vadd.f32 %v2902, %v3078
      %v3080 = vpop.f32.mrb[0].mxu0
      %v3081 = vpop.f32.mrb[0].mxu0
      %v3082 = vadd.f32 %v2905, %v3081
      %v3083 = vpop.f32.mrb[0].mxu0
      %3084 = vmatprep.mubr.bf16.mxu0 %v1788
      %3085 = vmatmul.mubr.bf16.gmra.mrb[0].mxu0 %v1786
      %v3086 = vpop.f32.mrb[0].mxu0
      %v3087 = vadd.f32 %v2910, %v3086
      %v3088 = vpop.f32.mrb[0].mxu0
      %v3089 = vpop.f32.mrb[0].mxu0
      %v3090 = vadd.f32 %v2913, %v3089
      %v3091 = vpop.f32.mrb[0].mxu0
      %3092 = vmatprep.mubr.bf16.mxu0 %v1790
      %3093 = vmatmul.mubr.bf16.gmra.mrb[0].mxu0 %v1788
      %v3094 = vpop.f32.mrb[0].mxu0
      %v3095 = vadd.f32 %v2918, %v3094
      %v3096 = vpop.f32.mrb[0].mxu0
      %v3097 = vpop.f32.mrb[0].mxu0
      %v3098 = vadd.f32 %v2921, %v3097
      %v3099 = vpop.f32.mrb[0].mxu0
      %3100 = vmatprep.mubr.bf16.mxu0 %v1792
      %3101 = vmatmul.mubr.bf16.gmra.mrb[0].mxu0 %v1790
      %v3102 = vpop.f32.mrb[0].mxu0
      %v3103 = vadd.f32 %v2926, %v3102
      %v3104 = vpop.f32.mrb[0].mxu0
      %v3105 = vpop.f32.mrb[0].mxu0
      %v3106 = vadd.f32 %v2929, %v3105
      %v3107 = vpop.f32.mrb[0].mxu0
      %3108 = vmatprep.mubr.bf16.mxu0 %v1827
      %3109 = vmatmul.mubr.bf16.gmra.mrb[0].mxu0 %v1792
      %v3110 = vpop.f32.mrb[0].mxu0
      %v3111 = vadd.f32 %v2934, %v3110
      %v3112 = vpop.f32.mrb[0].mxu0
      %v3113 = vpop.f32.mrb[0].mxu0
      %v3114 = vadd.f32 %v2937, %v3113
      %v3115 = vpop.f32.mrb[0].mxu0
      %3116 = vmatprep.mubr.bf16.mxu0 %v1829
      %3117 = vmatmul.mubr.bf16.gmra.mrb[0].mxu0 %v1794
      %v3118 = vpop.f32.mrb[0].mxu0
      %v3119 = vadd.f32 %v2942, %v3118
      %v3120 = vpop.f32.mrb[0].mxu0
      %v3121 = vpop.f32.mrb[0].mxu0
      %v3122 = vadd.f32 %v2945, %v3121
      %v3123 = vpop.f32.mrb[0].mxu0
      %3124 = vdwg.mxu0
      %3125 = vmatprep.subr.bf16.mxu0 0
      %3126 = vmatpush1.bf16.msra.mxu0 %v2659
      %3127 = vmatprep.subr.bf16.mxu0 0
      %3128 = vmatpush1.bf16.msra.mxu0 %v2660
      %3129 = vmatprep.subr.bf16.mxu0 0
      %3130 = vmatpush1.bf16.msra.mxu0 %v2661
      %3131 = vmatprep.subr.bf16.mxu0 0
      %3132 = vmatpush1.bf16.msra.mxu0 %v2662
      %3133 = vmatprep.subr.bf16.mxu0 0
      %3134 = vmatpush1.bf16.msra.mxu0 %v2663
      %3135 = vmatprep.subr.bf16.mxu0 0
      %3136 = vmatpush1.bf16.msra.mxu0 %v2664
      %3137 = vmatprep.subr.bf16.mxu0 0
      %3138 = vmatpush1.bf16.msra.mxu0 %v2665
      %3139 = vmatprep.subr.bf16.mxu0 0
      %3140 = vmatpush1.bf16.msra.mxu0 %v2666
      %3141 = vmatprep.subr.bf16.mxu0 0
      %3142 = vmatpush1.bf16.msra.mxu0 %v2667
      %3143 = vmatprep.subr.bf16.mxu0 0
      %3144 = vmatpush1.bf16.msra.mxu0 %v2668
      %3145 = vmatprep.subr.bf16.mxu0 0
      %3146 = vmatpush1.bf16.msra.mxu0 %v2669
      %3147 = vmatprep.subr.bf16.mxu0 0
      %3148 = vmatpush1.bf16.msra.mxu0 %v2670
      %3149 = vmatprep.subr.bf16.mxu0 0
      %3150 = vmatpush1.bf16.msra.mxu0 %v2671
      %3151 = vmatprep.subr.bf16.mxu0 0
      %3152 = vmatpush1.bf16.msra.mxu0 %v2672
      %3153 = vmatprep.subr.bf16.mxu0 0
      %3154 = vmatpush1.bf16.msra.mxu0 %v2673
      %3155 = vmatprep.subr.bf16.mxu0 0
      %3156 = vmatpush1.bf16.msra.mxu0 %v2674
      %3157 = vmatprep.mubr.bf16.mxu0 %v1951
      %3158 = vmatmul.mubr.bf16.gmra.mrb[0].mxu0 %v1848
      %v3159 = vpop.f32.mrb[0].mxu0
      %v3160 = vadd.f32 %v2983, %v3159
      %v3161 = vpop.f32.mrb[0].mxu0
      %v3162 = vpop.f32.mrb[0].mxu0
      %v3163 = vadd.f32 %v2986, %v3162
      %v3164 = vpop.f32.mrb[0].mxu0
      %3165 = vmatprep.mubr.bf16.mxu0 %v1953
      %3166 = vmatmul.mubr.bf16.gmra.mrb[0].mxu0 %v1852
      %v3167 = vpop.f32.mrb[0].mxu0
      %v3168 = vadd.f32 %v2991, %v3167
      %v3169 = vpop.f32.mrb[0].mxu0
      %v3170 = vpop.f32.mrb[0].mxu0
      %v3171 = vadd.f32 %v2994, %v3170
      %v3172 = vpop.f32.mrb[0].mxu0
      %3173 = vmatprep.mubr.bf16.mxu0 %v1955
      %3174 = vmatmul.mubr.bf16.gmra.mrb[0].mxu0 %v1856
      %v3175 = vpop.f32.mrb[0].mxu0
      %v3176 = vadd.f32 %v2999, %v3175
      %v3177 = vpop.f32.mrb[0].mxu0
      %v3178 = vpop.f32.mrb[0].mxu0
      %v3179 = vadd.f32 %v3002, %v3178
      %v3180 = vpop.f32.mrb[0].mxu0
      %3181 = vmatprep.mubr.bf16.mxu0 %v1957
      %3182 = vmatmul.mubr.bf16.gmra.mrb[0].mxu0 %v1860
      %v3183 = vpop.f32.mrb[0].mxu0
      %v3184 = vadd.f32 %v3007, %v3183
      %v3185 = vpop.f32.mrb[0].mxu0
      %v3186 = vpop.f32.mrb[0].mxu0
      %v3187 = vadd.f32 %v3010, %v3186
      %v3188 = vpop.f32.mrb[0].mxu0
      %3189 = vmatprep.mubr.bf16.mxu0 %v1959
      %3190 = vmatmul.mubr.bf16.gmra.mrb[0].mxu0 %v1864
      %v3191 = vpop.f32.mrb[0].mxu0
      %v3192 = vadd.f32 %v3015, %v3191
      %v3193 = vpop.f32.mrb[0].mxu0
      %v3194 = vpop.f32.mrb[0].mxu0
      %v3195 = vadd.f32 %v3018, %v3194
      %v3196 = vpop.f32.mrb[0].mxu0
      %3197 = vmatprep.mubr.bf16.mxu0 %v1961
      %3198 = vmatmul.mubr.bf16.gmra.mrb[0].mxu0 %v1868
      %v3199 = vpop.f32.mrb[0].mxu0
      %v3200 = vadd.f32 %v3023, %v3199
      %v3201 = vpop.f32.mrb[0].mxu0
      %v3202 = vpop.f32.mrb[0].mxu0
      %v3203 = vadd.f32 %v3026, %v3202
      %v3204 = vpop.f32.mrb[0].mxu0
      %3205 = vmatprep.mubr.bf16.mxu0 %v1963
      %3206 = vmatmul.mubr.bf16.gmra.mrb[0].mxu0 %v1872
      %v3207 = vpop.f32.mrb[0].mxu0
      %v3208 = vadd.f32 %v3031, %v3207
      %v3209 = vpop.f32.mrb[0].mxu0
      %v3210 = vpop.f32.mrb[0].mxu0
      %v3211 = vadd.f32 %v3034, %v3210
      %v3212 = vpop.f32.mrb[0].mxu0
      %3213 = vmatprep.mubr.bf16.mxu0 %v1965
      %3214 = vmatmul.mubr.bf16.gmra.mrb[0].mxu0 %v1876
      %v3215 = vpop.f32.mrb[0].mxu0
      %v3216 = vadd.f32 %v3039, %v3215
      %v3217 = vpop.f32.mrb[0].mxu0
      %v3218 = vpop.f32.mrb[0].mxu0
      %v3219 = vadd.f32 %v3042, %v3218
      %v3220 = vpop.f32.mrb[0].mxu0
      %3221 = vmatprep.mubr.bf16.mxu0 %v1967
      %3222 = vmatmul.mubr.bf16.gmra.mrb[0].mxu0 %v1880
      %v3223 = vpop.f32.mrb[0].mxu0
      %v3224 = vadd.f32 %v3047, %v3223
      %v3225 = vpop.f32.mrb[0].mxu0
      %v3226 = vpop.f32.mrb[0].mxu0
      %v3227 = vadd.f32 %v3050, %v3226
      %v3228 = vpop.f32.mrb[0].mxu0
      %3229 = vmatprep.mubr.bf16.mxu0 %v1969
      %3230 = vmatmul.mubr.bf16.gmra.mrb[0].mxu0 %v1884
      %v3231 = vpop.f32.mrb[0].mxu0
      %v3232 = vadd.f32 %v3055, %v3231
      %v3233 = vpop.f32.mrb[0].mxu0
      %v3234 = vpop.f32.mrb[0].mxu0
      %v3235 = vadd.f32 %v3058, %v3234
      %v3236 = vpop.f32.mrb[0].mxu0
      %3237 = vmatprep.mubr.bf16.mxu0 %v1971
      %3238 = vmatmul.mubr.bf16.gmra.mrb[0].mxu0 %v1888
      %v3239 = vpop.f32.mrb[0].mxu0
      %v3240 = vadd.f32 %v3063, %v3239
      %v3241 = vpop.f32.mrb[0].mxu0
      %v3242 = vpop.f32.mrb[0].mxu0
      %v3243 = vadd.f32 %v3066, %v3242
      %v3244 = vpop.f32.mrb[0].mxu0
      %3245 = vmatprep.mubr.bf16.mxu0 %v1973
      %3246 = vmatmul.mubr.bf16.gmra.mrb[0].mxu0 %v1892
      %v3247 = vpop.f32.mrb[0].mxu0
      %v3248 = vadd.f32 %v3071, %v3247
      %v3249 = vpop.f32.mrb[0].mxu0
      %v3250 = vpop.f32.mrb[0].mxu0
      %v3251 = vadd.f32 %v3074, %v3250
      %v3252 = vpop.f32.mrb[0].mxu0
      %3253 = vmatprep.mubr.bf16.mxu0 %v1975
      %3254 = vmatmul.mubr.bf16.gmra.mrb[0].mxu0 %v1896
      %v3255 = vpop.f32.mrb[0].mxu0
      %v3256 = vadd.f32 %v3079, %v3255
      %v3257 = vpop.f32.mrb[0].mxu0
      %v3258 = vpop.f32.mrb[0].mxu0
      %v3259 = vadd.f32 %v3082, %v3258
      %v3260 = vpop.f32.mrb[0].mxu0
      %3261 = vmatprep.mubr.bf16.mxu0 %v1977
      %3262 = vmatmul.mubr.bf16.gmra.mrb[0].mxu0 %v1900
      %v3263 = vpop.f32.mrb[0].mxu0
      %v3264 = vadd.f32 %v3087, %v3263
      %v3265 = vpop.f32.mrb[0].mxu0
      %v3266 = vpop.f32.mrb[0].mxu0
      %v3267 = vadd.f32 %v3090, %v3266
      %v3268 = vpop.f32.mrb[0].mxu0
      %3269 = vmatprep.mubr.bf16.mxu0 %v1979
      %3270 = vmatmul.mubr.bf16.gmra.mrb[0].mxu0 %v1904
      %v3271 = vpop.f32.mrb[0].mxu0
      %v3272 = vadd.f32 %v3095, %v3271
      %v3273 = vpop.f32.mrb[0].mxu0
      %v3274 = vpop.f32.mrb[0].mxu0
      %v3275 = vadd.f32 %v3098, %v3274
      %v3276 = vpop.f32.mrb[0].mxu0
      %3277 = vmatprep.mubr.bf16.mxu0 %v1981
      %3278 = vmatmul.mubr.bf16.gmra.mrb[0].mxu0 %v1908
      %v3279 = vpop.f32.mrb[0].mxu0
      %v3280 = vadd.f32 %v3103, %v3279
      %v3281 = vpop.f32.mrb[0].mxu0
      %v3282 = vpop.f32.mrb[0].mxu0
      %v3283 = vadd.f32 %v3106, %v3282
      %v3284 = vpop.f32.mrb[0].mxu0
      %3285 = vmatprep.mubr.bf16.mxu0 %v1983
      %3286 = vmatmul.mubr.bf16.gmra.mrb[0].mxu0 %v1917
      %v3287 = vpop.f32.mrb[0].mxu0
      %v3288 = vadd.f32 %v3111, %v3287
      %v3289 = vpop.f32.mrb[0].mxu0
      %v3290 = vpop.f32.mrb[0].mxu0
      %v3291 = vadd.f32 %v3114, %v3290
      %v3292 = vpop.f32.mrb[0].mxu0
      %3293 = vmatprep.mubr.bf16.mxu0 %v1985
      %3294 = vmatmul.mubr.bf16.gmra.mrb[0].mxu0 %v1926
      %v3295 = vpop.f32.mrb[0].mxu0
      %v3296 = vadd.f32 %v3119, %v3295
      %v3297 = vpop.f32.mrb[0].mxu0
      %v3298 = vpop.f32.mrb[0].mxu0
      %v3299 = vadd.f32 %v3122, %v3298
      %v3300 = vpop.f32.mrb[0].mxu0
      %3301 = vdwg.mxu0
      %3302 = vmatprep.subr.bf16.mxu0 0
      %3303 = vmatpush1.bf16.msra.mxu0 %v2675
      %3304 = vmatprep.subr.bf16.mxu0 0
      %3305 = vmatpush1.bf16.msra.mxu0 %v2676
      %3306 = vmatprep.subr.bf16.mxu0 0
      %3307 = vmatpush1.bf16.msra.mxu0 %v2677
      %3308 = vmatprep.subr.bf16.mxu0 0
      %3309 = vmatpush1.bf16.msra.mxu0 %v2678
      %3310 = vmatprep.subr.bf16.mxu0 0
      %3311 = vmatpush1.bf16.msra.mxu0 %v2679
      %3312 = vmatprep.subr.bf16.mxu0 0
      %3313 = vmatpush1.bf16.msra.mxu0 %v2680
      %3314 = vmatprep.subr.bf16.mxu0 0
      %3315 = vmatpush1.bf16.msra.mxu0 %v2681
      %3316 = vmatprep.subr.bf16.mxu0 0
      %3317 = vmatpush1.bf16.msra.mxu0 %v2682
      %3318 = vmatprep.subr.bf16.mxu0 0
      %3319 = vmatpush1.bf16.msra.mxu0 %v2683
      %3320 = vmatprep.subr.bf16.mxu0 0
      %3321 = vmatpush1.bf16.msra.mxu0 %v2684
      %3322 = vmatprep.subr.bf16.mxu0 0
      %3323 = vmatpush1.bf16.msra.mxu0 %v2685
      %3324 = vmatprep.subr.bf16.mxu0 0
      %3325 = vmatpush1.bf16.msra.mxu0 %v2686
      %3326 = vmatprep.subr.bf16.mxu0 0
      %3327 = vmatpush1.bf16.msra.mxu0 %v2687
      %3328 = vmatprep.subr.bf16.mxu0 0
      %3329 = vmatpush1.bf16.msra.mxu0 %v2688
      %3330 = vmatprep.subr.bf16.mxu0 0
      %3331 = vmatpush1.bf16.msra.mxu0 %v2689
      %3332 = vmatprep.subr.bf16.mxu0 0
      %3333 = vmatpush1.bf16.msra.mxu0 %v2690
      %3334 = vmatprep.mubr.bf16.mxu0 %v2039
      %3335 = vmatmul.mubr.bf16.gmra.mrb[0].mxu0 %v2016
      %v3336 = vpop.f32.mrb[0].mxu0
      %v3337 = vadd.f32 %v3160, %v3336
      %v3338 = vpop.f32.mrb[0].mxu0
      %v3339 = vpop.f32.mrb[0].mxu0
      %v3340 = vadd.f32 %v3163, %v3339
      %v3341 = vpop.f32.mrb[0].mxu0
      %3342 = vmatprep.mubr.bf16.mxu0 %v2043
      %3343 = vmatmul.mubr.bf16.gmra.mrb[0].mxu0 %v1955
      %v3344 = vpop.f32.mrb[0].mxu0
      %v3345 = vadd.f32 %v3168, %v3344
      %v3346 = vpop.f32.mrb[0].mxu0
      %v3347 = vpop.f32.mrb[0].mxu0
      %v3348 = vadd.f32 %v3171, %v3347
      %v3349 = vpop.f32.mrb[0].mxu0
      %3350 = vmatprep.mubr.bf16.mxu0 %v2047
      %3351 = vmatmul.mubr.bf16.gmra.mrb[0].mxu0 %v1957
      %v3352 = vpop.f32.mrb[0].mxu0
      %v3353 = vadd.f32 %v3176, %v3352
      %v3354 = vpop.f32.mrb[0].mxu0
      %v3355 = vpop.f32.mrb[0].mxu0
      %v3356 = vadd.f32 %v3179, %v3355
      %v3357 = vpop.f32.mrb[0].mxu0
      %3358 = vmatprep.mubr.bf16.mxu0 %v2051
      %3359 = vmatmul.mubr.bf16.gmra.mrb[0].mxu0 %v1959
      %v3360 = vpop.f32.mrb[0].mxu0
      %v3361 = vadd.f32 %v3184, %v3360
      %v3362 = vpop.f32.mrb[0].mxu0
      %v3363 = vpop.f32.mrb[0].mxu0
      %v3364 = vadd.f32 %v3187, %v3363
      %v3365 = vpop.f32.mrb[0].mxu0
      %3366 = vmatprep.mubr.bf16.mxu0 %v2055
      %3367 = vmatmul.mubr.bf16.gmra.mrb[0].mxu0 %v1961
      %v3368 = vpop.f32.mrb[0].mxu0
      %v3369 = vadd.f32 %v3192, %v3368
      %v3370 = vpop.f32.mrb[0].mxu0
      %v3371 = vpop.f32.mrb[0].mxu0
      %v3372 = vadd.f32 %v3195, %v3371
      %v3373 = vpop.f32.mrb[0].mxu0
      %3374 = vmatprep.mubr.bf16.mxu0 %v2059
      %3375 = vmatmul.mubr.bf16.gmra.mrb[0].mxu0 %v1963
      %v3376 = vpop.f32.mrb[0].mxu0
      %v3377 = vadd.f32 %v3200, %v3376
      %v3378 = vpop.f32.mrb[0].mxu0
      %v3379 = vpop.f32.mrb[0].mxu0
      %v3380 = vadd.f32 %v3203, %v3379
      %v3381 = vpop.f32.mrb[0].mxu0
      %3382 = vmatprep.mubr.bf16.mxu0 %v2063
      %3383 = vmatmul.mubr.bf16.gmra.mrb[0].mxu0 %v1965
      %v3384 = vpop.f32.mrb[0].mxu0
      %v3385 = vadd.f32 %v3208, %v3384
      %v3386 = vpop.f32.mrb[0].mxu0
      %v3387 = vpop.f32.mrb[0].mxu0
      %v3388 = vadd.f32 %v3211, %v3387
      %v3389 = vpop.f32.mrb[0].mxu0
      %3390 = vmatprep.mubr.bf16.mxu0 %v2067
      %3391 = vmatmul.mubr.bf16.gmra.mrb[0].mxu0 %v1967
      %v3392 = vpop.f32.mrb[0].mxu0
      %v3393 = vadd.f32 %v3216, %v3392
      %v3394 = vpop.f32.mrb[0].mxu0
      %v3395 = vpop.f32.mrb[0].mxu0
      %v3396 = vadd.f32 %v3219, %v3395
      %v3397 = vpop.f32.mrb[0].mxu0
      %3398 = vmatprep.mubr.bf16.mxu0 %v2071
      %3399 = vmatmul.mubr.bf16.gmra.mrb[0].mxu0 %v1969
      %v3400 = vpop.f32.mrb[0].mxu0
      %v3401 = vadd.f32 %v3224, %v3400
      %v3402 = vpop.f32.mrb[0].mxu0
      %v3403 = vpop.f32.mrb[0].mxu0
      %v3404 = vadd.f32 %v3227, %v3403
      %v3405 = vpop.f32.mrb[0].mxu0
      %3406 = vmatprep.mubr.bf16.mxu0 %v2075
      %3407 = vmatmul.mubr.bf16.gmra.mrb[0].mxu0 %v1971
      %v3408 = vpop.f32.mrb[0].mxu0
      %v3409 = vadd.f32 %v3232, %v3408
      %v3410 = vpop.f32.mrb[0].mxu0
      %v3411 = vpop.f32.mrb[0].mxu0
      %v3412 = vadd.f32 %v3235, %v3411
      %v3413 = vpop.f32.mrb[0].mxu0
      %3414 = vmatprep.mubr.bf16.mxu0 %v2079
      %3415 = vmatmul.mubr.bf16.gmra.mrb[0].mxu0 %v1973
      %v3416 = vpop.f32.mrb[0].mxu0
      %v3417 = vadd.f32 %v3240, %v3416
      %v3418 = vpop.f32.mrb[0].mxu0
      %v3419 = vpop.f32.mrb[0].mxu0
      %v3420 = vadd.f32 %v3243, %v3419
      %v3421 = vpop.f32.mrb[0].mxu0
      %3422 = vmatprep.mubr.bf16.mxu0 %v2083
      %3423 = vmatmul.mubr.bf16.gmra.mrb[0].mxu0 %v1975
      %v3424 = vpop.f32.mrb[0].mxu0
      %v3425 = vadd.f32 %v3248, %v3424
      %v3426 = vpop.f32.mrb[0].mxu0
      %v3427 = vpop.f32.mrb[0].mxu0
      %v3428 = vadd.f32 %v3251, %v3427
      %v3429 = vpop.f32.mrb[0].mxu0
      %3430 = vmatprep.mubr.bf16.mxu0 %v2087
      %3431 = vmatmul.mubr.bf16.gmra.mrb[0].mxu0 %v1977
      %v3432 = vpop.f32.mrb[0].mxu0
      %v3433 = vadd.f32 %v3256, %v3432
      %v3434 = vpop.f32.mrb[0].mxu0
      %v3435 = vpop.f32.mrb[0].mxu0
      %v3436 = vadd.f32 %v3259, %v3435
      %v3437 = vpop.f32.mrb[0].mxu0
      %3438 = vmatprep.mubr.bf16.mxu0 %v2091
      %3439 = vmatmul.mubr.bf16.gmra.mrb[0].mxu0 %v1979
      %v3440 = vpop.f32.mrb[0].mxu0
      %v3441 = vadd.f32 %v3264, %v3440
      %v3442 = vpop.f32.mrb[0].mxu0
      %v3443 = vpop.f32.mrb[0].mxu0
      %v3444 = vadd.f32 %v3267, %v3443
      %v3445 = vpop.f32.mrb[0].mxu0
      %3446 = vmatprep.mubr.bf16.mxu0 %v2095
      %3447 = vmatmul.mubr.bf16.gmra.mrb[0].mxu0 %v1981
      %v3448 = vpop.f32.mrb[0].mxu0
      %v3449 = vadd.f32 %v3272, %v3448
      %v3450 = vpop.f32.mrb[0].mxu0
      %v3451 = vpop.f32.mrb[0].mxu0
      %v3452 = vadd.f32 %v3275, %v3451
      %v3453 = vpop.f32.mrb[0].mxu0
      %3454 = vmatprep.mubr.bf16.mxu0 %v2099
      %3455 = vmatmul.mubr.bf16.gmra.mrb[0].mxu0 %v1983
      %v3456 = vpop.f32.mrb[0].mxu0
      %v3457 = vadd.f32 %v3280, %v3456
      %v3458 = vpop.f32.mrb[0].mxu0
      %v3459 = vpop.f32.mrb[0].mxu0
      %v3460 = vadd.f32 %v3283, %v3459
      %v3461 = vpop.f32.mrb[0].mxu0
      %3462 = vmatprep.mubr.bf16.mxu0 %v2108
      %3463 = vmatmul.mubr.bf16.gmra.mrb[0].mxu0 %v2018
      %v3464 = vpop.f32.mrb[0].mxu0
      %v3465 = vadd.f32 %v3288, %v3464
      %v3466 = vpop.f32.mrb[0].mxu0
      %v3467 = vpop.f32.mrb[0].mxu0
      %v3468 = vadd.f32 %v3291, %v3467
      %v3469 = vpop.f32.mrb[0].mxu0
      %3470 = vmatprep.mubr.bf16.mxu0 %v2117
      %3471 = vmatmul.mubr.bf16.gmra.mrb[0].mxu0 %v2020
      %v3472 = vpop.f32.mrb[0].mxu0
      %v3473 = vadd.f32 %v3296, %v3472
      %v3474 = vpop.f32.mrb[0].mxu0
      %v3475 = vpop.f32.mrb[0].mxu0
      %v3476 = vadd.f32 %v3299, %v3475
      %v3477 = vpop.f32.mrb[0].mxu0
      %3478 = vdwg.mxu0
      %3479 = vmatprep.subr.bf16.mxu0 0
      %3480 = vmatpush1.bf16.msra.mxu0 %v2691
      %3481 = vmatprep.subr.bf16.mxu0 0
      %3482 = vmatpush1.bf16.msra.mxu0 %v2692
      %3483 = vmatprep.subr.bf16.mxu0 0
      %3484 = vmatpush1.bf16.msra.mxu0 %v2693
      %3485 = vmatprep.subr.bf16.mxu0 0
      %3486 = vmatpush1.bf16.msra.mxu0 %v2694
      %3487 = vmatprep.subr.bf16.mxu0 0
      %3488 = vmatpush1.bf16.msra.mxu0 %v2695
      %3489 = vmatprep.subr.bf16.mxu0 0
      %3490 = vmatpush1.bf16.msra.mxu0 %v2696
      %3491 = vmatprep.subr.bf16.mxu0 0
      %3492 = vmatpush1.bf16.msra.mxu0 %v2697
      %3493 = vmatprep.subr.bf16.mxu0 0
      %3494 = vmatpush1.bf16.msra.mxu0 %v2698
      %3495 = vmatprep.subr.bf16.mxu0 0
      %3496 = vmatpush1.bf16.msra.mxu0 0
      %3497 = vmatprep.subr.bf16.mxu0 0
      %3498 = vmatpush1.bf16.msra.mxu0 0
      %3499 = vmatprep.subr.bf16.mxu0 0
      %3500 = vmatpush1.bf16.msra.mxu0 0
      %3501 = vmatprep.subr.bf16.mxu0 0
      %3502 = vmatpush1.bf16.msra.mxu0 0
      %3503 = vmatprep.subr.bf16.mxu0 0
      %3504 = vmatpush1.bf16.msra.mxu0 0
      %3505 = vmatprep.subr.bf16.mxu0 0
      %3506 = vmatpush1.bf16.msra.mxu0 0
      %3507 = vmatprep.subr.bf16.mxu0 0
      %3508 = vmatpush1.bf16.msra.mxu0 0
      %3509 = vmatprep.subr.bf16.mxu0 0
      %3510 = vmatpush1.bf16.msra.mxu0 0
      %3511 = vmatprep.mubr.bf16.mxu0 0
      %3512 = vmatmul.mubr.bf16.gmra.mrb[0].mxu0 %v2142
      %v3513 = vpop.f32.mrb[0].mxu0
      %v3514 = vadd.f32 %v3337, %v3513
      %v3515 = vpop.f32.mrb[0].mxu0
      %v3516 = vpop.f32.mrb[0].mxu0
      %v3517 = vadd.f32 %v3340, %v3516
      %v3518 = vpop.f32.mrb[0].mxu0
      %3519 = vmatprep.mubr.bf16.mxu0 0
      %3520 = vmatmul.mubr.bf16.gmra.mrb[0].mxu0 %v2144
      %v3521 = vpop.f32.mrb[0].mxu0
      %v3522 = vadd.f32 %v3345, %v3521
      %v3523 = vpop.f32.mrb[0].mxu0
      %v3524 = vpop.f32.mrb[0].mxu0
      %v3525 = vadd.f32 %v3348, %v3524
      %v3526 = vpop.f32.mrb[0].mxu0
      %3527 = vmatprep.mubr.bf16.mxu0 0
      %3528 = vmatmul.mubr.bf16.gmra.mrb[0].mxu0 %v2146
      %v3529 = vpop.f32.mrb[0].mxu0
      %v3530 = vadd.f32 %v3353, %v3529
      %v3531 = vpop.f32.mrb[0].mxu0
      %v3532 = vpop.f32.mrb[0].mxu0
      %v3533 = vadd.f32 %v3356, %v3532
      %v3534 = vpop.f32.mrb[0].mxu0
      %3535 = vmatprep.mubr.bf16.mxu0 0
      %3536 = vmatmul.mubr.bf16.gmra.mrb[0].mxu0 %v2148
      %v3537 = vpop.f32.mrb[0].mxu0
      %v3538 = vadd.f32 %v3361, %v3537
      %v3539 = vpop.f32.mrb[0].mxu0
      %v3540 = vpop.f32.mrb[0].mxu0
      %v3541 = vadd.f32 %v3364, %v3540
      %v3542 = vpop.f32.mrb[0].mxu0
      %3543 = vmatprep.mubr.bf16.mxu0 0
      %3544 = vmatmul.mubr.bf16.gmra.mrb[0].mxu0 %v2150
      %v3545 = vpop.f32.mrb[0].mxu0
      %v3546 = vadd.f32 %v3369, %v3545
      %v3547 = vpop.f32.mrb[0].mxu0
      %v3548 = vpop.f32.mrb[0].mxu0
      %v3549 = vadd.f32 %v3372, %v3548
      %v3550 = vpop.f32.mrb[0].mxu0
      %3551 = vmatprep.mubr.bf16.mxu0 0
      %3552 = vmatmul.mubr.bf16.gmra.mrb[0].mxu0 %v2152
      %v3553 = vpop.f32.mrb[0].mxu0
      %v3554 = vadd.f32 %v3377, %v3553
      %v3555 = vpop.f32.mrb[0].mxu0
      %v3556 = vpop.f32.mrb[0].mxu0
      %v3557 = vadd.f32 %v3380, %v3556
      %v3558 = vpop.f32.mrb[0].mxu0
      %3559 = vmatprep.mubr.bf16.mxu0 0
      %3560 = vmatmul.mubr.bf16.gmra.mrb[0].mxu0 %v2154
      %v3561 = vpop.f32.mrb[0].mxu0
      %v3562 = vadd.f32 %v3385, %v3561
      %v3563 = vpop.f32.mrb[0].mxu0
      %v3564 = vpop.f32.mrb[0].mxu0
      %v3565 = vadd.f32 %v3388, %v3564
      %v3566 = vpop.f32.mrb[0].mxu0
      %3567 = vmatprep.mubr.bf16.mxu0 0
      %3568 = vmatmul.mubr.bf16.gmra.mrb[0].mxu0 %v2156
      %v3569 = vpop.f32.mrb[0].mxu0
      %v3570 = vadd.f32 %v3393, %v3569
      %v3571 = vpop.f32.mrb[0].mxu0
      %v3572 = vpop.f32.mrb[0].mxu0
      %v3573 = vadd.f32 %v3396, %v3572
      %v3574 = vpop.f32.mrb[0].mxu0
      %3575 = vmatprep.mubr.bf16.mxu0 0
      %3576 = vmatmul.mubr.bf16.gmra.mrb[0].mxu0 %v2158
      %v3577 = vpop.f32.mrb[0].mxu0
      %v3578 = vadd.f32 %v3401, %v3577
      %v3579 = vpop.f32.mrb[0].mxu0
      %v3580 = vpop.f32.mrb[0].mxu0
      %v3581 = vadd.f32 %v3404, %v3580
      %v3582 = vpop.f32.mrb[0].mxu0
      %3583 = vmatprep.mubr.bf16.mxu0 0
      %3584 = vmatmul.mubr.bf16.gmra.mrb[0].mxu0 %v2160
      %v3585 = vpop.f32.mrb[0].mxu0
      %v3586 = vadd.f32 %v3409, %v3585
      %v3587 = vpop.f32.mrb[0].mxu0
      %v3588 = vpop.f32.mrb[0].mxu0
      %v3589 = vadd.f32 %v3412, %v3588
      %v3590 = vpop.f32.mrb[0].mxu0
      %3591 = vmatprep.mubr.bf16.mxu0 0
      %3592 = vmatmul.mubr.bf16.gmra.mrb[0].mxu0 %v2162
      %v3593 = vpop.f32.mrb[0].mxu0
      %v3594 = vadd.f32 %v3417, %v3593
      %v3595 = vpop.f32.mrb[0].mxu0
      %v3596 = vpop.f32.mrb[0].mxu0
      %v3597 = vadd.f32 %v3420, %v3596
      %v3598 = vpop.f32.mrb[0].mxu0
      %3599 = vmatprep.mubr.bf16.mxu0 0
      %3600 = vmatmul.mubr.bf16.gmra.mrb[0].mxu0 %v2164
      %v3601 = vpop.f32.mrb[0].mxu0
      %v3602 = vadd.f32 %v3425, %v3601
      %v3603 = vpop.f32.mrb[0].mxu0
      %v3604 = vpop.f32.mrb[0].mxu0
      %v3605 = vadd.f32 %v3428, %v3604
      %v3606 = vpop.f32.mrb[0].mxu0
      %3607 = vmatprep.mubr.bf16.mxu0 0
      %3608 = vmatmul.mubr.bf16.gmra.mrb[0].mxu0 %v2166
      %v3609 = vpop.f32.mrb[0].mxu0
      %v3610 = vadd.f32 %v3433, %v3609
      %v3611 = vpop.f32.mrb[0].mxu0
      %v3612 = vpop.f32.mrb[0].mxu0
      %v3613 = vadd.f32 %v3436, %v3612
      %v3614 = vpop.f32.mrb[0].mxu0
      %3615 = vmatprep.mubr.bf16.mxu0 0
      %3616 = vmatmul.mubr.bf16.gmra.mrb[0].mxu0 %v2168
      %v3617 = vpop.f32.mrb[0].mxu0
      %v3618 = vadd.f32 %v3441, %v3617
      %v3619 = vpop.f32.mrb[0].mxu0
      %v3620 = vpop.f32.mrb[0].mxu0
      %v3621 = vadd.f32 %v3444, %v3620
      %v3622 = vpop.f32.mrb[0].mxu0
      %3623 = vmatprep.mubr.bf16.mxu0 0
      %3624 = vmatmul.mubr.bf16.gmra.mrb[0].mxu0 %v2170
      %v3625 = vpop.f32.mrb[0].mxu0
      %v3626 = vadd.f32 %v3449, %v3625
      %v3627 = vpop.f32.mrb[0].mxu0
      %v3628 = vpop.f32.mrb[0].mxu0
      %v3629 = vadd.f32 %v3452, %v3628
      %v3630 = vpop.f32.mrb[0].mxu0
      %3631 = vmatprep.mubr.bf16.mxu0 0
      %3632 = vmatmul.mubr.bf16.gmra.mrb[0].mxu0 %v2172
      %v3633 = vpop.f32.mrb[0].mxu0
      %v3634 = vadd.f32 %v3457, %v3633
      %v3635 = vpop.f32.mrb[0].mxu0
      %v3636 = vpop.f32.mrb[0].mxu0
      %v3637 = vadd.f32 %v3460, %v3636
      %v3638 = vpop.f32.mrb[0].mxu0
      %3639 = vmatprep.mubr.bf16.mxu0 0
      %3640 = vmatmul.mubr.bf16.gmra.mrb[0].mxu0 %v2174
      %v3641 = vpop.f32.mrb[0].mxu0
      %v3642 = vadd.f32 %v3465, %v3641
      %v3643 = vpop.f32.mrb[0].mxu0
      %v3644 = vpop.f32.mrb[0].mxu0
      %v3645 = vadd.f32 %v3468, %v3644
      %v3646 = vpop.f32.mrb[0].mxu0
      %3647 = vmatprep.mubr.bf16.mxu0 0
      %3648 = vmatmul.mubr.bf16.gmra.mrb[0].mxu0 %v2176
      %v3649 = vpop.f32.mrb[0].mxu0
      %v3650 = vadd.f32 %v3473, %v3649
      %v3651 = vpop.f32.mrb[0].mxu0
      %v3652 = vpop.f32.mrb[0].mxu0
      %v3653 = vadd.f32 %v3476, %v3652
      %v3654 = vpop.f32.mrb[0].mxu0
      %3655 = vdwg.mxu0
      %v3656 = vpack.c.bf16 %v3517, %v3514
      %v3657 = vpack.c.bf16 %v3525, %v3522
      %v3658 = vpack.c.bf16 %v3533, %v3530
      %v3659 = vpack.c.bf16 %v3541, %v3538
      %v3660 = vpack.c.bf16 %v3549, %v3546
      %v3661 = vpack.c.bf16 %v3557, %v3554
      %v3662 = vpack.c.bf16 %v3565, %v3562
      %v3663 = vpack.c.bf16 %v3573, %v3570
      %v3664 = vpack.c.bf16 %v3581, %v3578
      %v3665 = vpack.c.bf16 %v3589, %v3586
      %v3666 = vpack.c.bf16 %v3597, %v3594
      %v3667 = vpack.c.bf16 %v3605, %v3602
      %v3668 = vpack.c.bf16 %v3613, %v3610
      %v3669 = vpack.c.bf16 %v3621, %v3618
      %v3670 = vpack.c.bf16 %v3629, %v3626
      %v3671 = vpack.c.bf16 %v3637, %v3634
      %v3672 = vpack.c.bf16 %v3645, %v3642
      %v3673 = vpack.c.bf16 %v3653, %v3650
      %v3692 = vunpack.c.l.b16 %v3656
      %v3693 = vunpack.c.h.b16 %v3656
      %v3694 = vunpack.c.l.b16 %v3657
      %v3695 = vunpack.c.h.b16 %v3657
      %v3696 = vunpack.c.l.b16 %v3658
      %v3697 = vunpack.c.h.b16 %v3658
      %v3698 = vunpack.c.l.b16 %v3659
      %v3699 = vunpack.c.h.b16 %v3659
      %v3700 = vunpack.c.l.b16 %v3660
      %v3701 = vunpack.c.h.b16 %v3660
      %v3702 = vunpack.c.l.b16 %v3661
      %v3703 = vunpack.c.h.b16 %v3661
      %v3704 = vunpack.c.l.b16 %v3662
      %v3705 = vunpack.c.h.b16 %v3662
      %v3706 = vunpack.c.l.b16 %v3663
      %v3707 = vunpack.c.h.b16 %v3663
      %v3708 = vunpack.c.l.b16 %v3664
      %v3709 = vunpack.c.h.b16 %v3664
      %v3710 = vunpack.c.l.b16 %v3665
      %v3711 = vunpack.c.h.b16 %v3665
      %v3712 = vunpack.c.l.b16 %v3666
      %v3713 = vunpack.c.h.b16 %v3666
      %v3714 = vunpack.c.l.b16 %v3667
      %v3715 = vunpack.c.h.b16 %v3667
      %v3716 = vunpack.c.l.b16 %v3668
      %v3717 = vunpack.c.h.b16 %v3668
      %v3718 = vunpack.c.l.b16 %v3669
      %v3719 = vunpack.c.h.b16 %v3669
      %v3720 = vunpack.c.l.b16 %v3670
      %v3721 = vunpack.c.h.b16 %v3670
      %v3722 = vunpack.c.l.b16 %v3671
      %v3723 = vunpack.c.h.b16 %v3671
      %v3724 = vunpack.c.l.b16 %v3672
      %v3725 = vunpack.c.h.b16 %v3672
      %v3726 = vunpack.c.l.b16 %v3673
      %v3727 = vunpack.c.h.b16 %v3673
      %v3728 = vpack.c.b16 %v3692, %v3692
      %v3729 = vpack.c.b16 %v3693, %v3693
      %v3730 = vpack.c.b16 %v3694, %v3694
      %v3731 = vpack.c.b16 %v3695, %v3695
      %v3732 = vpack.c.b16 %v3696, %v3696
      %v3733 = vpack.c.b16 %v3697, %v3697
      %v3734 = vpack.c.b16 %v3698, %v3698
      %v3735 = vpack.c.b16 %v3699, %v3699
      %v3736 = vpack.c.b16 %v3700, %v3700
      %v3737 = vpack.c.b16 %v3701, %v3701
      %v3738 = vpack.c.b16 %v3702, %v3702
      %v3739 = vpack.c.b16 %v3703, %v3703
      %v3740 = vpack.c.b16 %v3704, %v3704
      %v3741 = vpack.c.b16 %v3705, %v3705
      %v3742 = vpack.c.b16 %v3706, %v3706
      %v3743 = vpack.c.b16 %v3707, %v3707
      %v3744 = vpack.c.b16 %v3708, %v3708
      %v3745 = vpack.c.b16 %v3709, %v3709
      %v3746 = vpack.c.b16 %v3710, %v3710
      %v3747 = vpack.c.b16 %v3711, %v3711
      %v3748 = vpack.c.b16 %v3712, %v3712
      %v3749 = vpack.c.b16 %v3713, %v3713
      %v3750 = vpack.c.b16 %v3714, %v3714
      %v3751 = vpack.c.b16 %v3715, %v3715
      %v3752 = vpack.c.b16 %v3716, %v3716
      %v3753 = vpack.c.b16 %v3717, %v3717
      %v3754 = vpack.c.b16 %v3718, %v3718
      %v3755 = vpack.c.b16 %v3719, %v3719
      %v3756 = vpack.c.b16 %v3720, %v3720
      %v3757 = vpack.c.b16 %v3721, %v3721
      %v3758 = vpack.c.b16 %v3722, %v3722
      %v3759 = vpack.c.b16 %v3723, %v3723
      %v3760 = vpack.c.b16 %v3724, %v3724
      %v3761 = vpack.c.b16 %v3725, %v3725
      %v3762 = vpack.c.b16 %v3726, %v3726
      %v3763 = vpack.c.b16 %v3727, %v3727
      %3800 = vst [vmem:[%s262] sm:$0xf] %v3728
      %3801 = vst [vmem:[%s262 + $0x4] sm:$0xf] %v3729
      %3802 = vst [vmem:[%s262 + $0x8] sm:$0xf] %v3730
      %3803 = vst [vmem:[%s262 + $0xc] sm:$0xf] %v3731
      %3804 = vst [vmem:[%s262 + $0x10] sm:$0xf] %v3732
      %3805 = vst [vmem:[%s262 + $0x14] sm:$0xf] %v3733
      %3806 = vst [vmem:[%s262 + $0x18] sm:$0xf] %v3734
      %3807 = vst [vmem:[%s262 + $0x1c] sm:$0xf] %v3735
      %3808 = vst [vmem:[%s262 + $0x20] sm:$0xf] %v3736
      %3809 = vst [vmem:[%s262 + $0x24] sm:$0xf] %v3737
      %3810 = vst [vmem:[%s262 + $0x28] sm:$0xf] %v3738
      %3811 = vst [vmem:[%s262 + $0x2c] sm:$0xf] %v3739
      %3812 = vst [vmem:[%s262 + $0x30] sm:$0xf] %v3740
      %3813 = vst [vmem:[%s262 + $0x34] sm:$0xf] %v3741
      %3814 = vst [vmem:[%s262 + $0x38] sm:$0xf] %v3742
      %3815 = vst [vmem:[%s262 + $0x3c] sm:$0xf] %v3743
      %3816 = vst [vmem:[%s262 + $0x40] sm:$0xf] %v3744
      %3817 = vst [vmem:[%s262 + $0x44] sm:$0xf] %v3745
      %3818 = vst [vmem:[%s262 + $0x48] sm:$0xf] %v3746
      %3819 = vst [vmem:[%s262 + $0x4c] sm:$0xf] %v3747
      %3820 = vst [vmem:[%s262 + $0x50] sm:$0xf] %v3748
      %3821 = vst [vmem:[%s262 + $0x54] sm:$0xf] %v3749
      %3822 = vst [vmem:[%s262 + $0x58] sm:$0xf] %v3750
      %3823 = vst [vmem:[%s262 + $0x5c] sm:$0xf] %v3751
      %3824 = vst [vmem:[%s262 + $0x60] sm:$0xf] %v3752
      %3825 = vst [vmem:[%s262 + $0x64] sm:$0xf] %v3753
      %3826 = vst [vmem:[%s262 + $0x68] sm:$0xf] %v3754
      %3827 = vst [vmem:[%s262 + $0x6c] sm:$0xf] %v3755
      %3828 = vst [vmem:[%s262 + $0x70] sm:$0xf] %v3756
      %3829 = vst [vmem:[%s262 + $0x74] sm:$0xf] %v3757
      %3830 = vst [vmem:[%s262 + $0x78] sm:$0xf] %v3758
      %3831 = vst [vmem:[%s262 + $0x7c] sm:$0xf] %v3759
      %3832 = vst [vmem:[%s262 + $0x80] sm:$0xf] %v3760
      %3833 = vst [vmem:[%s262 + $0x84] sm:$0xf] %v3761
      %3834 = vst [vmem:[%s262 + $0x88] sm:$0xf] %v3762
      %3835 = vst [vmem:[%s262 + $0x8c] sm:$0xf] %v3763
      %v3836 = vmul.f32 %v3514, %v595
      %v3837 = vmul.f32 %v3517, %v596
      %v3838 = vmul.f32 %v3522, %v597
      %v3839 = vmul.f32 %v3525, %v598
      %v3840 = vmul.f32 %v3530, %v599
      %v3841 = vmul.f32 %v3533, %v600
      %v3842 = vmul.f32 %v3538, %v601
      %v3843 = vmul.f32 %v3541, %v602
      %v3844 = vmul.f32 %v3546, %v603
      %v3845 = vmul.f32 %v3549, %v604
      %v3846 = vmul.f32 %v3554, %v605
      %v3847 = vmul.f32 %v3557, %v606
      %v3848 = vmul.f32 %v3562, %v607
      %v3849 = vmul.f32 %v3565, %v608
      %v3850 = vmul.f32 %v3570, %v609
      %v3851 = vmul.f32 %v3573, %v610
      %v3852 = vmul.f32 %v3578, %v611
      %v3853 = vmul.f32 %v3581, %v612
      %v3854 = vmul.f32 %v3586, %v613
      %v3855 = vmul.f32 %v3589, %v614
      %v3856 = vmul.f32 %v3594, %v615
      %v3857 = vmul.f32 %v3597, %v616
      %v3858 = vmul.f32 %v3602, %v617
      %v3859 = vmul.f32 %v3605, %v618
      %v3860 = vmul.f32 %v3610, %v619
      %v3861 = vmul.f32 %v3613, %v620
      %v3862 = vmul.f32 %v3618, %v621
      %v3863 = vmul.f32 %v3621, %v622
      %v3864 = vmul.f32 %v3626, %v623
      %v3865 = vmul.f32 %v3629, %v624
      %v3866 = vmul.f32 %v3634, %v625
      %v3867 = vmul.f32 %v3637, %v626
      %v3868 = vmul.f32 %v3642, %v627
      %v3869 = vmul.f32 %v3645, %v628
      %v3870 = vmul.f32 %v3650, %v629
      %v3871 = vmul.f32 %v3653, %v630
      %v3872 = vadd.f32 %v3836, %v3837
      %v3873 = vadd.f32 %v3872, %v3838
      %v3874 = vadd.f32 %v3873, %v3839
      %v3875 = vadd.f32 %v3874, %v3840
      %v3876 = vadd.f32 %v3875, %v3841
      %v3877 = vadd.f32 %v3876, %v3842
      %v3878 = vadd.f32 %v3877, %v3843
      %v3879 = vadd.f32 %v3878, %v3844
      %v3880 = vadd.f32 %v3879, %v3845
      %v3881 = vadd.f32 %v3880, %v3846
      %v3882 = vadd.f32 %v3881, %v3847
      %v3883 = vadd.f32 %v3882, %v3848
      %v3884 = vadd.f32 %v3883, %v3849
      %v3885 = vadd.f32 %v3884, %v3850
      %v3886 = vadd.f32 %v3885, %v3851
      %v3887 = vadd.f32 %v3886, %v3852
      %v3888 = vadd.f32 %v3887, %v3853
      %v3889 = vadd.f32 %v3888, %v3854
      %v3890 = vadd.f32 %v3889, %v3855
      %v3891 = vadd.f32 %v3890, %v3856
      %v3892 = vadd.f32 %v3891, %v3857
      %v3893 = vadd.f32 %v3892, %v3858
      %v3894 = vadd.f32 %v3893, %v3859
      %v3895 = vadd.f32 %v3894, %v3860
      %v3896 = vadd.f32 %v3895, %v3861
      %v3897 = vadd.f32 %v3896, %v3862
      %v3898 = vadd.f32 %v3897, %v3863
      %v3899 = vadd.f32 %v3898, %v3864
      %v3900 = vadd.f32 %v3899, %v3865
      %v3901 = vadd.f32 %v3900, %v3866
      %v3902 = vadd.f32 %v3901, %v3867
      %v3903 = vadd.f32 %v3902, %v3868
      %v3904 = vadd.f32 %v3903, %v3869
      %v3905 = vadd.f32 %v3904, %v3870
      %v3906 = vadd.f32 %v3905, %v3871
      %v3907 = vrot.slane %v3906, 4
      %v3908 = vadd.f32 %v3906, %v3907
      %v3909 = vrot.slane %v3908, 2
      %v3910 = vadd.f32 %v3908, %v3909
      %v3911 = vrot.slane %v3910, 1
      %v3912 = vadd.f32 %v3910, %v3911
      %3913 = vst [vmem:[%s265] sm:$0x1] %v3912
      %v3914 = vmul.f32 %v3836, %v3836
      %v3915 = vmul.f32 %v3837, %v3837
      %v3916 = vmul.f32 %v3838, %v3838
      %v3917 = vmul.f32 %v3839, %v3839
      %v3918 = vmul.f32 %v3840, %v3840
      %v3919 = vmul.f32 %v3841, %v3841
      %v3920 = vmul.f32 %v3842, %v3842
      %v3921 = vmul.f32 %v3843, %v3843
      %v3922 = vmul.f32 %v3844, %v3844
      %v3923 = vmul.f32 %v3845, %v3845
      %v3924 = vmul.f32 %v3846, %v3846
      %v3925 = vmul.f32 %v3847, %v3847
      %v3926 = vmul.f32 %v3848, %v3848
      %v3927 = vmul.f32 %v3849, %v3849
      %v3928 = vmul.f32 %v3850, %v3850
      %v3929 = vmul.f32 %v3851, %v3851
      %v3930 = vmul.f32 %v3852, %v3852
      %v3931 = vmul.f32 %v3853, %v3853
      %v3932 = vmul.f32 %v3854, %v3854
      %v3933 = vmul.f32 %v3855, %v3855
      %v3934 = vmul.f32 %v3856, %v3856
      %v3935 = vmul.f32 %v3857, %v3857
      %v3936 = vmul.f32 %v3858, %v3858
      %v3937 = vmul.f32 %v3859, %v3859
      %v3938 = vmul.f32 %v3860, %v3860
      %v3939 = vmul.f32 %v3861, %v3861
      %v3940 = vmul.f32 %v3862, %v3862
      %v3941 = vmul.f32 %v3863, %v3863
      %v3942 = vmul.f32 %v3864, %v3864
      %v3943 = vmul.f32 %v3865, %v3865
      %v3944 = vmul.f32 %v3866, %v3866
      %v3945 = vmul.f32 %v3867, %v3867
      %v3946 = vmul.f32 %v3868, %v3868
      %v3947 = vmul.f32 %v3869, %v3869
      %v3948 = vmul.f32 %v3870, %v3870
      %v3949 = vmul.f32 %v3871, %v3871
      %v3950 = vadd.f32 %v3914, %v3915
      %v3951 = vadd.f32 %v3950, %v3916
      %v3952 = vadd.f32 %v3951, %v3917
      %v3953 = vadd.f32 %v3952, %v3918
      %v3954 = vadd.f32 %v3953, %v3919
      %v3955 = vadd.f32 %v3954, %v3920
      %v3956 = vadd.f32 %v3955, %v3921
      %v3957 = vadd.f32 %v3956, %v3922
      %v3958 = vadd.f32 %v3957, %v3923
      %v3959 = vadd.f32 %v3958, %v3924
      %v3960 = vadd.f32 %v3959, %v3925
      %v3961 = vadd.f32 %v3960, %v3926
      %v3962 = vadd.f32 %v3961, %v3927
      %v3963 = vadd.f32 %v3962, %v3928
      %v3964 = vadd.f32 %v3963, %v3929
      %v3965 = vadd.f32 %v3964, %v3930
      %v3966 = vadd.f32 %v3965, %v3931
      %v3967 = vadd.f32 %v3966, %v3932
      %v3968 = vadd.f32 %v3967, %v3933
      %v3969 = vadd.f32 %v3968, %v3934
      %v3970 = vadd.f32 %v3969, %v3935
      %v3971 = vadd.f32 %v3970, %v3936
      %v3972 = vadd.f32 %v3971, %v3937
      %v3973 = vadd.f32 %v3972, %v3938
      %v3974 = vadd.f32 %v3973, %v3939
      %v3975 = vadd.f32 %v3974, %v3940
      %v3976 = vadd.f32 %v3975, %v3941
      %v3977 = vadd.f32 %v3976, %v3942
      %v3978 = vadd.f32 %v3977, %v3943
      %v3979 = vadd.f32 %v3978, %v3944
      %v3980 = vadd.f32 %v3979, %v3945
      %v3981 = vadd.f32 %v3980, %v3946
      %v3982 = vadd.f32 %v3981, %v3947
      %v3983 = vadd.f32 %v3982, %v3948
      %v3984 = vadd.f32 %v3983, %v3949
      %v3985 = vrot.slane %v3984, 4
      %v3986 = vadd.f32 %v3984, %v3985
      %v3987 = vrot.slane %v3986, 2
      %v3988 = vadd.f32 %v3986, %v3987
      %v3989 = vrot.slane %v3988, 1
      %v3990 = vadd.f32 %v3988, %v3989
      %3991 = vst [vmem:[%s268] sm:$0x1] %v3990
      %p3992 = scmp.lt.s32.totalorder %s18, 1
      %s3993 = scalar_select %p3992, %s18, 1
      %s3994 = smul.addr %s3993, 36
      %s3995 = smul.addr %s3994, 4
      %s3996 = scalar_lea.vmem %s4, %s3995
      %p3997 = scmp.lt.s32.totalorder %s18, 1
      %s3998 = scalar_select %p3997, %s18, 1
      %s3999 = scalar_lea.vmem %s5, %s3998
      %p4000 = scmp.lt.s32.totalorder %s18, 1
      %s4001 = scalar_select %p4000, %s18, 1
      %s4002 = scalar_lea.vmem %s6, %s4001
      // Predicated region
      $region37: #{encoder_block_forward.4} parent=35 // pred_check
        %p4003 = pneg %p125
      $region38: #{encoder_block_forward.4} parent=35 // pred_check_branch
        %4005 = sbr.rel (%p4003) target = $region40
      $region39: #{encoder_block_forward.4} parent=35 // pred_region
        _
      $region40: #{encoder_block_forward.4} parent=35 // pred_fallthru
        _
      // Predicated region
      $region41: #{encoder_block_forward.4} parent=35 // pred_check
        %p4006 = pneg %p151
      $region42: #{encoder_block_forward.4} parent=35 // pred_check_branch
        %4008 = sbr.rel (%p4006) target = $region44
      $region43: #{encoder_block_forward.4} parent=35 // pred_region
        _
      $region44: #{encoder_block_forward.4} parent=35 // pred_fallthru
        _
      // Predicated region
      $region45: #{encoder_block_forward.4} parent=35 // pred_check
        %p4009 = pneg %p177
      $region46: #{encoder_block_forward.4} parent=35 // pred_check_branch
        %4011 = sbr.rel (%p4009) target = $region48
      $region47: #{encoder_block_forward.4} parent=35 // pred_region
        _
      $region48: #{encoder_block_forward.4} parent=35 // pred_fallthru
        _
    $region36: #{encoder_block_forward.4} parent=5 // pred_fallthru
      _
    %p4012 = scmp.le.s32.totalorder 2, %s13
    // Predicated region
    $region49: #{encoder_block_forward.4} parent=5 // pred_check
      %p4013 = pneg %p4012
    $region50: #{encoder_block_forward.4} parent=5 // pred_check_branch
      %4015 = sbr.rel (%p4013) target = $region52
    $region51: #{encoder_block_forward.4} parent=5 // pred_region
      %s4016 = ssub.s32 %s13, 2
      // Predicated region
      $region53: #{encoder_block_forward.4} parent=51 // pred_check
        %p4017 = pneg %p131
      $region54: #{encoder_block_forward.4} parent=51 // pred_check_branch
        %4019 = sbr.rel (%p4017) target = $region56
      $region55: #{encoder_block_forward.4} parent=51 // pred_region
        %p4020 = scmp.lt.s32.totalorder %s19, 1
        %s4021 = scalar_select %p4020, %s19, 1
        %s4022 = smul.addr %s4021, 36
        %s4023 = smul.addr %s4022, 4
        %s4024 = scalar_lea.vmem %s4, %s4023
      $region56: #{encoder_block_forward.4} parent=51 // pred_fallthru
        _
      // Predicated region
      $region57: #{encoder_block_forward.4} parent=51 // pred_check
        %p4025 = pneg %p157
      $region58: #{encoder_block_forward.4} parent=51 // pred_check_branch
        %4027 = sbr.rel (%p4025) target = $region60
      $region59: #{encoder_block_forward.4} parent=51 // pred_region
        %p4028 = scmp.lt.s32.totalorder %s19, 1
        %s4029 = scalar_select %p4028, %s19, 1
        %s4030 = scalar_lea.vmem %s5, %s4029
      $region60: #{encoder_block_forward.4} parent=51 // pred_fallthru
        _
      // Predicated region
      $region61: #{encoder_block_forward.4} parent=51 // pred_check
        %p4031 = pneg %p183
      $region62: #{encoder_block_forward.4} parent=51 // pred_check_branch
        %4033 = sbr.rel (%p4031) target = $region64
      $region63: #{encoder_block_forward.4} parent=51 // pred_region
        %p4034 = scmp.lt.s32.totalorder %s19, 1
        %s4035 = scalar_select %p4034, %s19, 1
        %s4036 = scalar_lea.vmem %s6, %s4035
      $region64: #{encoder_block_forward.4} parent=51 // pred_fallthru
        _
    $region52: #{encoder_block_forward.4} parent=5 // pred_fallthru
      _
  $region6: #{encoder_block_forward.4} parent=0 // loop_footer
    %s17 = sadd.s32 1, %s13
  $region7: #{encoder_block_forward.4} parent=0 // loop_footer_branch
    %12 = sbr.rel target = $region3
  $region8: #{encoder_block_forward.4} parent=0 // loop_exit
    _

</llo_original>
